<compile_context>
chip_gen: v7x
topology: tpu7x:2x2x1
jax: 0.10.0
libtpu: 0.0.40
codegen_flags: <defaults>
</compile_context>

<pallas_src>
import math
import functools

import jax
import jax.numpy as jnp
from jax import lax
from jax.experimental import pallas as pl
from jax.experimental.pallas import tpu as pltpu


def _gelu_tanh(x):
    c = math.sqrt(2.0 / math.pi)
    return 0.5 * x * (1.0 + jnp.tanh(c * (x + 0.044715 * x * x * x)))


def _layernorm(v, g, b, eps=1e-5):
    mu = jnp.mean(v, axis=-1, keepdims=True)
    var = jnp.mean((v - mu) ** 2, axis=-1, keepdims=True)
    return (v - mu) * lax.rsqrt(var + eps) * g + b


def block_kernel(x_ref, neg_ref,
                 g1_ref, b1_ref,
                 wqkv_ref, bqkv_ref, wpr_ref, bpr_ref,
                 g2_ref, b2_ref,
                 wfc_ref, bfc_ref, wp2_ref, bp2_ref,
                 o_ref,
                 att_ref,                       # VMEM scratch (T, C) bf16
                 *, n_head, q_tile):
    x = x_ref[0].astype(jnp.float32)            # (T, C)
    T, C = x.shape
    H = n_head
    hd = C // H

    # ---- ln_1 + fused QKV projection (bf16 MXU operands, f32 accumulate) ---
    # NOTE: 1/sqrt(hd) is already folded into the q columns of w_qkv / b_qkv.
    h = _layernorm(x, g1_ref[...], b1_ref[...])
    qkv = jnp.dot(h.astype(jnp.bfloat16), wqkv_ref[...],
                  preferred_element_type=jnp.float32) + bqkv_ref[...]

    # head-major (H, T, hd) stacks via one reshape + transpose per tensor
    qh = jnp.transpose(qkv[:, 0:C].reshape(T, H, hd), (1, 0, 2)).astype(jnp.bfloat16)
    kh = jnp.transpose(qkv[:, C:2 * C].reshape(T, H, hd), (1, 0, 2)).astype(jnp.bfloat16)
    vh = jnp.transpose(qkv[:, 2 * C:3 * C].reshape(T, H, hd), (1, 0, 2)).astype(jnp.bfloat16)

    neg = neg_ref[...]                          # (q_tile, q_tile) additive diag mask

    # ---- flash-style attention: online softmax over KV tiles, causal skip ---
    n_tiles = T // q_tile
    for qi in range(n_tiles):
        q_blk = qh[:, qi * q_tile:(qi + 1) * q_tile, :]          # (H, Tq, hd)
        m = jnp.full((H, q_tile, 1), -1e30, jnp.float32)
        l = jnp.zeros((H, q_tile, 1), jnp.float32)
        acc = jnp.zeros((H, q_tile, hd), jnp.float32)

        for ki in range(qi + 1):                # tiles above the diagonal are skipped
            k_blk = kh[:, ki * q_tile:(ki + 1) * q_tile, :]      # (H, Tk, hd)
            v_blk = vh[:, ki * q_tile:(ki + 1) * q_tile, :]

            s = jnp.einsum("hqd,hkd->hqk", q_blk, k_blk,
                           preferred_element_type=jnp.float32)   # (H, Tq, Tk)
            if ki == qi:                        # only the diagonal tile is masked
                s = s + neg

            m_new = jnp.maximum(m, jnp.max(s, axis=-1, keepdims=True))
            alpha = jnp.exp(m - m_new)
            p = jnp.exp(s - m_new)
            l = alpha * l + jnp.sum(p, axis=-1, keepdims=True)
            acc = alpha * acc + jnp.einsum("hqk,hkd->hqd",
                                           p.astype(jnp.bfloat16), v_blk,
                                           preferred_element_type=jnp.float32)
            m = m_new

        y = acc * pl.reciprocal(l, approx=True)                  # EUP slot, (H, Tq, hd)
        # merge heads once per tile and do a single lane-dense (Tq, C) store
        y = jnp.transpose(y, (1, 0, 2)).reshape(q_tile, C)
        att_ref[qi * q_tile:(qi + 1) * q_tile, :] = y.astype(jnp.bfloat16)

    # ---- attention output projection + residual 1 ---------------------------
    attn_out = jnp.dot(att_ref[...], wpr_ref[...],
                       preferred_element_type=jnp.float32) + bpr_ref[...]
    x1 = x + attn_out

    # ---- ln_2 + MLP + residual 2 ---------------------------------------------
    h2 = _layernorm(x1, g2_ref[...], b2_ref[...])
    f = jnp.dot(h2.astype(jnp.bfloat16), wfc_ref[...],
                preferred_element_type=jnp.float32) + bfc_ref[...]
    f = _gelu_tanh(f)                            # f32 elementwise (v5e-safe)
    mlp = jnp.dot(f.astype(jnp.bfloat16), wp2_ref[...],
                  preferred_element_type=jnp.float32) + bp2_ref[...]

    o_ref[0] = (x1 + mlp).astype(o_ref.dtype)


def _vmem_limit_bytes(T, C):
    c2 = C * C
    weights = (3 * c2 + c2 + 4 * c2 + 4 * c2) * 2     # bf16 weights, single-buffered
    io = 2 * 2 * T * C * 4                            # x/out blocks, double-buffered
    act = T * (3 * C + 4 * C + 3 * C) * 4             # rough transient activations
    scratch = T * C * 2
    est = int(1.5 * (weights + io + act + scratch)) + (2 << 20)
    return max(32 << 20, min(est, 128 << 20))


def gpt_block(x, params, n_head, attn_tile=None):
    B, T, C = x.shape
    assert C % n_head == 0
    hd = C // n_head
    if attn_tile is None:
        attn_tile = min(256, T)                 # >=256 keeps MXU M/N full on v6e/v7x
    assert T % attn_tile == 0 and attn_tile % 8 == 0

    wdt = jnp.bfloat16
    scale = 1.0 / math.sqrt(hd)
    # fold 1/sqrt(hd) into the q portion of the QKV projection (host-side, once)
    w_qkv = params["w_qkv"].at[:, :C].multiply(scale).astype(wdt)
    b_qkv = params["b_qkv"].at[:, :C].multiply(scale)

    # additive causal mask for the diagonal tile (same for every diagonal tile)
    r = jnp.arange(attn_tile)
    neg = jnp.where(r[:, None] >= r[None, :], 0.0, -1e30).astype(jnp.float32)

    plist = [
        neg,
        params["ln1_g"], params["ln1_b"],
        w_qkv, b_qkv,
        params["w_proj"].astype(wdt), params["b_proj"],
        params["ln2_g"], params["ln2_b"],
        params["w_fc"].astype(wdt), params["b_fc"],
        params["w_fc_proj"].astype(wdt), params["b_fc_proj"],
    ]

    def inv_spec(shape):
        n = len(shape)
        # grid-invariant + single-buffered: never re-fetched, half the resident VMEM
        return pl.BlockSpec(shape, lambda b, _n=n: (0,) * _n,
                            pipeline_mode=pl.Buffered(1))

    in_specs = [pl.BlockSpec((1, T, C), lambda b: (b, 0, 0))]
    in_specs += [inv_spec(p.shape) for p in plist]

    return pl.pallas_call(
        functools.partial(block_kernel, n_head=n_head, q_tile=attn_tile),
        out_shape=jax.ShapeDtypeStruct((B, T, C), x.dtype),
        grid_spec=pltpu.PrefetchScalarGridSpec(
            num_scalar_prefetch=0,
            grid=(B,),
            in_specs=in_specs,
            out_specs=pl.BlockSpec((1, T, C), lambda b: (b, 0, 0)),
            scratch_shapes=[pltpu.VMEM((T, C), jnp.bfloat16)],
        ),
        compiler_params=pltpu.CompilerParams(
            dimension_semantics=("parallel",),
            vmem_limit_bytes=_vmem_limit_bytes(T, C)),
    )(x, *plist)


# ---------------------------- reference (plain JAX, f32) ----------------------------
def gpt_block_ref(x, params, n_head):
    B, T, C = x.shape
    hd = C // n_head
    h = _layernorm(x, params["ln1_g"], params["ln1_b"])
    qkv = h @ params["w_qkv"] + params["b_qkv"]
    q, k, v = jnp.split(qkv, 3, axis=-1)
    q = q.reshape(B, T, n_head, hd).transpose(0, 2, 1, 3)
    k = k.reshape(B, T, n_head, hd).transpose(0, 2, 1, 3)
    v = v.reshape(B, T, n_head, hd).transpose(0, 2, 1, 3)
    s = jnp.einsum("bhtd,bhsd->bhts", q, k) / math.sqrt(hd)
    mask = jnp.tril(jnp.ones((T, T), dtype=bool))
    s = jnp.where(mask, s, -jnp.inf)
    p = jax.nn.softmax(s, axis=-1)
    y = jnp.einsum("bhts,bhsd->bhtd", p, v).transpose(0, 2, 1, 3).reshape(B, T, C)
    x1 = x + (y @ params["w_proj"] + params["b_proj"])
    h2 = _layernorm(x1, params["ln2_g"], params["ln2_b"])
    f = _gelu_tanh(h2 @ params["w_fc"] + params["b_fc"])
    return x1 + (f @ params["w_fc_proj"] + params["b_fc_proj"])


if __name__ == "__main__":
    # small shapes consistent with the module: (B, T, C), n_head | C
    B, T, C, n_head = 2, 64, 128, 4

    key = jax.random.PRNGKey(0)
    ks = jax.random.split(key, 9)
    std = 0.02
    params = {
        "ln1_g": jnp.ones((1, C), jnp.float32),
        "ln1_b": jnp.zeros((1, C), jnp.float32),
        "w_qkv": std * jax.random.normal(ks[0], (C, 3 * C), jnp.float32),
        "b_qkv": std * jax.random.normal(ks[1], (1, 3 * C), jnp.float32),
        "w_proj": std * jax.random.normal(ks[2], (C, C), jnp.float32),
        "b_proj": std * jax.random.normal(ks[3], (1, C), jnp.float32),
        "ln2_g": jnp.ones((1, C), jnp.float32),
        "ln2_b": jnp.zeros((1, C), jnp.float32),
        "w_fc": std * jax.random.normal(ks[4], (C, 4 * C), jnp.float32),
        "b_fc": std * jax.random.normal(ks[5], (1, 4 * C), jnp.float32),
        "w_fc_proj": std * jax.random.normal(ks[6], (4 * C, C), jnp.float32),
        "b_fc_proj": std * jax.random.normal(ks[7], (1, C), jnp.float32),
    }

    x = jax.random.normal(ks[8], (B, T, C), jnp.float32)

    # attn_tile=32 -> 2 query tiles, exercising the flash loop (diagonal + full tile)
    out = gpt_block(x, params, n_head, attn_tile=32)
    out = jax.block_until_ready(out)

    ref = gpt_block_ref(x, params, n_head)
    assert out.shape == (B, T, C)
    # bf16 MXU operands + approx EUP reciprocal -> compare with bf16-level tolerance
    assert jnp.allclose(out, ref, rtol=1e-2, atol=1e-2), "mismatch vs JAX reference"

    print("KERNEL_OK")
</pallas_src>

<mosaic_0001>
module attributes {stable_mosaic.version = 11 : i64} {
  func.func @block_kernel(%arg0: i32, %arg1: memref<1x64x128xf32, #tpu.memory_space<vmem>>, %arg2: memref<32x32xf32, #tpu.memory_space<vmem>>, %arg3: memref<1x128xf32, #tpu.memory_space<vmem>>, %arg4: memref<1x128xf32, #tpu.memory_space<vmem>>, %arg5: memref<128x384xbf16, #tpu.memory_space<vmem>>, %arg6: memref<1x384xf32, #tpu.memory_space<vmem>>, %arg7: memref<128x128xbf16, #tpu.memory_space<vmem>>, %arg8: memref<1x128xf32, #tpu.memory_space<vmem>>, %arg9: memref<1x128xf32, #tpu.memory_space<vmem>>, %arg10: memref<1x128xf32, #tpu.memory_space<vmem>>, %arg11: memref<128x512xbf16, #tpu.memory_space<vmem>>, %arg12: memref<1x512xf32, #tpu.memory_space<vmem>>, %arg13: memref<512x128xbf16, #tpu.memory_space<vmem>>, %arg14: memref<1x128xf32, #tpu.memory_space<vmem>>, %arg15: memref<1x64x128xf32, #tpu.memory_space<vmem>>, %arg16: memref<64x128xbf16, #tpu.memory_space<vmem>>) attributes {dimension_semantics = [#tpu.dimension_semantics<parallel>], iteration_bounds = array<i64: 2>, scalar_prefetch = 0 : i64, scratch_operands = 1 : i64, tpu.core_type = #tpu.core_type<tc>, window_params = [{transform_indices = @transform_0, window_bounds = array<i64: 1, 64, 128>}, {pipeline_mode = #tpu.pipeline_mode<synchronous>, transform_indices = @transform_1, window_bounds = array<i64: 32, 32>}, {pipeline_mode = #tpu.pipeline_mode<synchronous>, transform_indices = @transform_2, window_bounds = array<i64: 1, 128>}, {pipeline_mode = #tpu.pipeline_mode<synchronous>, transform_indices = @transform_3, window_bounds = array<i64: 1, 128>}, {pipeline_mode = #tpu.pipeline_mode<synchronous>, transform_indices = @transform_4, window_bounds = array<i64: 128, 384>}, {pipeline_mode = #tpu.pipeline_mode<synchronous>, transform_indices = @transform_5, window_bounds = array<i64: 1, 384>}, {pipeline_mode = #tpu.pipeline_mode<synchronous>, transform_indices = @transform_6, window_bounds = array<i64: 128, 128>}, {pipeline_mode = #tpu.pipeline_mode<synchronous>, transform_indices = @transform_7, window_bounds = array<i64: 1, 128>}, {pipeline_mode = #tpu.pipeline_mode<synchronous>, transform_indices = @transform_8, window_bounds = array<i64: 1, 128>}, {pipeline_mode = #tpu.pipeline_mode<synchronous>, transform_indices = @transform_9, window_bounds = array<i64: 1, 128>}, {pipeline_mode = #tpu.pipeline_mode<synchronous>, transform_indices = @transform_10, window_bounds = array<i64: 128, 512>}, {pipeline_mode = #tpu.pipeline_mode<synchronous>, transform_indices = @transform_11, window_bounds = array<i64: 1, 512>}, {pipeline_mode = #tpu.pipeline_mode<synchronous>, transform_indices = @transform_12, window_bounds = array<i64: 512, 128>}, {pipeline_mode = #tpu.pipeline_mode<synchronous>, transform_indices = @transform_13, window_bounds = array<i64: 1, 128>}, {transform_indices = @transform_14, window_bounds = array<i64: 1, 64, 128>}]} {
    %c0 = arith.constant 0 : index
    %c0_0 = arith.constant 0 : index
    %c0_1 = arith.constant 0 : index
    %0 = vector.load %arg1[%c0, %c0_0, %c0_1] : memref<1x64x128xf32, #tpu.memory_space<vmem>>, vector<1x64x128xf32>
    %1 = vector.shape_cast %0 : vector<1x64x128xf32> to vector<64x128xf32>
    %c0_2 = arith.constant 0 : index
    %c0_3 = arith.constant 0 : index
    %2 = vector.load %arg3[%c0_2, %c0_3] : memref<1x128xf32, #tpu.memory_space<vmem>>, vector<1x128xf32>
    %c0_4 = arith.constant 0 : index
    %c0_5 = arith.constant 0 : index
    %3 = vector.load %arg4[%c0_4, %c0_5] : memref<1x128xf32, #tpu.memory_space<vmem>>, vector<1x128xf32>
    %cst = arith.constant dense<0.000000e+00> : vector<64xf32>
    %4 = vector.multi_reduction <add>, %1, %cst [1] : vector<64x128xf32> to vector<64xf32>
    %5 = vector.shape_cast %4 : vector<64xf32> to vector<64x1xf32>
    %cst_6 = arith.constant 1.280000e+02 : f32
    %6 = vector.broadcast %cst_6 : f32 to vector<64x1xf32>
    %7 = arith.divf %5, %6 : vector<64x1xf32>
    %8 = vector.broadcast %7 : vector<64x1xf32> to vector<64x128xf32>
    %9 = arith.subf %1, %8 : vector<64x128xf32>
    %10 = arith.mulf %9, %9 : vector<64x128xf32>
    %cst_7 = arith.constant dense<0.000000e+00> : vector<64xf32>
    %11 = vector.multi_reduction <add>, %10, %cst_7 [1] : vector<64x128xf32> to vector<64xf32>
    %12 = vector.shape_cast %11 : vector<64xf32> to vector<64x1xf32>
    %cst_8 = arith.constant 1.280000e+02 : f32
    %13 = vector.broadcast %cst_8 : f32 to vector<64x1xf32>
    %14 = arith.divf %12, %13 : vector<64x1xf32>
    %15 = vector.broadcast %7 : vector<64x1xf32> to vector<64x128xf32>
    %16 = arith.subf %1, %15 : vector<64x128xf32>
    %cst_9 = arith.constant 9.99999974E-6 : f32
    %17 = vector.broadcast %cst_9 : f32 to vector<64x1xf32>
    %18 = arith.addf %14, %17 : vector<64x1xf32>
    %19 = math.rsqrt %18 : vector<64x1xf32>
    %20 = vector.broadcast %19 : vector<64x1xf32> to vector<64x128xf32>
    %21 = arith.mulf %16, %20 : vector<64x128xf32>
    %22 = vector.broadcast %2 : vector<1x128xf32> to vector<64x128xf32>
    %23 = arith.mulf %21, %22 : vector<64x128xf32>
    %24 = vector.broadcast %3 : vector<1x128xf32> to vector<64x128xf32>
    %25 = arith.addf %23, %24 : vector<64x128xf32>
    %26 = arith.truncf %25 : vector<64x128xf32> to vector<64x128xbf16>
    %c0_10 = arith.constant 0 : index
    %c0_11 = arith.constant 0 : index
    %27 = vector.load %arg5[%c0_10, %c0_11] : memref<128x384xbf16, #tpu.memory_space<vmem>>, vector<128x384xbf16>
    %cst_12 = arith.constant dense<0.000000e+00> : vector<64x384xf32>
    %28 = tpu.matmul %26, %27, %cst_12 {dimension_numbers = #tpu.dot_dimension_numbers<[1], [0], [0], [1], [0, 0, 1, 1], [], []>} : vector<64x128xbf16>, vector<128x384xbf16>, vector<64x384xf32> -> vector<64x384xf32>
    %c0_13 = arith.constant 0 : index
    %c0_14 = arith.constant 0 : index
    %29 = vector.load %arg6[%c0_13, %c0_14] : memref<1x384xf32, #tpu.memory_space<vmem>>, vector<1x384xf32>
    %30 = vector.broadcast %29 : vector<1x384xf32> to vector<64x384xf32>
    %31 = arith.addf %28, %30 : vector<64x384xf32>
    %32 = vector.extract_strided_slice %31 {offsets = [0, 0], sizes = [64, 128], strides = [1, 1]} : vector<64x384xf32> to vector<64x128xf32>
    %33 = vector.shape_cast %32 : vector<64x128xf32> to vector<64x4x32xf32>
    %34 = tpu.transpose %33, [1, 0, 2] : vector<64x4x32xf32> -> vector<4x64x32xf32>
    %35 = arith.truncf %34 : vector<4x64x32xf32> to vector<4x64x32xbf16>
    %36 = vector.extract_strided_slice %31 {offsets = [0, 128], sizes = [64, 128], strides = [1, 1]} : vector<64x384xf32> to vector<64x128xf32>
    %37 = vector.shape_cast %36 : vector<64x128xf32> to vector<64x4x32xf32>
    %38 = tpu.transpose %37, [1, 0, 2] : vector<64x4x32xf32> -> vector<4x64x32xf32>
    %39 = arith.truncf %38 : vector<4x64x32xf32> to vector<4x64x32xbf16>
    %40 = vector.extract_strided_slice %31 {offsets = [0, 256], sizes = [64, 128], strides = [1, 1]} : vector<64x384xf32> to vector<64x128xf32>
    %41 = vector.shape_cast %40 : vector<64x128xf32> to vector<64x4x32xf32>
    %42 = tpu.transpose %41, [1, 0, 2] : vector<64x4x32xf32> -> vector<4x64x32xf32>
    %43 = arith.truncf %42 : vector<4x64x32xf32> to vector<4x64x32xbf16>
    %c0_15 = arith.constant 0 : index
    %c0_16 = arith.constant 0 : index
    %44 = vector.load %arg2[%c0_15, %c0_16] : memref<32x32xf32, #tpu.memory_space<vmem>>, vector<32x32xf32>
    %45 = vector.extract_strided_slice %35 {offsets = [0, 0, 0], sizes = [4, 32, 32], strides = [1, 1, 1]} : vector<4x64x32xbf16> to vector<4x32x32xbf16>
    %cst_17 = arith.constant -1.000000e+30 : f32
    %46 = vector.broadcast %cst_17 : f32 to vector<4x32x1xf32>
    %cst_18 = arith.constant 0.000000e+00 : f32
    %47 = vector.broadcast %cst_18 : f32 to vector<4x32x1xf32>
    %cst_19 = arith.constant 0.000000e+00 : f32
    %48 = vector.broadcast %cst_19 : f32 to vector<4x32x32xf32>
    %49 = vector.extract_strided_slice %39 {offsets = [0, 0, 0], sizes = [4, 32, 32], strides = [1, 1, 1]} : vector<4x64x32xbf16> to vector<4x32x32xbf16>
    %50 = vector.extract_strided_slice %43 {offsets = [0, 0, 0], sizes = [4, 32, 32], strides = [1, 1, 1]} : vector<4x64x32xbf16> to vector<4x32x32xbf16>
    "tpu.trace_start"() <{level = 10 : i32, message = "hqd,hkd->hqk"}> : () -> ()
    %cst_20 = arith.constant dense<0.000000e+00> : vector<4x32x32xf32>
    %51 = tpu.matmul %45, %49, %cst_20 {dimension_numbers = #tpu.dot_dimension_numbers<[2], [2], [1], [1], [0, 0, 0, 1, 1, 1], [0], [0]>} : vector<4x32x32xbf16>, vector<4x32x32xbf16>, vector<4x32x32xf32> -> vector<4x32x32xf32>
    "tpu.trace_stop"() : () -> ()
    %52 = vector.shape_cast %44 : vector<32x32xf32> to vector<1x32x32xf32>
    %53 = vector.broadcast %52 : vector<1x32x32xf32> to vector<4x32x32xf32>
    %54 = arith.addf %51, %53 : vector<4x32x32xf32>
    %cst_21 = arith.constant dense<0xFF800000> : vector<4x32xf32>
    %55 = vector.multi_reduction <maximumf>, %54, %cst_21 [2] : vector<4x32x32xf32> to vector<4x32xf32>
    %56 = vector.shape_cast %55 : vector<4x32xf32> to vector<4x32x1xf32>
    %57 = arith.maximumf %46, %56 : vector<4x32x1xf32>
    %58 = arith.subf %46, %57 : vector<4x32x1xf32>
    %59 = math.exp %58 : vector<4x32x1xf32>
    %60 = vector.broadcast %57 : vector<4x32x1xf32> to vector<4x32x32xf32>
    %61 = arith.subf %54, %60 : vector<4x32x32xf32>
    %62 = math.exp %61 : vector<4x32x32xf32>
    %63 = arith.mulf %59, %47 : vector<4x32x1xf32>
    %cst_22 = arith.constant dense<0.000000e+00> : vector<4x32xf32>
    %64 = vector.multi_reduction <add>, %62, %cst_22 [2] : vector<4x32x32xf32> to vector<4x32xf32>
    %65 = vector.shape_cast %64 : vector<4x32xf32> to vector<4x32x1xf32>
    %66 = arith.addf %63, %65 : vector<4x32x1xf32>
    %67 = vector.broadcast %59 : vector<4x32x1xf32> to vector<4x32x32xf32>
    %68 = arith.mulf %67, %48 : vector<4x32x32xf32>
    %69 = arith.truncf %62 : vector<4x32x32xf32> to vector<4x32x32xbf16>
    "tpu.trace_start"() <{level = 10 : i32, message = "hqk,hkd->hqd"}> : () -> ()
    %cst_23 = arith.constant dense<0.000000e+00> : vector<4x32x32xf32>
    %70 = tpu.matmul %69, %50, %cst_23 {dimension_numbers = #tpu.dot_dimension_numbers<[2], [1], [1], [2], [0, 0, 0, 1, 1, 2], [0], [0]>} : vector<4x32x32xbf16>, vector<4x32x32xbf16>, vector<4x32x32xf32> -> vector<4x32x32xf32>
    "tpu.trace_stop"() : () -> ()
    %71 = arith.addf %68, %70 : vector<4x32x32xf32>
    %72 = tpu.reciprocal %66 {approx = true} : vector<4x32x1xf32> -> vector<4x32x1xf32>
    %73 = vector.broadcast %72 : vector<4x32x1xf32> to vector<4x32x32xf32>
    %74 = arith.mulf %71, %73 : vector<4x32x32xf32>
    %75 = tpu.transpose %74, [1, 0, 2] : vector<4x32x32xf32> -> vector<32x4x32xf32>
    %76 = vector.shape_cast %75 : vector<32x4x32xf32> to vector<32x128xf32>
    %77 = arith.truncf %76 : vector<32x128xf32> to vector<32x128xbf16>
    %c0_24 = arith.constant 0 : index
    %c0_25 = arith.constant 0 : index
    %78 = vector.load %arg16[%c0_24, %c0_25] : memref<64x128xbf16, #tpu.memory_space<vmem>>, vector<32x128xbf16>
    tpu.vector_store %arg16[%c0_24, %c0_25], %77 {strides = array<i32>} : memref<64x128xbf16, #tpu.memory_space<vmem>>, vector<32x128xbf16>,
    %79 = vector.extract_strided_slice %35 {offsets = [0, 32, 0], sizes = [4, 32, 32], strides = [1, 1, 1]} : vector<4x64x32xbf16> to vector<4x32x32xbf16>
    %cst_26 = arith.constant -1.000000e+30 : f32
    %80 = vector.broadcast %cst_26 : f32 to vector<4x32x1xf32>
    %cst_27 = arith.constant 0.000000e+00 : f32
    %81 = vector.broadcast %cst_27 : f32 to vector<4x32x1xf32>
    %cst_28 = arith.constant 0.000000e+00 : f32
    %82 = vector.broadcast %cst_28 : f32 to vector<4x32x32xf32>
    %83 = vector.extract_strided_slice %39 {offsets = [0, 0, 0], sizes = [4, 32, 32], strides = [1, 1, 1]} : vector<4x64x32xbf16> to vector<4x32x32xbf16>
    %84 = vector.extract_strided_slice %43 {offsets = [0, 0, 0], sizes = [4, 32, 32], strides = [1, 1, 1]} : vector<4x64x32xbf16> to vector<4x32x32xbf16>
    "tpu.trace_start"() <{level = 10 : i32, message = "hqd,hkd->hqk"}> : () -> ()
    %cst_29 = arith.constant dense<0.000000e+00> : vector<4x32x32xf32>
    %85 = tpu.matmul %79, %83, %cst_29 {dimension_numbers = #tpu.dot_dimension_numbers<[2], [2], [1], [1], [0, 0, 0, 1, 1, 1], [0], [0]>} : vector<4x32x32xbf16>, vector<4x32x32xbf16>, vector<4x32x32xf32> -> vector<4x32x32xf32>
    "tpu.trace_stop"() : () -> ()
    %cst_30 = arith.constant dense<0xFF800000> : vector<4x32xf32>
    %86 = vector.multi_reduction <maximumf>, %85, %cst_30 [2] : vector<4x32x32xf32> to vector<4x32xf32>
    %87 = vector.shape_cast %86 : vector<4x32xf32> to vector<4x32x1xf32>
    %88 = arith.maximumf %80, %87 : vector<4x32x1xf32>
    %89 = arith.subf %80, %88 : vector<4x32x1xf32>
    %90 = math.exp %89 : vector<4x32x1xf32>
    %91 = vector.broadcast %88 : vector<4x32x1xf32> to vector<4x32x32xf32>
    %92 = arith.subf %85, %91 : vector<4x32x32xf32>
    %93 = math.exp %92 : vector<4x32x32xf32>
    %94 = arith.mulf %90, %81 : vector<4x32x1xf32>
    %cst_31 = arith.constant dense<0.000000e+00> : vector<4x32xf32>
    %95 = vector.multi_reduction <add>, %93, %cst_31 [2] : vector<4x32x32xf32> to vector<4x32xf32>
    %96 = vector.shape_cast %95 : vector<4x32xf32> to vector<4x32x1xf32>
    %97 = arith.addf %94, %96 : vector<4x32x1xf32>
    %98 = vector.broadcast %90 : vector<4x32x1xf32> to vector<4x32x32xf32>
    %99 = arith.mulf %98, %82 : vector<4x32x32xf32>
    %100 = arith.truncf %93 : vector<4x32x32xf32> to vector<4x32x32xbf16>
    "tpu.trace_start"() <{level = 10 : i32, message = "hqk,hkd->hqd"}> : () -> ()
    %cst_32 = arith.constant dense<0.000000e+00> : vector<4x32x32xf32>
    %101 = tpu.matmul %100, %84, %cst_32 {dimension_numbers = #tpu.dot_dimension_numbers<[2], [1], [1], [2], [0, 0, 0, 1, 1, 2], [0], [0]>} : vector<4x32x32xbf16>, vector<4x32x32xbf16>, vector<4x32x32xf32> -> vector<4x32x32xf32>
    "tpu.trace_stop"() : () -> ()
    %102 = arith.addf %99, %101 : vector<4x32x32xf32>
    %103 = vector.extract_strided_slice %39 {offsets = [0, 32, 0], sizes = [4, 32, 32], strides = [1, 1, 1]} : vector<4x64x32xbf16> to vector<4x32x32xbf16>
    %104 = vector.extract_strided_slice %43 {offsets = [0, 32, 0], sizes = [4, 32, 32], strides = [1, 1, 1]} : vector<4x64x32xbf16> to vector<4x32x32xbf16>
    "tpu.trace_start"() <{level = 10 : i32, message = "hqd,hkd->hqk"}> : () -> ()
    %cst_33 = arith.constant dense<0.000000e+00> : vector<4x32x32xf32>
    %105 = tpu.matmul %79, %103, %cst_33 {dimension_numbers = #tpu.dot_dimension_numbers<[2], [2], [1], [1], [0, 0, 0, 1, 1, 1], [0], [0]>} : vector<4x32x32xbf16>, vector<4x32x32xbf16>, vector<4x32x32xf32> -> vector<4x32x32xf32>
    "tpu.trace_stop"() : () -> ()
    %106 = vector.shape_cast %44 : vector<32x32xf32> to vector<1x32x32xf32>
    %107 = vector.broadcast %106 : vector<1x32x32xf32> to vector<4x32x32xf32>
    %108 = arith.addf %105, %107 : vector<4x32x32xf32>
    %cst_34 = arith.constant dense<0xFF800000> : vector<4x32xf32>
    %109 = vector.multi_reduction <maximumf>, %108, %cst_34 [2] : vector<4x32x32xf32> to vector<4x32xf32>
    %110 = vector.shape_cast %109 : vector<4x32xf32> to vector<4x32x1xf32>
    %111 = arith.maximumf %88, %110 : vector<4x32x1xf32>
    %112 = arith.subf %88, %111 : vector<4x32x1xf32>
    %113 = math.exp %112 : vector<4x32x1xf32>
    %114 = vector.broadcast %111 : vector<4x32x1xf32> to vector<4x32x32xf32>
    %115 = arith.subf %108, %114 : vector<4x32x32xf32>
    %116 = math.exp %115 : vector<4x32x32xf32>
    %117 = arith.mulf %113, %97 : vector<4x32x1xf32>
    %cst_35 = arith.constant dense<0.000000e+00> : vector<4x32xf32>
    %118 = vector.multi_reduction <add>, %116, %cst_35 [2] : vector<4x32x32xf32> to vector<4x32xf32>
    %119 = vector.shape_cast %118 : vector<4x32xf32> to vector<4x32x1xf32>
    %120 = arith.addf %117, %119 : vector<4x32x1xf32>
    %121 = vector.broadcast %113 : vector<4x32x1xf32> to vector<4x32x32xf32>
    %122 = arith.mulf %121, %102 : vector<4x32x32xf32>
    %123 = arith.truncf %116 : vector<4x32x32xf32> to vector<4x32x32xbf16>
    "tpu.trace_start"() <{level = 10 : i32, message = "hqk,hkd->hqd"}> : () -> ()
    %cst_36 = arith.constant dense<0.000000e+00> : vector<4x32x32xf32>
    %124 = tpu.matmul %123, %104, %cst_36 {dimension_numbers = #tpu.dot_dimension_numbers<[2], [1], [1], [2], [0, 0, 0, 1, 1, 2], [0], [0]>} : vector<4x32x32xbf16>, vector<4x32x32xbf16>, vector<4x32x32xf32> -> vector<4x32x32xf32>
    "tpu.trace_stop"() : () -> ()
    %125 = arith.addf %122, %124 : vector<4x32x32xf32>
    %126 = tpu.reciprocal %120 {approx = true} : vector<4x32x1xf32> -> vector<4x32x1xf32>
    %127 = vector.broadcast %126 : vector<4x32x1xf32> to vector<4x32x32xf32>
    %128 = arith.mulf %125, %127 : vector<4x32x32xf32>
    %129 = tpu.transpose %128, [1, 0, 2] : vector<4x32x32xf32> -> vector<32x4x32xf32>
    %130 = vector.shape_cast %129 : vector<32x4x32xf32> to vector<32x128xf32>
    %131 = arith.truncf %130 : vector<32x128xf32> to vector<32x128xbf16>
    %c32 = arith.constant 32 : index
    %c0_37 = arith.constant 0 : index
    %132 = vector.load %arg16[%c32, %c0_37] : memref<64x128xbf16, #tpu.memory_space<vmem>>, vector<32x128xbf16>
    tpu.vector_store %arg16[%c32, %c0_37], %131 {strides = array<i32>} : memref<64x128xbf16, #tpu.memory_space<vmem>>, vector<32x128xbf16>,
    %c0_38 = arith.constant 0 : index
    %c0_39 = arith.constant 0 : index
    %133 = vector.load %arg16[%c0_38, %c0_39] : memref<64x128xbf16, #tpu.memory_space<vmem>>, vector<64x128xbf16>
    %c0_40 = arith.constant 0 : index
    %c0_41 = arith.constant 0 : index
    %134 = vector.load %arg7[%c0_40, %c0_41] : memref<128x128xbf16, #tpu.memory_space<vmem>>, vector<128x128xbf16>
    %cst_42 = arith.constant dense<0.000000e+00> : vector<64x128xf32>
    %135 = tpu.matmul %133, %134, %cst_42 {dimension_numbers = #tpu.dot_dimension_numbers<[1], [0], [0], [1], [0, 0, 1, 1], [], []>} : vector<64x128xbf16>, vector<128x128xbf16>, vector<64x128xf32> -> vector<64x128xf32>
    %c0_43 = arith.constant 0 : index
    %c0_44 = arith.constant 0 : index
    %136 = vector.load %arg8[%c0_43, %c0_44] : memref<1x128xf32, #tpu.memory_space<vmem>>, vector<1x128xf32>
    %137 = vector.broadcast %136 : vector<1x128xf32> to vector<64x128xf32>
    %138 = arith.addf %135, %137 : vector<64x128xf32>
    %139 = arith.addf %1, %138 : vector<64x128xf32>
    %c0_45 = arith.constant 0 : index
    %c0_46 = arith.constant 0 : index
    %140 = vector.load %arg9[%c0_45, %c0_46] : memref<1x128xf32, #tpu.memory_space<vmem>>, vector<1x128xf32>
    %c0_47 = arith.constant 0 : index
    %c0_48 = arith.constant 0 : index
    %141 = vector.load %arg10[%c0_47, %c0_48] : memref<1x128xf32, #tpu.memory_space<vmem>>, vector<1x128xf32>
    %cst_49 = arith.constant dense<0.000000e+00> : vector<64xf32>
    %142 = vector.multi_reduction <add>, %139, %cst_49 [1] : vector<64x128xf32> to vector<64xf32>
    %143 = vector.shape_cast %142 : vector<64xf32> to vector<64x1xf32>
    %cst_50 = arith.constant 1.280000e+02 : f32
    %144 = vector.broadcast %cst_50 : f32 to vector<64x1xf32>
    %145 = arith.divf %143, %144 : vector<64x1xf32>
    %146 = vector.broadcast %145 : vector<64x1xf32> to vector<64x128xf32>
    %147 = arith.subf %139, %146 : vector<64x128xf32>
    %148 = arith.mulf %147, %147 : vector<64x128xf32>
    %cst_51 = arith.constant dense<0.000000e+00> : vector<64xf32>
    %149 = vector.multi_reduction <add>, %148, %cst_51 [1] : vector<64x128xf32> to vector<64xf32>
    %150 = vector.shape_cast %149 : vector<64xf32> to vector<64x1xf32>
    %cst_52 = arith.constant 1.280000e+02 : f32
    %151 = vector.broadcast %cst_52 : f32 to vector<64x1xf32>
    %152 = arith.divf %150, %151 : vector<64x1xf32>
    %153 = vector.broadcast %145 : vector<64x1xf32> to vector<64x128xf32>
    %154 = arith.subf %139, %153 : vector<64x128xf32>
    %cst_53 = arith.constant 9.99999974E-6 : f32
    %155 = vector.broadcast %cst_53 : f32 to vector<64x1xf32>
    %156 = arith.addf %152, %155 : vector<64x1xf32>
    %157 = math.rsqrt %156 : vector<64x1xf32>
    %158 = vector.broadcast %157 : vector<64x1xf32> to vector<64x128xf32>
    %159 = arith.mulf %154, %158 : vector<64x128xf32>
    %160 = vector.broadcast %140 : vector<1x128xf32> to vector<64x128xf32>
    %161 = arith.mulf %159, %160 : vector<64x128xf32>
    %162 = vector.broadcast %141 : vector<1x128xf32> to vector<64x128xf32>
    %163 = arith.addf %161, %162 : vector<64x128xf32>
    %164 = arith.truncf %163 : vector<64x128xf32> to vector<64x128xbf16>
    %c0_54 = arith.constant 0 : index
    %c0_55 = arith.constant 0 : index
    %165 = vector.load %arg11[%c0_54, %c0_55] : memref<128x512xbf16, #tpu.memory_space<vmem>>, vector<128x512xbf16>
    %cst_56 = arith.constant dense<0.000000e+00> : vector<64x512xf32>
    %166 = tpu.matmul %164, %165, %cst_56 {dimension_numbers = #tpu.dot_dimension_numbers<[1], [0], [0], [1], [0, 0, 1, 1], [], []>} : vector<64x128xbf16>, vector<128x512xbf16>, vector<64x512xf32> -> vector<64x512xf32>
    %c0_57 = arith.constant 0 : index
    %c0_58 = arith.constant 0 : index
    %167 = vector.load %arg12[%c0_57, %c0_58] : memref<1x512xf32, #tpu.memory_space<vmem>>, vector<1x512xf32>
    %168 = vector.broadcast %167 : vector<1x512xf32> to vector<64x512xf32>
    %169 = arith.addf %166, %168 : vector<64x512xf32>
    %cst_59 = arith.constant 5.000000e-01 : f32
    %170 = vector.broadcast %cst_59 : f32 to vector<64x512xf32>
    %171 = arith.mulf %170, %169 : vector<64x512xf32>
    %cst_60 = arith.constant 4.471500e-02 : f32
    %172 = vector.broadcast %cst_60 : f32 to vector<64x512xf32>
    %173 = arith.mulf %172, %169 : vector<64x512xf32>
    %174 = arith.mulf %173, %169 : vector<64x512xf32>
    %175 = arith.mulf %174, %169 : vector<64x512xf32>
    %176 = arith.addf %169, %175 : vector<64x512xf32>
    %cst_61 = arith.constant 0.797884583 : f32
    %177 = vector.broadcast %cst_61 : f32 to vector<64x512xf32>
    %178 = arith.mulf %177, %176 : vector<64x512xf32>
    %179 = math.tanh %178 : vector<64x512xf32>
    %cst_62 = arith.constant 1.000000e+00 : f32
    %180 = vector.broadcast %cst_62 : f32 to vector<64x512xf32>
    %181 = arith.addf %180, %179 : vector<64x512xf32>
    %182 = arith.mulf %171, %181 : vector<64x512xf32>
    %183 = arith.truncf %182 : vector<64x512xf32> to vector<64x512xbf16>
    %c0_63 = arith.constant 0 : index
    %c0_64 = arith.constant 0 : index
    %184 = vector.load %arg13[%c0_63, %c0_64] : memref<512x128xbf16, #tpu.memory_space<vmem>>, vector<512x128xbf16>
    %cst_65 = arith.constant dense<0.000000e+00> : vector<64x128xf32>
    %185 = tpu.matmul %183, %184, %cst_65 {dimension_numbers = #tpu.dot_dimension_numbers<[1], [0], [0], [1], [0, 0, 1, 1], [], []>} : vector<64x512xbf16>, vector<512x128xbf16>, vector<64x128xf32> -> vector<64x128xf32>
    %c0_66 = arith.constant 0 : index
    %c0_67 = arith.constant 0 : index
    %186 = vector.load %arg14[%c0_66, %c0_67] : memref<1x128xf32, #tpu.memory_space<vmem>>, vector<1x128xf32>
    %187 = vector.broadcast %186 : vector<1x128xf32> to vector<64x128xf32>
    %188 = arith.addf %185, %187 : vector<64x128xf32>
    %189 = arith.addf %139, %188 : vector<64x128xf32>
    %c0_68 = arith.constant 0 : index
    %c0_69 = arith.constant 0 : index
    %c0_70 = arith.constant 0 : index
    %190 = vector.load %arg15[%c0_68, %c0_69, %c0_70] : memref<1x64x128xf32, #tpu.memory_space<vmem>>, vector<1x64x128xf32>
    %191 = vector.shape_cast %190 : vector<1x64x128xf32> to vector<64x128xf32>
    %192 = vector.shape_cast %189 : vector<64x128xf32> to vector<1x64x128xf32>
    tpu.vector_store %arg15[%c0_68, %c0_69, %c0_70], %192 {strides = array<i32>} : memref<1x64x128xf32, #tpu.memory_space<vmem>>, vector<1x64x128xf32>,
    return
  }
  func.func @transform_0(%arg0: i32) -> (i32, i32, i32) {
    %c0_i32 = arith.constant 0 : i32
    %c0_i32_0 = arith.constant 0 : i32
    %c0_i32_1 = arith.constant 0 : i32
    return %arg0, %c0_i32, %c0_i32_0 : i32, i32, i32
  }
  func.func @transform_1(%arg0: i32) -> (i32, i32) {
    %c0_i32 = arith.constant 0 : i32
    %c0_i32_0 = arith.constant 0 : i32
    %c0_i32_1 = arith.constant 0 : i32
    return %c0_i32, %c0_i32_0 : i32, i32
  }
  func.func @transform_2(%arg0: i32) -> (i32, i32) {
    %c0_i32 = arith.constant 0 : i32
    %c0_i32_0 = arith.constant 0 : i32
    %c0_i32_1 = arith.constant 0 : i32
    return %c0_i32, %c0_i32_0 : i32, i32
  }
  func.func @transform_3(%arg0: i32) -> (i32, i32) {
    %c0_i32 = arith.constant 0 : i32
    %c0_i32_0 = arith.constant 0 : i32
    %c0_i32_1 = arith.constant 0 : i32
    return %c0_i32, %c0_i32_0 : i32, i32
  }
  func.func @transform_4(%arg0: i32) -> (i32, i32) {
    %c0_i32 = arith.constant 0 : i32
    %c0_i32_0 = arith.constant 0 : i32
    %c0_i32_1 = arith.constant 0 : i32
    return %c0_i32, %c0_i32_0 : i32, i32
  }
  func.func @transform_5(%arg0: i32) -> (i32, i32) {
    %c0_i32 = arith.constant 0 : i32
    %c0_i32_0 = arith.constant 0 : i32
    %c0_i32_1 = arith.constant 0 : i32
    return %c0_i32, %c0_i32_0 : i32, i32
  }
  func.func @transform_6(%arg0: i32) -> (i32, i32) {
    %c0_i32 = arith.constant 0 : i32
    %c0_i32_0 = arith.constant 0 : i32
    %c0_i32_1 = arith.constant 0 : i32
    return %c0_i32, %c0_i32_0 : i32, i32
  }
  func.func @transform_7(%arg0: i32) -> (i32, i32) {
    %c0_i32 = arith.constant 0 : i32
    %c0_i32_0 = arith.constant 0 : i32
    %c0_i32_1 = arith.constant 0 : i32
    return %c0_i32, %c0_i32_0 : i32, i32
  }
  func.func @transform_8(%arg0: i32) -> (i32, i32) {
    %c0_i32 = arith.constant 0 : i32
    %c0_i32_0 = arith.constant 0 : i32
    %c0_i32_1 = arith.constant 0 : i32
    return %c0_i32, %c0_i32_0 : i32, i32
  }
  func.func @transform_9(%arg0: i32) -> (i32, i32) {
    %c0_i32 = arith.constant 0 : i32
    %c0_i32_0 = arith.constant 0 : i32
    %c0_i32_1 = arith.constant 0 : i32
    return %c0_i32, %c0_i32_0 : i32, i32
  }
  func.func @transform_10(%arg0: i32) -> (i32, i32) {
    %c0_i32 = arith.constant 0 : i32
    %c0_i32_0 = arith.constant 0 : i32
    %c0_i32_1 = arith.constant 0 : i32
    return %c0_i32, %c0_i32_0 : i32, i32
  }
  func.func @transform_11(%arg0: i32) -> (i32, i32) {
    %c0_i32 = arith.constant 0 : i32
    %c0_i32_0 = arith.constant 0 : i32
    %c0_i32_1 = arith.constant 0 : i32
    return %c0_i32, %c0_i32_0 : i32, i32
  }
  func.func @transform_12(%arg0: i32) -> (i32, i32) {
    %c0_i32 = arith.constant 0 : i32
    %c0_i32_0 = arith.constant 0 : i32
    %c0_i32_1 = arith.constant 0 : i32
    return %c0_i32, %c0_i32_0 : i32, i32
  }
  func.func @transform_13(%arg0: i32) -> (i32, i32) {
    %c0_i32 = arith.constant 0 : i32
    %c0_i32_0 = arith.constant 0 : i32
    %c0_i32_1 = arith.constant 0 : i32
    return %c0_i32, %c0_i32_0 : i32, i32
  }
  func.func @transform_14(%arg0: i32) -> (i32, i32, i32) {
    %c0_i32 = arith.constant 0 : i32
    %c0_i32_0 = arith.constant 0 : i32
    %c0_i32_1 = arith.constant 0 : i32
    return %arg0, %c0_i32, %c0_i32_0 : i32, i32, i32
  }
}

</mosaic_0001>

<llo_original>
// kernel: tpu_custom_call.1
$region0: #{tpu_custom_call.1}
  #allocation0 [shape = 'u32[]', space=smem, size = 0x4, offset = 0x4, fixed_abs, tag = 'smem constant byte address 0x4 - core index']
  #allocation1 [shape = 'u32[144,128]{1,0:T(1,128)}', space=vmem, size = 0x12000, scoped, tag = 'internal scratch']
  #allocation2 [shape = 'bf16[64,128]{1,0:T(16,128)(2,1)}', space=vmem, size = 0x4000, scoped, tag = 'scratch operand']
  %s0 = inlined_call_operand.hbm [shape: f32[2,64,128], index: 0, kind: input, shape index: {}]
  %s1 = inlined_call_operand.hbm [shape: f32[32,32], index: 1, kind: input, shape index: {}]
  %s2 = inlined_call_operand.hbm [shape: f32[1,128], index: 2, kind: input, shape index: {}]
  %s3 = inlined_call_operand.vmem [shape: f32[1,128], index: 3, kind: input, shape index: {}]
  %s4 = inlined_call_operand.hbm [shape: bf16[128,384], index: 4, kind: input, shape index: {}]
  %s5 = inlined_call_operand.vmem [shape: f32[1,384], index: 5, kind: input, shape index: {}]
  %s6 = inlined_call_operand.hbm [shape: bf16[128,128], index: 6, kind: input, shape index: {}]
  %s7 = inlined_call_operand.vmem [shape: f32[1,128], index: 7, kind: input, shape index: {}]
  %s8 = inlined_call_operand.vmem [shape: f32[1,128], index: 8, kind: input, shape index: {}]
  %s9 = inlined_call_operand.vmem [shape: f32[1,128], index: 9, kind: input, shape index: {}]
  %s10 = inlined_call_operand.hbm [shape: bf16[128,512], index: 10, kind: input, shape index: {}]
  %s11 = inlined_call_operand.vmem [shape: f32[1,512], index: 11, kind: input, shape index: {}]
  %s12 = inlined_call_operand.hbm [shape: bf16[512,128], index: 12, kind: input, shape index: {}]
  %s13 = inlined_call_operand.vmem [shape: f32[1,128], index: 13, kind: input, shape index: {}]
  %s14 = inlined_call_operand.hbm [shape: f32[2,64,128], index: 14, kind: output, shape index: {}]
  %s15 = sld [smem:[#allocation0]]
  $region117: #{tpu_custom_call.1} parent=0
    _
  %s17 = ssub.s32 1, %s15
  %s18 = scalar_select 0, %s17, %s15
  $region1: #{tpu_custom_call.1} parent=0
    #allocation3 [shape = 'u8[65536]{0}', space=vmem, size = 0x10000, scoped, tag = 'input window, operand 0']
    #allocation4 [shape = 's32[2]{0}', space=sflag, size = 0x8, scoped, tag = 'scoped memory for tpu_custom_call.1']
    #allocation5 [shape = 's32[2]{0}', space=sflag, size = 0x8, scoped, tag = 'scoped memory for tpu_custom_call.1']
    #allocation6 [shape = 'u8[16384]{0}', space=vmem, size = 0x4000, scoped, tag = 'input window, operand 1, single buffered']
    #allocation7 [shape = 's32[1]{0}', space=sflag, size = 0x4, scoped, tag = 'scoped memory for tpu_custom_call.1']
    #allocation8 [shape = 'u8[512]{0}', space=vmem, size = 0x400, scoped, tag = 'input window, operand 2, single buffered']
    #allocation9 [shape = 'u8[98304]{0}', space=vmem, size = 0x18000, scoped, tag = 'input window, operand 4, single buffered']
    #allocation10 [shape = 's32[1]{0}', space=sflag, size = 0x4, scoped, tag = 'scoped memory for tpu_custom_call.1']
    #allocation11 [shape = 'u8[32768]{0}', space=vmem, size = 0x8000, scoped, tag = 'input window, operand 6, single buffered']
    #allocation12 [shape = 'u8[131072]{0}', space=vmem, size = 0x20000, scoped, tag = 'input window, operand 10, single buffered']
    #allocation13 [shape = 's32[1]{0}', space=sflag, size = 0x4, scoped, tag = 'scoped memory for tpu_custom_call.1']
    #allocation14 [shape = 'u8[131072]{0}', space=vmem, size = 0x20000, scoped, tag = 'input window, operand 12, single buffered']
    #allocation15 [shape = 'u8[65536]{0}', space=vmem, size = 0x10000, scoped, tag = 'output window, operand 0']
    %19 = vsyncpa [#allocation4], 0
    %s20 = scalar_lea.sflag [#allocation4], 1
    %21 = vsyncpa %s20, 0
    %22 = vsyncpa [#allocation7], 0
    %23 = vsyncpa [#allocation10], 0
    %24 = vsyncpa [#allocation13], 0
    %25 = vsyncpa [#allocation5], 0
    %s26 = scalar_lea.sflag [#allocation5], 1
    %27 = vsyncpa %s26, 0
    loop: start=0, step=1, limit=4
    $region2: #{tpu_custom_call.1} parent=1 // loop_pre_header
      _
    $region3: #{tpu_custom_call.1} parent=1 // loop_header
      %s29 = sphi 0, %s33
      %p30 = scmp.ge.s32.totalorder %s29, 4
      %s39 = sphi 0, %s41
      %s42 = sphi 0, %s39
      %s43 = sphi 0, %s42
      %s59 = sphi 0, %s43
      %s63 = sphi 0, %s63
      %s65 = sphi 0, %s63
      %s66 = sphi 0, %s65
      %s80 = sphi 0, %s66
      %s84 = sphi 0, %s84
      %s86 = sphi 0, %s84
      %s87 = sphi 0, %s86
      %s101 = sphi 0, %s87
      %s105 = sphi 0, %s105
      %s107 = sphi 0, %s105
      %s108 = sphi 0, %s107
      %s122 = sphi 0, %s108
      %s126 = sphi 0, %s126
      %s128 = sphi 0, %s126
      %s129 = sphi 0, %s128
      %s143 = sphi 0, %s129
      %s147 = sphi 0, %s147
      %s149 = sphi 0, %s147
      %s150 = sphi 0, %s149
      %s164 = sphi 0, %s150
      %s168 = sphi 0, %s168
      %s170 = sphi 0, %s168
      %s171 = sphi 0, %s170
      %s185 = sphi 0, %s171
      %s189 = sphi 0, %s189
      %s191 = sphi 0, %s189
      %s192 = sphi 0, %s191
      %s206 = sphi 0, %s192
      %s210 = sphi 0, %s210
      %s212 = sphi 0, %s210
      %s213 = sphi 0, %s212
      %s227 = sphi 0, %s213
      %s231 = sphi 0, %s231
      %s233 = sphi 0, %s231
      %s234 = sphi 0, %s233
      %s248 = sphi 0, %s234
      %s252 = sphi 0, %s252
      %s254 = sphi 0, %s252
      %s255 = sphi 0, %s254
      %s269 = sphi 0, %s255
      %s273 = sphi 0, %s273
      %s275 = sphi 0, %s273
      %s276 = sphi 0, %s275
      %s290 = sphi 0, %s276
      %s294 = sphi 0, %s294
      %s296 = sphi 0, %s294
      %s297 = sphi 0, %s296
      %s311 = sphi 0, %s297
      %s315 = sphi 0, %s315
      %s317 = sphi 0, %s315
      %s318 = sphi 0, %s317
      %s332 = sphi 0, %s318
      %s338 = sphi 0, %s340
      %s341 = sphi 0, %s338
      %s342 = sphi 0, %s341
      %s358 = sphi 0, %s342
    $region4: #{tpu_custom_call.1} parent=1 // loop_header_branch
      %32 = sbr.rel (%p30) target = $region8
    $region5: #{tpu_custom_call.1} parent=1 // loop_body
      %s34 = ssub.s32 %s29, 1
      %s35 = ssub.s32 %s29, 2
      %s36 = sadd.s32 %s29, 1
      %s37 = ssub.s32 %s29, %s36
      %p38 = scmp.eq.s32.totalorder %s37, 0
      %s40 = sadd.s32 %s39, 1
      %s41 = scalar_select %p38, %s39, %s40
      %p44 = pneg %p38
      %p45 = scmp.eq.s32.totalorder %s29, 1
      %p46 = por %p44, %p45
      %p47 = scmp.ne.s32.totalorder %s39, %s42
      %p48 = scmp.eq.s32.totalorder %s29, 0
      %p49 = por %p47, %p48
      %p50 = scmp.ne.s32.totalorder %s39, %s42
      %p51 = scmp.eq.s32.totalorder %s34, 1
      %p52 = por %p50, %p51
      %p53 = scmp.ne.s32.totalorder %s42, %s43
      %p54 = scmp.eq.s32.totalorder %s34, 0
      %p55 = por %p53, %p54
      %p56 = scmp.ne.s32.totalorder %s42, %s43
      %p57 = scmp.eq.s32.totalorder %s35, 1
      %p58 = por %p56, %p57
      %p60 = scmp.ne.s32.totalorder %s43, %s59
      %p61 = scmp.eq.s32.totalorder %s35, 0
      %p62 = por %p60, %p61
      %s64 = sadd.s32 %s63, 1
      %p67 = scmp.eq.s32.totalorder %s29, 1
      %p68 = scmp.ne.s32.totalorder %s63, %s65
      %p69 = scmp.eq.s32.totalorder %s29, 0
      %p70 = por %p68, %p69
      %p71 = scmp.ne.s32.totalorder %s63, %s65
      %p72 = scmp.eq.s32.totalorder %s34, 1
      %p73 = por %p71, %p72
      %p74 = scmp.ne.s32.totalorder %s65, %s66
      %p75 = scmp.eq.s32.totalorder %s34, 0
      %p76 = por %p74, %p75
      %p77 = scmp.ne.s32.totalorder %s65, %s66
      %p78 = scmp.eq.s32.totalorder %s35, 1
      %p79 = por %p77, %p78
      %p81 = scmp.ne.s32.totalorder %s66, %s80
      %p82 = scmp.eq.s32.totalorder %s35, 0
      %p83 = por %p81, %p82
      %s85 = sadd.s32 %s84, 1
      %p88 = scmp.eq.s32.totalorder %s29, 1
      %p89 = scmp.ne.s32.totalorder %s84, %s86
      %p90 = scmp.eq.s32.totalorder %s29, 0
      %p91 = por %p89, %p90
      %p92 = scmp.ne.s32.totalorder %s84, %s86
      %p93 = scmp.eq.s32.totalorder %s34, 1
      %p94 = por %p92, %p93
      %p95 = scmp.ne.s32.totalorder %s86, %s87
      %p96 = scmp.eq.s32.totalorder %s34, 0
      %p97 = por %p95, %p96
      %p98 = scmp.ne.s32.totalorder %s86, %s87
      %p99 = scmp.eq.s32.totalorder %s35, 1
      %p100 = por %p98, %p99
      %p102 = scmp.ne.s32.totalorder %s87, %s101
      %p103 = scmp.eq.s32.totalorder %s35, 0
      %p104 = por %p102, %p103
      %s106 = sadd.s32 %s105, 1
      %p109 = scmp.eq.s32.totalorder %s29, 1
      %p110 = scmp.ne.s32.totalorder %s105, %s107
      %p111 = scmp.eq.s32.totalorder %s29, 0
      %p112 = por %p110, %p111
      %p113 = scmp.ne.s32.totalorder %s105, %s107
      %p114 = scmp.eq.s32.totalorder %s34, 1
      %p115 = por %p113, %p114
      %p116 = scmp.ne.s32.totalorder %s107, %s108
      %p117 = scmp.eq.s32.totalorder %s34, 0
      %p118 = por %p116, %p117
      %p119 = scmp.ne.s32.totalorder %s107, %s108
      %p120 = scmp.eq.s32.totalorder %s35, 1
      %p121 = por %p119, %p120
      %p123 = scmp.ne.s32.totalorder %s108, %s122
      %p124 = scmp.eq.s32.totalorder %s35, 0
      %p125 = por %p123, %p124
      %s127 = sadd.s32 %s126, 1
      %p130 = scmp.eq.s32.totalorder %s29, 1
      %p131 = scmp.ne.s32.totalorder %s126, %s128
      %p132 = scmp.eq.s32.totalorder %s29, 0
      %p133 = por %p131, %p132
      %p134 = scmp.ne.s32.totalorder %s126, %s128
      %p135 = scmp.eq.s32.totalorder %s34, 1
      %p136 = por %p134, %p135
      %p137 = scmp.ne.s32.totalorder %s128, %s129
      %p138 = scmp.eq.s32.totalorder %s34, 0
      %p139 = por %p137, %p138
      %p140 = scmp.ne.s32.totalorder %s128, %s129
      %p141 = scmp.eq.s32.totalorder %s35, 1
      %p142 = por %p140, %p141
      %p144 = scmp.ne.s32.totalorder %s129, %s143
      %p145 = scmp.eq.s32.totalorder %s35, 0
      %p146 = por %p144, %p145
      %s148 = sadd.s32 %s147, 1
      %p151 = scmp.eq.s32.totalorder %s29, 1
      %p152 = scmp.ne.s32.totalorder %s147, %s149
      %p153 = scmp.eq.s32.totalorder %s29, 0
      %p154 = por %p152, %p153
      %p155 = scmp.ne.s32.totalorder %s147, %s149
      %p156 = scmp.eq.s32.totalorder %s34, 1
      %p157 = por %p155, %p156
      %p158 = scmp.ne.s32.totalorder %s149, %s150
      %p159 = scmp.eq.s32.totalorder %s34, 0
      %p160 = por %p158, %p159
      %p161 = scmp.ne.s32.totalorder %s149, %s150
      %p162 = scmp.eq.s32.totalorder %s35, 1
      %p163 = por %p161, %p162
      %p165 = scmp.ne.s32.totalorder %s150, %s164
      %p166 = scmp.eq.s32.totalorder %s35, 0
      %p167 = por %p165, %p166
      %s169 = sadd.s32 %s168, 1
      %p172 = scmp.eq.s32.totalorder %s29, 1
      %p173 = scmp.ne.s32.totalorder %s168, %s170
      %p174 = scmp.eq.s32.totalorder %s29, 0
      %p175 = por %p173, %p174
      %p176 = scmp.ne.s32.totalorder %s168, %s170
      %p177 = scmp.eq.s32.totalorder %s34, 1
      %p178 = por %p176, %p177
      %p179 = scmp.ne.s32.totalorder %s170, %s171
      %p180 = scmp.eq.s32.totalorder %s34, 0
      %p181 = por %p179, %p180
      %p182 = scmp.ne.s32.totalorder %s170, %s171
      %p183 = scmp.eq.s32.totalorder %s35, 1
      %p184 = por %p182, %p183
      %p186 = scmp.ne.s32.totalorder %s171, %s185
      %p187 = scmp.eq.s32.totalorder %s35, 0
      %p188 = por %p186, %p187
      %s190 = sadd.s32 %s189, 1
      %p193 = scmp.eq.s32.totalorder %s29, 1
      %p194 = scmp.ne.s32.totalorder %s189, %s191
      %p195 = scmp.eq.s32.totalorder %s29, 0
      %p196 = por %p194, %p195
      %p197 = scmp.ne.s32.totalorder %s189, %s191
      %p198 = scmp.eq.s32.totalorder %s34, 1
      %p199 = por %p197, %p198
      %p200 = scmp.ne.s32.totalorder %s191, %s192
      %p201 = scmp.eq.s32.totalorder %s34, 0
      %p202 = por %p200, %p201
      %p203 = scmp.ne.s32.totalorder %s191, %s192
      %p204 = scmp.eq.s32.totalorder %s35, 1
      %p205 = por %p203, %p204
      %p207 = scmp.ne.s32.totalorder %s192, %s206
      %p208 = scmp.eq.s32.totalorder %s35, 0
      %p209 = por %p207, %p208
      %s211 = sadd.s32 %s210, 1
      %p214 = scmp.eq.s32.totalorder %s29, 1
      %p215 = scmp.ne.s32.totalorder %s210, %s212
      %p216 = scmp.eq.s32.totalorder %s29, 0
      %p217 = por %p215, %p216
      %p218 = scmp.ne.s32.totalorder %s210, %s212
      %p219 = scmp.eq.s32.totalorder %s34, 1
      %p220 = por %p218, %p219
      %p221 = scmp.ne.s32.totalorder %s212, %s213
      %p222 = scmp.eq.s32.totalorder %s34, 0
      %p223 = por %p221, %p222
      %p224 = scmp.ne.s32.totalorder %s212, %s213
      %p225 = scmp.eq.s32.totalorder %s35, 1
      %p226 = por %p224, %p225
      %p228 = scmp.ne.s32.totalorder %s213, %s227
      %p229 = scmp.eq.s32.totalorder %s35, 0
      %p230 = por %p228, %p229
      %s232 = sadd.s32 %s231, 1
      %p235 = scmp.eq.s32.totalorder %s29, 1
      %p236 = scmp.ne.s32.totalorder %s231, %s233
      %p237 = scmp.eq.s32.totalorder %s29, 0
      %p238 = por %p236, %p237
      %p239 = scmp.ne.s32.totalorder %s231, %s233
      %p240 = scmp.eq.s32.totalorder %s34, 1
      %p241 = por %p239, %p240
      %p242 = scmp.ne.s32.totalorder %s233, %s234
      %p243 = scmp.eq.s32.totalorder %s34, 0
      %p244 = por %p242, %p243
      %p245 = scmp.ne.s32.totalorder %s233, %s234
      %p246 = scmp.eq.s32.totalorder %s35, 1
      %p247 = por %p245, %p246
      %p249 = scmp.ne.s32.totalorder %s234, %s248
      %p250 = scmp.eq.s32.totalorder %s35, 0
      %p251 = por %p249, %p250
      %s253 = sadd.s32 %s252, 1
      %p256 = scmp.eq.s32.totalorder %s29, 1
      %p257 = scmp.ne.s32.totalorder %s252, %s254
      %p258 = scmp.eq.s32.totalorder %s29, 0
      %p259 = por %p257, %p258
      %p260 = scmp.ne.s32.totalorder %s252, %s254
      %p261 = scmp.eq.s32.totalorder %s34, 1
      %p262 = por %p260, %p261
      %p263 = scmp.ne.s32.totalorder %s254, %s255
      %p264 = scmp.eq.s32.totalorder %s34, 0
      %p265 = por %p263, %p264
      %p266 = scmp.ne.s32.totalorder %s254, %s255
      %p267 = scmp.eq.s32.totalorder %s35, 1
      %p268 = por %p266, %p267
      %p270 = scmp.ne.s32.totalorder %s255, %s269
      %p271 = scmp.eq.s32.totalorder %s35, 0
      %p272 = por %p270, %p271
      %s274 = sadd.s32 %s273, 1
      %p277 = scmp.eq.s32.totalorder %s29, 1
      %p278 = scmp.ne.s32.totalorder %s273, %s275
      %p279 = scmp.eq.s32.totalorder %s29, 0
      %p280 = por %p278, %p279
      %p281 = scmp.ne.s32.totalorder %s273, %s275
      %p282 = scmp.eq.s32.totalorder %s34, 1
      %p283 = por %p281, %p282
      %p284 = scmp.ne.s32.totalorder %s275, %s276
      %p285 = scmp.eq.s32.totalorder %s34, 0
      %p286 = por %p284, %p285
      %p287 = scmp.ne.s32.totalorder %s275, %s276
      %p288 = scmp.eq.s32.totalorder %s35, 1
      %p289 = por %p287, %p288
      %p291 = scmp.ne.s32.totalorder %s276, %s290
      %p292 = scmp.eq.s32.totalorder %s35, 0
      %p293 = por %p291, %p292
      %s295 = sadd.s32 %s294, 1
      %p298 = scmp.eq.s32.totalorder %s29, 1
      %p299 = scmp.ne.s32.totalorder %s294, %s296
      %p300 = scmp.eq.s32.totalorder %s29, 0
      %p301 = por %p299, %p300
      %p302 = scmp.ne.s32.totalorder %s294, %s296
      %p303 = scmp.eq.s32.totalorder %s34, 1
      %p304 = por %p302, %p303
      %p305 = scmp.ne.s32.totalorder %s296, %s297
      %p306 = scmp.eq.s32.totalorder %s34, 0
      %p307 = por %p305, %p306
      %p308 = scmp.ne.s32.totalorder %s296, %s297
      %p309 = scmp.eq.s32.totalorder %s35, 1
      %p310 = por %p308, %p309
      %p312 = scmp.ne.s32.totalorder %s297, %s311
      %p313 = scmp.eq.s32.totalorder %s35, 0
      %p314 = por %p312, %p313
      %s316 = sadd.s32 %s315, 1
      %p319 = scmp.eq.s32.totalorder %s29, 1
      %p320 = scmp.ne.s32.totalorder %s315, %s317
      %p321 = scmp.eq.s32.totalorder %s29, 0
      %p322 = por %p320, %p321
      %p323 = scmp.ne.s32.totalorder %s315, %s317
      %p324 = scmp.eq.s32.totalorder %s34, 1
      %p325 = por %p323, %p324
      %p326 = scmp.ne.s32.totalorder %s317, %s318
      %p327 = scmp.eq.s32.totalorder %s34, 0
      %p328 = por %p326, %p327
      %p329 = scmp.ne.s32.totalorder %s317, %s318
      %p330 = scmp.eq.s32.totalorder %s35, 1
      %p331 = por %p329, %p330
      %p333 = scmp.ne.s32.totalorder %s318, %s332
      %p334 = scmp.eq.s32.totalorder %s35, 0
      %p335 = por %p333, %p334
      %s336 = ssub.s32 %s29, %s36
      %p337 = scmp.eq.s32.totalorder %s336, 0
      %s339 = sadd.s32 %s338, 1
      %s340 = scalar_select %p337, %s338, %s339
      %p343 = pneg %p337
      %p344 = scmp.eq.s32.totalorder %s29, 1
      %p345 = por %p343, %p344
      %p346 = scmp.ne.s32.totalorder %s338, %s341
      %p347 = scmp.eq.s32.totalorder %s29, 0
      %p348 = por %p346, %p347
      %p349 = scmp.ne.s32.totalorder %s338, %s341
      %p350 = scmp.eq.s32.totalorder %s34, 1
      %p351 = por %p349, %p350
      %p352 = scmp.ne.s32.totalorder %s341, %s342
      %p353 = scmp.eq.s32.totalorder %s34, 0
      %p354 = por %p352, %p353
      %p355 = scmp.ne.s32.totalorder %s341, %s342
      %p356 = scmp.eq.s32.totalorder %s35, 1
      %p357 = por %p355, %p356
      %p359 = scmp.ne.s32.totalorder %s342, %s358
      %p360 = scmp.eq.s32.totalorder %s35, 0
      %p361 = por %p359, %p360
      %p362 = scmp.le.s32.totalorder 1, %s29
      %p363 = scmp.lt.s32.totalorder %s29, 3
      %p364 = pnand %p362, %p363
      %p365 = pneg %p364
      // Predicated region
      $region9: #{tpu_custom_call.1} parent=5 // pred_check
        _
      $region10: #{tpu_custom_call.1} parent=5 // pred_check_branch
        %367 = sbr.rel (%p364) target = $region12
      $region11: #{tpu_custom_call.1} parent=5 // pred_region
        %s368 = ssub.s32 %s29, 1
        // Predicated region
        $region13: #{tpu_custom_call.1} parent=11 // pred_check
          %p369 = pneg %p76
        $region14: #{tpu_custom_call.1} parent=11 // pred_check_branch
          %371 = sbr.rel (%p369) target = $region16
        $region15: #{tpu_custom_call.1} parent=11 // pred_region
          %s373 = ssub.s32 512, 512
          %374 = vsyncadd [#allocation7], %s373
          %s375 = sshll.u32 [#allocation6], 4
          %s376 = int_to_ptr.vmem [resolvable:$true] %s375
          %381 = dma.hbm_to_vmem [thread:$0]  %s1, 512, %s376, [#allocation7], 128, 128, 8
        $region16: #{tpu_custom_call.1} parent=11 // pred_fallthru
          _
        // Predicated region
        $region17: #{tpu_custom_call.1} parent=11 // pred_check
          %p382 = pneg %p97
        $region18: #{tpu_custom_call.1} parent=11 // pred_check_branch
          %384 = sbr.rel (%p382) target = $region20
        $region19: #{tpu_custom_call.1} parent=11 // pred_region
          %s386 = ssub.s32 16, 16
          %387 = vsyncadd [#allocation7], %s386
          %s389 = sshll.u32 [#allocation8], 4
          %s390 = int_to_ptr.vmem [resolvable:$true] %s389
          %392 = dma.hbm_to_vmem [thread:$0]  %s2, 16, %s390, [#allocation7]
        $region20: #{tpu_custom_call.1} parent=11 // pred_fallthru
          _
        // Predicated region
        $region21: #{tpu_custom_call.1} parent=11 // pred_check
          %p393 = pneg %p118
        $region22: #{tpu_custom_call.1} parent=11 // pred_check_branch
          %395 = sbr.rel (%p393) target = $region24
        $region23: #{tpu_custom_call.1} parent=11 // pred_region
          _
        $region24: #{tpu_custom_call.1} parent=11 // pred_fallthru
          _
        // Predicated region
        $region25: #{tpu_custom_call.1} parent=11 // pred_check
          %p396 = pneg %p139
        $region26: #{tpu_custom_call.1} parent=11 // pred_check_branch
          %398 = sbr.rel (%p396) target = $region28
        $region27: #{tpu_custom_call.1} parent=11 // pred_region
          %s400 = ssub.s32 3072, 3072
          %401 = vsyncadd [#allocation10], %s400
          %s402 = sshll.u32 [#allocation9], 4
          %s403 = int_to_ptr.vmem [resolvable:$true] %s402
          %408 = dma.hbm_to_vmem [thread:$0]  %s4, 3072, %s403, [#allocation10], 192, 192, 12
        $region28: #{tpu_custom_call.1} parent=11 // pred_fallthru
          _
        // Predicated region
        $region29: #{tpu_custom_call.1} parent=11 // pred_check
          %p409 = pneg %p160
        $region30: #{tpu_custom_call.1} parent=11 // pred_check_branch
          %411 = sbr.rel (%p409) target = $region32
        $region31: #{tpu_custom_call.1} parent=11 // pred_region
          _
        $region32: #{tpu_custom_call.1} parent=11 // pred_fallthru
          _
        // Predicated region
        $region33: #{tpu_custom_call.1} parent=11 // pred_check
          %p412 = pneg %p181
        $region34: #{tpu_custom_call.1} parent=11 // pred_check_branch
          %414 = sbr.rel (%p412) target = $region36
        $region35: #{tpu_custom_call.1} parent=11 // pred_region
          %s416 = ssub.s32 1024, 1024
          %417 = vsyncadd [#allocation10], %s416
          %s418 = sshll.u32 [#allocation11], 4
          %s419 = int_to_ptr.vmem [resolvable:$true] %s418
          %424 = dma.hbm_to_vmem [thread:$0]  %s6, 1024, %s419, [#allocation10], 64, 64, 4
        $region36: #{tpu_custom_call.1} parent=11 // pred_fallthru
          _
        // Predicated region
        $region37: #{tpu_custom_call.1} parent=11 // pred_check
          %p425 = pneg %p202
        $region38: #{tpu_custom_call.1} parent=11 // pred_check_branch
          %427 = sbr.rel (%p425) target = $region40
        $region39: #{tpu_custom_call.1} parent=11 // pred_region
          _
        $region40: #{tpu_custom_call.1} parent=11 // pred_fallthru
          _
        // Predicated region
        $region41: #{tpu_custom_call.1} parent=11 // pred_check
          %p428 = pneg %p223
        $region42: #{tpu_custom_call.1} parent=11 // pred_check_branch
          %430 = sbr.rel (%p428) target = $region44
        $region43: #{tpu_custom_call.1} parent=11 // pred_region
          _
        $region44: #{tpu_custom_call.1} parent=11 // pred_fallthru
          _
        // Predicated region
        $region45: #{tpu_custom_call.1} parent=11 // pred_check
          %p431 = pneg %p244
        $region46: #{tpu_custom_call.1} parent=11 // pred_check_branch
          %433 = sbr.rel (%p431) target = $region48
        $region47: #{tpu_custom_call.1} parent=11 // pred_region
          _
        $region48: #{tpu_custom_call.1} parent=11 // pred_fallthru
          _
        // Predicated region
        $region49: #{tpu_custom_call.1} parent=11 // pred_check
          %p434 = pneg %p265
        $region50: #{tpu_custom_call.1} parent=11 // pred_check_branch
          %436 = sbr.rel (%p434) target = $region52
        $region51: #{tpu_custom_call.1} parent=11 // pred_region
          %s438 = ssub.s32 4096, 4096
          %439 = vsyncadd [#allocation13], %s438
          %s440 = sshll.u32 [#allocation12], 4
          %s441 = int_to_ptr.vmem [resolvable:$true] %s440
          %446 = dma.hbm_to_vmem [thread:$0]  %s10, 4096, %s441, [#allocation13], 256, 256, 16
        $region52: #{tpu_custom_call.1} parent=11 // pred_fallthru
          _
        // Predicated region
        $region53: #{tpu_custom_call.1} parent=11 // pred_check
          %p447 = pneg %p286
        $region54: #{tpu_custom_call.1} parent=11 // pred_check_branch
          %449 = sbr.rel (%p447) target = $region56
        $region55: #{tpu_custom_call.1} parent=11 // pred_region
          _
        $region56: #{tpu_custom_call.1} parent=11 // pred_fallthru
          _
        // Predicated region
        $region57: #{tpu_custom_call.1} parent=11 // pred_check
          %p450 = pneg %p307
        $region58: #{tpu_custom_call.1} parent=11 // pred_check_branch
          %452 = sbr.rel (%p450) target = $region60
        $region59: #{tpu_custom_call.1} parent=11 // pred_region
          %s454 = ssub.s32 4096, 4096
          %455 = vsyncadd [#allocation13], %s454
          %s456 = sshll.u32 [#allocation14], 4
          %s457 = int_to_ptr.vmem [resolvable:$true] %s456
          %462 = dma.hbm_to_vmem [thread:$0]  %s12, 4096, %s457, [#allocation13], 64, 64, 4
        $region60: #{tpu_custom_call.1} parent=11 // pred_fallthru
          _
        // Predicated region
        $region61: #{tpu_custom_call.1} parent=11 // pred_check
          %p463 = pneg %p328
        $region62: #{tpu_custom_call.1} parent=11 // pred_check_branch
          %465 = sbr.rel (%p463) target = $region64
        $region63: #{tpu_custom_call.1} parent=11 // pred_region
          _
        $region64: #{tpu_custom_call.1} parent=11 // pred_fallthru
          _
      $region12: #{tpu_custom_call.1} parent=5 // pred_fallthru
        _
      %p466 = scmp.lt.s32.totalorder %s29, 2
      // Predicated region
      $region65: #{tpu_custom_call.1} parent=5 // pred_check
        %p467 = pneg %p466
      $region66: #{tpu_custom_call.1} parent=5 // pred_check_branch
        %469 = sbr.rel (%p467) target = $region68
      $region67: #{tpu_custom_call.1} parent=5 // pred_region
        // Predicated region
        $region69: #{tpu_custom_call.1} parent=67 // pred_check
          %p470 = pneg %p49
        $region70: #{tpu_custom_call.1} parent=67 // pred_check_branch
          %472 = sbr.rel (%p470) target = $region72
        $region71: #{tpu_custom_call.1} parent=67 // pred_region
          %s473 = sand.u32 %s39, 1
          %s474 = scalar_lea.sflag [#allocation4], %s473
          %s475 = sand.u32 %s39, 1
          %s476 = smul.addr %s475, 64
          %s477 = scalar_lea.vmem [#allocation3], %s476
          %s479 = ssub.s32 1024, 1024
          %480 = vsyncadd %s474, %s479
          %s481 = smul.addr %s29, 8
          %s482 = smul.addr %s481, 128
          %s483 = scalar_lea.hbm %s0, %s482
          %s484 = sshll.u32 %s477, 4
          %s485 = int_to_ptr.vmem [resolvable:$true] %s484
          %490 = dma.hbm_to_vmem [thread:$0]  %s483, 1024, %s485, %s474, 128, 128, 8
        $region72: #{tpu_custom_call.1} parent=67 // pred_fallthru
          _
      $region68: #{tpu_custom_call.1} parent=5 // pred_fallthru
        _
      %p491 = scmp.le.s32.totalorder 1, %s29
      %p492 = scmp.lt.s32.totalorder %s29, 3
      %p493 = pnand %p491, %p492
      %p494 = pneg %p493
      // Predicated region
      $region73: #{tpu_custom_call.1} parent=5 // pred_check
        _
      $region74: #{tpu_custom_call.1} parent=5 // pred_check_branch
        %496 = sbr.rel (%p493) target = $region76
      $region75: #{tpu_custom_call.1} parent=5 // pred_region
        %s497 = ssub.s32 %s29, 1
        %s498 = sand.u32 %s42, 1
        %s499 = scalar_lea.sflag [#allocation4], %s498
        %s500 = sand.u32 %s42, 1
        %s501 = smul.addr %s500, 64
        %s502 = scalar_lea.vmem [#allocation3], %s501
        // Predicated region
        $region77: #{tpu_custom_call.1} parent=75 // pred_check
          %p503 = pneg %p55
        $region78: #{tpu_custom_call.1} parent=75 // pred_check_branch
          %505 = sbr.rel (%p503) target = $region80
        $region79: #{tpu_custom_call.1} parent=75 // pred_region
          %506 = dma.done %s499, 1024
        $region80: #{tpu_custom_call.1} parent=75 // pred_fallthru
          _
        // Predicated region
        $region81: #{tpu_custom_call.1} parent=75 // pred_check
          %p507 = pneg %p76
        $region82: #{tpu_custom_call.1} parent=75 // pred_check_branch
          %509 = sbr.rel (%p507) target = $region84
        $region83: #{tpu_custom_call.1} parent=75 // pred_region
          %510 = dma.done [#allocation7], 512
        $region84: #{tpu_custom_call.1} parent=75 // pred_fallthru
          _
        // Predicated region
        $region85: #{tpu_custom_call.1} parent=75 // pred_check
          %p511 = pneg %p97
        $region86: #{tpu_custom_call.1} parent=75 // pred_check_branch
          %513 = sbr.rel (%p511) target = $region88
        $region87: #{tpu_custom_call.1} parent=75 // pred_region
          %514 = dma.done [#allocation7], 16
        $region88: #{tpu_custom_call.1} parent=75 // pred_fallthru
          _
        // Predicated region
        $region89: #{tpu_custom_call.1} parent=75 // pred_check
          %p515 = pneg %p139
        $region90: #{tpu_custom_call.1} parent=75 // pred_check_branch
          %517 = sbr.rel (%p515) target = $region92
        $region91: #{tpu_custom_call.1} parent=75 // pred_region
          %518 = dma.done [#allocation10], 3072
        $region92: #{tpu_custom_call.1} parent=75 // pred_fallthru
          _
        // Predicated region
        $region93: #{tpu_custom_call.1} parent=75 // pred_check
          %p519 = pneg %p181
        $region94: #{tpu_custom_call.1} parent=75 // pred_check_branch
          %521 = sbr.rel (%p519) target = $region96
        $region95: #{tpu_custom_call.1} parent=75 // pred_region
          %522 = dma.done [#allocation10], 1024
        $region96: #{tpu_custom_call.1} parent=75 // pred_fallthru
          _
        // Predicated region
        $region97: #{tpu_custom_call.1} parent=75 // pred_check
          %p523 = pneg %p265
        $region98: #{tpu_custom_call.1} parent=75 // pred_check_branch
          %525 = sbr.rel (%p523) target = $region100
        $region99: #{tpu_custom_call.1} parent=75 // pred_region
          %526 = dma.done [#allocation13], 4096
        $region100: #{tpu_custom_call.1} parent=75 // pred_fallthru
          _
        // Predicated region
        $region101: #{tpu_custom_call.1} parent=75 // pred_check
          %p527 = pneg %p307
        $region102: #{tpu_custom_call.1} parent=75 // pred_check_branch
          %529 = sbr.rel (%p527) target = $region104
        $region103: #{tpu_custom_call.1} parent=75 // pred_region
          %530 = dma.done [#allocation13], 4096
        $region104: #{tpu_custom_call.1} parent=75 // pred_fallthru
          _
        %s531 = sand.u32 %s42, 1
        %s532 = scalar_lea.sflag [#allocation4], %s531
        %s533 = sand.u32 %s42, 1
        %s534 = smul.addr %s533, 64
        %s535 = scalar_lea.vmem [#allocation3], %s534
        %p536 = pneg %p55
        %p537 = pneg %p52
        %p538 = pneg %p76
        %p539 = pneg %p73
        %p540 = pneg %p97
        %p541 = pneg %p94
        %p542 = pneg %p118
        %p543 = pneg %p115
        %p544 = pneg %p139
        %p545 = pneg %p136
        %p546 = pneg %p160
        %p547 = pneg %p157
        %p548 = pneg %p181
        %p549 = pneg %p178
        %p550 = pneg %p202
        %p551 = pneg %p199
        %p552 = pneg %p223
        %p553 = pneg %p220
        %p554 = pneg %p244
        %p555 = pneg %p241
        %p556 = pneg %p265
        %p557 = pneg %p262
        %p558 = pneg %p286
        %p559 = pneg %p283
        %p560 = pneg %p307
        %p561 = pneg %p304
        %p562 = pneg %p328
        %p563 = pneg %p325
        %p564 = pneg %p354
        %p565 = pneg %p351
        %s566 = sand.u32 %s341, 1
        %s567 = scalar_lea.sflag [#allocation5], %s566
        %s568 = sand.u32 %s341, 1
        %s569 = smul.addr %s568, 64
        %s570 = scalar_lea.vmem [#allocation15], %s569
        %v572 = vld [vmem:[%s502] sm:$0xff]
        %v573 = vld [vmem:[%s502 + $0x8] sm:$0xff]
        %v574 = vld [vmem:[%s502 + $0x10] sm:$0xff]
        %v575 = vld [vmem:[%s502 + $0x18] sm:$0xff]
        %v576 = vld [vmem:[%s502 + $0x20] sm:$0xff]
        %v577 = vld [vmem:[%s502 + $0x28] sm:$0xff]
        %v578 = vld [vmem:[%s502 + $0x30] sm:$0xff]
        %v579 = vld [vmem:[%s502 + $0x38] sm:$0xff]
        %v580 = vld [vmem:[#allocation8] sm:$0x1]
        %v581 = vld [vmem:[%s3] sm:$0x1]
        %582 = vadd.xlane.f32.xlu0 %v572
        %v583 = vpop.xlane.xlu0 %582
        %584 = vadd.xlane.f32.xlu0 %v573
        %v585 = vpop.xlane.xlu0 %584
        %586 = vadd.xlane.f32.xlu0 %v574
        %v587 = vpop.xlane.xlu0 %586
        %588 = vadd.xlane.f32.xlu0 %v575
        %v589 = vpop.xlane.xlu0 %588
        %590 = vadd.xlane.f32.xlu0 %v576
        %v591 = vpop.xlane.xlu0 %590
        %592 = vadd.xlane.f32.xlu0 %v577
        %v593 = vpop.xlane.xlu0 %592
        %594 = vadd.xlane.f32.xlu0 %v578
        %v595 = vpop.xlane.xlu0 %594
        %596 = vadd.xlane.f32.xlu0 %v579
        %v597 = vpop.xlane.xlu0 %596
        %v598 = vrcp.pop 128.0
        %v599 = vmul.f32 %v583, %v598
        %v600 = vmul.f32 %v585, %v598
        %v601 = vmul.f32 %v587, %v598
        %v602 = vmul.f32 %v589, %v598
        %v603 = vmul.f32 %v591, %v598
        %v604 = vmul.f32 %v593, %v598
        %v605 = vmul.f32 %v595, %v598
        %v606 = vmul.f32 %v597, %v598
        %v607 = vsub.f32 %v572, %v599
        %v608 = vsub.f32 %v573, %v600
        %v609 = vsub.f32 %v574, %v601
        %v610 = vsub.f32 %v575, %v602
        %v611 = vsub.f32 %v576, %v603
        %v612 = vsub.f32 %v577, %v604
        %v613 = vsub.f32 %v578, %v605
        %v614 = vsub.f32 %v579, %v606
        %v615 = vmul.f32 %v607, %v607
        %v616 = vmul.f32 %v608, %v608
        %v617 = vmul.f32 %v609, %v609
        %v618 = vmul.f32 %v610, %v610
        %v619 = vmul.f32 %v611, %v611
        %v620 = vmul.f32 %v612, %v612
        %v621 = vmul.f32 %v613, %v613
        %v622 = vmul.f32 %v614, %v614
        %623 = vadd.xlane.f32.xlu0 %v615
        %v624 = vpop.xlane.xlu0 %623
        %625 = vadd.xlane.f32.xlu0 %v616
        %v626 = vpop.xlane.xlu0 %625
        %627 = vadd.xlane.f32.xlu0 %v617
        %v628 = vpop.xlane.xlu0 %627
        %629 = vadd.xlane.f32.xlu0 %v618
        %v630 = vpop.xlane.xlu0 %629
        %631 = vadd.xlane.f32.xlu0 %v619
        %v632 = vpop.xlane.xlu0 %631
        %633 = vadd.xlane.f32.xlu0 %v620
        %v634 = vpop.xlane.xlu0 %633
        %635 = vadd.xlane.f32.xlu0 %v621
        %v636 = vpop.xlane.xlu0 %635
        %637 = vadd.xlane.f32.xlu0 %v622
        %v638 = vpop.xlane.xlu0 %637
        %v639 = vmul.f32 %v624, %v598
        %v640 = vmul.f32 %v626, %v598
        %v641 = vmul.f32 %v628, %v598
        %v642 = vmul.f32 %v630, %v598
        %v643 = vmul.f32 %v632, %v598
        %v644 = vmul.f32 %v634, %v598
        %v645 = vmul.f32 %v636, %v598
        %v646 = vmul.f32 %v638, %v598
        %v647 = vadd.f32 %v639, 1e-05
        %v648 = vadd.f32 %v640, 1e-05
        %v649 = vadd.f32 %v641, 1e-05
        %v650 = vadd.f32 %v642, 1e-05
        %v651 = vadd.f32 %v643, 1e-05
        %v652 = vadd.f32 %v644, 1e-05
        %v653 = vadd.f32 %v645, 1e-05
        %v654 = vadd.f32 %v646, 1e-05
        %v655 = vrsqrt.pop %v647
        %v656 = vrsqrt.pop %v648
        %v657 = vrsqrt.pop %v649
        %v658 = vrsqrt.pop %v650
        %v659 = vrsqrt.pop %v651
        %v660 = vrsqrt.pop %v652
        %v661 = vrsqrt.pop %v653
        %v662 = vrsqrt.pop %v654
        %v663 = vmul.f32 %v607, %v655
        %v664 = vmul.f32 %v608, %v656
        %v665 = vmul.f32 %v609, %v657
        %v666 = vmul.f32 %v610, %v658
        %v667 = vmul.f32 %v611, %v659
        %v668 = vmul.f32 %v612, %v660
        %v669 = vmul.f32 %v613, %v661
        %v670 = vmul.f32 %v614, %v662
        %v672 = vlaneseq
        %v673 = vshrl.u32 %v672, 7
        %v674 = vsub.s32 0, %v673
        %v675 = vrot.slane %v580, %v674
        %v677 = vmul.f32 %v663, %v675
        %v678 = vmul.f32 %v664, %v675
        %v679 = vmul.f32 %v665, %v675
        %v680 = vmul.f32 %v666, %v675
        %v681 = vmul.f32 %v667, %v675
        %v682 = vmul.f32 %v668, %v675
        %v683 = vmul.f32 %v669, %v675
        %v684 = vmul.f32 %v670, %v675
        %v686 = vlaneseq
        %v687 = vshrl.u32 %v686, 7
        %v688 = vsub.s32 0, %v687
        %v689 = vrot.slane %v581, %v688
        %v691 = vadd.f32 %v677, %v689
        %v692 = vadd.f32 %v678, %v689
        %v693 = vadd.f32 %v679, %v689
        %v694 = vadd.f32 %v680, %v689
        %v695 = vadd.f32 %v681, %v689
        %v696 = vadd.f32 %v682, %v689
        %v697 = vadd.f32 %v683, %v689
        %v698 = vadd.f32 %v684, %v689
        %v699 = vpack.c.bf16 %v692, %v691
        %v700 = vpack.c.bf16 %v694, %v693
        %v701 = vpack.c.bf16 %v696, %v695
        %v702 = vpack.c.bf16 %v698, %v697
        %v703 = vld [vmem:[#allocation9] sm:$0xff]
        %v704 = vld [vmem:[#allocation9 + $0x8] sm:$0xf]
        %v705 = vld [vmem:[#allocation9 + $0xc] sm:$0xff]
        %v706 = vld [vmem:[#allocation9 + $0x14] sm:$0xf]
        %v707 = vld [vmem:[#allocation9 + $0x18] sm:$0xff]
        %v708 = vld [vmem:[#allocation9 + $0x20] sm:$0xf]
        %v709 = vld [vmem:[#allocation9 + $0x24] sm:$0xff]
        %v710 = vld [vmem:[#allocation9 + $0x2c] sm:$0xf]
        %v711 = vld [vmem:[#allocation9 + $0x30] sm:$0xff]
        %v712 = vld [vmem:[#allocation9 + $0x38] sm:$0xf]
        %v713 = vld [vmem:[#allocation9 + $0x3c] sm:$0xff]
        %v714 = vld [vmem:[#allocation9 + $0x44] sm:$0xf]
        %v715 = vld [vmem:[#allocation9 + $0x48] sm:$0xff]
        %v716 = vld [vmem:[#allocation9 + $0x50] sm:$0xf]
        %v717 = vld [vmem:[#allocation9 + $0x54] sm:$0xff]
        %v718 = vld [vmem:[#allocation9 + $0x5c] sm:$0xf]
        %v719 = vld [vmem:[#allocation9 + $0x60] sm:$0xff]
        %v720 = vld [vmem:[#allocation9 + $0x68] sm:$0xf]
        %v721 = vld [vmem:[#allocation9 + $0x6c] sm:$0xff]
        %v722 = vld [vmem:[#allocation9 + $0x74] sm:$0xf]
        %v723 = vld [vmem:[#allocation9 + $0x78] sm:$0xff]
        %v724 = vld [vmem:[#allocation9 + $0x80] sm:$0xf]
        %v725 = vld [vmem:[#allocation9 + $0x84] sm:$0xff]
        %v726 = vld [vmem:[#allocation9 + $0x8c] sm:$0xf]
        %v727 = vld [vmem:[#allocation9 + $0x90] sm:$0xff]
        %v728 = vld [vmem:[#allocation9 + $0x98] sm:$0xf]
        %v729 = vld [vmem:[#allocation9 + $0x9c] sm:$0xff]
        %v730 = vld [vmem:[#allocation9 + $0xa4] sm:$0xf]
        %v731 = vld [vmem:[#allocation9 + $0xa8] sm:$0xff]
        %v732 = vld [vmem:[#allocation9 + $0xb0] sm:$0xf]
        %v733 = vld [vmem:[#allocation9 + $0xb4] sm:$0xff]
        %v734 = vld [vmem:[#allocation9 + $0xbc] sm:$0xf]
        %v735 = vld [vmem:[%s5] sm:$0x7]
        %v737 = vlaneseq
        %v738 = vshrl.u32 %v737, 7
        %v739 = vsub.s32 0, %v738
        %v740 = vrot.slane %v735, %v739
        %v741 = vlaneseq
        %v742 = vshrl.u32 %v741, 7
        %v743 = vsub.s32 1, %v742
        %v744 = vrot.slane %v735, %v743
        %v745 = vlaneseq
        %v746 = vshrl.u32 %v745, 7
        %v747 = vsub.s32 2, %v746
        %v748 = vrot.slane %v735, %v747
        %v784 = vunpack.c.l.b16 %v703
        %v785 = vunpack.c.h.b16 %v703
        %v786 = vunpack.c.l.b16 %v704
        %v787 = vunpack.c.l.b16 %v705
        %v788 = vunpack.c.h.b16 %v705
        %v789 = vunpack.c.l.b16 %v706
        %v790 = vunpack.c.l.b16 %v707
        %v791 = vunpack.c.h.b16 %v707
        %v792 = vunpack.c.l.b16 %v708
        %v793 = vunpack.c.l.b16 %v709
        %v794 = vunpack.c.h.b16 %v709
        %v795 = vunpack.c.l.b16 %v710
        %v796 = vunpack.c.l.b16 %v711
        %v797 = vunpack.c.h.b16 %v711
        %v798 = vunpack.c.l.b16 %v712
        %v799 = vunpack.c.l.b16 %v713
        %v800 = vunpack.c.h.b16 %v713
        %v801 = vunpack.c.l.b16 %v714
        %v802 = vunpack.c.l.b16 %v715
        %v803 = vunpack.c.h.b16 %v715
        %v804 = vunpack.c.l.b16 %v716
        %v805 = vunpack.c.l.b16 %v717
        %v806 = vunpack.c.h.b16 %v717
        %v807 = vunpack.c.l.b16 %v718
        %v808 = vunpack.c.l.b16 %v719
        %v809 = vunpack.c.h.b16 %v719
        %v810 = vunpack.c.l.b16 %v720
        %v811 = vunpack.c.l.b16 %v721
        %v812 = vunpack.c.h.b16 %v721
        %v813 = vunpack.c.l.b16 %v722
        %v814 = vunpack.c.l.b16 %v723
        %v815 = vunpack.c.h.b16 %v723
        %v816 = vunpack.c.l.b16 %v724
        %v817 = vunpack.c.l.b16 %v725
        %v818 = vunpack.c.h.b16 %v725
        %v819 = vunpack.c.l.b16 %v726
        %v820 = vunpack.c.l.b16 %v727
        %v821 = vunpack.c.h.b16 %v727
        %v822 = vunpack.c.l.b16 %v728
        %v823 = vunpack.c.l.b16 %v729
        %v824 = vunpack.c.h.b16 %v729
        %v825 = vunpack.c.l.b16 %v730
        %v826 = vunpack.c.l.b16 %v731
        %v827 = vunpack.c.h.b16 %v731
        %v828 = vunpack.c.l.b16 %v732
        %v829 = vunpack.c.l.b16 %v733
        %v830 = vunpack.c.h.b16 %v733
        %v831 = vunpack.c.l.b16 %v734
        %v832 = vpack.c.b16 %v787, %v784
        %v833 = vpack.c.b16 %v788, %v785
        %v834 = vpack.c.b16 %v789, %v786
        %v835 = vpack.c.b16 %v793, %v790
        %v836 = vpack.c.b16 %v794, %v791
        %v837 = vpack.c.b16 %v795, %v792
        %v838 = vpack.c.b16 %v799, %v796
        %v839 = vpack.c.b16 %v800, %v797
        %v840 = vpack.c.b16 %v801, %v798
        %v841 = vpack.c.b16 %v805, %v802
        %v842 = vpack.c.b16 %v806, %v803
        %v843 = vpack.c.b16 %v807, %v804
        %v844 = vpack.c.b16 %v811, %v808
        %v845 = vpack.c.b16 %v812, %v809
        %v846 = vpack.c.b16 %v813, %v810
        %v847 = vpack.c.b16 %v817, %v814
        %v848 = vpack.c.b16 %v818, %v815
        %v849 = vpack.c.b16 %v819, %v816
        %v850 = vpack.c.b16 %v823, %v820
        %v851 = vpack.c.b16 %v824, %v821
        %v852 = vpack.c.b16 %v825, %v822
        %v853 = vpack.c.b16 %v829, %v826
        %v854 = vpack.c.b16 %v830, %v827
        %v855 = vpack.c.b16 %v831, %v828
        %880 = vmatprep.subr.bf16.mxu0 %v833
        %881 = vmatpush1.bf16.msra.mxu0 %v832
        %882 = vmatprep.subr.bf16.mxu0 %v836
        %883 = vmatpush1.bf16.msra.mxu0 %v835
        %884 = vmatprep.subr.bf16.mxu0 %v839
        %885 = vmatpush1.bf16.msra.mxu0 %v838
        %886 = vmatprep.subr.bf16.mxu0 %v842
        %887 = vmatpush1.bf16.msra.mxu0 %v841
        %888 = vmatprep.subr.bf16.mxu0 %v845
        %889 = vmatpush1.bf16.msra.mxu0 %v844
        %890 = vmatprep.subr.bf16.mxu0 %v848
        %891 = vmatpush1.bf16.msra.mxu0 %v847
        %892 = vmatprep.subr.bf16.mxu0 %v851
        %893 = vmatpush1.bf16.msra.mxu0 %v850
        %894 = vmatprep.subr.bf16.mxu0 %v854
        %895 = vmatpush1.bf16.msra.mxu0 %v853
        %896 = vmatprep.subr.bf16.mxu0 0
        %897 = vmatpush1.bf16.msra.mxu0 0
        %898 = vmatprep.subr.bf16.mxu0 0
        %899 = vmatpush1.bf16.msra.mxu0 0
        %900 = vmatprep.subr.bf16.mxu0 0
        %901 = vmatpush1.bf16.msra.mxu0 0
        %902 = vmatprep.subr.bf16.mxu0 0
        %903 = vmatpush1.bf16.msra.mxu0 0
        %904 = vmatprep.subr.bf16.mxu0 0
        %905 = vmatpush1.bf16.msra.mxu0 0
        %906 = vmatprep.subr.bf16.mxu0 0
        %907 = vmatpush1.bf16.msra.mxu0 0
        %908 = vmatprep.subr.bf16.mxu0 0
        %909 = vmatpush1.bf16.msra.mxu0 0
        %910 = vmatprep.subr.bf16.mxu0 0
        %911 = vmatpush1.bf16.msra.mxu0 0
        %912 = vmatprep.mubr.bf16.mxu0 0
        %913 = vmatmul.mubr.bf16.gmra.mrb[0].mxu0 %v699
        %v914 = vpop.f32.mrb[0].mxu0
        %v915 = vadd.f32 %v740, %v914
        %v916 = vpop.f32.mrb[0].mxu0
        %v917 = vadd.f32 %v744, %v916
        %v918 = vpop.f32.mrb[0].mxu0
        %v919 = vadd.f32 %v740, %v918
        %v920 = vpop.f32.mrb[0].mxu0
        %v921 = vadd.f32 %v744, %v920
        %922 = vmatprep.mubr.bf16.mxu0 0
        %923 = vmatmul.mubr.bf16.gmra.mrb[0].mxu0 %v700
        %v924 = vpop.f32.mrb[0].mxu0
        %v925 = vadd.f32 %v740, %v924
        %v926 = vpop.f32.mrb[0].mxu0
        %v927 = vadd.f32 %v744, %v926
        %v928 = vpop.f32.mrb[0].mxu0
        %v929 = vadd.f32 %v740, %v928
        %v930 = vpop.f32.mrb[0].mxu0
        %v931 = vadd.f32 %v744, %v930
        %932 = vmatprep.mubr.bf16.mxu0 0
        %933 = vmatmul.mubr.bf16.gmra.mrb[0].mxu0 %v701
        %v934 = vpop.f32.mrb[0].mxu0
        %v935 = vadd.f32 %v740, %v934
        %v936 = vpop.f32.mrb[0].mxu0
        %v937 = vadd.f32 %v744, %v936
        %v938 = vpop.f32.mrb[0].mxu0
        %v939 = vadd.f32 %v740, %v938
        %v940 = vpop.f32.mrb[0].mxu0
        %v941 = vadd.f32 %v744, %v940
        %942 = vmatprep.mubr.bf16.mxu0 0
        %943 = vmatmul.mubr.bf16.gmra.mrb[0].mxu0 %v702
        %v944 = vpop.f32.mrb[0].mxu0
        %v945 = vadd.f32 %v740, %v944
        %v946 = vpop.f32.mrb[0].mxu0
        %v947 = vadd.f32 %v744, %v946
        %v948 = vpop.f32.mrb[0].mxu0
        %v949 = vadd.f32 %v740, %v948
        %v950 = vpop.f32.mrb[0].mxu0
        %v951 = vadd.f32 %v744, %v950
        %952 = vdwg.mxu0
        %953 = vmatprep.subr.bf16.mxu0 0
        %954 = vmatpush1.bf16.msra.mxu0 %v834
        %955 = vmatprep.subr.bf16.mxu0 0
        %956 = vmatpush1.bf16.msra.mxu0 %v837
        %957 = vmatprep.subr.bf16.mxu0 0
        %958 = vmatpush1.bf16.msra.mxu0 %v840
        %959 = vmatprep.subr.bf16.mxu0 0
        %960 = vmatpush1.bf16.msra.mxu0 %v843
        %961 = vmatprep.subr.bf16.mxu0 0
        %962 = vmatpush1.bf16.msra.mxu0 %v846
        %963 = vmatprep.subr.bf16.mxu0 0
        %964 = vmatpush1.bf16.msra.mxu0 %v849
        %965 = vmatprep.subr.bf16.mxu0 0
        %966 = vmatpush1.bf16.msra.mxu0 %v852
        %967 = vmatprep.subr.bf16.mxu0 0
        %968 = vmatpush1.bf16.msra.mxu0 %v855
        %969 = vmatprep.subr.bf16.mxu0 0
        %970 = vmatpush1.bf16.msra.mxu0 0
        %971 = vmatprep.subr.bf16.mxu0 0
        %972 = vmatpush1.bf16.msra.mxu0 0
        %973 = vmatprep.subr.bf16.mxu0 0
        %974 = vmatpush1.bf16.msra.mxu0 0
        %975 = vmatprep.subr.bf16.mxu0 0
        %976 = vmatpush1.bf16.msra.mxu0 0
        %977 = vmatprep.subr.bf16.mxu0 0
        %978 = vmatpush1.bf16.msra.mxu0 0
        %979 = vmatprep.subr.bf16.mxu0 0
        %980 = vmatpush1.bf16.msra.mxu0 0
        %981 = vmatprep.subr.bf16.mxu0 0
        %982 = vmatpush1.bf16.msra.mxu0 0
        %983 = vmatprep.subr.bf16.mxu0 0
        %984 = vmatpush1.bf16.msra.mxu0 0
        %985 = vmatprep.mubr.bf16.mxu0 0
        %986 = vmatmul.mubr.bf16.gmra.mrb[0].mxu0 %v699
        %v987 = vpop.f32.mrb[0].mxu0
        %v988 = vadd.f32 %v748, %v987
        %v989 = vpop.f32.mrb[0].mxu0
        %v990 = vpop.f32.mrb[0].mxu0
        %v991 = vadd.f32 %v748, %v990
        %v992 = vpop.f32.mrb[0].mxu0
        %993 = vmatprep.mubr.bf16.mxu0 0
        %994 = vmatmul.mubr.bf16.gmra.mrb[0].mxu0 %v700
        %v995 = vpop.f32.mrb[0].mxu0
        %v996 = vadd.f32 %v748, %v995
        %v997 = vpop.f32.mrb[0].mxu0
        %v998 = vpop.f32.mrb[0].mxu0
        %v999 = vadd.f32 %v748, %v998
        %v1000 = vpop.f32.mrb[0].mxu0
        %1001 = vmatprep.mubr.bf16.mxu0 0
        %1002 = vmatmul.mubr.bf16.gmra.mrb[0].mxu0 %v701
        %v1003 = vpop.f32.mrb[0].mxu0
        %v1004 = vadd.f32 %v748, %v1003
        %v1005 = vpop.f32.mrb[0].mxu0
        %v1006 = vpop.f32.mrb[0].mxu0
        %v1007 = vadd.f32 %v748, %v1006
        %v1008 = vpop.f32.mrb[0].mxu0
        %1009 = vmatprep.mubr.bf16.mxu0 0
        %1010 = vmatmul.mubr.bf16.gmra.mrb[0].mxu0 %v702
        %v1011 = vpop.f32.mrb[0].mxu0
        %v1012 = vadd.f32 %v748, %v1011
        %v1013 = vpop.f32.mrb[0].mxu0
        %v1014 = vpop.f32.mrb[0].mxu0
        %v1015 = vadd.f32 %v748, %v1014
        %v1016 = vpop.f32.mrb[0].mxu0
        %1017 = vdwg.mxu0
        %1026 = vrot.lane.b32.xlu0 %v915, 96
        %v1027 = vpop.permute.xlu0 %1026
        %1028 = vrot.lane.b32.xlu0 %v919, 96
        %v1029 = vpop.permute.xlu0 %1028
        %1030 = vrot.lane.b32.xlu0 %v925, 96
        %v1031 = vpop.permute.xlu0 %1030
        %1032 = vrot.lane.b32.xlu0 %v929, 96
        %v1033 = vpop.permute.xlu0 %1032
        %1034 = vrot.lane.b32.xlu0 %v935, 96
        %v1035 = vpop.permute.xlu0 %1034
        %1036 = vrot.lane.b32.xlu0 %v939, 96
        %v1037 = vpop.permute.xlu0 %1036
        %1038 = vrot.lane.b32.xlu0 %v945, 96
        %v1039 = vpop.permute.xlu0 %1038
        %1040 = vrot.lane.b32.xlu0 %v949, 96
        %v1041 = vpop.permute.xlu0 %1040
        %1050 = vrot.lane.b32.xlu0 %v915, 64
        %v1051 = vpop.permute.xlu0 %1050
        %1052 = vrot.lane.b32.xlu0 %v919, 64
        %v1053 = vpop.permute.xlu0 %1052
        %1054 = vrot.lane.b32.xlu0 %v925, 64
        %v1055 = vpop.permute.xlu0 %1054
        %1056 = vrot.lane.b32.xlu0 %v929, 64
        %v1057 = vpop.permute.xlu0 %1056
        %1058 = vrot.lane.b32.xlu0 %v935, 64
        %v1059 = vpop.permute.xlu0 %1058
        %1060 = vrot.lane.b32.xlu0 %v939, 64
        %v1061 = vpop.permute.xlu0 %1060
        %1062 = vrot.lane.b32.xlu0 %v945, 64
        %v1063 = vpop.permute.xlu0 %1062
        %1064 = vrot.lane.b32.xlu0 %v949, 64
        %v1065 = vpop.permute.xlu0 %1064
        %1074 = vrot.lane.b32.xlu0 %v915, 32
        %v1075 = vpop.permute.xlu0 %1074
        %1076 = vrot.lane.b32.xlu0 %v919, 32
        %v1077 = vpop.permute.xlu0 %1076
        %1078 = vrot.lane.b32.xlu0 %v925, 32
        %v1079 = vpop.permute.xlu0 %1078
        %1080 = vrot.lane.b32.xlu0 %v929, 32
        %v1081 = vpop.permute.xlu0 %1080
        %1082 = vrot.lane.b32.xlu0 %v935, 32
        %v1083 = vpop.permute.xlu0 %1082
        %1084 = vrot.lane.b32.xlu0 %v939, 32
        %v1085 = vpop.permute.xlu0 %1084
        %1086 = vrot.lane.b32.xlu0 %v945, 32
        %v1087 = vpop.permute.xlu0 %1086
        %1088 = vrot.lane.b32.xlu0 %v949, 32
        %v1089 = vpop.permute.xlu0 %1088
        %v1098 = vcombine.low %v915, %v1051
        %v1099 = vcombine.high %v915, %v1051
        %v1101 = vunpack.c.l.s4 1983009808
        %v1102 = vunpack.c.0.s8 %v1101
        %v1103 = vlaneseq
        %v1104 = vshrl.u32 %v1103, 7
        %v1105 = vsub.s32 %v1102, %v1104
        %v1106 = vrot.slane %v1098, %v1105
        %v1108 = vunpack.c.l.s4 1983009808
        %v1109 = vunpack.c.0.s8 %v1108
        %v1110 = vlaneseq
        %v1111 = vshrl.u32 %v1110, 7
        %v1112 = vsub.s32 %v1109, %v1111
        %v1113 = vrot.slane %v1099, %v1112
        %v1114 = vcombine.low %v1027, %v1075
        %v1115 = vcombine.high %v1027, %v1075
        %v1117 = vunpack.c.l.s4 1983009808
        %v1118 = vunpack.c.0.s8 %v1117
        %v1119 = vlaneseq
        %v1120 = vshrl.u32 %v1119, 7
        %v1121 = vsub.s32 %v1118, %v1120
        %v1122 = vrot.slane %v1114, %v1121
        %v1124 = vunpack.c.l.s4 1983009808
        %v1125 = vunpack.c.0.s8 %v1124
        %v1126 = vlaneseq
        %v1127 = vshrl.u32 %v1126, 7
        %v1128 = vsub.s32 %v1125, %v1127
        %v1129 = vrot.slane %v1115, %v1128
        %v1130 = vcombine.low %v1106, %v1122
        %v1131 = vcombine.high %v1106, %v1122
        %v1133 = vunpack.c.l.s4 1934713408
        %v1134 = vunpack.c.0.s8 %v1133
        %v1135 = vlaneseq
        %v1136 = vshrl.u32 %v1135, 7
        %v1137 = vsub.s32 %v1134, %v1136
        %v1138 = vrot.slane %v1130, %v1137
        %v1140 = vunpack.c.l.s4 1934713408
        %v1141 = vunpack.c.0.s8 %v1140
        %v1142 = vlaneseq
        %v1143 = vshrl.u32 %v1142, 7
        %v1144 = vsub.s32 %v1141, %v1143
        %v1145 = vrot.slane %v1131, %v1144
        %v1146 = vcombine.low %v1113, %v1129
        %v1147 = vcombine.high %v1113, %v1129
        %v1149 = vunpack.c.l.s4 1934713408
        %v1150 = vunpack.c.0.s8 %v1149
        %v1151 = vlaneseq
        %v1152 = vshrl.u32 %v1151, 7
        %v1153 = vsub.s32 %v1150, %v1152
        %v1154 = vrot.slane %v1146, %v1153
        %v1156 = vunpack.c.l.s4 1934713408
        %v1157 = vunpack.c.0.s8 %v1156
        %v1158 = vlaneseq
        %v1159 = vshrl.u32 %v1158, 7
        %v1160 = vsub.s32 %v1157, %v1159
        %v1161 = vrot.slane %v1147, %v1160
        %v1162 = vcombine.high %v1138, 0.0
        %v1163 = vcombine.high %v1145, 0.0
        %v1164 = vcombine.high %v1154, 0.0
        %v1165 = vcombine.high %v1161, 0.0
        %v1166 = vcombine.low %v919, %v1053
        %v1167 = vcombine.high %v919, %v1053
        %v1169 = vunpack.c.l.s4 1983009808
        %v1170 = vunpack.c.0.s8 %v1169
        %v1171 = vlaneseq
        %v1172 = vshrl.u32 %v1171, 7
        %v1173 = vsub.s32 %v1170, %v1172
        %v1174 = vrot.slane %v1166, %v1173
        %v1176 = vunpack.c.l.s4 1983009808
        %v1177 = vunpack.c.0.s8 %v1176
        %v1178 = vlaneseq
        %v1179 = vshrl.u32 %v1178, 7
        %v1180 = vsub.s32 %v1177, %v1179
        %v1181 = vrot.slane %v1167, %v1180
        %v1182 = vcombine.low %v1029, %v1077
        %v1183 = vcombine.high %v1029, %v1077
        %v1185 = vunpack.c.l.s4 1983009808
        %v1186 = vunpack.c.0.s8 %v1185
        %v1187 = vlaneseq
        %v1188 = vshrl.u32 %v1187, 7
        %v1189 = vsub.s32 %v1186, %v1188
        %v1190 = vrot.slane %v1182, %v1189
        %v1192 = vunpack.c.l.s4 1983009808
        %v1193 = vunpack.c.0.s8 %v1192
        %v1194 = vlaneseq
        %v1195 = vshrl.u32 %v1194, 7
        %v1196 = vsub.s32 %v1193, %v1195
        %v1197 = vrot.slane %v1183, %v1196
        %v1198 = vcombine.low %v1174, %v1190
        %v1199 = vcombine.high %v1174, %v1190
        %v1201 = vunpack.c.l.s4 1934713408
        %v1202 = vunpack.c.0.s8 %v1201
        %v1203 = vlaneseq
        %v1204 = vshrl.u32 %v1203, 7
        %v1205 = vsub.s32 %v1202, %v1204
        %v1206 = vrot.slane %v1198, %v1205
        %v1208 = vunpack.c.l.s4 1934713408
        %v1209 = vunpack.c.0.s8 %v1208
        %v1210 = vlaneseq
        %v1211 = vshrl.u32 %v1210, 7
        %v1212 = vsub.s32 %v1209, %v1211
        %v1213 = vrot.slane %v1199, %v1212
        %v1214 = vcombine.low %v1181, %v1197
        %v1215 = vcombine.high %v1181, %v1197
        %v1217 = vunpack.c.l.s4 1934713408
        %v1218 = vunpack.c.0.s8 %v1217
        %v1219 = vlaneseq
        %v1220 = vshrl.u32 %v1219, 7
        %v1221 = vsub.s32 %v1218, %v1220
        %v1222 = vrot.slane %v1214, %v1221
        %v1224 = vunpack.c.l.s4 1934713408
        %v1225 = vunpack.c.0.s8 %v1224
        %v1226 = vlaneseq
        %v1227 = vshrl.u32 %v1226, 7
        %v1228 = vsub.s32 %v1225, %v1227
        %v1229 = vrot.slane %v1215, %v1228
        %v1230 = vcombine.high %v1206, 0.0
        %v1231 = vcombine.high %v1213, 0.0
        %v1232 = vcombine.high %v1222, 0.0
        %v1233 = vcombine.high %v1229, 0.0
        %v1234 = vcombine.low %v925, %v1055
        %v1235 = vcombine.high %v925, %v1055
        %v1237 = vunpack.c.l.s4 1983009808
        %v1238 = vunpack.c.0.s8 %v1237
        %v1239 = vlaneseq
        %v1240 = vshrl.u32 %v1239, 7
        %v1241 = vsub.s32 %v1238, %v1240
        %v1242 = vrot.slane %v1234, %v1241
        %v1244 = vunpack.c.l.s4 1983009808
        %v1245 = vunpack.c.0.s8 %v1244
        %v1246 = vlaneseq
        %v1247 = vshrl.u32 %v1246, 7
        %v1248 = vsub.s32 %v1245, %v1247
        %v1249 = vrot.slane %v1235, %v1248
        %v1250 = vcombine.low %v1031, %v1079
        %v1251 = vcombine.high %v1031, %v1079
        %v1253 = vunpack.c.l.s4 1983009808
        %v1254 = vunpack.c.0.s8 %v1253
        %v1255 = vlaneseq
        %v1256 = vshrl.u32 %v1255, 7
        %v1257 = vsub.s32 %v1254, %v1256
        %v1258 = vrot.slane %v1250, %v1257
        %v1260 = vunpack.c.l.s4 1983009808
        %v1261 = vunpack.c.0.s8 %v1260
        %v1262 = vlaneseq
        %v1263 = vshrl.u32 %v1262, 7
        %v1264 = vsub.s32 %v1261, %v1263
        %v1265 = vrot.slane %v1251, %v1264
        %v1266 = vcombine.low %v1242, %v1258
        %v1267 = vcombine.high %v1242, %v1258
        %v1269 = vunpack.c.l.s4 1934713408
        %v1270 = vunpack.c.0.s8 %v1269
        %v1271 = vlaneseq
        %v1272 = vshrl.u32 %v1271, 7
        %v1273 = vsub.s32 %v1270, %v1272
        %v1274 = vrot.slane %v1266, %v1273
        %v1276 = vunpack.c.l.s4 1934713408
        %v1277 = vunpack.c.0.s8 %v1276
        %v1278 = vlaneseq
        %v1279 = vshrl.u32 %v1278, 7
        %v1280 = vsub.s32 %v1277, %v1279
        %v1281 = vrot.slane %v1267, %v1280
        %v1282 = vcombine.low %v1249, %v1265
        %v1283 = vcombine.high %v1249, %v1265
        %v1285 = vunpack.c.l.s4 1934713408
        %v1286 = vunpack.c.0.s8 %v1285
        %v1287 = vlaneseq
        %v1288 = vshrl.u32 %v1287, 7
        %v1289 = vsub.s32 %v1286, %v1288
        %v1290 = vrot.slane %v1282, %v1289
        %v1292 = vunpack.c.l.s4 1934713408
        %v1293 = vunpack.c.0.s8 %v1292
        %v1294 = vlaneseq
        %v1295 = vshrl.u32 %v1294, 7
        %v1296 = vsub.s32 %v1293, %v1295
        %v1297 = vrot.slane %v1283, %v1296
        %v1298 = vcombine.high %v1274, 0.0
        %v1299 = vcombine.high %v1281, 0.0
        %v1300 = vcombine.high %v1290, 0.0
        %v1301 = vcombine.high %v1297, 0.0
        %v1302 = vcombine.low %v929, %v1057
        %v1303 = vcombine.high %v929, %v1057
        %v1305 = vunpack.c.l.s4 1983009808
        %v1306 = vunpack.c.0.s8 %v1305
        %v1307 = vlaneseq
        %v1308 = vshrl.u32 %v1307, 7
        %v1309 = vsub.s32 %v1306, %v1308
        %v1310 = vrot.slane %v1302, %v1309
        %v1312 = vunpack.c.l.s4 1983009808
        %v1313 = vunpack.c.0.s8 %v1312
        %v1314 = vlaneseq
        %v1315 = vshrl.u32 %v1314, 7
        %v1316 = vsub.s32 %v1313, %v1315
        %v1317 = vrot.slane %v1303, %v1316
        %v1318 = vcombine.low %v1033, %v1081
        %v1319 = vcombine.high %v1033, %v1081
        %v1321 = vunpack.c.l.s4 1983009808
        %v1322 = vunpack.c.0.s8 %v1321
        %v1323 = vlaneseq
        %v1324 = vshrl.u32 %v1323, 7
        %v1325 = vsub.s32 %v1322, %v1324
        %v1326 = vrot.slane %v1318, %v1325
        %v1328 = vunpack.c.l.s4 1983009808
        %v1329 = vunpack.c.0.s8 %v1328
        %v1330 = vlaneseq
        %v1331 = vshrl.u32 %v1330, 7
        %v1332 = vsub.s32 %v1329, %v1331
        %v1333 = vrot.slane %v1319, %v1332
        %v1334 = vcombine.low %v1310, %v1326
        %v1335 = vcombine.high %v1310, %v1326
        %v1337 = vunpack.c.l.s4 1934713408
        %v1338 = vunpack.c.0.s8 %v1337
        %v1339 = vlaneseq
        %v1340 = vshrl.u32 %v1339, 7
        %v1341 = vsub.s32 %v1338, %v1340
        %v1342 = vrot.slane %v1334, %v1341
        %v1344 = vunpack.c.l.s4 1934713408
        %v1345 = vunpack.c.0.s8 %v1344
        %v1346 = vlaneseq
        %v1347 = vshrl.u32 %v1346, 7
        %v1348 = vsub.s32 %v1345, %v1347
        %v1349 = vrot.slane %v1335, %v1348
        %v1350 = vcombine.low %v1317, %v1333
        %v1351 = vcombine.high %v1317, %v1333
        %v1353 = vunpack.c.l.s4 1934713408
        %v1354 = vunpack.c.0.s8 %v1353
        %v1355 = vlaneseq
        %v1356 = vshrl.u32 %v1355, 7
        %v1357 = vsub.s32 %v1354, %v1356
        %v1358 = vrot.slane %v1350, %v1357
        %v1360 = vunpack.c.l.s4 1934713408
        %v1361 = vunpack.c.0.s8 %v1360
        %v1362 = vlaneseq
        %v1363 = vshrl.u32 %v1362, 7
        %v1364 = vsub.s32 %v1361, %v1363
        %v1365 = vrot.slane %v1351, %v1364
        %v1366 = vcombine.high %v1342, 0.0
        %v1367 = vcombine.high %v1349, 0.0
        %v1368 = vcombine.high %v1358, 0.0
        %v1369 = vcombine.high %v1365, 0.0
        %v1370 = vcombine.low %v935, %v1059
        %v1371 = vcombine.high %v935, %v1059
        %v1373 = vunpack.c.l.s4 1983009808
        %v1374 = vunpack.c.0.s8 %v1373
        %v1375 = vlaneseq
        %v1376 = vshrl.u32 %v1375, 7
        %v1377 = vsub.s32 %v1374, %v1376
        %v1378 = vrot.slane %v1370, %v1377
        %v1380 = vunpack.c.l.s4 1983009808
        %v1381 = vunpack.c.0.s8 %v1380
        %v1382 = vlaneseq
        %v1383 = vshrl.u32 %v1382, 7
        %v1384 = vsub.s32 %v1381, %v1383
        %v1385 = vrot.slane %v1371, %v1384
        %v1386 = vcombine.low %v1035, %v1083
        %v1387 = vcombine.high %v1035, %v1083
        %v1389 = vunpack.c.l.s4 1983009808
        %v1390 = vunpack.c.0.s8 %v1389
        %v1391 = vlaneseq
        %v1392 = vshrl.u32 %v1391, 7
        %v1393 = vsub.s32 %v1390, %v1392
        %v1394 = vrot.slane %v1386, %v1393
        %v1396 = vunpack.c.l.s4 1983009808
        %v1397 = vunpack.c.0.s8 %v1396
        %v1398 = vlaneseq
        %v1399 = vshrl.u32 %v1398, 7
        %v1400 = vsub.s32 %v1397, %v1399
        %v1401 = vrot.slane %v1387, %v1400
        %v1402 = vcombine.low %v1378, %v1394
        %v1403 = vcombine.high %v1378, %v1394
        %v1405 = vunpack.c.l.s4 1934713408
        %v1406 = vunpack.c.0.s8 %v1405
        %v1407 = vlaneseq
        %v1408 = vshrl.u32 %v1407, 7
        %v1409 = vsub.s32 %v1406, %v1408
        %v1410 = vrot.slane %v1402, %v1409
        %v1412 = vunpack.c.l.s4 1934713408
        %v1413 = vunpack.c.0.s8 %v1412
        %v1414 = vlaneseq
        %v1415 = vshrl.u32 %v1414, 7
        %v1416 = vsub.s32 %v1413, %v1415
        %v1417 = vrot.slane %v1403, %v1416
        %v1418 = vcombine.low %v1385, %v1401
        %v1419 = vcombine.high %v1385, %v1401
        %v1421 = vunpack.c.l.s4 1934713408
        %v1422 = vunpack.c.0.s8 %v1421
        %v1423 = vlaneseq
        %v1424 = vshrl.u32 %v1423, 7
        %v1425 = vsub.s32 %v1422, %v1424
        %v1426 = vrot.slane %v1418, %v1425
        %v1428 = vunpack.c.l.s4 1934713408
        %v1429 = vunpack.c.0.s8 %v1428
        %v1430 = vlaneseq
        %v1431 = vshrl.u32 %v1430, 7
        %v1432 = vsub.s32 %v1429, %v1431
        %v1433 = vrot.slane %v1419, %v1432
        %v1434 = vcombine.high %v1410, 0.0
        %v1435 = vcombine.high %v1417, 0.0
        %v1436 = vcombine.high %v1426, 0.0
        %v1437 = vcombine.high %v1433, 0.0
        %v1438 = vcombine.low %v939, %v1061
        %v1439 = vcombine.high %v939, %v1061
        %v1441 = vunpack.c.l.s4 1983009808
        %v1442 = vunpack.c.0.s8 %v1441
        %v1443 = vlaneseq
        %v1444 = vshrl.u32 %v1443, 7
        %v1445 = vsub.s32 %v1442, %v1444
        %v1446 = vrot.slane %v1438, %v1445
        %v1448 = vunpack.c.l.s4 1983009808
        %v1449 = vunpack.c.0.s8 %v1448
        %v1450 = vlaneseq
        %v1451 = vshrl.u32 %v1450, 7
        %v1452 = vsub.s32 %v1449, %v1451
        %v1453 = vrot.slane %v1439, %v1452
        %v1454 = vcombine.low %v1037, %v1085
        %v1455 = vcombine.high %v1037, %v1085
        %v1457 = vunpack.c.l.s4 1983009808
        %v1458 = vunpack.c.0.s8 %v1457
        %v1459 = vlaneseq
        %v1460 = vshrl.u32 %v1459, 7
        %v1461 = vsub.s32 %v1458, %v1460
        %v1462 = vrot.slane %v1454, %v1461
        %v1464 = vunpack.c.l.s4 1983009808
        %v1465 = vunpack.c.0.s8 %v1464
        %v1466 = vlaneseq
        %v1467 = vshrl.u32 %v1466, 7
        %v1468 = vsub.s32 %v1465, %v1467
        %v1469 = vrot.slane %v1455, %v1468
        %v1470 = vcombine.low %v1446, %v1462
        %v1471 = vcombine.high %v1446, %v1462
        %v1473 = vunpack.c.l.s4 1934713408
        %v1474 = vunpack.c.0.s8 %v1473
        %v1475 = vlaneseq
        %v1476 = vshrl.u32 %v1475, 7
        %v1477 = vsub.s32 %v1474, %v1476
        %v1478 = vrot.slane %v1470, %v1477
        %v1480 = vunpack.c.l.s4 1934713408
        %v1481 = vunpack.c.0.s8 %v1480
        %v1482 = vlaneseq
        %v1483 = vshrl.u32 %v1482, 7
        %v1484 = vsub.s32 %v1481, %v1483
        %v1485 = vrot.slane %v1471, %v1484
        %v1486 = vcombine.low %v1453, %v1469
        %v1487 = vcombine.high %v1453, %v1469
        %v1489 = vunpack.c.l.s4 1934713408
        %v1490 = vunpack.c.0.s8 %v1489
        %v1491 = vlaneseq
        %v1492 = vshrl.u32 %v1491, 7
        %v1493 = vsub.s32 %v1490, %v1492
        %v1494 = vrot.slane %v1486, %v1493
        %v1496 = vunpack.c.l.s4 1934713408
        %v1497 = vunpack.c.0.s8 %v1496
        %v1498 = vlaneseq
        %v1499 = vshrl.u32 %v1498, 7
        %v1500 = vsub.s32 %v1497, %v1499
        %v1501 = vrot.slane %v1487, %v1500
        %v1502 = vcombine.high %v1478, 0.0
        %v1503 = vcombine.high %v1485, 0.0
        %v1504 = vcombine.high %v1494, 0.0
        %v1505 = vcombine.high %v1501, 0.0
        %v1506 = vcombine.low %v945, %v1063
        %v1507 = vcombine.high %v945, %v1063
        %v1509 = vunpack.c.l.s4 1983009808
        %v1510 = vunpack.c.0.s8 %v1509
        %v1511 = vlaneseq
        %v1512 = vshrl.u32 %v1511, 7
        %v1513 = vsub.s32 %v1510, %v1512
        %v1514 = vrot.slane %v1506, %v1513
        %v1516 = vunpack.c.l.s4 1983009808
        %v1517 = vunpack.c.0.s8 %v1516
        %v1518 = vlaneseq
        %v1519 = vshrl.u32 %v1518, 7
        %v1520 = vsub.s32 %v1517, %v1519
        %v1521 = vrot.slane %v1507, %v1520
        %v1522 = vcombine.low %v1039, %v1087
        %v1523 = vcombine.high %v1039, %v1087
        %v1525 = vunpack.c.l.s4 1983009808
        %v1526 = vunpack.c.0.s8 %v1525
        %v1527 = vlaneseq
        %v1528 = vshrl.u32 %v1527, 7
        %v1529 = vsub.s32 %v1526, %v1528
        %v1530 = vrot.slane %v1522, %v1529
        %v1532 = vunpack.c.l.s4 1983009808
        %v1533 = vunpack.c.0.s8 %v1532
        %v1534 = vlaneseq
        %v1535 = vshrl.u32 %v1534, 7
        %v1536 = vsub.s32 %v1533, %v1535
        %v1537 = vrot.slane %v1523, %v1536
        %v1538 = vcombine.low %v1514, %v1530
        %v1539 = vcombine.high %v1514, %v1530
        %v1541 = vunpack.c.l.s4 1934713408
        %v1542 = vunpack.c.0.s8 %v1541
        %v1543 = vlaneseq
        %v1544 = vshrl.u32 %v1543, 7
        %v1545 = vsub.s32 %v1542, %v1544
        %v1546 = vrot.slane %v1538, %v1545
        %v1548 = vunpack.c.l.s4 1934713408
        %v1549 = vunpack.c.0.s8 %v1548
        %v1550 = vlaneseq
        %v1551 = vshrl.u32 %v1550, 7
        %v1552 = vsub.s32 %v1549, %v1551
        %v1553 = vrot.slane %v1539, %v1552
        %v1554 = vcombine.low %v1521, %v1537
        %v1555 = vcombine.high %v1521, %v1537
        %v1557 = vunpack.c.l.s4 1934713408
        %v1558 = vunpack.c.0.s8 %v1557
        %v1559 = vlaneseq
        %v1560 = vshrl.u32 %v1559, 7
        %v1561 = vsub.s32 %v1558, %v1560
        %v1562 = vrot.slane %v1554, %v1561
        %v1564 = vunpack.c.l.s4 1934713408
        %v1565 = vunpack.c.0.s8 %v1564
        %v1566 = vlaneseq
        %v1567 = vshrl.u32 %v1566, 7
        %v1568 = vsub.s32 %v1565, %v1567
        %v1569 = vrot.slane %v1555, %v1568
        %v1570 = vcombine.high %v1546, 0.0
        %v1571 = vcombine.high %v1553, 0.0
        %v1572 = vcombine.high %v1562, 0.0
        %v1573 = vcombine.high %v1569, 0.0
        %v1574 = vcombine.low %v949, %v1065
        %v1575 = vcombine.high %v949, %v1065
        %v1577 = vunpack.c.l.s4 1983009808
        %v1578 = vunpack.c.0.s8 %v1577
        %v1579 = vlaneseq
        %v1580 = vshrl.u32 %v1579, 7
        %v1581 = vsub.s32 %v1578, %v1580
        %v1582 = vrot.slane %v1574, %v1581
        %v1584 = vunpack.c.l.s4 1983009808
        %v1585 = vunpack.c.0.s8 %v1584
        %v1586 = vlaneseq
        %v1587 = vshrl.u32 %v1586, 7
        %v1588 = vsub.s32 %v1585, %v1587
        %v1589 = vrot.slane %v1575, %v1588
        %v1590 = vcombine.low %v1041, %v1089
        %v1591 = vcombine.high %v1041, %v1089
        %v1593 = vunpack.c.l.s4 1983009808
        %v1594 = vunpack.c.0.s8 %v1593
        %v1595 = vlaneseq
        %v1596 = vshrl.u32 %v1595, 7
        %v1597 = vsub.s32 %v1594, %v1596
        %v1598 = vrot.slane %v1590, %v1597
        %v1600 = vunpack.c.l.s4 1983009808
        %v1601 = vunpack.c.0.s8 %v1600
        %v1602 = vlaneseq
        %v1603 = vshrl.u32 %v1602, 7
        %v1604 = vsub.s32 %v1601, %v1603
        %v1605 = vrot.slane %v1591, %v1604
        %v1606 = vcombine.low %v1582, %v1598
        %v1607 = vcombine.high %v1582, %v1598
        %v1609 = vunpack.c.l.s4 1934713408
        %v1610 = vunpack.c.0.s8 %v1609
        %v1611 = vlaneseq
        %v1612 = vshrl.u32 %v1611, 7
        %v1613 = vsub.s32 %v1610, %v1612
        %v1614 = vrot.slane %v1606, %v1613
        %v1616 = vunpack.c.l.s4 1934713408
        %v1617 = vunpack.c.0.s8 %v1616
        %v1618 = vlaneseq
        %v1619 = vshrl.u32 %v1618, 7
        %v1620 = vsub.s32 %v1617, %v1619
        %v1621 = vrot.slane %v1607, %v1620
        %v1622 = vcombine.low %v1589, %v1605
        %v1623 = vcombine.high %v1589, %v1605
        %v1625 = vunpack.c.l.s4 1934713408
        %v1626 = vunpack.c.0.s8 %v1625
        %v1627 = vlaneseq
        %v1628 = vshrl.u32 %v1627, 7
        %v1629 = vsub.s32 %v1626, %v1628
        %v1630 = vrot.slane %v1622, %v1629
        %v1632 = vunpack.c.l.s4 1934713408
        %v1633 = vunpack.c.0.s8 %v1632
        %v1634 = vlaneseq
        %v1635 = vshrl.u32 %v1634, 7
        %v1636 = vsub.s32 %v1633, %v1635
        %v1637 = vrot.slane %v1623, %v1636
        %v1638 = vcombine.high %v1614, 0.0
        %v1639 = vcombine.high %v1621, 0.0
        %v1640 = vcombine.high %v1630, 0.0
        %v1641 = vcombine.high %v1637, 0.0
        %v1642 = vcombine.low %v1138, %v1145
        %v1644 = vunpack.c.l.s4 1983009808
        %v1645 = vunpack.c.0.s8 %v1644
        %v1646 = vlaneseq
        %v1647 = vshrl.u32 %v1646, 7
        %v1648 = vsub.s32 %v1645, %v1647
        %v1649 = vrot.slane %v1642, %v1648
        %v1650 = vcombine.low %v1162, %v1163
        %v1652 = vunpack.c.l.s4 1983009808
        %v1653 = vunpack.c.0.s8 %v1652
        %v1654 = vlaneseq
        %v1655 = vshrl.u32 %v1654, 7
        %v1656 = vsub.s32 %v1653, %v1655
        %v1657 = vrot.slane %v1650, %v1656
        %v1658 = vcombine.low %v1154, %v1161
        %v1660 = vunpack.c.l.s4 1983009808
        %v1661 = vunpack.c.0.s8 %v1660
        %v1662 = vlaneseq
        %v1663 = vshrl.u32 %v1662, 7
        %v1664 = vsub.s32 %v1661, %v1663
        %v1665 = vrot.slane %v1658, %v1664
        %v1666 = vcombine.low %v1164, %v1165
        %v1668 = vunpack.c.l.s4 1983009808
        %v1669 = vunpack.c.0.s8 %v1668
        %v1670 = vlaneseq
        %v1671 = vshrl.u32 %v1670, 7
        %v1672 = vsub.s32 %v1669, %v1671
        %v1673 = vrot.slane %v1666, %v1672
        %v1674 = vcombine.low %v1649, %v1657
        %v1675 = vcombine.high %v1649, %v1657
        %v1677 = vunpack.c.l.s4 1934713408
        %v1678 = vunpack.c.0.s8 %v1677
        %v1679 = vlaneseq
        %v1680 = vshrl.u32 %v1679, 7
        %v1681 = vsub.s32 %v1678, %v1680
        %v1682 = vrot.slane %v1674, %v1681
        %v1684 = vunpack.c.l.s4 1934713408
        %v1685 = vunpack.c.0.s8 %v1684
        %v1686 = vlaneseq
        %v1687 = vshrl.u32 %v1686, 7
        %v1688 = vsub.s32 %v1685, %v1687
        %v1689 = vrot.slane %v1675, %v1688
        %v1690 = vcombine.low %v1665, %v1673
        %v1691 = vcombine.high %v1665, %v1673
        %v1693 = vunpack.c.l.s4 1934713408
        %v1694 = vunpack.c.0.s8 %v1693
        %v1695 = vlaneseq
        %v1696 = vshrl.u32 %v1695, 7
        %v1697 = vsub.s32 %v1694, %v1696
        %v1698 = vrot.slane %v1690, %v1697
        %v1700 = vunpack.c.l.s4 1934713408
        %v1701 = vunpack.c.0.s8 %v1700
        %v1702 = vlaneseq
        %v1703 = vshrl.u32 %v1702, 7
        %v1704 = vsub.s32 %v1701, %v1703
        %v1705 = vrot.slane %v1691, %v1704
        %v1706 = vcombine.low %v1682, %v1698
        %v1707 = vcombine.high %v1682, %v1698
        %v1708 = vcombine.low %v1689, %v1705
        %v1709 = vcombine.high %v1689, %v1705
        %v1710 = vcombine.low %v1206, %v1213
        %v1712 = vunpack.c.l.s4 1983009808
        %v1713 = vunpack.c.0.s8 %v1712
        %v1714 = vlaneseq
        %v1715 = vshrl.u32 %v1714, 7
        %v1716 = vsub.s32 %v1713, %v1715
        %v1717 = vrot.slane %v1710, %v1716
        %v1718 = vcombine.low %v1230, %v1231
        %v1720 = vunpack.c.l.s4 1983009808
        %v1721 = vunpack.c.0.s8 %v1720
        %v1722 = vlaneseq
        %v1723 = vshrl.u32 %v1722, 7
        %v1724 = vsub.s32 %v1721, %v1723
        %v1725 = vrot.slane %v1718, %v1724
        %v1726 = vcombine.low %v1222, %v1229
        %v1728 = vunpack.c.l.s4 1983009808
        %v1729 = vunpack.c.0.s8 %v1728
        %v1730 = vlaneseq
        %v1731 = vshrl.u32 %v1730, 7
        %v1732 = vsub.s32 %v1729, %v1731
        %v1733 = vrot.slane %v1726, %v1732
        %v1734 = vcombine.low %v1232, %v1233
        %v1736 = vunpack.c.l.s4 1983009808
        %v1737 = vunpack.c.0.s8 %v1736
        %v1738 = vlaneseq
        %v1739 = vshrl.u32 %v1738, 7
        %v1740 = vsub.s32 %v1737, %v1739
        %v1741 = vrot.slane %v1734, %v1740
        %v1742 = vcombine.low %v1717, %v1725
        %v1743 = vcombine.high %v1717, %v1725
        %v1745 = vunpack.c.l.s4 1934713408
        %v1746 = vunpack.c.0.s8 %v1745
        %v1747 = vlaneseq
        %v1748 = vshrl.u32 %v1747, 7
        %v1749 = vsub.s32 %v1746, %v1748
        %v1750 = vrot.slane %v1742, %v1749
        %v1752 = vunpack.c.l.s4 1934713408
        %v1753 = vunpack.c.0.s8 %v1752
        %v1754 = vlaneseq
        %v1755 = vshrl.u32 %v1754, 7
        %v1756 = vsub.s32 %v1753, %v1755
        %v1757 = vrot.slane %v1743, %v1756
        %v1758 = vcombine.low %v1733, %v1741
        %v1759 = vcombine.high %v1733, %v1741
        %v1761 = vunpack.c.l.s4 1934713408
        %v1762 = vunpack.c.0.s8 %v1761
        %v1763 = vlaneseq
        %v1764 = vshrl.u32 %v1763, 7
        %v1765 = vsub.s32 %v1762, %v1764
        %v1766 = vrot.slane %v1758, %v1765
        %v1768 = vunpack.c.l.s4 1934713408
        %v1769 = vunpack.c.0.s8 %v1768
        %v1770 = vlaneseq
        %v1771 = vshrl.u32 %v1770, 7
        %v1772 = vsub.s32 %v1769, %v1771
        %v1773 = vrot.slane %v1759, %v1772
        %v1774 = vcombine.low %v1750, %v1766
        %v1775 = vcombine.high %v1750, %v1766
        %v1776 = vcombine.low %v1757, %v1773
        %v1777 = vcombine.high %v1757, %v1773
        %v1778 = vcombine.low %v1274, %v1281
        %v1780 = vunpack.c.l.s4 1983009808
        %v1781 = vunpack.c.0.s8 %v1780
        %v1782 = vlaneseq
        %v1783 = vshrl.u32 %v1782, 7
        %v1784 = vsub.s32 %v1781, %v1783
        %v1785 = vrot.slane %v1778, %v1784
        %v1786 = vcombine.low %v1298, %v1299
        %v1788 = vunpack.c.l.s4 1983009808
        %v1789 = vunpack.c.0.s8 %v1788
        %v1790 = vlaneseq
        %v1791 = vshrl.u32 %v1790, 7
        %v1792 = vsub.s32 %v1789, %v1791
        %v1793 = vrot.slane %v1786, %v1792
        %v1794 = vcombine.low %v1290, %v1297
        %v1796 = vunpack.c.l.s4 1983009808
        %v1797 = vunpack.c.0.s8 %v1796
        %v1798 = vlaneseq
        %v1799 = vshrl.u32 %v1798, 7
        %v1800 = vsub.s32 %v1797, %v1799
        %v1801 = vrot.slane %v1794, %v1800
        %v1802 = vcombine.low %v1300, %v1301
        %v1804 = vunpack.c.l.s4 1983009808
        %v1805 = vunpack.c.0.s8 %v1804
        %v1806 = vlaneseq
        %v1807 = vshrl.u32 %v1806, 7
        %v1808 = vsub.s32 %v1805, %v1807
        %v1809 = vrot.slane %v1802, %v1808
        %v1810 = vcombine.low %v1785, %v1793
        %v1811 = vcombine.high %v1785, %v1793
        %v1813 = vunpack.c.l.s4 1934713408
        %v1814 = vunpack.c.0.s8 %v1813
        %v1815 = vlaneseq
        %v1816 = vshrl.u32 %v1815, 7
        %v1817 = vsub.s32 %v1814, %v1816
        %v1818 = vrot.slane %v1810, %v1817
        %v1820 = vunpack.c.l.s4 1934713408
        %v1821 = vunpack.c.0.s8 %v1820
        %v1822 = vlaneseq
        %v1823 = vshrl.u32 %v1822, 7
        %v1824 = vsub.s32 %v1821, %v1823
        %v1825 = vrot.slane %v1811, %v1824
        %v1826 = vcombine.low %v1801, %v1809
        %v1827 = vcombine.high %v1801, %v1809
        %v1829 = vunpack.c.l.s4 1934713408
        %v1830 = vunpack.c.0.s8 %v1829
        %v1831 = vlaneseq
        %v1832 = vshrl.u32 %v1831, 7
        %v1833 = vsub.s32 %v1830, %v1832
        %v1834 = vrot.slane %v1826, %v1833
        %v1836 = vunpack.c.l.s4 1934713408
        %v1837 = vunpack.c.0.s8 %v1836
        %v1838 = vlaneseq
        %v1839 = vshrl.u32 %v1838, 7
        %v1840 = vsub.s32 %v1837, %v1839
        %v1841 = vrot.slane %v1827, %v1840
        %v1842 = vcombine.low %v1818, %v1834
        %v1843 = vcombine.high %v1818, %v1834
        %v1844 = vcombine.low %v1825, %v1841
        %v1845 = vcombine.high %v1825, %v1841
        %v1846 = vcombine.low %v1342, %v1349
        %v1848 = vunpack.c.l.s4 1983009808
        %v1849 = vunpack.c.0.s8 %v1848
        %v1850 = vlaneseq
        %v1851 = vshrl.u32 %v1850, 7
        %v1852 = vsub.s32 %v1849, %v1851
        %v1853 = vrot.slane %v1846, %v1852
        %v1854 = vcombine.low %v1366, %v1367
        %v1856 = vunpack.c.l.s4 1983009808
        %v1857 = vunpack.c.0.s8 %v1856
        %v1858 = vlaneseq
        %v1859 = vshrl.u32 %v1858, 7
        %v1860 = vsub.s32 %v1857, %v1859
        %v1861 = vrot.slane %v1854, %v1860
        %v1862 = vcombine.low %v1358, %v1365
        %v1864 = vunpack.c.l.s4 1983009808
        %v1865 = vunpack.c.0.s8 %v1864
        %v1866 = vlaneseq
        %v1867 = vshrl.u32 %v1866, 7
        %v1868 = vsub.s32 %v1865, %v1867
        %v1869 = vrot.slane %v1862, %v1868
        %v1870 = vcombine.low %v1368, %v1369
        %v1872 = vunpack.c.l.s4 1983009808
        %v1873 = vunpack.c.0.s8 %v1872
        %v1874 = vlaneseq
        %v1875 = vshrl.u32 %v1874, 7
        %v1876 = vsub.s32 %v1873, %v1875
        %v1877 = vrot.slane %v1870, %v1876
        %v1878 = vcombine.low %v1853, %v1861
        %v1879 = vcombine.high %v1853, %v1861
        %v1881 = vunpack.c.l.s4 1934713408
        %v1882 = vunpack.c.0.s8 %v1881
        %v1883 = vlaneseq
        %v1884 = vshrl.u32 %v1883, 7
        %v1885 = vsub.s32 %v1882, %v1884
        %v1886 = vrot.slane %v1878, %v1885
        %v1888 = vunpack.c.l.s4 1934713408
        %v1889 = vunpack.c.0.s8 %v1888
        %v1890 = vlaneseq
        %v1891 = vshrl.u32 %v1890, 7
        %v1892 = vsub.s32 %v1889, %v1891
        %v1893 = vrot.slane %v1879, %v1892
        %v1894 = vcombine.low %v1869, %v1877
        %v1895 = vcombine.high %v1869, %v1877
        %v1897 = vunpack.c.l.s4 1934713408
        %v1898 = vunpack.c.0.s8 %v1897
        %v1899 = vlaneseq
        %v1900 = vshrl.u32 %v1899, 7
        %v1901 = vsub.s32 %v1898, %v1900
        %v1902 = vrot.slane %v1894, %v1901
        %v1904 = vunpack.c.l.s4 1934713408
        %v1905 = vunpack.c.0.s8 %v1904
        %v1906 = vlaneseq
        %v1907 = vshrl.u32 %v1906, 7
        %v1908 = vsub.s32 %v1905, %v1907
        %v1909 = vrot.slane %v1895, %v1908
        %v1910 = vcombine.low %v1886, %v1902
        %v1911 = vcombine.high %v1886, %v1902
        %v1912 = vcombine.low %v1893, %v1909
        %v1913 = vcombine.high %v1893, %v1909
        %v1914 = vcombine.low %v1410, %v1417
        %v1916 = vunpack.c.l.s4 1983009808
        %v1917 = vunpack.c.0.s8 %v1916
        %v1918 = vlaneseq
        %v1919 = vshrl.u32 %v1918, 7
        %v1920 = vsub.s32 %v1917, %v1919
        %v1921 = vrot.slane %v1914, %v1920
        %v1922 = vcombine.low %v1434, %v1435
        %v1924 = vunpack.c.l.s4 1983009808
        %v1925 = vunpack.c.0.s8 %v1924
        %v1926 = vlaneseq
        %v1927 = vshrl.u32 %v1926, 7
        %v1928 = vsub.s32 %v1925, %v1927
        %v1929 = vrot.slane %v1922, %v1928
        %v1930 = vcombine.low %v1426, %v1433
        %v1932 = vunpack.c.l.s4 1983009808
        %v1933 = vunpack.c.0.s8 %v1932
        %v1934 = vlaneseq
        %v1935 = vshrl.u32 %v1934, 7
        %v1936 = vsub.s32 %v1933, %v1935
        %v1937 = vrot.slane %v1930, %v1936
        %v1938 = vcombine.low %v1436, %v1437
        %v1940 = vunpack.c.l.s4 1983009808
        %v1941 = vunpack.c.0.s8 %v1940
        %v1942 = vlaneseq
        %v1943 = vshrl.u32 %v1942, 7
        %v1944 = vsub.s32 %v1941, %v1943
        %v1945 = vrot.slane %v1938, %v1944
        %v1946 = vcombine.low %v1921, %v1929
        %v1947 = vcombine.high %v1921, %v1929
        %v1949 = vunpack.c.l.s4 1934713408
        %v1950 = vunpack.c.0.s8 %v1949
        %v1951 = vlaneseq
        %v1952 = vshrl.u32 %v1951, 7
        %v1953 = vsub.s32 %v1950, %v1952
        %v1954 = vrot.slane %v1946, %v1953
        %v1956 = vunpack.c.l.s4 1934713408
        %v1957 = vunpack.c.0.s8 %v1956
        %v1958 = vlaneseq
        %v1959 = vshrl.u32 %v1958, 7
        %v1960 = vsub.s32 %v1957, %v1959
        %v1961 = vrot.slane %v1947, %v1960
        %v1962 = vcombine.low %v1937, %v1945
        %v1963 = vcombine.high %v1937, %v1945
        %v1965 = vunpack.c.l.s4 1934713408
        %v1966 = vunpack.c.0.s8 %v1965
        %v1967 = vlaneseq
        %v1968 = vshrl.u32 %v1967, 7
        %v1969 = vsub.s32 %v1966, %v1968
        %v1970 = vrot.slane %v1962, %v1969
        %v1972 = vunpack.c.l.s4 1934713408
        %v1973 = vunpack.c.0.s8 %v1972
        %v1974 = vlaneseq
        %v1975 = vshrl.u32 %v1974, 7
        %v1976 = vsub.s32 %v1973, %v1975
        %v1977 = vrot.slane %v1963, %v1976
        %v1978 = vcombine.low %v1954, %v1970
        %v1979 = vcombine.high %v1954, %v1970
        %v1980 = vcombine.low %v1961, %v1977
        %v1981 = vcombine.high %v1961, %v1977
        %v1982 = vcombine.low %v1478, %v1485
        %v1984 = vunpack.c.l.s4 1983009808
        %v1985 = vunpack.c.0.s8 %v1984
        %v1986 = vlaneseq
        %v1987 = vshrl.u32 %v1986, 7
        %v1988 = vsub.s32 %v1985, %v1987
        %v1989 = vrot.slane %v1982, %v1988
        %v1990 = vcombine.low %v1502, %v1503
        %v1992 = vunpack.c.l.s4 1983009808
        %v1993 = vunpack.c.0.s8 %v1992
        %v1994 = vlaneseq
        %v1995 = vshrl.u32 %v1994, 7
        %v1996 = vsub.s32 %v1993, %v1995
        %v1997 = vrot.slane %v1990, %v1996
        %v1998 = vcombine.low %v1494, %v1501
        %v2000 = vunpack.c.l.s4 1983009808
        %v2001 = vunpack.c.0.s8 %v2000
        %v2002 = vlaneseq
        %v2003 = vshrl.u32 %v2002, 7
        %v2004 = vsub.s32 %v2001, %v2003
        %v2005 = vrot.slane %v1998, %v2004
        %v2006 = vcombine.low %v1504, %v1505
        %v2008 = vunpack.c.l.s4 1983009808
        %v2009 = vunpack.c.0.s8 %v2008
        %v2010 = vlaneseq
        %v2011 = vshrl.u32 %v2010, 7
        %v2012 = vsub.s32 %v2009, %v2011
        %v2013 = vrot.slane %v2006, %v2012
        %v2014 = vcombine.low %v1989, %v1997
        %v2015 = vcombine.high %v1989, %v1997
        %v2017 = vunpack.c.l.s4 1934713408
        %v2018 = vunpack.c.0.s8 %v2017
        %v2019 = vlaneseq
        %v2020 = vshrl.u32 %v2019, 7
        %v2021 = vsub.s32 %v2018, %v2020
        %v2022 = vrot.slane %v2014, %v2021
        %v2024 = vunpack.c.l.s4 1934713408
        %v2025 = vunpack.c.0.s8 %v2024
        %v2026 = vlaneseq
        %v2027 = vshrl.u32 %v2026, 7
        %v2028 = vsub.s32 %v2025, %v2027
        %v2029 = vrot.slane %v2015, %v2028
        %v2030 = vcombine.low %v2005, %v2013
        %v2031 = vcombine.high %v2005, %v2013
        %v2033 = vunpack.c.l.s4 1934713408
        %v2034 = vunpack.c.0.s8 %v2033
        %v2035 = vlaneseq
        %v2036 = vshrl.u32 %v2035, 7
        %v2037 = vsub.s32 %v2034, %v2036
        %v2038 = vrot.slane %v2030, %v2037
        %v2040 = vunpack.c.l.s4 1934713408
        %v2041 = vunpack.c.0.s8 %v2040
        %v2042 = vlaneseq
        %v2043 = vshrl.u32 %v2042, 7
        %v2044 = vsub.s32 %v2041, %v2043
        %v2045 = vrot.slane %v2031, %v2044
        %v2046 = vcombine.low %v2022, %v2038
        %v2047 = vcombine.high %v2022, %v2038
        %v2048 = vcombine.low %v2029, %v2045
        %v2049 = vcombine.high %v2029, %v2045
        %v2050 = vcombine.low %v1546, %v1553
        %v2052 = vunpack.c.l.s4 1983009808
        %v2053 = vunpack.c.0.s8 %v2052
        %v2054 = vlaneseq
        %v2055 = vshrl.u32 %v2054, 7
        %v2056 = vsub.s32 %v2053, %v2055
        %v2057 = vrot.slane %v2050, %v2056
        %v2058 = vcombine.low %v1570, %v1571
        %v2060 = vunpack.c.l.s4 1983009808
        %v2061 = vunpack.c.0.s8 %v2060
        %v2062 = vlaneseq
        %v2063 = vshrl.u32 %v2062, 7
        %v2064 = vsub.s32 %v2061, %v2063
        %v2065 = vrot.slane %v2058, %v2064
        %v2066 = vcombine.low %v1562, %v1569
        %v2068 = vunpack.c.l.s4 1983009808
        %v2069 = vunpack.c.0.s8 %v2068
        %v2070 = vlaneseq
        %v2071 = vshrl.u32 %v2070, 7
        %v2072 = vsub.s32 %v2069, %v2071
        %v2073 = vrot.slane %v2066, %v2072
        %v2074 = vcombine.low %v1572, %v1573
        %v2076 = vunpack.c.l.s4 1983009808
        %v2077 = vunpack.c.0.s8 %v2076
        %v2078 = vlaneseq
        %v2079 = vshrl.u32 %v2078, 7
        %v2080 = vsub.s32 %v2077, %v2079
        %v2081 = vrot.slane %v2074, %v2080
        %v2082 = vcombine.low %v2057, %v2065
        %v2083 = vcombine.high %v2057, %v2065
        %v2085 = vunpack.c.l.s4 1934713408
        %v2086 = vunpack.c.0.s8 %v2085
        %v2087 = vlaneseq
        %v2088 = vshrl.u32 %v2087, 7
        %v2089 = vsub.s32 %v2086, %v2088
        %v2090 = vrot.slane %v2082, %v2089
        %v2092 = vunpack.c.l.s4 1934713408
        %v2093 = vunpack.c.0.s8 %v2092
        %v2094 = vlaneseq
        %v2095 = vshrl.u32 %v2094, 7
        %v2096 = vsub.s32 %v2093, %v2095
        %v2097 = vrot.slane %v2083, %v2096
        %v2098 = vcombine.low %v2073, %v2081
        %v2099 = vcombine.high %v2073, %v2081
        %v2101 = vunpack.c.l.s4 1934713408
        %v2102 = vunpack.c.0.s8 %v2101
        %v2103 = vlaneseq
        %v2104 = vshrl.u32 %v2103, 7
        %v2105 = vsub.s32 %v2102, %v2104
        %v2106 = vrot.slane %v2098, %v2105
        %v2108 = vunpack.c.l.s4 1934713408
        %v2109 = vunpack.c.0.s8 %v2108
        %v2110 = vlaneseq
        %v2111 = vshrl.u32 %v2110, 7
        %v2112 = vsub.s32 %v2109, %v2111
        %v2113 = vrot.slane %v2099, %v2112
        %v2114 = vcombine.low %v2090, %v2106
        %v2115 = vcombine.high %v2090, %v2106
        %v2116 = vcombine.low %v2097, %v2113
        %v2117 = vcombine.high %v2097, %v2113
        %v2118 = vcombine.low %v1614, %v1621
        %v2120 = vunpack.c.l.s4 1983009808
        %v2121 = vunpack.c.0.s8 %v2120
        %v2122 = vlaneseq
        %v2123 = vshrl.u32 %v2122, 7
        %v2124 = vsub.s32 %v2121, %v2123
        %v2125 = vrot.slane %v2118, %v2124
        %v2126 = vcombine.low %v1638, %v1639
        %v2128 = vunpack.c.l.s4 1983009808
        %v2129 = vunpack.c.0.s8 %v2128
        %v2130 = vlaneseq
        %v2131 = vshrl.u32 %v2130, 7
        %v2132 = vsub.s32 %v2129, %v2131
        %v2133 = vrot.slane %v2126, %v2132
        %v2134 = vcombine.low %v1630, %v1637
        %v2136 = vunpack.c.l.s4 1983009808
        %v2137 = vunpack.c.0.s8 %v2136
        %v2138 = vlaneseq
        %v2139 = vshrl.u32 %v2138, 7
        %v2140 = vsub.s32 %v2137, %v2139
        %v2141 = vrot.slane %v2134, %v2140
        %v2142 = vcombine.low %v1640, %v1641
        %v2144 = vunpack.c.l.s4 1983009808
        %v2145 = vunpack.c.0.s8 %v2144
        %v2146 = vlaneseq
        %v2147 = vshrl.u32 %v2146, 7
        %v2148 = vsub.s32 %v2145, %v2147
        %v2149 = vrot.slane %v2142, %v2148
        %v2150 = vcombine.low %v2125, %v2133
        %v2151 = vcombine.high %v2125, %v2133
        %v2153 = vunpack.c.l.s4 1934713408
        %v2154 = vunpack.c.0.s8 %v2153
        %v2155 = vlaneseq
        %v2156 = vshrl.u32 %v2155, 7
        %v2157 = vsub.s32 %v2154, %v2156
        %v2158 = vrot.slane %v2150, %v2157
        %v2160 = vunpack.c.l.s4 1934713408
        %v2161 = vunpack.c.0.s8 %v2160
        %v2162 = vlaneseq
        %v2163 = vshrl.u32 %v2162, 7
        %v2164 = vsub.s32 %v2161, %v2163
        %v2165 = vrot.slane %v2151, %v2164
        %v2166 = vcombine.low %v2141, %v2149
        %v2167 = vcombine.high %v2141, %v2149
        %v2169 = vunpack.c.l.s4 1934713408
        %v2170 = vunpack.c.0.s8 %v2169
        %v2171 = vlaneseq
        %v2172 = vshrl.u32 %v2171, 7
        %v2173 = vsub.s32 %v2170, %v2172
        %v2174 = vrot.slane %v2166, %v2173
        %v2176 = vunpack.c.l.s4 1934713408
        %v2177 = vunpack.c.0.s8 %v2176
        %v2178 = vlaneseq
        %v2179 = vshrl.u32 %v2178, 7
        %v2180 = vsub.s32 %v2177, %v2179
        %v2181 = vrot.slane %v2167, %v2180
        %v2182 = vcombine.low %v2158, %v2174
        %v2183 = vcombine.high %v2158, %v2174
        %v2184 = vcombine.low %v2165, %v2181
        %v2185 = vcombine.high %v2165, %v2181
        %v2186 = vpack.c.bf16 %v1774, %v1706
        %v2187 = vpack.c.bf16 %v1910, %v1842
        %v2188 = vpack.c.bf16 %v2046, %v1978
        %v2189 = vpack.c.bf16 %v2182, %v2114
        %v2190 = vpack.c.bf16 %v1775, %v1707
        %v2191 = vpack.c.bf16 %v1911, %v1843
        %v2192 = vpack.c.bf16 %v2047, %v1979
        %v2193 = vpack.c.bf16 %v2183, %v2115
        %v2194 = vpack.c.bf16 %v1776, %v1708
        %v2195 = vpack.c.bf16 %v1912, %v1844
        %v2196 = vpack.c.bf16 %v2048, %v1980
        %v2197 = vpack.c.bf16 %v2184, %v2116
        %v2198 = vpack.c.bf16 %v1777, %v1709
        %v2199 = vpack.c.bf16 %v1913, %v1845
        %v2200 = vpack.c.bf16 %v2049, %v1981
        %v2201 = vpack.c.bf16 %v2185, %v2117
        %2210 = vrot.lane.b32.xlu0 %v917, 96
        %v2211 = vpop.permute.xlu0 %2210
        %2212 = vrot.lane.b32.xlu0 %v921, 96
        %v2213 = vpop.permute.xlu0 %2212
        %2214 = vrot.lane.b32.xlu0 %v927, 96
        %v2215 = vpop.permute.xlu0 %2214
        %2216 = vrot.lane.b32.xlu0 %v931, 96
        %v2217 = vpop.permute.xlu0 %2216
        %2218 = vrot.lane.b32.xlu0 %v937, 96
        %v2219 = vpop.permute.xlu0 %2218
        %2220 = vrot.lane.b32.xlu0 %v941, 96
        %v2221 = vpop.permute.xlu0 %2220
        %2222 = vrot.lane.b32.xlu0 %v947, 96
        %v2223 = vpop.permute.xlu0 %2222
        %2224 = vrot.lane.b32.xlu0 %v951, 96
        %v2225 = vpop.permute.xlu0 %2224
        %2234 = vrot.lane.b32.xlu0 %v917, 64
        %v2235 = vpop.permute.xlu0 %2234
        %2236 = vrot.lane.b32.xlu0 %v921, 64
        %v2237 = vpop.permute.xlu0 %2236
        %2238 = vrot.lane.b32.xlu0 %v927, 64
        %v2239 = vpop.permute.xlu0 %2238
        %2240 = vrot.lane.b32.xlu0 %v931, 64
        %v2241 = vpop.permute.xlu0 %2240
        %2242 = vrot.lane.b32.xlu0 %v937, 64
        %v2243 = vpop.permute.xlu0 %2242
        %2244 = vrot.lane.b32.xlu0 %v941, 64
        %v2245 = vpop.permute.xlu0 %2244
        %2246 = vrot.lane.b32.xlu0 %v947, 64
        %v2247 = vpop.permute.xlu0 %2246
        %2248 = vrot.lane.b32.xlu0 %v951, 64
        %v2249 = vpop.permute.xlu0 %2248
        %2258 = vrot.lane.b32.xlu0 %v917, 32
        %v2259 = vpop.permute.xlu0 %2258
        %2260 = vrot.lane.b32.xlu0 %v921, 32
        %v2261 = vpop.permute.xlu0 %2260
        %2262 = vrot.lane.b32.xlu0 %v927, 32
        %v2263 = vpop.permute.xlu0 %2262
        %2264 = vrot.lane.b32.xlu0 %v931, 32
        %v2265 = vpop.permute.xlu0 %2264
        %2266 = vrot.lane.b32.xlu0 %v937, 32
        %v2267 = vpop.permute.xlu0 %2266
        %2268 = vrot.lane.b32.xlu0 %v941, 32
        %v2269 = vpop.permute.xlu0 %2268
        %2270 = vrot.lane.b32.xlu0 %v947, 32
        %v2271 = vpop.permute.xlu0 %2270
        %2272 = vrot.lane.b32.xlu0 %v951, 32
        %v2273 = vpop.permute.xlu0 %2272
        %v2282 = vcombine.low %v917, %v2235
        %v2283 = vcombine.high %v917, %v2235
        %v2285 = vunpack.c.l.s4 1983009808
        %v2286 = vunpack.c.0.s8 %v2285
        %v2287 = vlaneseq
        %v2288 = vshrl.u32 %v2287, 7
        %v2289 = vsub.s32 %v2286, %v2288
        %v2290 = vrot.slane %v2282, %v2289
        %v2292 = vunpack.c.l.s4 1983009808
        %v2293 = vunpack.c.0.s8 %v2292
        %v2294 = vlaneseq
        %v2295 = vshrl.u32 %v2294, 7
        %v2296 = vsub.s32 %v2293, %v2295
        %v2297 = vrot.slane %v2283, %v2296
        %v2298 = vcombine.low %v2211, %v2259
        %v2299 = vcombine.high %v2211, %v2259
        %v2301 = vunpack.c.l.s4 1983009808
        %v2302 = vunpack.c.0.s8 %v2301
        %v2303 = vlaneseq
        %v2304 = vshrl.u32 %v2303, 7
        %v2305 = vsub.s32 %v2302, %v2304
        %v2306 = vrot.slane %v2298, %v2305
        %v2308 = vunpack.c.l.s4 1983009808
        %v2309 = vunpack.c.0.s8 %v2308
        %v2310 = vlaneseq
        %v2311 = vshrl.u32 %v2310, 7
        %v2312 = vsub.s32 %v2309, %v2311
        %v2313 = vrot.slane %v2299, %v2312
        %v2314 = vcombine.low %v2290, %v2306
        %v2315 = vcombine.high %v2290, %v2306
        %v2317 = vunpack.c.l.s4 1934713408
        %v2318 = vunpack.c.0.s8 %v2317
        %v2319 = vlaneseq
        %v2320 = vshrl.u32 %v2319, 7
        %v2321 = vsub.s32 %v2318, %v2320
        %v2322 = vrot.slane %v2314, %v2321
        %v2324 = vunpack.c.l.s4 1934713408
        %v2325 = vunpack.c.0.s8 %v2324
        %v2326 = vlaneseq
        %v2327 = vshrl.u32 %v2326, 7
        %v2328 = vsub.s32 %v2325, %v2327
        %v2329 = vrot.slane %v2315, %v2328
        %v2330 = vcombine.low %v2297, %v2313
        %v2331 = vcombine.high %v2297, %v2313
        %v2333 = vunpack.c.l.s4 1934713408
        %v2334 = vunpack.c.0.s8 %v2333
        %v2335 = vlaneseq
        %v2336 = vshrl.u32 %v2335, 7
        %v2337 = vsub.s32 %v2334, %v2336
        %v2338 = vrot.slane %v2330, %v2337
        %v2340 = vunpack.c.l.s4 1934713408
        %v2341 = vunpack.c.0.s8 %v2340
        %v2342 = vlaneseq
        %v2343 = vshrl.u32 %v2342, 7
        %v2344 = vsub.s32 %v2341, %v2343
        %v2345 = vrot.slane %v2331, %v2344
        %v2346 = vcombine.high %v2322, 0.0
        %v2347 = vcombine.high %v2329, 0.0
        %v2348 = vcombine.high %v2338, 0.0
        %v2349 = vcombine.high %v2345, 0.0
        %v2350 = vcombine.low %v921, %v2237
        %v2351 = vcombine.high %v921, %v2237
        %v2353 = vunpack.c.l.s4 1983009808
        %v2354 = vunpack.c.0.s8 %v2353
        %v2355 = vlaneseq
        %v2356 = vshrl.u32 %v2355, 7
        %v2357 = vsub.s32 %v2354, %v2356
        %v2358 = vrot.slane %v2350, %v2357
        %v2360 = vunpack.c.l.s4 1983009808
        %v2361 = vunpack.c.0.s8 %v2360
        %v2362 = vlaneseq
        %v2363 = vshrl.u32 %v2362, 7
        %v2364 = vsub.s32 %v2361, %v2363
        %v2365 = vrot.slane %v2351, %v2364
        %v2366 = vcombine.low %v2213, %v2261
        %v2367 = vcombine.high %v2213, %v2261
        %v2369 = vunpack.c.l.s4 1983009808
        %v2370 = vunpack.c.0.s8 %v2369
        %v2371 = vlaneseq
        %v2372 = vshrl.u32 %v2371, 7
        %v2373 = vsub.s32 %v2370, %v2372
        %v2374 = vrot.slane %v2366, %v2373
        %v2376 = vunpack.c.l.s4 1983009808
        %v2377 = vunpack.c.0.s8 %v2376
        %v2378 = vlaneseq
        %v2379 = vshrl.u32 %v2378, 7
        %v2380 = vsub.s32 %v2377, %v2379
        %v2381 = vrot.slane %v2367, %v2380
        %v2382 = vcombine.low %v2358, %v2374
        %v2383 = vcombine.high %v2358, %v2374
        %v2385 = vunpack.c.l.s4 1934713408
        %v2386 = vunpack.c.0.s8 %v2385
        %v2387 = vlaneseq
        %v2388 = vshrl.u32 %v2387, 7
        %v2389 = vsub.s32 %v2386, %v2388
        %v2390 = vrot.slane %v2382, %v2389
        %v2392 = vunpack.c.l.s4 1934713408
        %v2393 = vunpack.c.0.s8 %v2392
        %v2394 = vlaneseq
        %v2395 = vshrl.u32 %v2394, 7
        %v2396 = vsub.s32 %v2393, %v2395
        %v2397 = vrot.slane %v2383, %v2396
        %v2398 = vcombine.low %v2365, %v2381
        %v2399 = vcombine.high %v2365, %v2381
        %v2401 = vunpack.c.l.s4 1934713408
        %v2402 = vunpack.c.0.s8 %v2401
        %v2403 = vlaneseq
        %v2404 = vshrl.u32 %v2403, 7
        %v2405 = vsub.s32 %v2402, %v2404
        %v2406 = vrot.slane %v2398, %v2405
        %v2408 = vunpack.c.l.s4 1934713408
        %v2409 = vunpack.c.0.s8 %v2408
        %v2410 = vlaneseq
        %v2411 = vshrl.u32 %v2410, 7
        %v2412 = vsub.s32 %v2409, %v2411
        %v2413 = vrot.slane %v2399, %v2412
        %v2414 = vcombine.high %v2390, 0.0
        %v2415 = vcombine.high %v2397, 0.0
        %v2416 = vcombine.high %v2406, 0.0
        %v2417 = vcombine.high %v2413, 0.0
        %v2418 = vcombine.low %v927, %v2239
        %v2419 = vcombine.high %v927, %v2239
        %v2421 = vunpack.c.l.s4 1983009808
        %v2422 = vunpack.c.0.s8 %v2421
        %v2423 = vlaneseq
        %v2424 = vshrl.u32 %v2423, 7
        %v2425 = vsub.s32 %v2422, %v2424
        %v2426 = vrot.slane %v2418, %v2425
        %v2428 = vunpack.c.l.s4 1983009808
        %v2429 = vunpack.c.0.s8 %v2428
        %v2430 = vlaneseq
        %v2431 = vshrl.u32 %v2430, 7
        %v2432 = vsub.s32 %v2429, %v2431
        %v2433 = vrot.slane %v2419, %v2432
        %v2434 = vcombine.low %v2215, %v2263
        %v2435 = vcombine.high %v2215, %v2263
        %v2437 = vunpack.c.l.s4 1983009808
        %v2438 = vunpack.c.0.s8 %v2437
        %v2439 = vlaneseq
        %v2440 = vshrl.u32 %v2439, 7
        %v2441 = vsub.s32 %v2438, %v2440
        %v2442 = vrot.slane %v2434, %v2441
        %v2444 = vunpack.c.l.s4 1983009808
        %v2445 = vunpack.c.0.s8 %v2444
        %v2446 = vlaneseq
        %v2447 = vshrl.u32 %v2446, 7
        %v2448 = vsub.s32 %v2445, %v2447
        %v2449 = vrot.slane %v2435, %v2448
        %v2450 = vcombine.low %v2426, %v2442
        %v2451 = vcombine.high %v2426, %v2442
        %v2453 = vunpack.c.l.s4 1934713408
        %v2454 = vunpack.c.0.s8 %v2453
        %v2455 = vlaneseq
        %v2456 = vshrl.u32 %v2455, 7
        %v2457 = vsub.s32 %v2454, %v2456
        %v2458 = vrot.slane %v2450, %v2457
        %v2460 = vunpack.c.l.s4 1934713408
        %v2461 = vunpack.c.0.s8 %v2460
        %v2462 = vlaneseq
        %v2463 = vshrl.u32 %v2462, 7
        %v2464 = vsub.s32 %v2461, %v2463
        %v2465 = vrot.slane %v2451, %v2464
        %v2466 = vcombine.low %v2433, %v2449
        %v2467 = vcombine.high %v2433, %v2449
        %v2469 = vunpack.c.l.s4 1934713408
        %v2470 = vunpack.c.0.s8 %v2469
        %v2471 = vlaneseq
        %v2472 = vshrl.u32 %v2471, 7
        %v2473 = vsub.s32 %v2470, %v2472
        %v2474 = vrot.slane %v2466, %v2473
        %v2476 = vunpack.c.l.s4 1934713408
        %v2477 = vunpack.c.0.s8 %v2476
        %v2478 = vlaneseq
        %v2479 = vshrl.u32 %v2478, 7
        %v2480 = vsub.s32 %v2477, %v2479
        %v2481 = vrot.slane %v2467, %v2480
        %v2482 = vcombine.high %v2458, 0.0
        %v2483 = vcombine.high %v2465, 0.0
        %v2484 = vcombine.high %v2474, 0.0
        %v2485 = vcombine.high %v2481, 0.0
        %v2486 = vcombine.low %v931, %v2241
        %v2487 = vcombine.high %v931, %v2241
        %v2489 = vunpack.c.l.s4 1983009808
        %v2490 = vunpack.c.0.s8 %v2489
        %v2491 = vlaneseq
        %v2492 = vshrl.u32 %v2491, 7
        %v2493 = vsub.s32 %v2490, %v2492
        %v2494 = vrot.slane %v2486, %v2493
        %v2496 = vunpack.c.l.s4 1983009808
        %v2497 = vunpack.c.0.s8 %v2496
        %v2498 = vlaneseq
        %v2499 = vshrl.u32 %v2498, 7
        %v2500 = vsub.s32 %v2497, %v2499
        %v2501 = vrot.slane %v2487, %v2500
        %v2502 = vcombine.low %v2217, %v2265
        %v2503 = vcombine.high %v2217, %v2265
        %v2505 = vunpack.c.l.s4 1983009808
        %v2506 = vunpack.c.0.s8 %v2505
        %v2507 = vlaneseq
        %v2508 = vshrl.u32 %v2507, 7
        %v2509 = vsub.s32 %v2506, %v2508
        %v2510 = vrot.slane %v2502, %v2509
        %v2512 = vunpack.c.l.s4 1983009808
        %v2513 = vunpack.c.0.s8 %v2512
        %v2514 = vlaneseq
        %v2515 = vshrl.u32 %v2514, 7
        %v2516 = vsub.s32 %v2513, %v2515
        %v2517 = vrot.slane %v2503, %v2516
        %v2518 = vcombine.low %v2494, %v2510
        %v2519 = vcombine.high %v2494, %v2510
        %v2521 = vunpack.c.l.s4 1934713408
        %v2522 = vunpack.c.0.s8 %v2521
        %v2523 = vlaneseq
        %v2524 = vshrl.u32 %v2523, 7
        %v2525 = vsub.s32 %v2522, %v2524
        %v2526 = vrot.slane %v2518, %v2525
        %v2528 = vunpack.c.l.s4 1934713408
        %v2529 = vunpack.c.0.s8 %v2528
        %v2530 = vlaneseq
        %v2531 = vshrl.u32 %v2530, 7
        %v2532 = vsub.s32 %v2529, %v2531
        %v2533 = vrot.slane %v2519, %v2532
        %v2534 = vcombine.low %v2501, %v2517
        %v2535 = vcombine.high %v2501, %v2517
        %v2537 = vunpack.c.l.s4 1934713408
        %v2538 = vunpack.c.0.s8 %v2537
        %v2539 = vlaneseq
        %v2540 = vshrl.u32 %v2539, 7
        %v2541 = vsub.s32 %v2538, %v2540
        %v2542 = vrot.slane %v2534, %v2541
        %v2544 = vunpack.c.l.s4 1934713408
        %v2545 = vunpack.c.0.s8 %v2544
        %v2546 = vlaneseq
        %v2547 = vshrl.u32 %v2546, 7
        %v2548 = vsub.s32 %v2545, %v2547
        %v2549 = vrot.slane %v2535, %v2548
        %v2550 = vcombine.high %v2526, 0.0
        %v2551 = vcombine.high %v2533, 0.0
        %v2552 = vcombine.high %v2542, 0.0
        %v2553 = vcombine.high %v2549, 0.0
        %v2554 = vcombine.low %v937, %v2243
        %v2555 = vcombine.high %v937, %v2243
        %v2557 = vunpack.c.l.s4 1983009808
        %v2558 = vunpack.c.0.s8 %v2557
        %v2559 = vlaneseq
        %v2560 = vshrl.u32 %v2559, 7
        %v2561 = vsub.s32 %v2558, %v2560
        %v2562 = vrot.slane %v2554, %v2561
        %v2564 = vunpack.c.l.s4 1983009808
        %v2565 = vunpack.c.0.s8 %v2564
        %v2566 = vlaneseq
        %v2567 = vshrl.u32 %v2566, 7
        %v2568 = vsub.s32 %v2565, %v2567
        %v2569 = vrot.slane %v2555, %v2568
        %v2570 = vcombine.low %v2219, %v2267
        %v2571 = vcombine.high %v2219, %v2267
        %v2573 = vunpack.c.l.s4 1983009808
        %v2574 = vunpack.c.0.s8 %v2573
        %v2575 = vlaneseq
        %v2576 = vshrl.u32 %v2575, 7
        %v2577 = vsub.s32 %v2574, %v2576
        %v2578 = vrot.slane %v2570, %v2577
        %v2580 = vunpack.c.l.s4 1983009808
        %v2581 = vunpack.c.0.s8 %v2580
        %v2582 = vlaneseq
        %v2583 = vshrl.u32 %v2582, 7
        %v2584 = vsub.s32 %v2581, %v2583
        %v2585 = vrot.slane %v2571, %v2584
        %v2586 = vcombine.low %v2562, %v2578
        %v2587 = vcombine.high %v2562, %v2578
        %v2589 = vunpack.c.l.s4 1934713408
        %v2590 = vunpack.c.0.s8 %v2589
        %v2591 = vlaneseq
        %v2592 = vshrl.u32 %v2591, 7
        %v2593 = vsub.s32 %v2590, %v2592
        %v2594 = vrot.slane %v2586, %v2593
        %v2596 = vunpack.c.l.s4 1934713408
        %v2597 = vunpack.c.0.s8 %v2596
        %v2598 = vlaneseq
        %v2599 = vshrl.u32 %v2598, 7
        %v2600 = vsub.s32 %v2597, %v2599
        %v2601 = vrot.slane %v2587, %v2600
        %v2602 = vcombine.low %v2569, %v2585
        %v2603 = vcombine.high %v2569, %v2585
        %v2605 = vunpack.c.l.s4 1934713408
        %v2606 = vunpack.c.0.s8 %v2605
        %v2607 = vlaneseq
        %v2608 = vshrl.u32 %v2607, 7
        %v2609 = vsub.s32 %v2606, %v2608
        %v2610 = vrot.slane %v2602, %v2609
        %v2612 = vunpack.c.l.s4 1934713408
        %v2613 = vunpack.c.0.s8 %v2612
        %v2614 = vlaneseq
        %v2615 = vshrl.u32 %v2614, 7
        %v2616 = vsub.s32 %v2613, %v2615
        %v2617 = vrot.slane %v2603, %v2616
        %v2618 = vcombine.high %v2594, 0.0
        %v2619 = vcombine.high %v2601, 0.0
        %v2620 = vcombine.high %v2610, 0.0
        %v2621 = vcombine.high %v2617, 0.0
        %v2622 = vcombine.low %v941, %v2245
        %v2623 = vcombine.high %v941, %v2245
        %v2625 = vunpack.c.l.s4 1983009808
        %v2626 = vunpack.c.0.s8 %v2625
        %v2627 = vlaneseq
        %v2628 = vshrl.u32 %v2627, 7
        %v2629 = vsub.s32 %v2626, %v2628
        %v2630 = vrot.slane %v2622, %v2629
        %v2632 = vunpack.c.l.s4 1983009808
        %v2633 = vunpack.c.0.s8 %v2632
        %v2634 = vlaneseq
        %v2635 = vshrl.u32 %v2634, 7
        %v2636 = vsub.s32 %v2633, %v2635
        %v2637 = vrot.slane %v2623, %v2636
        %v2638 = vcombine.low %v2221, %v2269
        %v2639 = vcombine.high %v2221, %v2269
        %v2641 = vunpack.c.l.s4 1983009808
        %v2642 = vunpack.c.0.s8 %v2641
        %v2643 = vlaneseq
        %v2644 = vshrl.u32 %v2643, 7
        %v2645 = vsub.s32 %v2642, %v2644
        %v2646 = vrot.slane %v2638, %v2645
        %v2648 = vunpack.c.l.s4 1983009808
        %v2649 = vunpack.c.0.s8 %v2648
        %v2650 = vlaneseq
        %v2651 = vshrl.u32 %v2650, 7
        %v2652 = vsub.s32 %v2649, %v2651
        %v2653 = vrot.slane %v2639, %v2652
        %v2654 = vcombine.low %v2630, %v2646
        %v2655 = vcombine.high %v2630, %v2646
        %v2657 = vunpack.c.l.s4 1934713408
        %v2658 = vunpack.c.0.s8 %v2657
        %v2659 = vlaneseq
        %v2660 = vshrl.u32 %v2659, 7
        %v2661 = vsub.s32 %v2658, %v2660
        %v2662 = vrot.slane %v2654, %v2661
        %v2664 = vunpack.c.l.s4 1934713408
        %v2665 = vunpack.c.0.s8 %v2664
        %v2666 = vlaneseq
        %v2667 = vshrl.u32 %v2666, 7
        %v2668 = vsub.s32 %v2665, %v2667
        %v2669 = vrot.slane %v2655, %v2668
        %v2670 = vcombine.low %v2637, %v2653
        %v2671 = vcombine.high %v2637, %v2653
        %v2673 = vunpack.c.l.s4 1934713408
        %v2674 = vunpack.c.0.s8 %v2673
        %v2675 = vlaneseq
        %v2676 = vshrl.u32 %v2675, 7
        %v2677 = vsub.s32 %v2674, %v2676
        %v2678 = vrot.slane %v2670, %v2677
        %v2680 = vunpack.c.l.s4 1934713408
        %v2681 = vunpack.c.0.s8 %v2680
        %v2682 = vlaneseq
        %v2683 = vshrl.u32 %v2682, 7
        %v2684 = vsub.s32 %v2681, %v2683
        %v2685 = vrot.slane %v2671, %v2684
        %v2686 = vcombine.high %v2662, 0.0
        %v2687 = vcombine.high %v2669, 0.0
        %v2688 = vcombine.high %v2678, 0.0
        %v2689 = vcombine.high %v2685, 0.0
        %v2690 = vcombine.low %v947, %v2247
        %v2691 = vcombine.high %v947, %v2247
        %v2693 = vunpack.c.l.s4 1983009808
        %v2694 = vunpack.c.0.s8 %v2693
        %v2695 = vlaneseq
        %v2696 = vshrl.u32 %v2695, 7
        %v2697 = vsub.s32 %v2694, %v2696
        %v2698 = vrot.slane %v2690, %v2697
        %v2700 = vunpack.c.l.s4 1983009808
        %v2701 = vunpack.c.0.s8 %v2700
        %v2702 = vlaneseq
        %v2703 = vshrl.u32 %v2702, 7
        %v2704 = vsub.s32 %v2701, %v2703
        %v2705 = vrot.slane %v2691, %v2704
        %v2706 = vcombine.low %v2223, %v2271
        %v2707 = vcombine.high %v2223, %v2271
        %v2709 = vunpack.c.l.s4 1983009808
        %v2710 = vunpack.c.0.s8 %v2709
        %v2711 = vlaneseq
        %v2712 = vshrl.u32 %v2711, 7
        %v2713 = vsub.s32 %v2710, %v2712
        %v2714 = vrot.slane %v2706, %v2713
        %v2716 = vunpack.c.l.s4 1983009808
        %v2717 = vunpack.c.0.s8 %v2716
        %v2718 = vlaneseq
        %v2719 = vshrl.u32 %v2718, 7
        %v2720 = vsub.s32 %v2717, %v2719
        %v2721 = vrot.slane %v2707, %v2720
        %v2722 = vcombine.low %v2698, %v2714
        %v2723 = vcombine.high %v2698, %v2714
        %v2725 = vunpack.c.l.s4 1934713408
        %v2726 = vunpack.c.0.s8 %v2725
        %v2727 = vlaneseq
        %v2728 = vshrl.u32 %v2727, 7
        %v2729 = vsub.s32 %v2726, %v2728
        %v2730 = vrot.slane %v2722, %v2729
        %v2732 = vunpack.c.l.s4 1934713408
        %v2733 = vunpack.c.0.s8 %v2732
        %v2734 = vlaneseq
        %v2735 = vshrl.u32 %v2734, 7
        %v2736 = vsub.s32 %v2733, %v2735
        %v2737 = vrot.slane %v2723, %v2736
        %v2738 = vcombine.low %v2705, %v2721
        %v2739 = vcombine.high %v2705, %v2721
        %v2741 = vunpack.c.l.s4 1934713408
        %v2742 = vunpack.c.0.s8 %v2741
        %v2743 = vlaneseq
        %v2744 = vshrl.u32 %v2743, 7
        %v2745 = vsub.s32 %v2742, %v2744
        %v2746 = vrot.slane %v2738, %v2745
        %v2748 = vunpack.c.l.s4 1934713408
        %v2749 = vunpack.c.0.s8 %v2748
        %v2750 = vlaneseq
        %v2751 = vshrl.u32 %v2750, 7
        %v2752 = vsub.s32 %v2749, %v2751
        %v2753 = vrot.slane %v2739, %v2752
        %v2754 = vcombine.high %v2730, 0.0
        %v2755 = vcombine.high %v2737, 0.0
        %v2756 = vcombine.high %v2746, 0.0
        %v2757 = vcombine.high %v2753, 0.0
        %v2758 = vcombine.low %v951, %v2249
        %v2759 = vcombine.high %v951, %v2249
        %v2761 = vunpack.c.l.s4 1983009808
        %v2762 = vunpack.c.0.s8 %v2761
        %v2763 = vlaneseq
        %v2764 = vshrl.u32 %v2763, 7
        %v2765 = vsub.s32 %v2762, %v2764
        %v2766 = vrot.slane %v2758, %v2765
        %v2768 = vunpack.c.l.s4 1983009808
        %v2769 = vunpack.c.0.s8 %v2768
        %v2770 = vlaneseq
        %v2771 = vshrl.u32 %v2770, 7
        %v2772 = vsub.s32 %v2769, %v2771
        %v2773 = vrot.slane %v2759, %v2772
        %v2774 = vcombine.low %v2225, %v2273
        %v2775 = vcombine.high %v2225, %v2273
        %v2777 = vunpack.c.l.s4 1983009808
        %v2778 = vunpack.c.0.s8 %v2777
        %v2779 = vlaneseq
        %v2780 = vshrl.u32 %v2779, 7
        %v2781 = vsub.s32 %v2778, %v2780
        %v2782 = vrot.slane %v2774, %v2781
        %v2784 = vunpack.c.l.s4 1983009808
        %v2785 = vunpack.c.0.s8 %v2784
        %v2786 = vlaneseq
        %v2787 = vshrl.u32 %v2786, 7
        %v2788 = vsub.s32 %v2785, %v2787
        %v2789 = vrot.slane %v2775, %v2788
        %v2790 = vcombine.low %v2766, %v2782
        %v2791 = vcombine.high %v2766, %v2782
        %v2793 = vunpack.c.l.s4 1934713408
        %v2794 = vunpack.c.0.s8 %v2793
        %v2795 = vlaneseq
        %v2796 = vshrl.u32 %v2795, 7
        %v2797 = vsub.s32 %v2794, %v2796
        %v2798 = vrot.slane %v2790, %v2797
        %v2800 = vunpack.c.l.s4 1934713408
        %v2801 = vunpack.c.0.s8 %v2800
        %v2802 = vlaneseq
        %v2803 = vshrl.u32 %v2802, 7
        %v2804 = vsub.s32 %v2801, %v2803
        %v2805 = vrot.slane %v2791, %v2804
        %v2806 = vcombine.low %v2773, %v2789
        %v2807 = vcombine.high %v2773, %v2789
        %v2809 = vunpack.c.l.s4 1934713408
        %v2810 = vunpack.c.0.s8 %v2809
        %v2811 = vlaneseq
        %v2812 = vshrl.u32 %v2811, 7
        %v2813 = vsub.s32 %v2810, %v2812
        %v2814 = vrot.slane %v2806, %v2813
        %v2816 = vunpack.c.l.s4 1934713408
        %v2817 = vunpack.c.0.s8 %v2816
        %v2818 = vlaneseq
        %v2819 = vshrl.u32 %v2818, 7
        %v2820 = vsub.s32 %v2817, %v2819
        %v2821 = vrot.slane %v2807, %v2820
        %v2822 = vcombine.high %v2798, 0.0
        %v2823 = vcombine.high %v2805, 0.0
        %v2824 = vcombine.high %v2814, 0.0
        %v2825 = vcombine.high %v2821, 0.0
        %v2826 = vcombine.low %v2322, %v2329
        %v2828 = vunpack.c.l.s4 1983009808
        %v2829 = vunpack.c.0.s8 %v2828
        %v2830 = vlaneseq
        %v2831 = vshrl.u32 %v2830, 7
        %v2832 = vsub.s32 %v2829, %v2831
        %v2833 = vrot.slane %v2826, %v2832
        %v2834 = vcombine.low %v2346, %v2347
        %v2836 = vunpack.c.l.s4 1983009808
        %v2837 = vunpack.c.0.s8 %v2836
        %v2838 = vlaneseq
        %v2839 = vshrl.u32 %v2838, 7
        %v2840 = vsub.s32 %v2837, %v2839
        %v2841 = vrot.slane %v2834, %v2840
        %v2842 = vcombine.low %v2338, %v2345
        %v2844 = vunpack.c.l.s4 1983009808
        %v2845 = vunpack.c.0.s8 %v2844
        %v2846 = vlaneseq
        %v2847 = vshrl.u32 %v2846, 7
        %v2848 = vsub.s32 %v2845, %v2847
        %v2849 = vrot.slane %v2842, %v2848
        %v2850 = vcombine.low %v2348, %v2349
        %v2852 = vunpack.c.l.s4 1983009808
        %v2853 = vunpack.c.0.s8 %v2852
        %v2854 = vlaneseq
        %v2855 = vshrl.u32 %v2854, 7
        %v2856 = vsub.s32 %v2853, %v2855
        %v2857 = vrot.slane %v2850, %v2856
        %v2858 = vcombine.low %v2833, %v2841
        %v2859 = vcombine.high %v2833, %v2841
        %v2861 = vunpack.c.l.s4 1934713408
        %v2862 = vunpack.c.0.s8 %v2861
        %v2863 = vlaneseq
        %v2864 = vshrl.u32 %v2863, 7
        %v2865 = vsub.s32 %v2862, %v2864
        %v2866 = vrot.slane %v2858, %v2865
        %v2868 = vunpack.c.l.s4 1934713408
        %v2869 = vunpack.c.0.s8 %v2868
        %v2870 = vlaneseq
        %v2871 = vshrl.u32 %v2870, 7
        %v2872 = vsub.s32 %v2869, %v2871
        %v2873 = vrot.slane %v2859, %v2872
        %v2874 = vcombine.low %v2849, %v2857
        %v2875 = vcombine.high %v2849, %v2857
        %v2877 = vunpack.c.l.s4 1934713408
        %v2878 = vunpack.c.0.s8 %v2877
        %v2879 = vlaneseq
        %v2880 = vshrl.u32 %v2879, 7
        %v2881 = vsub.s32 %v2878, %v2880
        %v2882 = vrot.slane %v2874, %v2881
        %v2884 = vunpack.c.l.s4 1934713408
        %v2885 = vunpack.c.0.s8 %v2884
        %v2886 = vlaneseq
        %v2887 = vshrl.u32 %v2886, 7
        %v2888 = vsub.s32 %v2885, %v2887
        %v2889 = vrot.slane %v2875, %v2888
        %v2890 = vcombine.low %v2866, %v2882
        %v2891 = vcombine.high %v2866, %v2882
        %v2892 = vcombine.low %v2873, %v2889
        %v2893 = vcombine.high %v2873, %v2889
        %v2894 = vcombine.low %v2390, %v2397
        %v2896 = vunpack.c.l.s4 1983009808
        %v2897 = vunpack.c.0.s8 %v2896
        %v2898 = vlaneseq
        %v2899 = vshrl.u32 %v2898, 7
        %v2900 = vsub.s32 %v2897, %v2899
        %v2901 = vrot.slane %v2894, %v2900
        %v2902 = vcombine.low %v2414, %v2415
        %v2904 = vunpack.c.l.s4 1983009808
        %v2905 = vunpack.c.0.s8 %v2904
        %v2906 = vlaneseq
        %v2907 = vshrl.u32 %v2906, 7
        %v2908 = vsub.s32 %v2905, %v2907
        %v2909 = vrot.slane %v2902, %v2908
        %v2910 = vcombine.low %v2406, %v2413
        %v2912 = vunpack.c.l.s4 1983009808
        %v2913 = vunpack.c.0.s8 %v2912
        %v2914 = vlaneseq
        %v2915 = vshrl.u32 %v2914, 7
        %v2916 = vsub.s32 %v2913, %v2915
        %v2917 = vrot.slane %v2910, %v2916
        %v2918 = vcombine.low %v2416, %v2417
        %v2920 = vunpack.c.l.s4 1983009808
        %v2921 = vunpack.c.0.s8 %v2920
        %v2922 = vlaneseq
        %v2923 = vshrl.u32 %v2922, 7
        %v2924 = vsub.s32 %v2921, %v2923
        %v2925 = vrot.slane %v2918, %v2924
        %v2926 = vcombine.low %v2901, %v2909
        %v2927 = vcombine.high %v2901, %v2909
        %v2929 = vunpack.c.l.s4 1934713408
        %v2930 = vunpack.c.0.s8 %v2929
        %v2931 = vlaneseq
        %v2932 = vshrl.u32 %v2931, 7
        %v2933 = vsub.s32 %v2930, %v2932
        %v2934 = vrot.slane %v2926, %v2933
        %v2936 = vunpack.c.l.s4 1934713408
        %v2937 = vunpack.c.0.s8 %v2936
        %v2938 = vlaneseq
        %v2939 = vshrl.u32 %v2938, 7
        %v2940 = vsub.s32 %v2937, %v2939
        %v2941 = vrot.slane %v2927, %v2940
        %v2942 = vcombine.low %v2917, %v2925
        %v2943 = vcombine.high %v2917, %v2925
        %v2945 = vunpack.c.l.s4 1934713408
        %v2946 = vunpack.c.0.s8 %v2945
        %v2947 = vlaneseq
        %v2948 = vshrl.u32 %v2947, 7
        %v2949 = vsub.s32 %v2946, %v2948
        %v2950 = vrot.slane %v2942, %v2949
        %v2952 = vunpack.c.l.s4 1934713408
        %v2953 = vunpack.c.0.s8 %v2952
        %v2954 = vlaneseq
        %v2955 = vshrl.u32 %v2954, 7
        %v2956 = vsub.s32 %v2953, %v2955
        %v2957 = vrot.slane %v2943, %v2956
        %v2958 = vcombine.low %v2934, %v2950
        %v2959 = vcombine.high %v2934, %v2950
        %v2960 = vcombine.low %v2941, %v2957
        %v2961 = vcombine.high %v2941, %v2957
        %v2962 = vcombine.low %v2458, %v2465
        %v2964 = vunpack.c.l.s4 1983009808
        %v2965 = vunpack.c.0.s8 %v2964
        %v2966 = vlaneseq
        %v2967 = vshrl.u32 %v2966, 7
        %v2968 = vsub.s32 %v2965, %v2967
        %v2969 = vrot.slane %v2962, %v2968
        %v2970 = vcombine.low %v2482, %v2483
        %v2972 = vunpack.c.l.s4 1983009808
        %v2973 = vunpack.c.0.s8 %v2972
        %v2974 = vlaneseq
        %v2975 = vshrl.u32 %v2974, 7
        %v2976 = vsub.s32 %v2973, %v2975
        %v2977 = vrot.slane %v2970, %v2976
        %v2978 = vcombine.low %v2474, %v2481
        %v2980 = vunpack.c.l.s4 1983009808
        %v2981 = vunpack.c.0.s8 %v2980
        %v2982 = vlaneseq
        %v2983 = vshrl.u32 %v2982, 7
        %v2984 = vsub.s32 %v2981, %v2983
        %v2985 = vrot.slane %v2978, %v2984
        %v2986 = vcombine.low %v2484, %v2485
        %v2988 = vunpack.c.l.s4 1983009808
        %v2989 = vunpack.c.0.s8 %v2988
        %v2990 = vlaneseq
        %v2991 = vshrl.u32 %v2990, 7
        %v2992 = vsub.s32 %v2989, %v2991
        %v2993 = vrot.slane %v2986, %v2992
        %v2994 = vcombine.low %v2969, %v2977
        %v2995 = vcombine.high %v2969, %v2977
        %v2997 = vunpack.c.l.s4 1934713408
        %v2998 = vunpack.c.0.s8 %v2997
        %v2999 = vlaneseq
        %v3000 = vshrl.u32 %v2999, 7
        %v3001 = vsub.s32 %v2998, %v3000
        %v3002 = vrot.slane %v2994, %v3001
        %v3004 = vunpack.c.l.s4 1934713408
        %v3005 = vunpack.c.0.s8 %v3004
        %v3006 = vlaneseq
        %v3007 = vshrl.u32 %v3006, 7
        %v3008 = vsub.s32 %v3005, %v3007
        %v3009 = vrot.slane %v2995, %v3008
        %v3010 = vcombine.low %v2985, %v2993
        %v3011 = vcombine.high %v2985, %v2993
        %v3013 = vunpack.c.l.s4 1934713408
        %v3014 = vunpack.c.0.s8 %v3013
        %v3015 = vlaneseq
        %v3016 = vshrl.u32 %v3015, 7
        %v3017 = vsub.s32 %v3014, %v3016
        %v3018 = vrot.slane %v3010, %v3017
        %v3020 = vunpack.c.l.s4 1934713408
        %v3021 = vunpack.c.0.s8 %v3020
        %v3022 = vlaneseq
        %v3023 = vshrl.u32 %v3022, 7
        %v3024 = vsub.s32 %v3021, %v3023
        %v3025 = vrot.slane %v3011, %v3024
        %v3026 = vcombine.low %v3002, %v3018
        %v3027 = vcombine.high %v3002, %v3018
        %v3028 = vcombine.low %v3009, %v3025
        %v3029 = vcombine.high %v3009, %v3025
        %v3030 = vcombine.low %v2526, %v2533
        %v3032 = vunpack.c.l.s4 1983009808
        %v3033 = vunpack.c.0.s8 %v3032
        %v3034 = vlaneseq
        %v3035 = vshrl.u32 %v3034, 7
        %v3036 = vsub.s32 %v3033, %v3035
        %v3037 = vrot.slane %v3030, %v3036
        %v3038 = vcombine.low %v2550, %v2551
        %v3040 = vunpack.c.l.s4 1983009808
        %v3041 = vunpack.c.0.s8 %v3040
        %v3042 = vlaneseq
        %v3043 = vshrl.u32 %v3042, 7
        %v3044 = vsub.s32 %v3041, %v3043
        %v3045 = vrot.slane %v3038, %v3044
        %v3046 = vcombine.low %v2542, %v2549
        %v3048 = vunpack.c.l.s4 1983009808
        %v3049 = vunpack.c.0.s8 %v3048
        %v3050 = vlaneseq
        %v3051 = vshrl.u32 %v3050, 7
        %v3052 = vsub.s32 %v3049, %v3051
        %v3053 = vrot.slane %v3046, %v3052
        %v3054 = vcombine.low %v2552, %v2553
        %v3056 = vunpack.c.l.s4 1983009808
        %v3057 = vunpack.c.0.s8 %v3056
        %v3058 = vlaneseq
        %v3059 = vshrl.u32 %v3058, 7
        %v3060 = vsub.s32 %v3057, %v3059
        %v3061 = vrot.slane %v3054, %v3060
        %v3062 = vcombine.low %v3037, %v3045
        %v3063 = vcombine.high %v3037, %v3045
        %v3065 = vunpack.c.l.s4 1934713408
        %v3066 = vunpack.c.0.s8 %v3065
        %v3067 = vlaneseq
        %v3068 = vshrl.u32 %v3067, 7
        %v3069 = vsub.s32 %v3066, %v3068
        %v3070 = vrot.slane %v3062, %v3069
        %v3072 = vunpack.c.l.s4 1934713408
        %v3073 = vunpack.c.0.s8 %v3072
        %v3074 = vlaneseq
        %v3075 = vshrl.u32 %v3074, 7
        %v3076 = vsub.s32 %v3073, %v3075
        %v3077 = vrot.slane %v3063, %v3076
        %v3078 = vcombine.low %v3053, %v3061
        %v3079 = vcombine.high %v3053, %v3061
        %v3081 = vunpack.c.l.s4 1934713408
        %v3082 = vunpack.c.0.s8 %v3081
        %v3083 = vlaneseq
        %v3084 = vshrl.u32 %v3083, 7
        %v3085 = vsub.s32 %v3082, %v3084
        %v3086 = vrot.slane %v3078, %v3085
        %v3088 = vunpack.c.l.s4 1934713408
        %v3089 = vunpack.c.0.s8 %v3088
        %v3090 = vlaneseq
        %v3091 = vshrl.u32 %v3090, 7
        %v3092 = vsub.s32 %v3089, %v3091
        %v3093 = vrot.slane %v3079, %v3092
        %v3094 = vcombine.low %v3070, %v3086
        %v3095 = vcombine.high %v3070, %v3086
        %v3096 = vcombine.low %v3077, %v3093
        %v3097 = vcombine.high %v3077, %v3093
        %v3098 = vcombine.low %v2594, %v2601
        %v3100 = vunpack.c.l.s4 1983009808
        %v3101 = vunpack.c.0.s8 %v3100
        %v3102 = vlaneseq
        %v3103 = vshrl.u32 %v3102, 7
        %v3104 = vsub.s32 %v3101, %v3103
        %v3105 = vrot.slane %v3098, %v3104
        %v3106 = vcombine.low %v2618, %v2619
        %v3108 = vunpack.c.l.s4 1983009808
        %v3109 = vunpack.c.0.s8 %v3108
        %v3110 = vlaneseq
        %v3111 = vshrl.u32 %v3110, 7
        %v3112 = vsub.s32 %v3109, %v3111
        %v3113 = vrot.slane %v3106, %v3112
        %v3114 = vcombine.low %v2610, %v2617
        %v3116 = vunpack.c.l.s4 1983009808
        %v3117 = vunpack.c.0.s8 %v3116
        %v3118 = vlaneseq
        %v3119 = vshrl.u32 %v3118, 7
        %v3120 = vsub.s32 %v3117, %v3119
        %v3121 = vrot.slane %v3114, %v3120
        %v3122 = vcombine.low %v2620, %v2621
        %v3124 = vunpack.c.l.s4 1983009808
        %v3125 = vunpack.c.0.s8 %v3124
        %v3126 = vlaneseq
        %v3127 = vshrl.u32 %v3126, 7
        %v3128 = vsub.s32 %v3125, %v3127
        %v3129 = vrot.slane %v3122, %v3128
        %v3130 = vcombine.low %v3105, %v3113
        %v3131 = vcombine.high %v3105, %v3113
        %v3133 = vunpack.c.l.s4 1934713408
        %v3134 = vunpack.c.0.s8 %v3133
        %v3135 = vlaneseq
        %v3136 = vshrl.u32 %v3135, 7
        %v3137 = vsub.s32 %v3134, %v3136
        %v3138 = vrot.slane %v3130, %v3137
        %v3140 = vunpack.c.l.s4 1934713408
        %v3141 = vunpack.c.0.s8 %v3140
        %v3142 = vlaneseq
        %v3143 = vshrl.u32 %v3142, 7
        %v3144 = vsub.s32 %v3141, %v3143
        %v3145 = vrot.slane %v3131, %v3144
        %v3146 = vcombine.low %v3121, %v3129
        %v3147 = vcombine.high %v3121, %v3129
        %v3149 = vunpack.c.l.s4 1934713408
        %v3150 = vunpack.c.0.s8 %v3149
        %v3151 = vlaneseq
        %v3152 = vshrl.u32 %v3151, 7
        %v3153 = vsub.s32 %v3150, %v3152
        %v3154 = vrot.slane %v3146, %v3153
        %v3156 = vunpack.c.l.s4 1934713408
        %v3157 = vunpack.c.0.s8 %v3156
        %v3158 = vlaneseq
        %v3159 = vshrl.u32 %v3158, 7
        %v3160 = vsub.s32 %v3157, %v3159
        %v3161 = vrot.slane %v3147, %v3160
        %v3162 = vcombine.low %v3138, %v3154
        %v3163 = vcombine.high %v3138, %v3154
        %v3164 = vcombine.low %v3145, %v3161
        %v3165 = vcombine.high %v3145, %v3161
        %v3166 = vcombine.low %v2662, %v2669
        %v3168 = vunpack.c.l.s4 1983009808
        %v3169 = vunpack.c.0.s8 %v3168
        %v3170 = vlaneseq
        %v3171 = vshrl.u32 %v3170, 7
        %v3172 = vsub.s32 %v3169, %v3171
        %v3173 = vrot.slane %v3166, %v3172
        %v3174 = vcombine.low %v2686, %v2687
        %v3176 = vunpack.c.l.s4 1983009808
        %v3177 = vunpack.c.0.s8 %v3176
        %v3178 = vlaneseq
        %v3179 = vshrl.u32 %v3178, 7
        %v3180 = vsub.s32 %v3177, %v3179
        %v3181 = vrot.slane %v3174, %v3180
        %v3182 = vcombine.low %v2678, %v2685
        %v3184 = vunpack.c.l.s4 1983009808
        %v3185 = vunpack.c.0.s8 %v3184
        %v3186 = vlaneseq
        %v3187 = vshrl.u32 %v3186, 7
        %v3188 = vsub.s32 %v3185, %v3187
        %v3189 = vrot.slane %v3182, %v3188
        %v3190 = vcombine.low %v2688, %v2689
        %v3192 = vunpack.c.l.s4 1983009808
        %v3193 = vunpack.c.0.s8 %v3192
        %v3194 = vlaneseq
        %v3195 = vshrl.u32 %v3194, 7
        %v3196 = vsub.s32 %v3193, %v3195
        %v3197 = vrot.slane %v3190, %v3196
        %v3198 = vcombine.low %v3173, %v3181
        %v3199 = vcombine.high %v3173, %v3181
        %v3201 = vunpack.c.l.s4 1934713408
        %v3202 = vunpack.c.0.s8 %v3201
        %v3203 = vlaneseq
        %v3204 = vshrl.u32 %v3203, 7
        %v3205 = vsub.s32 %v3202, %v3204
        %v3206 = vrot.slane %v3198, %v3205
        %v3208 = vunpack.c.l.s4 1934713408
        %v3209 = vunpack.c.0.s8 %v3208
        %v3210 = vlaneseq
        %v3211 = vshrl.u32 %v3210, 7
        %v3212 = vsub.s32 %v3209, %v3211
        %v3213 = vrot.slane %v3199, %v3212
        %v3214 = vcombine.low %v3189, %v3197
        %v3215 = vcombine.high %v3189, %v3197
        %v3217 = vunpack.c.l.s4 1934713408
        %v3218 = vunpack.c.0.s8 %v3217
        %v3219 = vlaneseq
        %v3220 = vshrl.u32 %v3219, 7
        %v3221 = vsub.s32 %v3218, %v3220
        %v3222 = vrot.slane %v3214, %v3221
        %v3224 = vunpack.c.l.s4 1934713408
        %v3225 = vunpack.c.0.s8 %v3224
        %v3226 = vlaneseq
        %v3227 = vshrl.u32 %v3226, 7
        %v3228 = vsub.s32 %v3225, %v3227
        %v3229 = vrot.slane %v3215, %v3228
        %v3230 = vcombine.low %v3206, %v3222
        %v3231 = vcombine.high %v3206, %v3222
        %v3232 = vcombine.low %v3213, %v3229
        %v3233 = vcombine.high %v3213, %v3229
        %v3234 = vcombine.low %v2730, %v2737
        %v3236 = vunpack.c.l.s4 1983009808
        %v3237 = vunpack.c.0.s8 %v3236
        %v3238 = vlaneseq
        %v3239 = vshrl.u32 %v3238, 7
        %v3240 = vsub.s32 %v3237, %v3239
        %v3241 = vrot.slane %v3234, %v3240
        %v3242 = vcombine.low %v2754, %v2755
        %v3244 = vunpack.c.l.s4 1983009808
        %v3245 = vunpack.c.0.s8 %v3244
        %v3246 = vlaneseq
        %v3247 = vshrl.u32 %v3246, 7
        %v3248 = vsub.s32 %v3245, %v3247
        %v3249 = vrot.slane %v3242, %v3248
        %v3250 = vcombine.low %v2746, %v2753
        %v3252 = vunpack.c.l.s4 1983009808
        %v3253 = vunpack.c.0.s8 %v3252
        %v3254 = vlaneseq
        %v3255 = vshrl.u32 %v3254, 7
        %v3256 = vsub.s32 %v3253, %v3255
        %v3257 = vrot.slane %v3250, %v3256
        %v3258 = vcombine.low %v2756, %v2757
        %v3260 = vunpack.c.l.s4 1983009808
        %v3261 = vunpack.c.0.s8 %v3260
        %v3262 = vlaneseq
        %v3263 = vshrl.u32 %v3262, 7
        %v3264 = vsub.s32 %v3261, %v3263
        %v3265 = vrot.slane %v3258, %v3264
        %v3266 = vcombine.low %v3241, %v3249
        %v3267 = vcombine.high %v3241, %v3249
        %v3269 = vunpack.c.l.s4 1934713408
        %v3270 = vunpack.c.0.s8 %v3269
        %v3271 = vlaneseq
        %v3272 = vshrl.u32 %v3271, 7
        %v3273 = vsub.s32 %v3270, %v3272
        %v3274 = vrot.slane %v3266, %v3273
        %v3276 = vunpack.c.l.s4 1934713408
        %v3277 = vunpack.c.0.s8 %v3276
        %v3278 = vlaneseq
        %v3279 = vshrl.u32 %v3278, 7
        %v3280 = vsub.s32 %v3277, %v3279
        %v3281 = vrot.slane %v3267, %v3280
        %v3282 = vcombine.low %v3257, %v3265
        %v3283 = vcombine.high %v3257, %v3265
        %v3285 = vunpack.c.l.s4 1934713408
        %v3286 = vunpack.c.0.s8 %v3285
        %v3287 = vlaneseq
        %v3288 = vshrl.u32 %v3287, 7
        %v3289 = vsub.s32 %v3286, %v3288
        %v3290 = vrot.slane %v3282, %v3289
        %v3292 = vunpack.c.l.s4 1934713408
        %v3293 = vunpack.c.0.s8 %v3292
        %v3294 = vlaneseq
        %v3295 = vshrl.u32 %v3294, 7
        %v3296 = vsub.s32 %v3293, %v3295
        %v3297 = vrot.slane %v3283, %v3296
        %v3298 = vcombine.low %v3274, %v3290
        %v3299 = vcombine.high %v3274, %v3290
        %v3300 = vcombine.low %v3281, %v3297
        %v3301 = vcombine.high %v3281, %v3297
        %v3302 = vcombine.low %v2798, %v2805
        %v3304 = vunpack.c.l.s4 1983009808
        %v3305 = vunpack.c.0.s8 %v3304
        %v3306 = vlaneseq
        %v3307 = vshrl.u32 %v3306, 7
        %v3308 = vsub.s32 %v3305, %v3307
        %v3309 = vrot.slane %v3302, %v3308
        %v3310 = vcombine.low %v2822, %v2823
        %v3312 = vunpack.c.l.s4 1983009808
        %v3313 = vunpack.c.0.s8 %v3312
        %v3314 = vlaneseq
        %v3315 = vshrl.u32 %v3314, 7
        %v3316 = vsub.s32 %v3313, %v3315
        %v3317 = vrot.slane %v3310, %v3316
        %v3318 = vcombine.low %v2814, %v2821
        %v3320 = vunpack.c.l.s4 1983009808
        %v3321 = vunpack.c.0.s8 %v3320
        %v3322 = vlaneseq
        %v3323 = vshrl.u32 %v3322, 7
        %v3324 = vsub.s32 %v3321, %v3323
        %v3325 = vrot.slane %v3318, %v3324
        %v3326 = vcombine.low %v2824, %v2825
        %v3328 = vunpack.c.l.s4 1983009808
        %v3329 = vunpack.c.0.s8 %v3328
        %v3330 = vlaneseq
        %v3331 = vshrl.u32 %v3330, 7
        %v3332 = vsub.s32 %v3329, %v3331
        %v3333 = vrot.slane %v3326, %v3332
        %v3334 = vcombine.low %v3309, %v3317
        %v3335 = vcombine.high %v3309, %v3317
        %v3337 = vunpack.c.l.s4 1934713408
        %v3338 = vunpack.c.0.s8 %v3337
        %v3339 = vlaneseq
        %v3340 = vshrl.u32 %v3339, 7
        %v3341 = vsub.s32 %v3338, %v3340
        %v3342 = vrot.slane %v3334, %v3341
        %v3344 = vunpack.c.l.s4 1934713408
        %v3345 = vunpack.c.0.s8 %v3344
        %v3346 = vlaneseq
        %v3347 = vshrl.u32 %v3346, 7
        %v3348 = vsub.s32 %v3345, %v3347
        %v3349 = vrot.slane %v3335, %v3348
        %v3350 = vcombine.low %v3325, %v3333
        %v3351 = vcombine.high %v3325, %v3333
        %v3353 = vunpack.c.l.s4 1934713408
        %v3354 = vunpack.c.0.s8 %v3353
        %v3355 = vlaneseq
        %v3356 = vshrl.u32 %v3355, 7
        %v3357 = vsub.s32 %v3354, %v3356
        %v3358 = vrot.slane %v3350, %v3357
        %v3360 = vunpack.c.l.s4 1934713408
        %v3361 = vunpack.c.0.s8 %v3360
        %v3362 = vlaneseq
        %v3363 = vshrl.u32 %v3362, 7
        %v3364 = vsub.s32 %v3361, %v3363
        %v3365 = vrot.slane %v3351, %v3364
        %v3366 = vcombine.low %v3342, %v3358
        %v3367 = vcombine.high %v3342, %v3358
        %v3368 = vcombine.low %v3349, %v3365
        %v3369 = vcombine.high %v3349, %v3365
        %v3370 = vpack.c.bf16 %v2958, %v2890
        %v3371 = vpack.c.bf16 %v3094, %v3026
        %v3372 = vpack.c.bf16 %v3230, %v3162
        %v3373 = vpack.c.bf16 %v3366, %v3298
        %v3374 = vpack.c.bf16 %v2959, %v2891
        %v3375 = vpack.c.bf16 %v3095, %v3027
        %v3376 = vpack.c.bf16 %v3231, %v3163
        %v3377 = vpack.c.bf16 %v3367, %v3299
        %v3378 = vpack.c.bf16 %v2960, %v2892
        %v3379 = vpack.c.bf16 %v3096, %v3028
        %v3380 = vpack.c.bf16 %v3232, %v3164
        %v3381 = vpack.c.bf16 %v3368, %v3300
        %v3382 = vpack.c.bf16 %v2961, %v2893
        %v3383 = vpack.c.bf16 %v3097, %v3029
        %v3384 = vpack.c.bf16 %v3233, %v3165
        %v3385 = vpack.c.bf16 %v3369, %v3301
        %3394 = vrot.lane.b32.xlu0 %v988, 96
        %v3395 = vpop.permute.xlu0 %3394
        %3396 = vrot.lane.b32.xlu0 %v991, 96
        %v3397 = vpop.permute.xlu0 %3396
        %3398 = vrot.lane.b32.xlu0 %v996, 96
        %v3399 = vpop.permute.xlu0 %3398
        %3400 = vrot.lane.b32.xlu0 %v999, 96
        %v3401 = vpop.permute.xlu0 %3400
        %3402 = vrot.lane.b32.xlu0 %v1004, 96
        %v3403 = vpop.permute.xlu0 %3402
        %3404 = vrot.lane.b32.xlu0 %v1007, 96
        %v3405 = vpop.permute.xlu0 %3404
        %3406 = vrot.lane.b32.xlu0 %v1012, 96
        %v3407 = vpop.permute.xlu0 %3406
        %3408 = vrot.lane.b32.xlu0 %v1015, 96
        %v3409 = vpop.permute.xlu0 %3408
        %3418 = vrot.lane.b32.xlu0 %v988, 64
        %v3419 = vpop.permute.xlu0 %3418
        %3420 = vrot.lane.b32.xlu0 %v991, 64
        %v3421 = vpop.permute.xlu0 %3420
        %3422 = vrot.lane.b32.xlu0 %v996, 64
        %v3423 = vpop.permute.xlu0 %3422
        %3424 = vrot.lane.b32.xlu0 %v999, 64
        %v3425 = vpop.permute.xlu0 %3424
        %3426 = vrot.lane.b32.xlu0 %v1004, 64
        %v3427 = vpop.permute.xlu0 %3426
        %3428 = vrot.lane.b32.xlu0 %v1007, 64
        %v3429 = vpop.permute.xlu0 %3428
        %3430 = vrot.lane.b32.xlu0 %v1012, 64
        %v3431 = vpop.permute.xlu0 %3430
        %3432 = vrot.lane.b32.xlu0 %v1015, 64
        %v3433 = vpop.permute.xlu0 %3432
        %3442 = vrot.lane.b32.xlu0 %v988, 32
        %v3443 = vpop.permute.xlu0 %3442
        %3444 = vrot.lane.b32.xlu0 %v991, 32
        %v3445 = vpop.permute.xlu0 %3444
        %3446 = vrot.lane.b32.xlu0 %v996, 32
        %v3447 = vpop.permute.xlu0 %3446
        %3448 = vrot.lane.b32.xlu0 %v999, 32
        %v3449 = vpop.permute.xlu0 %3448
        %3450 = vrot.lane.b32.xlu0 %v1004, 32
        %v3451 = vpop.permute.xlu0 %3450
        %3452 = vrot.lane.b32.xlu0 %v1007, 32
        %v3453 = vpop.permute.xlu0 %3452
        %3454 = vrot.lane.b32.xlu0 %v1012, 32
        %v3455 = vpop.permute.xlu0 %3454
        %3456 = vrot.lane.b32.xlu0 %v1015, 32
        %v3457 = vpop.permute.xlu0 %3456
        %v3466 = vcombine.low %v988, %v3419
        %v3467 = vcombine.high %v988, %v3419
        %v3469 = vunpack.c.l.s4 1983009808
        %v3470 = vunpack.c.0.s8 %v3469
        %v3471 = vlaneseq
        %v3472 = vshrl.u32 %v3471, 7
        %v3473 = vsub.s32 %v3470, %v3472
        %v3474 = vrot.slane %v3466, %v3473
        %v3476 = vunpack.c.l.s4 1983009808
        %v3477 = vunpack.c.0.s8 %v3476
        %v3478 = vlaneseq
        %v3479 = vshrl.u32 %v3478, 7
        %v3480 = vsub.s32 %v3477, %v3479
        %v3481 = vrot.slane %v3467, %v3480
        %v3482 = vcombine.low %v3395, %v3443
        %v3483 = vcombine.high %v3395, %v3443
        %v3485 = vunpack.c.l.s4 1983009808
        %v3486 = vunpack.c.0.s8 %v3485
        %v3487 = vlaneseq
        %v3488 = vshrl.u32 %v3487, 7
        %v3489 = vsub.s32 %v3486, %v3488
        %v3490 = vrot.slane %v3482, %v3489
        %v3492 = vunpack.c.l.s4 1983009808
        %v3493 = vunpack.c.0.s8 %v3492
        %v3494 = vlaneseq
        %v3495 = vshrl.u32 %v3494, 7
        %v3496 = vsub.s32 %v3493, %v3495
        %v3497 = vrot.slane %v3483, %v3496
        %v3498 = vcombine.low %v3474, %v3490
        %v3499 = vcombine.high %v3474, %v3490
        %v3501 = vunpack.c.l.s4 1934713408
        %v3502 = vunpack.c.0.s8 %v3501
        %v3503 = vlaneseq
        %v3504 = vshrl.u32 %v3503, 7
        %v3505 = vsub.s32 %v3502, %v3504
        %v3506 = vrot.slane %v3498, %v3505
        %v3508 = vunpack.c.l.s4 1934713408
        %v3509 = vunpack.c.0.s8 %v3508
        %v3510 = vlaneseq
        %v3511 = vshrl.u32 %v3510, 7
        %v3512 = vsub.s32 %v3509, %v3511
        %v3513 = vrot.slane %v3499, %v3512
        %v3514 = vcombine.low %v3481, %v3497
        %v3515 = vcombine.high %v3481, %v3497
        %v3517 = vunpack.c.l.s4 1934713408
        %v3518 = vunpack.c.0.s8 %v3517
        %v3519 = vlaneseq
        %v3520 = vshrl.u32 %v3519, 7
        %v3521 = vsub.s32 %v3518, %v3520
        %v3522 = vrot.slane %v3514, %v3521
        %v3524 = vunpack.c.l.s4 1934713408
        %v3525 = vunpack.c.0.s8 %v3524
        %v3526 = vlaneseq
        %v3527 = vshrl.u32 %v3526, 7
        %v3528 = vsub.s32 %v3525, %v3527
        %v3529 = vrot.slane %v3515, %v3528
        %v3530 = vcombine.high %v3506, 0.0
        %v3531 = vcombine.high %v3513, 0.0
        %v3532 = vcombine.high %v3522, 0.0
        %v3533 = vcombine.high %v3529, 0.0
        %v3534 = vcombine.low %v991, %v3421
        %v3535 = vcombine.high %v991, %v3421
        %v3537 = vunpack.c.l.s4 1983009808
        %v3538 = vunpack.c.0.s8 %v3537
        %v3539 = vlaneseq
        %v3540 = vshrl.u32 %v3539, 7
        %v3541 = vsub.s32 %v3538, %v3540
        %v3542 = vrot.slane %v3534, %v3541
        %v3544 = vunpack.c.l.s4 1983009808
        %v3545 = vunpack.c.0.s8 %v3544
        %v3546 = vlaneseq
        %v3547 = vshrl.u32 %v3546, 7
        %v3548 = vsub.s32 %v3545, %v3547
        %v3549 = vrot.slane %v3535, %v3548
        %v3550 = vcombine.low %v3397, %v3445
        %v3551 = vcombine.high %v3397, %v3445
        %v3553 = vunpack.c.l.s4 1983009808
        %v3554 = vunpack.c.0.s8 %v3553
        %v3555 = vlaneseq
        %v3556 = vshrl.u32 %v3555, 7
        %v3557 = vsub.s32 %v3554, %v3556
        %v3558 = vrot.slane %v3550, %v3557
        %v3560 = vunpack.c.l.s4 1983009808
        %v3561 = vunpack.c.0.s8 %v3560
        %v3562 = vlaneseq
        %v3563 = vshrl.u32 %v3562, 7
        %v3564 = vsub.s32 %v3561, %v3563
        %v3565 = vrot.slane %v3551, %v3564
        %v3566 = vcombine.low %v3542, %v3558
        %v3567 = vcombine.high %v3542, %v3558
        %v3569 = vunpack.c.l.s4 1934713408
        %v3570 = vunpack.c.0.s8 %v3569
        %v3571 = vlaneseq
        %v3572 = vshrl.u32 %v3571, 7
        %v3573 = vsub.s32 %v3570, %v3572
        %v3574 = vrot.slane %v3566, %v3573
        %v3576 = vunpack.c.l.s4 1934713408
        %v3577 = vunpack.c.0.s8 %v3576
        %v3578 = vlaneseq
        %v3579 = vshrl.u32 %v3578, 7
        %v3580 = vsub.s32 %v3577, %v3579
        %v3581 = vrot.slane %v3567, %v3580
        %v3582 = vcombine.low %v3549, %v3565
        %v3583 = vcombine.high %v3549, %v3565
        %v3585 = vunpack.c.l.s4 1934713408
        %v3586 = vunpack.c.0.s8 %v3585
        %v3587 = vlaneseq
        %v3588 = vshrl.u32 %v3587, 7
        %v3589 = vsub.s32 %v3586, %v3588
        %v3590 = vrot.slane %v3582, %v3589
        %v3592 = vunpack.c.l.s4 1934713408
        %v3593 = vunpack.c.0.s8 %v3592
        %v3594 = vlaneseq
        %v3595 = vshrl.u32 %v3594, 7
        %v3596 = vsub.s32 %v3593, %v3595
        %v3597 = vrot.slane %v3583, %v3596
        %v3598 = vcombine.high %v3574, 0.0
        %v3599 = vcombine.high %v3581, 0.0
        %v3600 = vcombine.high %v3590, 0.0
        %v3601 = vcombine.high %v3597, 0.0
        %v3602 = vcombine.low %v996, %v3423
        %v3603 = vcombine.high %v996, %v3423
        %v3605 = vunpack.c.l.s4 1983009808
        %v3606 = vunpack.c.0.s8 %v3605
        %v3607 = vlaneseq
        %v3608 = vshrl.u32 %v3607, 7
        %v3609 = vsub.s32 %v3606, %v3608
        %v3610 = vrot.slane %v3602, %v3609
        %v3612 = vunpack.c.l.s4 1983009808
        %v3613 = vunpack.c.0.s8 %v3612
        %v3614 = vlaneseq
        %v3615 = vshrl.u32 %v3614, 7
        %v3616 = vsub.s32 %v3613, %v3615
        %v3617 = vrot.slane %v3603, %v3616
        %v3618 = vcombine.low %v3399, %v3447
        %v3619 = vcombine.high %v3399, %v3447
        %v3621 = vunpack.c.l.s4 1983009808
        %v3622 = vunpack.c.0.s8 %v3621
        %v3623 = vlaneseq
        %v3624 = vshrl.u32 %v3623, 7
        %v3625 = vsub.s32 %v3622, %v3624
        %v3626 = vrot.slane %v3618, %v3625
        %v3628 = vunpack.c.l.s4 1983009808
        %v3629 = vunpack.c.0.s8 %v3628
        %v3630 = vlaneseq
        %v3631 = vshrl.u32 %v3630, 7
        %v3632 = vsub.s32 %v3629, %v3631
        %v3633 = vrot.slane %v3619, %v3632
        %v3634 = vcombine.low %v3610, %v3626
        %v3635 = vcombine.high %v3610, %v3626
        %v3637 = vunpack.c.l.s4 1934713408
        %v3638 = vunpack.c.0.s8 %v3637
        %v3639 = vlaneseq
        %v3640 = vshrl.u32 %v3639, 7
        %v3641 = vsub.s32 %v3638, %v3640
        %v3642 = vrot.slane %v3634, %v3641
        %v3644 = vunpack.c.l.s4 1934713408
        %v3645 = vunpack.c.0.s8 %v3644
        %v3646 = vlaneseq
        %v3647 = vshrl.u32 %v3646, 7
        %v3648 = vsub.s32 %v3645, %v3647
        %v3649 = vrot.slane %v3635, %v3648
        %v3650 = vcombine.low %v3617, %v3633
        %v3651 = vcombine.high %v3617, %v3633
        %v3653 = vunpack.c.l.s4 1934713408
        %v3654 = vunpack.c.0.s8 %v3653
        %v3655 = vlaneseq
        %v3656 = vshrl.u32 %v3655, 7
        %v3657 = vsub.s32 %v3654, %v3656
        %v3658 = vrot.slane %v3650, %v3657
        %v3660 = vunpack.c.l.s4 1934713408
        %v3661 = vunpack.c.0.s8 %v3660
        %v3662 = vlaneseq
        %v3663 = vshrl.u32 %v3662, 7
        %v3664 = vsub.s32 %v3661, %v3663
        %v3665 = vrot.slane %v3651, %v3664
        %v3666 = vcombine.high %v3642, 0.0
        %v3667 = vcombine.high %v3649, 0.0
        %v3668 = vcombine.high %v3658, 0.0
        %v3669 = vcombine.high %v3665, 0.0
        %v3670 = vcombine.low %v999, %v3425
        %v3671 = vcombine.high %v999, %v3425
        %v3673 = vunpack.c.l.s4 1983009808
        %v3674 = vunpack.c.0.s8 %v3673
        %v3675 = vlaneseq
        %v3676 = vshrl.u32 %v3675, 7
        %v3677 = vsub.s32 %v3674, %v3676
        %v3678 = vrot.slane %v3670, %v3677
        %v3680 = vunpack.c.l.s4 1983009808
        %v3681 = vunpack.c.0.s8 %v3680
        %v3682 = vlaneseq
        %v3683 = vshrl.u32 %v3682, 7
        %v3684 = vsub.s32 %v3681, %v3683
        %v3685 = vrot.slane %v3671, %v3684
        %v3686 = vcombine.low %v3401, %v3449
        %v3687 = vcombine.high %v3401, %v3449
        %v3689 = vunpack.c.l.s4 1983009808
        %v3690 = vunpack.c.0.s8 %v3689
        %v3691 = vlaneseq
        %v3692 = vshrl.u32 %v3691, 7
        %v3693 = vsub.s32 %v3690, %v3692
        %v3694 = vrot.slane %v3686, %v3693
        %v3696 = vunpack.c.l.s4 1983009808
        %v3697 = vunpack.c.0.s8 %v3696
        %v3698 = vlaneseq
        %v3699 = vshrl.u32 %v3698, 7
        %v3700 = vsub.s32 %v3697, %v3699
        %v3701 = vrot.slane %v3687, %v3700
        %v3702 = vcombine.low %v3678, %v3694
        %v3703 = vcombine.high %v3678, %v3694
        %v3705 = vunpack.c.l.s4 1934713408
        %v3706 = vunpack.c.0.s8 %v3705
        %v3707 = vlaneseq
        %v3708 = vshrl.u32 %v3707, 7
        %v3709 = vsub.s32 %v3706, %v3708
        %v3710 = vrot.slane %v3702, %v3709
        %v3712 = vunpack.c.l.s4 1934713408
        %v3713 = vunpack.c.0.s8 %v3712
        %v3714 = vlaneseq
        %v3715 = vshrl.u32 %v3714, 7
        %v3716 = vsub.s32 %v3713, %v3715
        %v3717 = vrot.slane %v3703, %v3716
        %v3718 = vcombine.low %v3685, %v3701
        %v3719 = vcombine.high %v3685, %v3701
        %v3721 = vunpack.c.l.s4 1934713408
        %v3722 = vunpack.c.0.s8 %v3721
        %v3723 = vlaneseq
        %v3724 = vshrl.u32 %v3723, 7
        %v3725 = vsub.s32 %v3722, %v3724
        %v3726 = vrot.slane %v3718, %v3725
        %v3728 = vunpack.c.l.s4 1934713408
        %v3729 = vunpack.c.0.s8 %v3728
        %v3730 = vlaneseq
        %v3731 = vshrl.u32 %v3730, 7
        %v3732 = vsub.s32 %v3729, %v3731
        %v3733 = vrot.slane %v3719, %v3732
        %v3734 = vcombine.high %v3710, 0.0
        %v3735 = vcombine.high %v3717, 0.0
        %v3736 = vcombine.high %v3726, 0.0
        %v3737 = vcombine.high %v3733, 0.0
        %v3738 = vcombine.low %v1004, %v3427
        %v3739 = vcombine.high %v1004, %v3427
        %v3741 = vunpack.c.l.s4 1983009808
        %v3742 = vunpack.c.0.s8 %v3741
        %v3743 = vlaneseq
        %v3744 = vshrl.u32 %v3743, 7
        %v3745 = vsub.s32 %v3742, %v3744
        %v3746 = vrot.slane %v3738, %v3745
        %v3748 = vunpack.c.l.s4 1983009808
        %v3749 = vunpack.c.0.s8 %v3748
        %v3750 = vlaneseq
        %v3751 = vshrl.u32 %v3750, 7
        %v3752 = vsub.s32 %v3749, %v3751
        %v3753 = vrot.slane %v3739, %v3752
        %v3754 = vcombine.low %v3403, %v3451
        %v3755 = vcombine.high %v3403, %v3451
        %v3757 = vunpack.c.l.s4 1983009808
        %v3758 = vunpack.c.0.s8 %v3757
        %v3759 = vlaneseq
        %v3760 = vshrl.u32 %v3759, 7
        %v3761 = vsub.s32 %v3758, %v3760
        %v3762 = vrot.slane %v3754, %v3761
        %v3764 = vunpack.c.l.s4 1983009808
        %v3765 = vunpack.c.0.s8 %v3764
        %v3766 = vlaneseq
        %v3767 = vshrl.u32 %v3766, 7
        %v3768 = vsub.s32 %v3765, %v3767
        %v3769 = vrot.slane %v3755, %v3768
        %v3770 = vcombine.low %v3746, %v3762
        %v3771 = vcombine.high %v3746, %v3762
        %v3773 = vunpack.c.l.s4 1934713408
        %v3774 = vunpack.c.0.s8 %v3773
        %v3775 = vlaneseq
        %v3776 = vshrl.u32 %v3775, 7
        %v3777 = vsub.s32 %v3774, %v3776
        %v3778 = vrot.slane %v3770, %v3777
        %v3780 = vunpack.c.l.s4 1934713408
        %v3781 = vunpack.c.0.s8 %v3780
        %v3782 = vlaneseq
        %v3783 = vshrl.u32 %v3782, 7
        %v3784 = vsub.s32 %v3781, %v3783
        %v3785 = vrot.slane %v3771, %v3784
        %v3786 = vcombine.low %v3753, %v3769
        %v3787 = vcombine.high %v3753, %v3769
        %v3789 = vunpack.c.l.s4 1934713408
        %v3790 = vunpack.c.0.s8 %v3789
        %v3791 = vlaneseq
        %v3792 = vshrl.u32 %v3791, 7
        %v3793 = vsub.s32 %v3790, %v3792
        %v3794 = vrot.slane %v3786, %v3793
        %v3796 = vunpack.c.l.s4 1934713408
        %v3797 = vunpack.c.0.s8 %v3796
        %v3798 = vlaneseq
        %v3799 = vshrl.u32 %v3798, 7
        %v3800 = vsub.s32 %v3797, %v3799
        %v3801 = vrot.slane %v3787, %v3800
        %v3802 = vcombine.high %v3778, 0.0
        %v3803 = vcombine.high %v3785, 0.0
        %v3804 = vcombine.high %v3794, 0.0
        %v3805 = vcombine.high %v3801, 0.0
        %v3806 = vcombine.low %v1007, %v3429
        %v3807 = vcombine.high %v1007, %v3429
        %v3809 = vunpack.c.l.s4 1983009808
        %v3810 = vunpack.c.0.s8 %v3809
        %v3811 = vlaneseq
        %v3812 = vshrl.u32 %v3811, 7
        %v3813 = vsub.s32 %v3810, %v3812
        %v3814 = vrot.slane %v3806, %v3813
        %v3816 = vunpack.c.l.s4 1983009808
        %v3817 = vunpack.c.0.s8 %v3816
        %v3818 = vlaneseq
        %v3819 = vshrl.u32 %v3818, 7
        %v3820 = vsub.s32 %v3817, %v3819
        %v3821 = vrot.slane %v3807, %v3820
        %v3822 = vcombine.low %v3405, %v3453
        %v3823 = vcombine.high %v3405, %v3453
        %v3825 = vunpack.c.l.s4 1983009808
        %v3826 = vunpack.c.0.s8 %v3825
        %v3827 = vlaneseq
        %v3828 = vshrl.u32 %v3827, 7
        %v3829 = vsub.s32 %v3826, %v3828
        %v3830 = vrot.slane %v3822, %v3829
        %v3832 = vunpack.c.l.s4 1983009808
        %v3833 = vunpack.c.0.s8 %v3832
        %v3834 = vlaneseq
        %v3835 = vshrl.u32 %v3834, 7
        %v3836 = vsub.s32 %v3833, %v3835
        %v3837 = vrot.slane %v3823, %v3836
        %v3838 = vcombine.low %v3814, %v3830
        %v3839 = vcombine.high %v3814, %v3830
        %v3841 = vunpack.c.l.s4 1934713408
        %v3842 = vunpack.c.0.s8 %v3841
        %v3843 = vlaneseq
        %v3844 = vshrl.u32 %v3843, 7
        %v3845 = vsub.s32 %v3842, %v3844
        %v3846 = vrot.slane %v3838, %v3845
        %v3848 = vunpack.c.l.s4 1934713408
        %v3849 = vunpack.c.0.s8 %v3848
        %v3850 = vlaneseq
        %v3851 = vshrl.u32 %v3850, 7
        %v3852 = vsub.s32 %v3849, %v3851
        %v3853 = vrot.slane %v3839, %v3852
        %v3854 = vcombine.low %v3821, %v3837
        %v3855 = vcombine.high %v3821, %v3837
        %v3857 = vunpack.c.l.s4 1934713408
        %v3858 = vunpack.c.0.s8 %v3857
        %v3859 = vlaneseq
        %v3860 = vshrl.u32 %v3859, 7
        %v3861 = vsub.s32 %v3858, %v3860
        %v3862 = vrot.slane %v3854, %v3861
        %v3864 = vunpack.c.l.s4 1934713408
        %v3865 = vunpack.c.0.s8 %v3864
        %v3866 = vlaneseq
        %v3867 = vshrl.u32 %v3866, 7
        %v3868 = vsub.s32 %v3865, %v3867
        %v3869 = vrot.slane %v3855, %v3868
        %v3870 = vcombine.high %v3846, 0.0
        %v3871 = vcombine.high %v3853, 0.0
        %v3872 = vcombine.high %v3862, 0.0
        %v3873 = vcombine.high %v3869, 0.0
        %v3874 = vcombine.low %v1012, %v3431
        %v3875 = vcombine.high %v1012, %v3431
        %v3877 = vunpack.c.l.s4 1983009808
        %v3878 = vunpack.c.0.s8 %v3877
        %v3879 = vlaneseq
        %v3880 = vshrl.u32 %v3879, 7
        %v3881 = vsub.s32 %v3878, %v3880
        %v3882 = vrot.slane %v3874, %v3881
        %v3884 = vunpack.c.l.s4 1983009808
        %v3885 = vunpack.c.0.s8 %v3884
        %v3886 = vlaneseq
        %v3887 = vshrl.u32 %v3886, 7
        %v3888 = vsub.s32 %v3885, %v3887
        %v3889 = vrot.slane %v3875, %v3888
        %v3890 = vcombine.low %v3407, %v3455
        %v3891 = vcombine.high %v3407, %v3455
        %v3893 = vunpack.c.l.s4 1983009808
        %v3894 = vunpack.c.0.s8 %v3893
        %v3895 = vlaneseq
        %v3896 = vshrl.u32 %v3895, 7
        %v3897 = vsub.s32 %v3894, %v3896
        %v3898 = vrot.slane %v3890, %v3897
        %v3900 = vunpack.c.l.s4 1983009808
        %v3901 = vunpack.c.0.s8 %v3900
        %v3902 = vlaneseq
        %v3903 = vshrl.u32 %v3902, 7
        %v3904 = vsub.s32 %v3901, %v3903
        %v3905 = vrot.slane %v3891, %v3904
        %v3906 = vcombine.low %v3882, %v3898
        %v3907 = vcombine.high %v3882, %v3898
        %v3909 = vunpack.c.l.s4 1934713408
        %v3910 = vunpack.c.0.s8 %v3909
        %v3911 = vlaneseq
        %v3912 = vshrl.u32 %v3911, 7
        %v3913 = vsub.s32 %v3910, %v3912
        %v3914 = vrot.slane %v3906, %v3913
        %v3916 = vunpack.c.l.s4 1934713408
        %v3917 = vunpack.c.0.s8 %v3916
        %v3918 = vlaneseq
        %v3919 = vshrl.u32 %v3918, 7
        %v3920 = vsub.s32 %v3917, %v3919
        %v3921 = vrot.slane %v3907, %v3920
        %v3922 = vcombine.low %v3889, %v3905
        %v3923 = vcombine.high %v3889, %v3905
        %v3925 = vunpack.c.l.s4 1934713408
        %v3926 = vunpack.c.0.s8 %v3925
        %v3927 = vlaneseq
        %v3928 = vshrl.u32 %v3927, 7
        %v3929 = vsub.s32 %v3926, %v3928
        %v3930 = vrot.slane %v3922, %v3929
        %v3932 = vunpack.c.l.s4 1934713408
        %v3933 = vunpack.c.0.s8 %v3932
        %v3934 = vlaneseq
        %v3935 = vshrl.u32 %v3934, 7
        %v3936 = vsub.s32 %v3933, %v3935
        %v3937 = vrot.slane %v3923, %v3936
        %v3938 = vcombine.high %v3914, 0.0
        %v3939 = vcombine.high %v3921, 0.0
        %v3940 = vcombine.high %v3930, 0.0
        %v3941 = vcombine.high %v3937, 0.0
        %v3942 = vcombine.low %v1015, %v3433
        %v3943 = vcombine.high %v1015, %v3433
        %v3945 = vunpack.c.l.s4 1983009808
        %v3946 = vunpack.c.0.s8 %v3945
        %v3947 = vlaneseq
        %v3948 = vshrl.u32 %v3947, 7
        %v3949 = vsub.s32 %v3946, %v3948
        %v3950 = vrot.slane %v3942, %v3949
        %v3952 = vunpack.c.l.s4 1983009808
        %v3953 = vunpack.c.0.s8 %v3952
        %v3954 = vlaneseq
        %v3955 = vshrl.u32 %v3954, 7
        %v3956 = vsub.s32 %v3953, %v3955
        %v3957 = vrot.slane %v3943, %v3956
        %v3958 = vcombine.low %v3409, %v3457
        %v3959 = vcombine.high %v3409, %v3457
        %v3961 = vunpack.c.l.s4 1983009808
        %v3962 = vunpack.c.0.s8 %v3961
        %v3963 = vlaneseq
        %v3964 = vshrl.u32 %v3963, 7
        %v3965 = vsub.s32 %v3962, %v3964
        %v3966 = vrot.slane %v3958, %v3965
        %v3968 = vunpack.c.l.s4 1983009808
        %v3969 = vunpack.c.0.s8 %v3968
        %v3970 = vlaneseq
        %v3971 = vshrl.u32 %v3970, 7
        %v3972 = vsub.s32 %v3969, %v3971
        %v3973 = vrot.slane %v3959, %v3972
        %v3974 = vcombine.low %v3950, %v3966
        %v3975 = vcombine.high %v3950, %v3966
        %v3977 = vunpack.c.l.s4 1934713408
        %v3978 = vunpack.c.0.s8 %v3977
        %v3979 = vlaneseq
        %v3980 = vshrl.u32 %v3979, 7
        %v3981 = vsub.s32 %v3978, %v3980
        %v3982 = vrot.slane %v3974, %v3981
        %v3984 = vunpack.c.l.s4 1934713408
        %v3985 = vunpack.c.0.s8 %v3984
        %v3986 = vlaneseq
        %v3987 = vshrl.u32 %v3986, 7
        %v3988 = vsub.s32 %v3985, %v3987
        %v3989 = vrot.slane %v3975, %v3988
        %v3990 = vcombine.low %v3957, %v3973
        %v3991 = vcombine.high %v3957, %v3973
        %v3993 = vunpack.c.l.s4 1934713408
        %v3994 = vunpack.c.0.s8 %v3993
        %v3995 = vlaneseq
        %v3996 = vshrl.u32 %v3995, 7
        %v3997 = vsub.s32 %v3994, %v3996
        %v3998 = vrot.slane %v3990, %v3997
        %v4000 = vunpack.c.l.s4 1934713408
        %v4001 = vunpack.c.0.s8 %v4000
        %v4002 = vlaneseq
        %v4003 = vshrl.u32 %v4002, 7
        %v4004 = vsub.s32 %v4001, %v4003
        %v4005 = vrot.slane %v3991, %v4004
        %v4006 = vcombine.high %v3982, 0.0
        %v4007 = vcombine.high %v3989, 0.0
        %v4008 = vcombine.high %v3998, 0.0
        %v4009 = vcombine.high %v4005, 0.0
        %v4010 = vcombine.low %v3506, %v3513
        %v4012 = vunpack.c.l.s4 1983009808
        %v4013 = vunpack.c.0.s8 %v4012
        %v4014 = vlaneseq
        %v4015 = vshrl.u32 %v4014, 7
        %v4016 = vsub.s32 %v4013, %v4015
        %v4017 = vrot.slane %v4010, %v4016
        %v4018 = vcombine.low %v3530, %v3531
        %v4020 = vunpack.c.l.s4 1983009808
        %v4021 = vunpack.c.0.s8 %v4020
        %v4022 = vlaneseq
        %v4023 = vshrl.u32 %v4022, 7
        %v4024 = vsub.s32 %v4021, %v4023
        %v4025 = vrot.slane %v4018, %v4024
        %v4026 = vcombine.low %v3522, %v3529
        %v4028 = vunpack.c.l.s4 1983009808
        %v4029 = vunpack.c.0.s8 %v4028
        %v4030 = vlaneseq
        %v4031 = vshrl.u32 %v4030, 7
        %v4032 = vsub.s32 %v4029, %v4031
        %v4033 = vrot.slane %v4026, %v4032
        %v4034 = vcombine.low %v3532, %v3533
        %v4036 = vunpack.c.l.s4 1983009808
        %v4037 = vunpack.c.0.s8 %v4036
        %v4038 = vlaneseq
        %v4039 = vshrl.u32 %v4038, 7
        %v4040 = vsub.s32 %v4037, %v4039
        %v4041 = vrot.slane %v4034, %v4040
        %v4042 = vcombine.low %v4017, %v4025
        %v4043 = vcombine.high %v4017, %v4025
        %v4045 = vunpack.c.l.s4 1934713408
        %v4046 = vunpack.c.0.s8 %v4045
        %v4047 = vlaneseq
        %v4048 = vshrl.u32 %v4047, 7
        %v4049 = vsub.s32 %v4046, %v4048
        %v4050 = vrot.slane %v4042, %v4049
        %v4052 = vunpack.c.l.s4 1934713408
        %v4053 = vunpack.c.0.s8 %v4052
        %v4054 = vlaneseq
        %v4055 = vshrl.u32 %v4054, 7
        %v4056 = vsub.s32 %v4053, %v4055
        %v4057 = vrot.slane %v4043, %v4056
        %v4058 = vcombine.low %v4033, %v4041
        %v4059 = vcombine.high %v4033, %v4041
        %v4061 = vunpack.c.l.s4 1934713408
        %v4062 = vunpack.c.0.s8 %v4061
        %v4063 = vlaneseq
        %v4064 = vshrl.u32 %v4063, 7
        %v4065 = vsub.s32 %v4062, %v4064
        %v4066 = vrot.slane %v4058, %v4065
        %v4068 = vunpack.c.l.s4 1934713408
        %v4069 = vunpack.c.0.s8 %v4068
        %v4070 = vlaneseq
        %v4071 = vshrl.u32 %v4070, 7
        %v4072 = vsub.s32 %v4069, %v4071
        %v4073 = vrot.slane %v4059, %v4072
        %v4074 = vcombine.low %v4050, %v4066
        %v4075 = vcombine.high %v4050, %v4066
        %v4076 = vcombine.low %v4057, %v4073
        %v4077 = vcombine.high %v4057, %v4073
        %v4078 = vcombine.low %v3574, %v3581
        %v4080 = vunpack.c.l.s4 1983009808
        %v4081 = vunpack.c.0.s8 %v4080
        %v4082 = vlaneseq
        %v4083 = vshrl.u32 %v4082, 7
        %v4084 = vsub.s32 %v4081, %v4083
        %v4085 = vrot.slane %v4078, %v4084
        %v4086 = vcombine.low %v3598, %v3599
        %v4088 = vunpack.c.l.s4 1983009808
        %v4089 = vunpack.c.0.s8 %v4088
        %v4090 = vlaneseq
        %v4091 = vshrl.u32 %v4090, 7
        %v4092 = vsub.s32 %v4089, %v4091
        %v4093 = vrot.slane %v4086, %v4092
        %v4094 = vcombine.low %v3590, %v3597
        %v4096 = vunpack.c.l.s4 1983009808
        %v4097 = vunpack.c.0.s8 %v4096
        %v4098 = vlaneseq
        %v4099 = vshrl.u32 %v4098, 7
        %v4100 = vsub.s32 %v4097, %v4099
        %v4101 = vrot.slane %v4094, %v4100
        %v4102 = vcombine.low %v3600, %v3601
        %v4104 = vunpack.c.l.s4 1983009808
        %v4105 = vunpack.c.0.s8 %v4104
        %v4106 = vlaneseq
        %v4107 = vshrl.u32 %v4106, 7
        %v4108 = vsub.s32 %v4105, %v4107
        %v4109 = vrot.slane %v4102, %v4108
        %v4110 = vcombine.low %v4085, %v4093
        %v4111 = vcombine.high %v4085, %v4093
        %v4113 = vunpack.c.l.s4 1934713408
        %v4114 = vunpack.c.0.s8 %v4113
        %v4115 = vlaneseq
        %v4116 = vshrl.u32 %v4115, 7
        %v4117 = vsub.s32 %v4114, %v4116
        %v4118 = vrot.slane %v4110, %v4117
        %v4120 = vunpack.c.l.s4 1934713408
        %v4121 = vunpack.c.0.s8 %v4120
        %v4122 = vlaneseq
        %v4123 = vshrl.u32 %v4122, 7
        %v4124 = vsub.s32 %v4121, %v4123
        %v4125 = vrot.slane %v4111, %v4124
        %v4126 = vcombine.low %v4101, %v4109
        %v4127 = vcombine.high %v4101, %v4109
        %v4129 = vunpack.c.l.s4 1934713408
        %v4130 = vunpack.c.0.s8 %v4129
        %v4131 = vlaneseq
        %v4132 = vshrl.u32 %v4131, 7
        %v4133 = vsub.s32 %v4130, %v4132
        %v4134 = vrot.slane %v4126, %v4133
        %v4136 = vunpack.c.l.s4 1934713408
        %v4137 = vunpack.c.0.s8 %v4136
        %v4138 = vlaneseq
        %v4139 = vshrl.u32 %v4138, 7
        %v4140 = vsub.s32 %v4137, %v4139
        %v4141 = vrot.slane %v4127, %v4140
        %v4142 = vcombine.low %v4118, %v4134
        %v4143 = vcombine.high %v4118, %v4134
        %v4144 = vcombine.low %v4125, %v4141
        %v4145 = vcombine.high %v4125, %v4141
        %v4146 = vcombine.low %v3642, %v3649
        %v4148 = vunpack.c.l.s4 1983009808
        %v4149 = vunpack.c.0.s8 %v4148
        %v4150 = vlaneseq
        %v4151 = vshrl.u32 %v4150, 7
        %v4152 = vsub.s32 %v4149, %v4151
        %v4153 = vrot.slane %v4146, %v4152
        %v4154 = vcombine.low %v3666, %v3667
        %v4156 = vunpack.c.l.s4 1983009808
        %v4157 = vunpack.c.0.s8 %v4156
        %v4158 = vlaneseq
        %v4159 = vshrl.u32 %v4158, 7
        %v4160 = vsub.s32 %v4157, %v4159
        %v4161 = vrot.slane %v4154, %v4160
        %v4162 = vcombine.low %v3658, %v3665
        %v4164 = vunpack.c.l.s4 1983009808
        %v4165 = vunpack.c.0.s8 %v4164
        %v4166 = vlaneseq
        %v4167 = vshrl.u32 %v4166, 7
        %v4168 = vsub.s32 %v4165, %v4167
        %v4169 = vrot.slane %v4162, %v4168
        %v4170 = vcombine.low %v3668, %v3669
        %v4172 = vunpack.c.l.s4 1983009808
        %v4173 = vunpack.c.0.s8 %v4172
        %v4174 = vlaneseq
        %v4175 = vshrl.u32 %v4174, 7
        %v4176 = vsub.s32 %v4173, %v4175
        %v4177 = vrot.slane %v4170, %v4176
        %v4178 = vcombine.low %v4153, %v4161
        %v4179 = vcombine.high %v4153, %v4161
        %v4181 = vunpack.c.l.s4 1934713408
        %v4182 = vunpack.c.0.s8 %v4181
        %v4183 = vlaneseq
        %v4184 = vshrl.u32 %v4183, 7
        %v4185 = vsub.s32 %v4182, %v4184
        %v4186 = vrot.slane %v4178, %v4185
        %v4188 = vunpack.c.l.s4 1934713408
        %v4189 = vunpack.c.0.s8 %v4188
        %v4190 = vlaneseq
        %v4191 = vshrl.u32 %v4190, 7
        %v4192 = vsub.s32 %v4189, %v4191
        %v4193 = vrot.slane %v4179, %v4192
        %v4194 = vcombine.low %v4169, %v4177
        %v4195 = vcombine.high %v4169, %v4177
        %v4197 = vunpack.c.l.s4 1934713408
        %v4198 = vunpack.c.0.s8 %v4197
        %v4199 = vlaneseq
        %v4200 = vshrl.u32 %v4199, 7
        %v4201 = vsub.s32 %v4198, %v4200
        %v4202 = vrot.slane %v4194, %v4201
        %v4204 = vunpack.c.l.s4 1934713408
        %v4205 = vunpack.c.0.s8 %v4204
        %v4206 = vlaneseq
        %v4207 = vshrl.u32 %v4206, 7
        %v4208 = vsub.s32 %v4205, %v4207
        %v4209 = vrot.slane %v4195, %v4208
        %v4210 = vcombine.low %v4186, %v4202
        %v4211 = vcombine.high %v4186, %v4202
        %v4212 = vcombine.low %v4193, %v4209
        %v4213 = vcombine.high %v4193, %v4209
        %v4214 = vcombine.low %v3710, %v3717
        %v4216 = vunpack.c.l.s4 1983009808
        %v4217 = vunpack.c.0.s8 %v4216
        %v4218 = vlaneseq
        %v4219 = vshrl.u32 %v4218, 7
        %v4220 = vsub.s32 %v4217, %v4219
        %v4221 = vrot.slane %v4214, %v4220
        %v4222 = vcombine.low %v3734, %v3735
        %v4224 = vunpack.c.l.s4 1983009808
        %v4225 = vunpack.c.0.s8 %v4224
        %v4226 = vlaneseq
        %v4227 = vshrl.u32 %v4226, 7
        %v4228 = vsub.s32 %v4225, %v4227
        %v4229 = vrot.slane %v4222, %v4228
        %v4230 = vcombine.low %v3726, %v3733
        %v4232 = vunpack.c.l.s4 1983009808
        %v4233 = vunpack.c.0.s8 %v4232
        %v4234 = vlaneseq
        %v4235 = vshrl.u32 %v4234, 7
        %v4236 = vsub.s32 %v4233, %v4235
        %v4237 = vrot.slane %v4230, %v4236
        %v4238 = vcombine.low %v3736, %v3737
        %v4240 = vunpack.c.l.s4 1983009808
        %v4241 = vunpack.c.0.s8 %v4240
        %v4242 = vlaneseq
        %v4243 = vshrl.u32 %v4242, 7
        %v4244 = vsub.s32 %v4241, %v4243
        %v4245 = vrot.slane %v4238, %v4244
        %v4246 = vcombine.low %v4221, %v4229
        %v4247 = vcombine.high %v4221, %v4229
        %v4249 = vunpack.c.l.s4 1934713408
        %v4250 = vunpack.c.0.s8 %v4249
        %v4251 = vlaneseq
        %v4252 = vshrl.u32 %v4251, 7
        %v4253 = vsub.s32 %v4250, %v4252
        %v4254 = vrot.slane %v4246, %v4253
        %v4256 = vunpack.c.l.s4 1934713408
        %v4257 = vunpack.c.0.s8 %v4256
        %v4258 = vlaneseq
        %v4259 = vshrl.u32 %v4258, 7
        %v4260 = vsub.s32 %v4257, %v4259
        %v4261 = vrot.slane %v4247, %v4260
        %v4262 = vcombine.low %v4237, %v4245
        %v4263 = vcombine.high %v4237, %v4245
        %v4265 = vunpack.c.l.s4 1934713408
        %v4266 = vunpack.c.0.s8 %v4265
        %v4267 = vlaneseq
        %v4268 = vshrl.u32 %v4267, 7
        %v4269 = vsub.s32 %v4266, %v4268
        %v4270 = vrot.slane %v4262, %v4269
        %v4272 = vunpack.c.l.s4 1934713408
        %v4273 = vunpack.c.0.s8 %v4272
        %v4274 = vlaneseq
        %v4275 = vshrl.u32 %v4274, 7
        %v4276 = vsub.s32 %v4273, %v4275
        %v4277 = vrot.slane %v4263, %v4276
        %v4278 = vcombine.low %v4254, %v4270
        %v4279 = vcombine.high %v4254, %v4270
        %v4280 = vcombine.low %v4261, %v4277
        %v4281 = vcombine.high %v4261, %v4277
        %v4282 = vcombine.low %v3778, %v3785
        %v4284 = vunpack.c.l.s4 1983009808
        %v4285 = vunpack.c.0.s8 %v4284
        %v4286 = vlaneseq
        %v4287 = vshrl.u32 %v4286, 7
        %v4288 = vsub.s32 %v4285, %v4287
        %v4289 = vrot.slane %v4282, %v4288
        %v4290 = vcombine.low %v3802, %v3803
        %v4292 = vunpack.c.l.s4 1983009808
        %v4293 = vunpack.c.0.s8 %v4292
        %v4294 = vlaneseq
        %v4295 = vshrl.u32 %v4294, 7
        %v4296 = vsub.s32 %v4293, %v4295
        %v4297 = vrot.slane %v4290, %v4296
        %v4298 = vcombine.low %v3794, %v3801
        %v4300 = vunpack.c.l.s4 1983009808
        %v4301 = vunpack.c.0.s8 %v4300
        %v4302 = vlaneseq
        %v4303 = vshrl.u32 %v4302, 7
        %v4304 = vsub.s32 %v4301, %v4303
        %v4305 = vrot.slane %v4298, %v4304
        %v4306 = vcombine.low %v3804, %v3805
        %v4308 = vunpack.c.l.s4 1983009808
        %v4309 = vunpack.c.0.s8 %v4308
        %v4310 = vlaneseq
        %v4311 = vshrl.u32 %v4310, 7
        %v4312 = vsub.s32 %v4309, %v4311
        %v4313 = vrot.slane %v4306, %v4312
        %v4314 = vcombine.low %v4289, %v4297
        %v4315 = vcombine.high %v4289, %v4297
        %v4317 = vunpack.c.l.s4 1934713408
        %v4318 = vunpack.c.0.s8 %v4317
        %v4319 = vlaneseq
        %v4320 = vshrl.u32 %v4319, 7
        %v4321 = vsub.s32 %v4318, %v4320
        %v4322 = vrot.slane %v4314, %v4321
        %v4324 = vunpack.c.l.s4 1934713408
        %v4325 = vunpack.c.0.s8 %v4324
        %v4326 = vlaneseq
        %v4327 = vshrl.u32 %v4326, 7
        %v4328 = vsub.s32 %v4325, %v4327
        %v4329 = vrot.slane %v4315, %v4328
        %v4330 = vcombine.low %v4305, %v4313
        %v4331 = vcombine.high %v4305, %v4313
        %v4333 = vunpack.c.l.s4 1934713408
        %v4334 = vunpack.c.0.s8 %v4333
        %v4335 = vlaneseq
        %v4336 = vshrl.u32 %v4335, 7
        %v4337 = vsub.s32 %v4334, %v4336
        %v4338 = vrot.slane %v4330, %v4337
        %v4340 = vunpack.c.l.s4 1934713408
        %v4341 = vunpack.c.0.s8 %v4340
        %v4342 = vlaneseq
        %v4343 = vshrl.u32 %v4342, 7
        %v4344 = vsub.s32 %v4341, %v4343
        %v4345 = vrot.slane %v4331, %v4344
        %v4346 = vcombine.low %v4322, %v4338
        %v4347 = vcombine.high %v4322, %v4338
        %v4348 = vcombine.low %v4329, %v4345
        %v4349 = vcombine.high %v4329, %v4345
        %v4350 = vcombine.low %v3846, %v3853
        %v4352 = vunpack.c.l.s4 1983009808
        %v4353 = vunpack.c.0.s8 %v4352
        %v4354 = vlaneseq
        %v4355 = vshrl.u32 %v4354, 7
        %v4356 = vsub.s32 %v4353, %v4355
        %v4357 = vrot.slane %v4350, %v4356
        %v4358 = vcombine.low %v3870, %v3871
        %v4360 = vunpack.c.l.s4 1983009808
        %v4361 = vunpack.c.0.s8 %v4360
        %v4362 = vlaneseq
        %v4363 = vshrl.u32 %v4362, 7
        %v4364 = vsub.s32 %v4361, %v4363
        %v4365 = vrot.slane %v4358, %v4364
        %v4366 = vcombine.low %v3862, %v3869
        %v4368 = vunpack.c.l.s4 1983009808
        %v4369 = vunpack.c.0.s8 %v4368
        %v4370 = vlaneseq
        %v4371 = vshrl.u32 %v4370, 7
        %v4372 = vsub.s32 %v4369, %v4371
        %v4373 = vrot.slane %v4366, %v4372
        %v4374 = vcombine.low %v3872, %v3873
        %v4376 = vunpack.c.l.s4 1983009808
        %v4377 = vunpack.c.0.s8 %v4376
        %v4378 = vlaneseq
        %v4379 = vshrl.u32 %v4378, 7
        %v4380 = vsub.s32 %v4377, %v4379
        %v4381 = vrot.slane %v4374, %v4380
        %v4382 = vcombine.low %v4357, %v4365
        %v4383 = vcombine.high %v4357, %v4365
        %v4385 = vunpack.c.l.s4 1934713408
        %v4386 = vunpack.c.0.s8 %v4385
        %v4387 = vlaneseq
        %v4388 = vshrl.u32 %v4387, 7
        %v4389 = vsub.s32 %v4386, %v4388
        %v4390 = vrot.slane %v4382, %v4389
        %v4392 = vunpack.c.l.s4 1934713408
        %v4393 = vunpack.c.0.s8 %v4392
        %v4394 = vlaneseq
        %v4395 = vshrl.u32 %v4394, 7
        %v4396 = vsub.s32 %v4393, %v4395
        %v4397 = vrot.slane %v4383, %v4396
        %v4398 = vcombine.low %v4373, %v4381
        %v4399 = vcombine.high %v4373, %v4381
        %v4401 = vunpack.c.l.s4 1934713408
        %v4402 = vunpack.c.0.s8 %v4401
        %v4403 = vlaneseq
        %v4404 = vshrl.u32 %v4403, 7
        %v4405 = vsub.s32 %v4402, %v4404
        %v4406 = vrot.slane %v4398, %v4405
        %v4408 = vunpack.c.l.s4 1934713408
        %v4409 = vunpack.c.0.s8 %v4408
        %v4410 = vlaneseq
        %v4411 = vshrl.u32 %v4410, 7
        %v4412 = vsub.s32 %v4409, %v4411
        %v4413 = vrot.slane %v4399, %v4412
        %v4414 = vcombine.low %v4390, %v4406
        %v4415 = vcombine.high %v4390, %v4406
        %v4416 = vcombine.low %v4397, %v4413
        %v4417 = vcombine.high %v4397, %v4413
        %v4418 = vcombine.low %v3914, %v3921
        %v4420 = vunpack.c.l.s4 1983009808
        %v4421 = vunpack.c.0.s8 %v4420
        %v4422 = vlaneseq
        %v4423 = vshrl.u32 %v4422, 7
        %v4424 = vsub.s32 %v4421, %v4423
        %v4425 = vrot.slane %v4418, %v4424
        %v4426 = vcombine.low %v3938, %v3939
        %v4428 = vunpack.c.l.s4 1983009808
        %v4429 = vunpack.c.0.s8 %v4428
        %v4430 = vlaneseq
        %v4431 = vshrl.u32 %v4430, 7
        %v4432 = vsub.s32 %v4429, %v4431
        %v4433 = vrot.slane %v4426, %v4432
        %v4434 = vcombine.low %v3930, %v3937
        %v4436 = vunpack.c.l.s4 1983009808
        %v4437 = vunpack.c.0.s8 %v4436
        %v4438 = vlaneseq
        %v4439 = vshrl.u32 %v4438, 7
        %v4440 = vsub.s32 %v4437, %v4439
        %v4441 = vrot.slane %v4434, %v4440
        %v4442 = vcombine.low %v3940, %v3941
        %v4444 = vunpack.c.l.s4 1983009808
        %v4445 = vunpack.c.0.s8 %v4444
        %v4446 = vlaneseq
        %v4447 = vshrl.u32 %v4446, 7
        %v4448 = vsub.s32 %v4445, %v4447
        %v4449 = vrot.slane %v4442, %v4448
        %v4450 = vcombine.low %v4425, %v4433
        %v4451 = vcombine.high %v4425, %v4433
        %v4453 = vunpack.c.l.s4 1934713408
        %v4454 = vunpack.c.0.s8 %v4453
        %v4455 = vlaneseq
        %v4456 = vshrl.u32 %v4455, 7
        %v4457 = vsub.s32 %v4454, %v4456
        %v4458 = vrot.slane %v4450, %v4457
        %v4460 = vunpack.c.l.s4 1934713408
        %v4461 = vunpack.c.0.s8 %v4460
        %v4462 = vlaneseq
        %v4463 = vshrl.u32 %v4462, 7
        %v4464 = vsub.s32 %v4461, %v4463
        %v4465 = vrot.slane %v4451, %v4464
        %v4466 = vcombine.low %v4441, %v4449
        %v4467 = vcombine.high %v4441, %v4449
        %v4469 = vunpack.c.l.s4 1934713408
        %v4470 = vunpack.c.0.s8 %v4469
        %v4471 = vlaneseq
        %v4472 = vshrl.u32 %v4471, 7
        %v4473 = vsub.s32 %v4470, %v4472
        %v4474 = vrot.slane %v4466, %v4473
        %v4476 = vunpack.c.l.s4 1934713408
        %v4477 = vunpack.c.0.s8 %v4476
        %v4478 = vlaneseq
        %v4479 = vshrl.u32 %v4478, 7
        %v4480 = vsub.s32 %v4477, %v4479
        %v4481 = vrot.slane %v4467, %v4480
        %v4482 = vcombine.low %v4458, %v4474
        %v4483 = vcombine.high %v4458, %v4474
        %v4484 = vcombine.low %v4465, %v4481
        %v4485 = vcombine.high %v4465, %v4481
        %v4486 = vcombine.low %v3982, %v3989
        %v4488 = vunpack.c.l.s4 1983009808
        %v4489 = vunpack.c.0.s8 %v4488
        %v4490 = vlaneseq
        %v4491 = vshrl.u32 %v4490, 7
        %v4492 = vsub.s32 %v4489, %v4491
        %v4493 = vrot.slane %v4486, %v4492
        %v4494 = vcombine.low %v4006, %v4007
        %v4496 = vunpack.c.l.s4 1983009808
        %v4497 = vunpack.c.0.s8 %v4496
        %v4498 = vlaneseq
        %v4499 = vshrl.u32 %v4498, 7
        %v4500 = vsub.s32 %v4497, %v4499
        %v4501 = vrot.slane %v4494, %v4500
        %v4502 = vcombine.low %v3998, %v4005
        %v4504 = vunpack.c.l.s4 1983009808
        %v4505 = vunpack.c.0.s8 %v4504
        %v4506 = vlaneseq
        %v4507 = vshrl.u32 %v4506, 7
        %v4508 = vsub.s32 %v4505, %v4507
        %v4509 = vrot.slane %v4502, %v4508
        %v4510 = vcombine.low %v4008, %v4009
        %v4512 = vunpack.c.l.s4 1983009808
        %v4513 = vunpack.c.0.s8 %v4512
        %v4514 = vlaneseq
        %v4515 = vshrl.u32 %v4514, 7
        %v4516 = vsub.s32 %v4513, %v4515
        %v4517 = vrot.slane %v4510, %v4516
        %v4518 = vcombine.low %v4493, %v4501
        %v4519 = vcombine.high %v4493, %v4501
        %v4521 = vunpack.c.l.s4 1934713408
        %v4522 = vunpack.c.0.s8 %v4521
        %v4523 = vlaneseq
        %v4524 = vshrl.u32 %v4523, 7
        %v4525 = vsub.s32 %v4522, %v4524
        %v4526 = vrot.slane %v4518, %v4525
        %v4528 = vunpack.c.l.s4 1934713408
        %v4529 = vunpack.c.0.s8 %v4528
        %v4530 = vlaneseq
        %v4531 = vshrl.u32 %v4530, 7
        %v4532 = vsub.s32 %v4529, %v4531
        %v4533 = vrot.slane %v4519, %v4532
        %v4534 = vcombine.low %v4509, %v4517
        %v4535 = vcombine.high %v4509, %v4517
        %v4537 = vunpack.c.l.s4 1934713408
        %v4538 = vunpack.c.0.s8 %v4537
        %v4539 = vlaneseq
        %v4540 = vshrl.u32 %v4539, 7
        %v4541 = vsub.s32 %v4538, %v4540
        %v4542 = vrot.slane %v4534, %v4541
        %v4544 = vunpack.c.l.s4 1934713408
        %v4545 = vunpack.c.0.s8 %v4544
        %v4546 = vlaneseq
        %v4547 = vshrl.u32 %v4546, 7
        %v4548 = vsub.s32 %v4545, %v4547
        %v4549 = vrot.slane %v4535, %v4548
        %v4550 = vcombine.low %v4526, %v4542
        %v4551 = vcombine.high %v4526, %v4542
        %v4552 = vcombine.low %v4533, %v4549
        %v4553 = vcombine.high %v4533, %v4549
        %v4554 = vpack.c.bf16 %v4142, %v4074
        %v4555 = vpack.c.bf16 %v4278, %v4210
        %v4556 = vpack.c.bf16 %v4414, %v4346
        %v4557 = vpack.c.bf16 %v4550, %v4482
        %v4558 = vpack.c.bf16 %v4143, %v4075
        %v4559 = vpack.c.bf16 %v4279, %v4211
        %v4560 = vpack.c.bf16 %v4415, %v4347
        %v4561 = vpack.c.bf16 %v4551, %v4483
        %v4562 = vpack.c.bf16 %v4144, %v4076
        %v4563 = vpack.c.bf16 %v4280, %v4212
        %v4564 = vpack.c.bf16 %v4416, %v4348
        %v4565 = vpack.c.bf16 %v4552, %v4484
        %v4566 = vpack.c.bf16 %v4145, %v4077
        %v4567 = vpack.c.bf16 %v4281, %v4213
        %v4568 = vpack.c.bf16 %v4417, %v4349
        %v4569 = vpack.c.bf16 %v4553, %v4485
        %v4570 = vld [vmem:[#allocation6] sm:$0xff]
        %v4571 = vld [vmem:[#allocation6 + $0x8] sm:$0xff]
        %v4572 = vld [vmem:[#allocation6 + $0x10] sm:$0xff]
        %v4573 = vld [vmem:[#allocation6 + $0x18] sm:$0xff]
        %vm4574 = vcmask 261120
        %v4576 = vsel %vm4574, %v2186, 0
        %v4579 = vsel %vm4574, %v2187, 0
        %v4582 = vsel %vm4574, %v3370, 0
        %v4585 = vsel %vm4574, %v3371, 0
        %4587 = vmatprep.subr.bf16.mxu0 0
        %4588 = vmatpush1.bf16.xpose.msra.mxu0 %v4582
        %4589 = vmatprep.subr.bf16.mxu0 0
        %4590 = vmatpush1.bf16.xpose.msra.mxu0 %v4585
        %4591 = vmatprep.subr.bf16.mxu0 0
        %4592 = vmatpush1.bf16.xpose.msra.mxu0 0
        %4593 = vmatprep.subr.bf16.mxu0 0
        %4594 = vmatpush1.bf16.xpose.msra.mxu0 0
        %4595 = vmatprep.subr.bf16.mxu0 0
        %4596 = vmatpush1.bf16.xpose.msra.mxu0 0
        %4597 = vmatprep.subr.bf16.mxu0 0
        %4598 = vmatpush1.bf16.xpose.msra.mxu0 0
        %4599 = vmatprep.subr.bf16.mxu0 0
        %4600 = vmatpush1.bf16.xpose.msra.mxu0 0
        %4601 = vmatprep.subr.bf16.mxu0 0
        %4602 = vmatpush1.bf16.xpose.msra.mxu0 0
        %4603 = vmatprep.subr.bf16.mxu0 0
        %4604 = vmatpush1.bf16.xpose.msra.mxu0 0
        %4605 = vmatprep.subr.bf16.mxu0 0
        %4606 = vmatpush1.bf16.xpose.msra.mxu0 0
        %4607 = vmatprep.subr.bf16.mxu0 0
        %4608 = vmatpush1.bf16.xpose.msra.mxu0 0
        %4609 = vmatprep.subr.bf16.mxu0 0
        %4610 = vmatpush1.bf16.xpose.msra.mxu0 0
        %4611 = vmatprep.subr.bf16.mxu0 0
        %4612 = vmatpush1.bf16.xpose.msra.mxu0 0
        %4613 = vmatprep.subr.bf16.mxu0 0
        %4614 = vmatpush1.bf16.xpose.msra.mxu0 0
        %4615 = vmatprep.subr.bf16.mxu0 0
        %4616 = vmatpush1.bf16.xpose.msra.mxu0 0
        %4617 = vmatprep.subr.bf16.mxu0 0
        %4618 = vmatpush1.bf16.xpose.msra.mxu0 0
        %4619 = vmatprep.mubr.bf16.mxu0 0
        %4620 = vmatmul.mubr.bf16.gmra.mrb[0].mxu0 %v4576
        %v4621 = vpop.f32.mrb[0].mxu0
        %v4622 = vadd.f32 %v4570, %v4621
        %v4623 = vpop.f32.mrb[0].mxu0
        %v4624 = vpop.f32.mrb[0].mxu0
        %v4625 = vadd.f32 %v4571, %v4624
        %v4626 = vpop.f32.mrb[0].mxu0
        %4627 = vmatprep.mubr.bf16.mxu0 0
        %4628 = vmatmul.mubr.bf16.gmra.mrb[0].mxu0 %v4579
        %v4629 = vpop.f32.mrb[0].mxu0
        %v4630 = vadd.f32 %v4572, %v4629
        %v4631 = vpop.f32.mrb[0].mxu0
        %v4632 = vpop.f32.mrb[0].mxu0
        %v4633 = vadd.f32 %v4573, %v4632
        %v4634 = vpop.f32.mrb[0].mxu0
        %4635 = vdwg.mxu0
        %v4637 = vsel %vm4574, %v2190, 0
        %v4640 = vsel %vm4574, %v2191, 0
        %v4643 = vsel %vm4574, %v3374, 0
        %v4646 = vsel %vm4574, %v3375, 0
        %4648 = vmatprep.subr.bf16.mxu0 0
        %4649 = vmatpush1.bf16.xpose.msra.mxu0 %v4643
        %4650 = vmatprep.subr.bf16.mxu0 0
        %4651 = vmatpush1.bf16.xpose.msra.mxu0 %v4646
        %4652 = vmatprep.subr.bf16.mxu0 0
        %4653 = vmatpush1.bf16.xpose.msra.mxu0 0
        %4654 = vmatprep.subr.bf16.mxu0 0
        %4655 = vmatpush1.bf16.xpose.msra.mxu0 0
        %4656 = vmatprep.subr.bf16.mxu0 0
        %4657 = vmatpush1.bf16.xpose.msra.mxu0 0
        %4658 = vmatprep.subr.bf16.mxu0 0
        %4659 = vmatpush1.bf16.xpose.msra.mxu0 0
        %4660 = vmatprep.subr.bf16.mxu0 0
        %4661 = vmatpush1.bf16.xpose.msra.mxu0 0
        %4662 = vmatprep.subr.bf16.mxu0 0
        %4663 = vmatpush1.bf16.xpose.msra.mxu0 0
        %4664 = vmatprep.subr.bf16.mxu0 0
        %4665 = vmatpush1.bf16.xpose.msra.mxu0 0
        %4666 = vmatprep.subr.bf16.mxu0 0
        %4667 = vmatpush1.bf16.xpose.msra.mxu0 0
        %4668 = vmatprep.subr.bf16.mxu0 0
        %4669 = vmatpush1.bf16.xpose.msra.mxu0 0
        %4670 = vmatprep.subr.bf16.mxu0 0
        %4671 = vmatpush1.bf16.xpose.msra.mxu0 0
        %4672 = vmatprep.subr.bf16.mxu0 0
        %4673 = vmatpush1.bf16.xpose.msra.mxu0 0
        %4674 = vmatprep.subr.bf16.mxu0 0
        %4675 = vmatpush1.bf16.xpose.msra.mxu0 0
        %4676 = vmatprep.subr.bf16.mxu0 0
        %4677 = vmatpush1.bf16.xpose.msra.mxu0 0
        %4678 = vmatprep.subr.bf16.mxu0 0
        %4679 = vmatpush1.bf16.xpose.msra.mxu0 0
        %4680 = vmatprep.mubr.bf16.mxu0 0
        %4681 = vmatmul.mubr.bf16.gmra.mrb[0].mxu0 %v4637
        %v4682 = vpop.f32.mrb[0].mxu0
        %v4683 = vadd.f32 %v4570, %v4682
        %v4684 = vpop.f32.mrb[0].mxu0
        %v4685 = vpop.f32.mrb[0].mxu0
        %v4686 = vadd.f32 %v4571, %v4685
        %v4687 = vpop.f32.mrb[0].mxu0
        %4688 = vmatprep.mubr.bf16.mxu0 0
        %4689 = vmatmul.mubr.bf16.gmra.mrb[0].mxu0 %v4640
        %v4690 = vpop.f32.mrb[0].mxu0
        %v4691 = vadd.f32 %v4572, %v4690
        %v4692 = vpop.f32.mrb[0].mxu0
        %v4693 = vpop.f32.mrb[0].mxu0
        %v4694 = vadd.f32 %v4573, %v4693
        %v4695 = vpop.f32.mrb[0].mxu0
        %4696 = vdwg.mxu0
        %v4698 = vsel %vm4574, %v2194, 0
        %v4701 = vsel %vm4574, %v2195, 0
        %v4704 = vsel %vm4574, %v3378, 0
        %v4707 = vsel %vm4574, %v3379, 0
        %4709 = vmatprep.subr.bf16.mxu0 0
        %4710 = vmatpush1.bf16.xpose.msra.mxu0 %v4704
        %4711 = vmatprep.subr.bf16.mxu0 0
        %4712 = vmatpush1.bf16.xpose.msra.mxu0 %v4707
        %4713 = vmatprep.subr.bf16.mxu0 0
        %4714 = vmatpush1.bf16.xpose.msra.mxu0 0
        %4715 = vmatprep.subr.bf16.mxu0 0
        %4716 = vmatpush1.bf16.xpose.msra.mxu0 0
        %4717 = vmatprep.subr.bf16.mxu0 0
        %4718 = vmatpush1.bf16.xpose.msra.mxu0 0
        %4719 = vmatprep.subr.bf16.mxu0 0
        %4720 = vmatpush1.bf16.xpose.msra.mxu0 0
        %4721 = vmatprep.subr.bf16.mxu0 0
        %4722 = vmatpush1.bf16.xpose.msra.mxu0 0
        %4723 = vmatprep.subr.bf16.mxu0 0
        %4724 = vmatpush1.bf16.xpose.msra.mxu0 0
        %4725 = vmatprep.subr.bf16.mxu0 0
        %4726 = vmatpush1.bf16.xpose.msra.mxu0 0
        %4727 = vmatprep.subr.bf16.mxu0 0
        %4728 = vmatpush1.bf16.xpose.msra.mxu0 0
        %4729 = vmatprep.subr.bf16.mxu0 0
        %4730 = vmatpush1.bf16.xpose.msra.mxu0 0
        %4731 = vmatprep.subr.bf16.mxu0 0
        %4732 = vmatpush1.bf16.xpose.msra.mxu0 0
        %4733 = vmatprep.subr.bf16.mxu0 0
        %4734 = vmatpush1.bf16.xpose.msra.mxu0 0
        %4735 = vmatprep.subr.bf16.mxu0 0
        %4736 = vmatpush1.bf16.xpose.msra.mxu0 0
        %4737 = vmatprep.subr.bf16.mxu0 0
        %4738 = vmatpush1.bf16.xpose.msra.mxu0 0
        %4739 = vmatprep.subr.bf16.mxu0 0
        %4740 = vmatpush1.bf16.xpose.msra.mxu0 0
        %4741 = vmatprep.mubr.bf16.mxu0 0
        %4742 = vmatmul.mubr.bf16.gmra.mrb[0].mxu0 %v4698
        %v4743 = vpop.f32.mrb[0].mxu0
        %v4744 = vadd.f32 %v4570, %v4743
        %v4745 = vpop.f32.mrb[0].mxu0
        %v4746 = vpop.f32.mrb[0].mxu0
        %v4747 = vadd.f32 %v4571, %v4746
        %v4748 = vpop.f32.mrb[0].mxu0
        %4749 = vmatprep.mubr.bf16.mxu0 0
        %4750 = vmatmul.mubr.bf16.gmra.mrb[0].mxu0 %v4701
        %v4751 = vpop.f32.mrb[0].mxu0
        %v4752 = vadd.f32 %v4572, %v4751
        %v4753 = vpop.f32.mrb[0].mxu0
        %v4754 = vpop.f32.mrb[0].mxu0
        %v4755 = vadd.f32 %v4573, %v4754
        %v4756 = vpop.f32.mrb[0].mxu0
        %4757 = vdwg.mxu0
        %v4759 = vsel %vm4574, %v2198, 0
        %v4762 = vsel %vm4574, %v2199, 0
        %v4765 = vsel %vm4574, %v3382, 0
        %v4768 = vsel %vm4574, %v3383, 0
        %4770 = vmatprep.subr.bf16.mxu0 0
        %4771 = vmatpush1.bf16.xpose.msra.mxu0 %v4765
        %4772 = vmatprep.subr.bf16.mxu0 0
        %4773 = vmatpush1.bf16.xpose.msra.mxu0 %v4768
        %4774 = vmatprep.subr.bf16.mxu0 0
        %4775 = vmatpush1.bf16.xpose.msra.mxu0 0
        %4776 = vmatprep.subr.bf16.mxu0 0
        %4777 = vmatpush1.bf16.xpose.msra.mxu0 0
        %4778 = vmatprep.subr.bf16.mxu0 0
        %4779 = vmatpush1.bf16.xpose.msra.mxu0 0
        %4780 = vmatprep.subr.bf16.mxu0 0
        %4781 = vmatpush1.bf16.xpose.msra.mxu0 0
        %4782 = vmatprep.subr.bf16.mxu0 0
        %4783 = vmatpush1.bf16.xpose.msra.mxu0 0
        %4784 = vmatprep.subr.bf16.mxu0 0
        %4785 = vmatpush1.bf16.xpose.msra.mxu0 0
        %4786 = vmatprep.subr.bf16.mxu0 0
        %4787 = vmatpush1.bf16.xpose.msra.mxu0 0
        %4788 = vmatprep.subr.bf16.mxu0 0
        %4789 = vmatpush1.bf16.xpose.msra.mxu0 0
        %4790 = vmatprep.subr.bf16.mxu0 0
        %4791 = vmatpush1.bf16.xpose.msra.mxu0 0
        %4792 = vmatprep.subr.bf16.mxu0 0
        %4793 = vmatpush1.bf16.xpose.msra.mxu0 0
        %4794 = vmatprep.subr.bf16.mxu0 0
        %4795 = vmatpush1.bf16.xpose.msra.mxu0 0
        %4796 = vmatprep.subr.bf16.mxu0 0
        %4797 = vmatpush1.bf16.xpose.msra.mxu0 0
        %4798 = vmatprep.subr.bf16.mxu0 0
        %4799 = vmatpush1.bf16.xpose.msra.mxu0 0
        %4800 = vmatprep.subr.bf16.mxu0 0
        %4801 = vmatpush1.bf16.xpose.msra.mxu0 0
        %4802 = vmatprep.mubr.bf16.mxu0 0
        %4803 = vmatmul.mubr.bf16.gmra.mrb[0].mxu0 %v4759
        %v4804 = vpop.f32.mrb[0].mxu0
        %v4805 = vadd.f32 %v4570, %v4804
        %v4806 = vpop.f32.mrb[0].mxu0
        %v4807 = vpop.f32.mrb[0].mxu0
        %v4808 = vadd.f32 %v4571, %v4807
        %v4809 = vpop.f32.mrb[0].mxu0
        %4810 = vmatprep.mubr.bf16.mxu0 0
        %4811 = vmatmul.mubr.bf16.gmra.mrb[0].mxu0 %v4762
        %v4812 = vpop.f32.mrb[0].mxu0
        %v4813 = vadd.f32 %v4572, %v4812
        %v4814 = vpop.f32.mrb[0].mxu0
        %v4815 = vpop.f32.mrb[0].mxu0
        %v4816 = vadd.f32 %v4573, %v4815
        %v4817 = vpop.f32.mrb[0].mxu0
        %4818 = vdwg.mxu0
        %v4819 = vsel %vm4574, %v4622, -inf
        %4820 = vmax.xlane.f32.xlu0 %v4819
        %v4821 = vpop.xlane.xlu0 %4820
        %v4822 = vsel %vm4574, %v4625, -inf
        %4823 = vmax.xlane.f32.xlu0 %v4822
        %v4824 = vpop.xlane.xlu0 %4823
        %v4825 = vsel %vm4574, %v4630, -inf
        %4826 = vmax.xlane.f32.xlu0 %v4825
        %v4827 = vpop.xlane.xlu0 %4826
        %v4828 = vsel %vm4574, %v4633, -inf
        %4829 = vmax.xlane.f32.xlu0 %v4828
        %v4830 = vpop.xlane.xlu0 %4829
        %v4831 = vsel %vm4574, %v4683, -inf
        %4832 = vmax.xlane.f32.xlu0 %v4831
        %v4833 = vpop.xlane.xlu0 %4832
        %v4834 = vsel %vm4574, %v4686, -inf
        %4835 = vmax.xlane.f32.xlu0 %v4834
        %v4836 = vpop.xlane.xlu0 %4835
        %v4837 = vsel %vm4574, %v4691, -inf
        %4838 = vmax.xlane.f32.xlu0 %v4837
        %v4839 = vpop.xlane.xlu0 %4838
        %v4840 = vsel %vm4574, %v4694, -inf
        %4841 = vmax.xlane.f32.xlu0 %v4840
        %v4842 = vpop.xlane.xlu0 %4841
        %v4843 = vsel %vm4574, %v4744, -inf
        %4844 = vmax.xlane.f32.xlu0 %v4843
        %v4845 = vpop.xlane.xlu0 %4844
        %v4846 = vsel %vm4574, %v4747, -inf
        %4847 = vmax.xlane.f32.xlu0 %v4846
        %v4848 = vpop.xlane.xlu0 %4847
        %v4849 = vsel %vm4574, %v4752, -inf
        %4850 = vmax.xlane.f32.xlu0 %v4849
        %v4851 = vpop.xlane.xlu0 %4850
        %v4852 = vsel %vm4574, %v4755, -inf
        %4853 = vmax.xlane.f32.xlu0 %v4852
        %v4854 = vpop.xlane.xlu0 %4853
        %v4855 = vsel %vm4574, %v4805, -inf
        %4856 = vmax.xlane.f32.xlu0 %v4855
        %v4857 = vpop.xlane.xlu0 %4856
        %v4858 = vsel %vm4574, %v4808, -inf
        %4859 = vmax.xlane.f32.xlu0 %v4858
        %v4860 = vpop.xlane.xlu0 %4859
        %v4861 = vsel %vm4574, %v4813, -inf
        %4862 = vmax.xlane.f32.xlu0 %v4861
        %v4863 = vpop.xlane.xlu0 %4862
        %v4864 = vsel %vm4574, %v4816, -inf
        %4865 = vmax.xlane.f32.xlu0 %v4864
        %v4866 = vpop.xlane.xlu0 %4865
        %v4867 = vmax.f32 %v4821, -1e+30
        %v4868 = vmax.f32 %v4824, -1e+30
        %v4869 = vmax.f32 %v4827, -1e+30
        %v4870 = vmax.f32 %v4830, -1e+30
        %v4871 = vmax.f32 %v4833, -1e+30
        %v4872 = vmax.f32 %v4836, -1e+30
        %v4873 = vmax.f32 %v4839, -1e+30
        %v4874 = vmax.f32 %v4842, -1e+30
        %v4875 = vmax.f32 %v4845, -1e+30
        %v4876 = vmax.f32 %v4848, -1e+30
        %v4877 = vmax.f32 %v4851, -1e+30
        %v4878 = vmax.f32 %v4854, -1e+30
        %v4879 = vmax.f32 %v4857, -1e+30
        %v4880 = vmax.f32 %v4860, -1e+30
        %v4881 = vmax.f32 %v4863, -1e+30
        %v4882 = vmax.f32 %v4866, -1e+30
        %v4883 = vsub.f32 -1e+30, %v4867
        %v4884 = vsub.f32 -1e+30, %v4868
        %v4885 = vsub.f32 -1e+30, %v4869
        %v4886 = vsub.f32 -1e+30, %v4870
        %v4887 = vsub.f32 -1e+30, %v4871
        %v4888 = vsub.f32 -1e+30, %v4872
        %v4889 = vsub.f32 -1e+30, %v4873
        %v4890 = vsub.f32 -1e+30, %v4874
        %v4891 = vsub.f32 -1e+30, %v4875
        %v4892 = vsub.f32 -1e+30, %v4876
        %v4893 = vsub.f32 -1e+30, %v4877
        %v4894 = vsub.f32 -1e+30, %v4878
        %v4895 = vsub.f32 -1e+30, %v4879
        %v4896 = vsub.f32 -1e+30, %v4880
        %v4897 = vsub.f32 -1e+30, %v4881
        %v4898 = vsub.f32 -1e+30, %v4882
        %v4899 = vmul.f32 %v4883, 1.442695
        %v4900 = vpow.pop %v4899
        %v4901 = vmul.f32 %v4884, 1.442695
        %v4902 = vpow.pop %v4901
        %v4903 = vmul.f32 %v4885, 1.442695
        %v4904 = vpow.pop %v4903
        %v4905 = vmul.f32 %v4886, 1.442695
        %v4906 = vpow.pop %v4905
        %v4907 = vmul.f32 %v4887, 1.442695
        %v4908 = vpow.pop %v4907
        %v4909 = vmul.f32 %v4888, 1.442695
        %v4910 = vpow.pop %v4909
        %v4911 = vmul.f32 %v4889, 1.442695
        %v4912 = vpow.pop %v4911
        %v4913 = vmul.f32 %v4890, 1.442695
        %v4914 = vpow.pop %v4913
        %v4915 = vmul.f32 %v4891, 1.442695
        %v4916 = vpow.pop %v4915
        %v4917 = vmul.f32 %v4892, 1.442695
        %v4918 = vpow.pop %v4917
        %v4919 = vmul.f32 %v4893, 1.442695
        %v4920 = vpow.pop %v4919
        %v4921 = vmul.f32 %v4894, 1.442695
        %v4922 = vpow.pop %v4921
        %v4923 = vmul.f32 %v4895, 1.442695
        %v4924 = vpow.pop %v4923
        %v4925 = vmul.f32 %v4896, 1.442695
        %v4926 = vpow.pop %v4925
        %v4927 = vmul.f32 %v4897, 1.442695
        %v4928 = vpow.pop %v4927
        %v4929 = vmul.f32 %v4898, 1.442695
        %v4930 = vpow.pop %v4929
        %v4931 = vsub.f32 %v4622, %v4867
        %v4932 = vsub.f32 %v4625, %v4868
        %v4933 = vsub.f32 %v4630, %v4869
        %v4934 = vsub.f32 %v4633, %v4870
        %v4935 = vsub.f32 %v4683, %v4871
        %v4936 = vsub.f32 %v4686, %v4872
        %v4937 = vsub.f32 %v4691, %v4873
        %v4938 = vsub.f32 %v4694, %v4874
        %v4939 = vsub.f32 %v4744, %v4875
        %v4940 = vsub.f32 %v4747, %v4876
        %v4941 = vsub.f32 %v4752, %v4877
        %v4942 = vsub.f32 %v4755, %v4878
        %v4943 = vsub.f32 %v4805, %v4879
        %v4944 = vsub.f32 %v4808, %v4880
        %v4945 = vsub.f32 %v4813, %v4881
        %v4946 = vsub.f32 %v4816, %v4882
        %v4947 = vmul.f32 %v4931, 1.442695
        %v4948 = vpow.pop %v4947
        %v4949 = vmul.f32 %v4932, 1.442695
        %v4950 = vpow.pop %v4949
        %v4951 = vmul.f32 %v4933, 1.442695
        %v4952 = vpow.pop %v4951
        %v4953 = vmul.f32 %v4934, 1.442695
        %v4954 = vpow.pop %v4953
        %v4955 = vmul.f32 %v4935, 1.442695
        %v4956 = vpow.pop %v4955
        %v4957 = vmul.f32 %v4936, 1.442695
        %v4958 = vpow.pop %v4957
        %v4959 = vmul.f32 %v4937, 1.442695
        %v4960 = vpow.pop %v4959
        %v4961 = vmul.f32 %v4938, 1.442695
        %v4962 = vpow.pop %v4961
        %v4963 = vmul.f32 %v4939, 1.442695
        %v4964 = vpow.pop %v4963
        %v4965 = vmul.f32 %v4940, 1.442695
        %v4966 = vpow.pop %v4965
        %v4967 = vmul.f32 %v4941, 1.442695
        %v4968 = vpow.pop %v4967
        %v4969 = vmul.f32 %v4942, 1.442695
        %v4970 = vpow.pop %v4969
        %v4971 = vmul.f32 %v4943, 1.442695
        %v4972 = vpow.pop %v4971
        %v4973 = vmul.f32 %v4944, 1.442695
        %v4974 = vpow.pop %v4973
        %v4975 = vmul.f32 %v4945, 1.442695
        %v4976 = vpow.pop %v4975
        %v4977 = vmul.f32 %v4946, 1.442695
        %v4978 = vpow.pop %v4977
        %v4979 = vmul.f32 %v4900, 0.0
        %v4980 = vmul.f32 %v4902, 0.0
        %v4981 = vmul.f32 %v4904, 0.0
        %v4982 = vmul.f32 %v4906, 0.0
        %v4983 = vmul.f32 %v4908, 0.0
        %v4984 = vmul.f32 %v4910, 0.0
        %v4985 = vmul.f32 %v4912, 0.0
        %v4986 = vmul.f32 %v4914, 0.0
        %v4987 = vmul.f32 %v4916, 0.0
        %v4988 = vmul.f32 %v4918, 0.0
        %v4989 = vmul.f32 %v4920, 0.0
        %v4990 = vmul.f32 %v4922, 0.0
        %v4991 = vmul.f32 %v4924, 0.0
        %v4992 = vmul.f32 %v4926, 0.0
        %v4993 = vmul.f32 %v4928, 0.0
        %v4994 = vmul.f32 %v4930, 0.0
        %v4995 = vsel %vm4574, %v4948, 0.0
        %4996 = vadd.xlane.f32.xlu0 %v4995
        %v4997 = vpop.xlane.xlu0 %4996
        %v4998 = vsel %vm4574, %v4950, 0.0
        %4999 = vadd.xlane.f32.xlu0 %v4998
        %v5000 = vpop.xlane.xlu0 %4999
        %v5001 = vsel %vm4574, %v4952, 0.0
        %5002 = vadd.xlane.f32.xlu0 %v5001
        %v5003 = vpop.xlane.xlu0 %5002
        %v5004 = vsel %vm4574, %v4954, 0.0
        %5005 = vadd.xlane.f32.xlu0 %v5004
        %v5006 = vpop.xlane.xlu0 %5005
        %v5007 = vsel %vm4574, %v4956, 0.0
        %5008 = vadd.xlane.f32.xlu0 %v5007
        %v5009 = vpop.xlane.xlu0 %5008
        %v5010 = vsel %vm4574, %v4958, 0.0
        %5011 = vadd.xlane.f32.xlu0 %v5010
        %v5012 = vpop.xlane.xlu0 %5011
        %v5013 = vsel %vm4574, %v4960, 0.0
        %5014 = vadd.xlane.f32.xlu0 %v5013
        %v5015 = vpop.xlane.xlu0 %5014
        %v5016 = vsel %vm4574, %v4962, 0.0
        %5017 = vadd.xlane.f32.xlu0 %v5016
        %v5018 = vpop.xlane.xlu0 %5017
        %v5019 = vsel %vm4574, %v4964, 0.0
        %5020 = vadd.xlane.f32.xlu0 %v5019
        %v5021 = vpop.xlane.xlu0 %5020
        %v5022 = vsel %vm4574, %v4966, 0.0
        %5023 = vadd.xlane.f32.xlu0 %v5022
        %v5024 = vpop.xlane.xlu0 %5023
        %v5025 = vsel %vm4574, %v4968, 0.0
        %5026 = vadd.xlane.f32.xlu0 %v5025
        %v5027 = vpop.xlane.xlu0 %5026
        %v5028 = vsel %vm4574, %v4970, 0.0
        %5029 = vadd.xlane.f32.xlu0 %v5028
        %v5030 = vpop.xlane.xlu0 %5029
        %v5031 = vsel %vm4574, %v4972, 0.0
        %5032 = vadd.xlane.f32.xlu0 %v5031
        %v5033 = vpop.xlane.xlu0 %5032
        %v5034 = vsel %vm4574, %v4974, 0.0
        %5035 = vadd.xlane.f32.xlu0 %v5034
        %v5036 = vpop.xlane.xlu0 %5035
        %v5037 = vsel %vm4574, %v4976, 0.0
        %5038 = vadd.xlane.f32.xlu0 %v5037
        %v5039 = vpop.xlane.xlu0 %5038
        %v5040 = vsel %vm4574, %v4978, 0.0
        %5041 = vadd.xlane.f32.xlu0 %v5040
        %v5042 = vpop.xlane.xlu0 %5041
        %v5043 = vadd.f32 %v4979, %v4997
        %v5044 = vadd.f32 %v4980, %v5000
        %v5045 = vadd.f32 %v4981, %v5003
        %v5046 = vadd.f32 %v4982, %v5006
        %v5047 = vadd.f32 %v4983, %v5009
        %v5048 = vadd.f32 %v4984, %v5012
        %v5049 = vadd.f32 %v4985, %v5015
        %v5050 = vadd.f32 %v4986, %v5018
        %v5051 = vadd.f32 %v4987, %v5021
        %v5052 = vadd.f32 %v4988, %v5024
        %v5053 = vadd.f32 %v4989, %v5027
        %v5054 = vadd.f32 %v4990, %v5030
        %v5055 = vadd.f32 %v4991, %v5033
        %v5056 = vadd.f32 %v4992, %v5036
        %v5057 = vadd.f32 %v4993, %v5039
        %v5058 = vadd.f32 %v4994, %v5042
        %v5059 = vpack.c.bf16 %v4950, %v4948
        %v5060 = vpack.c.bf16 %v4954, %v4952
        %v5061 = vpack.c.bf16 %v4958, %v4956
        %v5062 = vpack.c.bf16 %v4962, %v4960
        %v5063 = vpack.c.bf16 %v4966, %v4964
        %v5064 = vpack.c.bf16 %v4970, %v4968
        %v5065 = vpack.c.bf16 %v4974, %v4972
        %v5066 = vpack.c.bf16 %v4978, %v4976
        %v5068 = vsel %vm4574, %v5059, 0
        %v5071 = vsel %vm4574, %v5060, 0
        %5073 = vmatprep.subr.bf16.mxu0 0
        %5074 = vmatpush1.bf16.msra.mxu0 %v4554
        %5075 = vmatprep.subr.bf16.mxu0 0
        %5076 = vmatpush1.bf16.msra.mxu0 %v4555
        %5077 = vmatprep.subr.bf16.mxu0 0
        %5078 = vmatpush1.bf16.msra.mxu0 0
        %5079 = vmatprep.subr.bf16.mxu0 0
        %5080 = vmatpush1.bf16.msra.mxu0 0
        %5081 = vmatprep.subr.bf16.mxu0 0
        %5082 = vmatpush1.bf16.msra.mxu0 0
        %5083 = vmatprep.subr.bf16.mxu0 0
        %5084 = vmatpush1.bf16.msra.mxu0 0
        %5085 = vmatprep.subr.bf16.mxu0 0
        %5086 = vmatpush1.bf16.msra.mxu0 0
        %5087 = vmatprep.subr.bf16.mxu0 0
        %5088 = vmatpush1.bf16.msra.mxu0 0
        %5089 = vmatprep.subr.bf16.mxu0 0
        %5090 = vmatpush1.bf16.msra.mxu0 0
        %5091 = vmatprep.subr.bf16.mxu0 0
        %5092 = vmatpush1.bf16.msra.mxu0 0
        %5093 = vmatprep.subr.bf16.mxu0 0
        %5094 = vmatpush1.bf16.msra.mxu0 0
        %5095 = vmatprep.subr.bf16.mxu0 0
        %5096 = vmatpush1.bf16.msra.mxu0 0
        %5097 = vmatprep.subr.bf16.mxu0 0
        %5098 = vmatpush1.bf16.msra.mxu0 0
        %5099 = vmatprep.subr.bf16.mxu0 0
        %5100 = vmatpush1.bf16.msra.mxu0 0
        %5101 = vmatprep.subr.bf16.mxu0 0
        %5102 = vmatpush1.bf16.msra.mxu0 0
        %5103 = vmatprep.subr.bf16.mxu0 0
        %5104 = vmatpush1.bf16.msra.mxu0 0
        %5105 = vmatprep.mubr.bf16.mxu0 0
        %5106 = vmatmul.mubr.bf16.gmra.mrb[0].mxu0 %v5068
        %v5107 = vpop.f32.mrb[0].mxu0
        %v5108 = vadd.f32 0.0, %v5107
        %v5109 = vpop.f32.mrb[0].mxu0
        %v5110 = vpop.f32.mrb[0].mxu0
        %v5111 = vadd.f32 0.0, %v5110
        %v5112 = vpop.f32.mrb[0].mxu0
        %5113 = vmatprep.mubr.bf16.mxu0 0
        %5114 = vmatmul.mubr.bf16.gmra.mrb[0].mxu0 %v5071
        %v5115 = vpop.f32.mrb[0].mxu0
        %v5116 = vadd.f32 0.0, %v5115
        %v5117 = vpop.f32.mrb[0].mxu0
        %v5118 = vpop.f32.mrb[0].mxu0
        %v5119 = vadd.f32 0.0, %v5118
        %v5120 = vpop.f32.mrb[0].mxu0
        %5121 = vdwg.mxu0
        %v5123 = vsel %vm4574, %v5061, 0
        %v5126 = vsel %vm4574, %v5062, 0
        %5128 = vmatprep.subr.bf16.mxu0 0
        %5129 = vmatpush1.bf16.msra.mxu0 %v4558
        %5130 = vmatprep.subr.bf16.mxu0 0
        %5131 = vmatpush1.bf16.msra.mxu0 %v4559
        %5132 = vmatprep.subr.bf16.mxu0 0
        %5133 = vmatpush1.bf16.msra.mxu0 0
        %5134 = vmatprep.subr.bf16.mxu0 0
        %5135 = vmatpush1.bf16.msra.mxu0 0
        %5136 = vmatprep.subr.bf16.mxu0 0
        %5137 = vmatpush1.bf16.msra.mxu0 0
        %5138 = vmatprep.subr.bf16.mxu0 0
        %5139 = vmatpush1.bf16.msra.mxu0 0
        %5140 = vmatprep.subr.bf16.mxu0 0
        %5141 = vmatpush1.bf16.msra.mxu0 0
        %5142 = vmatprep.subr.bf16.mxu0 0
        %5143 = vmatpush1.bf16.msra.mxu0 0
        %5144 = vmatprep.subr.bf16.mxu0 0
        %5145 = vmatpush1.bf16.msra.mxu0 0
        %5146 = vmatprep.subr.bf16.mxu0 0
        %5147 = vmatpush1.bf16.msra.mxu0 0
        %5148 = vmatprep.subr.bf16.mxu0 0
        %5149 = vmatpush1.bf16.msra.mxu0 0
        %5150 = vmatprep.subr.bf16.mxu0 0
        %5151 = vmatpush1.bf16.msra.mxu0 0
        %5152 = vmatprep.subr.bf16.mxu0 0
        %5153 = vmatpush1.bf16.msra.mxu0 0
        %5154 = vmatprep.subr.bf16.mxu0 0
        %5155 = vmatpush1.bf16.msra.mxu0 0
        %5156 = vmatprep.subr.bf16.mxu0 0
        %5157 = vmatpush1.bf16.msra.mxu0 0
        %5158 = vmatprep.subr.bf16.mxu0 0
        %5159 = vmatpush1.bf16.msra.mxu0 0
        %5160 = vmatprep.mubr.bf16.mxu0 0
        %5161 = vmatmul.mubr.bf16.gmra.mrb[0].mxu0 %v5123
        %v5162 = vpop.f32.mrb[0].mxu0
        %v5163 = vadd.f32 0.0, %v5162
        %v5164 = vpop.f32.mrb[0].mxu0
        %v5165 = vpop.f32.mrb[0].mxu0
        %v5166 = vadd.f32 0.0, %v5165
        %v5167 = vpop.f32.mrb[0].mxu0
        %5168 = vmatprep.mubr.bf16.mxu0 0
        %5169 = vmatmul.mubr.bf16.gmra.mrb[0].mxu0 %v5126
        %v5170 = vpop.f32.mrb[0].mxu0
        %v5171 = vadd.f32 0.0, %v5170
        %v5172 = vpop.f32.mrb[0].mxu0
        %v5173 = vpop.f32.mrb[0].mxu0
        %v5174 = vadd.f32 0.0, %v5173
        %v5175 = vpop.f32.mrb[0].mxu0
        %5176 = vdwg.mxu0
        %v5178 = vsel %vm4574, %v5063, 0
        %v5181 = vsel %vm4574, %v5064, 0
        %5183 = vmatprep.subr.bf16.mxu0 0
        %5184 = vmatpush1.bf16.msra.mxu0 %v4562
        %5185 = vmatprep.subr.bf16.mxu0 0
        %5186 = vmatpush1.bf16.msra.mxu0 %v4563
        %5187 = vmatprep.subr.bf16.mxu0 0
        %5188 = vmatpush1.bf16.msra.mxu0 0
        %5189 = vmatprep.subr.bf16.mxu0 0
        %5190 = vmatpush1.bf16.msra.mxu0 0
        %5191 = vmatprep.subr.bf16.mxu0 0
        %5192 = vmatpush1.bf16.msra.mxu0 0
        %5193 = vmatprep.subr.bf16.mxu0 0
        %5194 = vmatpush1.bf16.msra.mxu0 0
        %5195 = vmatprep.subr.bf16.mxu0 0
        %5196 = vmatpush1.bf16.msra.mxu0 0
        %5197 = vmatprep.subr.bf16.mxu0 0
        %5198 = vmatpush1.bf16.msra.mxu0 0
        %5199 = vmatprep.subr.bf16.mxu0 0
        %5200 = vmatpush1.bf16.msra.mxu0 0
        %5201 = vmatprep.subr.bf16.mxu0 0
        %5202 = vmatpush1.bf16.msra.mxu0 0
        %5203 = vmatprep.subr.bf16.mxu0 0
        %5204 = vmatpush1.bf16.msra.mxu0 0
        %5205 = vmatprep.subr.bf16.mxu0 0
        %5206 = vmatpush1.bf16.msra.mxu0 0
        %5207 = vmatprep.subr.bf16.mxu0 0
        %5208 = vmatpush1.bf16.msra.mxu0 0
        %5209 = vmatprep.subr.bf16.mxu0 0
        %5210 = vmatpush1.bf16.msra.mxu0 0
        %5211 = vmatprep.subr.bf16.mxu0 0
        %5212 = vmatpush1.bf16.msra.mxu0 0
        %5213 = vmatprep.subr.bf16.mxu0 0
        %5214 = vmatpush1.bf16.msra.mxu0 0
        %5215 = vmatprep.mubr.bf16.mxu0 0
        %5216 = vmatmul.mubr.bf16.gmra.mrb[0].mxu0 %v5178
        %v5217 = vpop.f32.mrb[0].mxu0
        %v5218 = vadd.f32 0.0, %v5217
        %v5219 = vpop.f32.mrb[0].mxu0
        %v5220 = vpop.f32.mrb[0].mxu0
        %v5221 = vadd.f32 0.0, %v5220
        %v5222 = vpop.f32.mrb[0].mxu0
        %5223 = vmatprep.mubr.bf16.mxu0 0
        %5224 = vmatmul.mubr.bf16.gmra.mrb[0].mxu0 %v5181
        %v5225 = vpop.f32.mrb[0].mxu0
        %v5226 = vadd.f32 0.0, %v5225
        %v5227 = vpop.f32.mrb[0].mxu0
        %v5228 = vpop.f32.mrb[0].mxu0
        %v5229 = vadd.f32 0.0, %v5228
        %v5230 = vpop.f32.mrb[0].mxu0
        %5231 = vdwg.mxu0
        %v5233 = vsel %vm4574, %v5065, 0
        %v5236 = vsel %vm4574, %v5066, 0
        %5238 = vmatprep.subr.bf16.mxu0 0
        %5239 = vmatpush1.bf16.msra.mxu0 %v4566
        %5240 = vmatprep.subr.bf16.mxu0 0
        %5241 = vmatpush1.bf16.msra.mxu0 %v4567
        %5242 = vmatprep.subr.bf16.mxu0 0
        %5243 = vmatpush1.bf16.msra.mxu0 0
        %5244 = vmatprep.subr.bf16.mxu0 0
        %5245 = vmatpush1.bf16.msra.mxu0 0
        %5246 = vmatprep.subr.bf16.mxu0 0
        %5247 = vmatpush1.bf16.msra.mxu0 0
        %5248 = vmatprep.subr.bf16.mxu0 0
        %5249 = vmatpush1.bf16.msra.mxu0 0
        %5250 = vmatprep.subr.bf16.mxu0 0
        %5251 = vmatpush1.bf16.msra.mxu0 0
        %5252 = vmatprep.subr.bf16.mxu0 0
        %5253 = vmatpush1.bf16.msra.mxu0 0
        %5254 = vmatprep.subr.bf16.mxu0 0
        %5255 = vmatpush1.bf16.msra.mxu0 0
        %5256 = vmatprep.subr.bf16.mxu0 0
        %5257 = vmatpush1.bf16.msra.mxu0 0
        %5258 = vmatprep.subr.bf16.mxu0 0
        %5259 = vmatpush1.bf16.msra.mxu0 0
        %5260 = vmatprep.subr.bf16.mxu0 0
        %5261 = vmatpush1.bf16.msra.mxu0 0
        %5262 = vmatprep.subr.bf16.mxu0 0
        %5263 = vmatpush1.bf16.msra.mxu0 0
        %5264 = vmatprep.subr.bf16.mxu0 0
        %5265 = vmatpush1.bf16.msra.mxu0 0
        %5266 = vmatprep.subr.bf16.mxu0 0
        %5267 = vmatpush1.bf16.msra.mxu0 0
        %5268 = vmatprep.subr.bf16.mxu0 0
        %5269 = vmatpush1.bf16.msra.mxu0 0
        %5270 = vmatprep.mubr.bf16.mxu0 0
        %5271 = vmatmul.mubr.bf16.gmra.mrb[0].mxu0 %v5233
        %v5272 = vpop.f32.mrb[0].mxu0
        %v5273 = vadd.f32 0.0, %v5272
        %v5274 = vpop.f32.mrb[0].mxu0
        %v5275 = vpop.f32.mrb[0].mxu0
        %v5276 = vadd.f32 0.0, %v5275
        %v5277 = vpop.f32.mrb[0].mxu0
        %5278 = vmatprep.mubr.bf16.mxu0 0
        %5279 = vmatmul.mubr.bf16.gmra.mrb[0].mxu0 %v5236
        %v5280 = vpop.f32.mrb[0].mxu0
        %v5281 = vadd.f32 0.0, %v5280
        %v5282 = vpop.f32.mrb[0].mxu0
        %v5283 = vpop.f32.mrb[0].mxu0
        %v5284 = vadd.f32 0.0, %v5283
        %v5285 = vpop.f32.mrb[0].mxu0
        %5286 = vdwg.mxu0
        %v5287 = vadd.f32 %v4979, %v5108
        %v5288 = vadd.f32 %v4980, %v5111
        %v5289 = vadd.f32 %v4981, %v5116
        %v5290 = vadd.f32 %v4982, %v5119
        %v5291 = vadd.f32 %v4983, %v5163
        %v5292 = vadd.f32 %v4984, %v5166
        %v5293 = vadd.f32 %v4985, %v5171
        %v5294 = vadd.f32 %v4986, %v5174
        %v5295 = vadd.f32 %v4987, %v5218
        %v5296 = vadd.f32 %v4988, %v5221
        %v5297 = vadd.f32 %v4989, %v5226
        %v5298 = vadd.f32 %v4990, %v5229
        %v5299 = vadd.f32 %v4991, %v5273
        %v5300 = vadd.f32 %v4992, %v5276
        %v5301 = vadd.f32 %v4993, %v5281
        %v5302 = vadd.f32 %v4994, %v5284
        %v5303 = vrcp.pop %v5043
        %v5304 = vrcp.pop %v5044
        %v5305 = vrcp.pop %v5045
        %v5306 = vrcp.pop %v5046
        %v5307 = vrcp.pop %v5047
        %v5308 = vrcp.pop %v5048
        %v5309 = vrcp.pop %v5049
        %v5310 = vrcp.pop %v5050
        %v5311 = vrcp.pop %v5051
        %v5312 = vrcp.pop %v5052
        %v5313 = vrcp.pop %v5053
        %v5314 = vrcp.pop %v5054
        %v5315 = vrcp.pop %v5055
        %v5316 = vrcp.pop %v5056
        %v5317 = vrcp.pop %v5057
        %v5318 = vrcp.pop %v5058
        %v5319 = vmul.f32 %v5287, %v5303
        %v5320 = vmul.f32 %v5288, %v5304
        %v5321 = vmul.f32 %v5289, %v5305
        %v5322 = vmul.f32 %v5290, %v5306
        %v5323 = vmul.f32 %v5291, %v5307
        %v5324 = vmul.f32 %v5292, %v5308
        %v5325 = vmul.f32 %v5293, %v5309
        %v5326 = vmul.f32 %v5294, %v5310
        %v5327 = vmul.f32 %v5295, %v5311
        %v5328 = vmul.f32 %v5296, %v5312
        %v5329 = vmul.f32 %v5297, %v5313
        %v5330 = vmul.f32 %v5298, %v5314
        %v5331 = vmul.f32 %v5299, %v5315
        %v5332 = vmul.f32 %v5300, %v5316
        %v5333 = vmul.f32 %v5301, %v5317
        %v5334 = vmul.f32 %v5302, %v5318
        %v5335 = vcombine.low %v5319, %v5327
        %v5336 = vcombine.high %v5319, %v5327
        %v5338 = vunpack.c.l.s4 1983009808
        %v5339 = vunpack.c.0.s8 %v5338
        %v5340 = vlaneseq
        %v5341 = vshrl.u32 %v5340, 7
        %v5342 = vsub.s32 %v5339, %v5341
        %v5343 = vrot.slane %v5335, %v5342
        %v5345 = vunpack.c.l.s4 1983009808
        %v5346 = vunpack.c.0.s8 %v5345
        %v5347 = vlaneseq
        %v5348 = vshrl.u32 %v5347, 7
        %v5349 = vsub.s32 %v5346, %v5348
        %v5350 = vrot.slane %v5336, %v5349
        %v5351 = vcombine.low %v5323, %v5331
        %v5352 = vcombine.high %v5323, %v5331
        %v5354 = vunpack.c.l.s4 1983009808
        %v5355 = vunpack.c.0.s8 %v5354
        %v5356 = vlaneseq
        %v5357 = vshrl.u32 %v5356, 7
        %v5358 = vsub.s32 %v5355, %v5357
        %v5359 = vrot.slane %v5351, %v5358
        %v5361 = vunpack.c.l.s4 1983009808
        %v5362 = vunpack.c.0.s8 %v5361
        %v5363 = vlaneseq
        %v5364 = vshrl.u32 %v5363, 7
        %v5365 = vsub.s32 %v5362, %v5364
        %v5366 = vrot.slane %v5352, %v5365
        %v5367 = vcombine.low %v5343, %v5359
        %v5368 = vcombine.high %v5343, %v5359
        %v5370 = vunpack.c.l.s4 1934713408
        %v5371 = vunpack.c.0.s8 %v5370
        %v5372 = vlaneseq
        %v5373 = vshrl.u32 %v5372, 7
        %v5374 = vsub.s32 %v5371, %v5373
        %v5375 = vrot.slane %v5367, %v5374
        %v5377 = vunpack.c.l.s4 1934713408
        %v5378 = vunpack.c.0.s8 %v5377
        %v5379 = vlaneseq
        %v5380 = vshrl.u32 %v5379, 7
        %v5381 = vsub.s32 %v5378, %v5380
        %v5382 = vrot.slane %v5368, %v5381
        %v5383 = vcombine.low %v5350, %v5366
        %v5384 = vcombine.high %v5350, %v5366
        %v5386 = vunpack.c.l.s4 1934713408
        %v5387 = vunpack.c.0.s8 %v5386
        %v5388 = vlaneseq
        %v5389 = vshrl.u32 %v5388, 7
        %v5390 = vsub.s32 %v5387, %v5389
        %v5391 = vrot.slane %v5383, %v5390
        %v5393 = vunpack.c.l.s4 1934713408
        %v5394 = vunpack.c.0.s8 %v5393
        %v5395 = vlaneseq
        %v5396 = vshrl.u32 %v5395, 7
        %v5397 = vsub.s32 %v5394, %v5396
        %v5398 = vrot.slane %v5384, %v5397
        %v5399 = vcombine.high %v5375, 0.0
        %v5400 = vcombine.high %v5382, 0.0
        %v5401 = vcombine.high %v5391, 0.0
        %v5402 = vcombine.high %v5398, 0.0
        %v5403 = vcombine.low %v5320, %v5328
        %v5404 = vcombine.high %v5320, %v5328
        %v5406 = vunpack.c.l.s4 1983009808
        %v5407 = vunpack.c.0.s8 %v5406
        %v5408 = vlaneseq
        %v5409 = vshrl.u32 %v5408, 7
        %v5410 = vsub.s32 %v5407, %v5409
        %v5411 = vrot.slane %v5403, %v5410
        %v5413 = vunpack.c.l.s4 1983009808
        %v5414 = vunpack.c.0.s8 %v5413
        %v5415 = vlaneseq
        %v5416 = vshrl.u32 %v5415, 7
        %v5417 = vsub.s32 %v5414, %v5416
        %v5418 = vrot.slane %v5404, %v5417
        %v5419 = vcombine.low %v5324, %v5332
        %v5420 = vcombine.high %v5324, %v5332
        %v5422 = vunpack.c.l.s4 1983009808
        %v5423 = vunpack.c.0.s8 %v5422
        %v5424 = vlaneseq
        %v5425 = vshrl.u32 %v5424, 7
        %v5426 = vsub.s32 %v5423, %v5425
        %v5427 = vrot.slane %v5419, %v5426
        %v5429 = vunpack.c.l.s4 1983009808
        %v5430 = vunpack.c.0.s8 %v5429
        %v5431 = vlaneseq
        %v5432 = vshrl.u32 %v5431, 7
        %v5433 = vsub.s32 %v5430, %v5432
        %v5434 = vrot.slane %v5420, %v5433
        %v5435 = vcombine.low %v5411, %v5427
        %v5436 = vcombine.high %v5411, %v5427
        %v5438 = vunpack.c.l.s4 1934713408
        %v5439 = vunpack.c.0.s8 %v5438
        %v5440 = vlaneseq
        %v5441 = vshrl.u32 %v5440, 7
        %v5442 = vsub.s32 %v5439, %v5441
        %v5443 = vrot.slane %v5435, %v5442
        %v5445 = vunpack.c.l.s4 1934713408
        %v5446 = vunpack.c.0.s8 %v5445
        %v5447 = vlaneseq
        %v5448 = vshrl.u32 %v5447, 7
        %v5449 = vsub.s32 %v5446, %v5448
        %v5450 = vrot.slane %v5436, %v5449
        %v5451 = vcombine.low %v5418, %v5434
        %v5452 = vcombine.high %v5418, %v5434
        %v5454 = vunpack.c.l.s4 1934713408
        %v5455 = vunpack.c.0.s8 %v5454
        %v5456 = vlaneseq
        %v5457 = vshrl.u32 %v5456, 7
        %v5458 = vsub.s32 %v5455, %v5457
        %v5459 = vrot.slane %v5451, %v5458
        %v5461 = vunpack.c.l.s4 1934713408
        %v5462 = vunpack.c.0.s8 %v5461
        %v5463 = vlaneseq
        %v5464 = vshrl.u32 %v5463, 7
        %v5465 = vsub.s32 %v5462, %v5464
        %v5466 = vrot.slane %v5452, %v5465
        %v5467 = vcombine.high %v5443, 0.0
        %v5468 = vcombine.high %v5450, 0.0
        %v5469 = vcombine.high %v5459, 0.0
        %v5470 = vcombine.high %v5466, 0.0
        %v5471 = vcombine.low %v5321, %v5329
        %v5472 = vcombine.high %v5321, %v5329
        %v5474 = vunpack.c.l.s4 1983009808
        %v5475 = vunpack.c.0.s8 %v5474
        %v5476 = vlaneseq
        %v5477 = vshrl.u32 %v5476, 7
        %v5478 = vsub.s32 %v5475, %v5477
        %v5479 = vrot.slane %v5471, %v5478
        %v5481 = vunpack.c.l.s4 1983009808
        %v5482 = vunpack.c.0.s8 %v5481
        %v5483 = vlaneseq
        %v5484 = vshrl.u32 %v5483, 7
        %v5485 = vsub.s32 %v5482, %v5484
        %v5486 = vrot.slane %v5472, %v5485
        %v5487 = vcombine.low %v5325, %v5333
        %v5488 = vcombine.high %v5325, %v5333
        %v5490 = vunpack.c.l.s4 1983009808
        %v5491 = vunpack.c.0.s8 %v5490
        %v5492 = vlaneseq
        %v5493 = vshrl.u32 %v5492, 7
        %v5494 = vsub.s32 %v5491, %v5493
        %v5495 = vrot.slane %v5487, %v5494
        %v5497 = vunpack.c.l.s4 1983009808
        %v5498 = vunpack.c.0.s8 %v5497
        %v5499 = vlaneseq
        %v5500 = vshrl.u32 %v5499, 7
        %v5501 = vsub.s32 %v5498, %v5500
        %v5502 = vrot.slane %v5488, %v5501
        %v5503 = vcombine.low %v5479, %v5495
        %v5504 = vcombine.high %v5479, %v5495
        %v5506 = vunpack.c.l.s4 1934713408
        %v5507 = vunpack.c.0.s8 %v5506
        %v5508 = vlaneseq
        %v5509 = vshrl.u32 %v5508, 7
        %v5510 = vsub.s32 %v5507, %v5509
        %v5511 = vrot.slane %v5503, %v5510
        %v5513 = vunpack.c.l.s4 1934713408
        %v5514 = vunpack.c.0.s8 %v5513
        %v5515 = vlaneseq
        %v5516 = vshrl.u32 %v5515, 7
        %v5517 = vsub.s32 %v5514, %v5516
        %v5518 = vrot.slane %v5504, %v5517
        %v5519 = vcombine.low %v5486, %v5502
        %v5520 = vcombine.high %v5486, %v5502
        %v5522 = vunpack.c.l.s4 1934713408
        %v5523 = vunpack.c.0.s8 %v5522
        %v5524 = vlaneseq
        %v5525 = vshrl.u32 %v5524, 7
        %v5526 = vsub.s32 %v5523, %v5525
        %v5527 = vrot.slane %v5519, %v5526
        %v5529 = vunpack.c.l.s4 1934713408
        %v5530 = vunpack.c.0.s8 %v5529
        %v5531 = vlaneseq
        %v5532 = vshrl.u32 %v5531, 7
        %v5533 = vsub.s32 %v5530, %v5532
        %v5534 = vrot.slane %v5520, %v5533
        %v5535 = vcombine.high %v5511, 0.0
        %v5536 = vcombine.high %v5518, 0.0
        %v5537 = vcombine.high %v5527, 0.0
        %v5538 = vcombine.high %v5534, 0.0
        %v5539 = vcombine.low %v5322, %v5330
        %v5540 = vcombine.high %v5322, %v5330
        %v5542 = vunpack.c.l.s4 1983009808
        %v5543 = vunpack.c.0.s8 %v5542
        %v5544 = vlaneseq
        %v5545 = vshrl.u32 %v5544, 7
        %v5546 = vsub.s32 %v5543, %v5545
        %v5547 = vrot.slane %v5539, %v5546
        %v5549 = vunpack.c.l.s4 1983009808
        %v5550 = vunpack.c.0.s8 %v5549
        %v5551 = vlaneseq
        %v5552 = vshrl.u32 %v5551, 7
        %v5553 = vsub.s32 %v5550, %v5552
        %v5554 = vrot.slane %v5540, %v5553
        %v5555 = vcombine.low %v5326, %v5334
        %v5556 = vcombine.high %v5326, %v5334
        %v5558 = vunpack.c.l.s4 1983009808
        %v5559 = vunpack.c.0.s8 %v5558
        %v5560 = vlaneseq
        %v5561 = vshrl.u32 %v5560, 7
        %v5562 = vsub.s32 %v5559, %v5561
        %v5563 = vrot.slane %v5555, %v5562
        %v5565 = vunpack.c.l.s4 1983009808
        %v5566 = vunpack.c.0.s8 %v5565
        %v5567 = vlaneseq
        %v5568 = vshrl.u32 %v5567, 7
        %v5569 = vsub.s32 %v5566, %v5568
        %v5570 = vrot.slane %v5556, %v5569
        %v5571 = vcombine.low %v5547, %v5563
        %v5572 = vcombine.high %v5547, %v5563
        %v5574 = vunpack.c.l.s4 1934713408
        %v5575 = vunpack.c.0.s8 %v5574
        %v5576 = vlaneseq
        %v5577 = vshrl.u32 %v5576, 7
        %v5578 = vsub.s32 %v5575, %v5577
        %v5579 = vrot.slane %v5571, %v5578
        %v5581 = vunpack.c.l.s4 1934713408
        %v5582 = vunpack.c.0.s8 %v5581
        %v5583 = vlaneseq
        %v5584 = vshrl.u32 %v5583, 7
        %v5585 = vsub.s32 %v5582, %v5584
        %v5586 = vrot.slane %v5572, %v5585
        %v5587 = vcombine.low %v5554, %v5570
        %v5588 = vcombine.high %v5554, %v5570
        %v5590 = vunpack.c.l.s4 1934713408
        %v5591 = vunpack.c.0.s8 %v5590
        %v5592 = vlaneseq
        %v5593 = vshrl.u32 %v5592, 7
        %v5594 = vsub.s32 %v5591, %v5593
        %v5595 = vrot.slane %v5587, %v5594
        %v5597 = vunpack.c.l.s4 1934713408
        %v5598 = vunpack.c.0.s8 %v5597
        %v5599 = vlaneseq
        %v5600 = vshrl.u32 %v5599, 7
        %v5601 = vsub.s32 %v5598, %v5600
        %v5602 = vrot.slane %v5588, %v5601
        %v5603 = vcombine.high %v5579, 0.0
        %v5604 = vcombine.high %v5586, 0.0
        %v5605 = vcombine.high %v5595, 0.0
        %v5606 = vcombine.high %v5602, 0.0
        %v5607 = vcombine.low %v5375, %v5382
        %v5609 = vunpack.c.l.s4 1983009808
        %v5610 = vunpack.c.0.s8 %v5609
        %v5611 = vlaneseq
        %v5612 = vshrl.u32 %v5611, 7
        %v5613 = vsub.s32 %v5610, %v5612
        %v5614 = vrot.slane %v5607, %v5613
        %v5615 = vcombine.low %v5399, %v5400
        %v5617 = vunpack.c.l.s4 1983009808
        %v5618 = vunpack.c.0.s8 %v5617
        %v5619 = vlaneseq
        %v5620 = vshrl.u32 %v5619, 7
        %v5621 = vsub.s32 %v5618, %v5620
        %v5622 = vrot.slane %v5615, %v5621
        %v5623 = vcombine.low %v5391, %v5398
        %v5625 = vunpack.c.l.s4 1983009808
        %v5626 = vunpack.c.0.s8 %v5625
        %v5627 = vlaneseq
        %v5628 = vshrl.u32 %v5627, 7
        %v5629 = vsub.s32 %v5626, %v5628
        %v5630 = vrot.slane %v5623, %v5629
        %v5631 = vcombine.low %v5401, %v5402
        %v5633 = vunpack.c.l.s4 1983009808
        %v5634 = vunpack.c.0.s8 %v5633
        %v5635 = vlaneseq
        %v5636 = vshrl.u32 %v5635, 7
        %v5637 = vsub.s32 %v5634, %v5636
        %v5638 = vrot.slane %v5631, %v5637
        %v5639 = vcombine.low %v5614, %v5622
        %v5640 = vcombine.high %v5614, %v5622
        %v5642 = vunpack.c.l.s4 1934713408
        %v5643 = vunpack.c.0.s8 %v5642
        %v5644 = vlaneseq
        %v5645 = vshrl.u32 %v5644, 7
        %v5646 = vsub.s32 %v5643, %v5645
        %v5647 = vrot.slane %v5639, %v5646
        %v5649 = vunpack.c.l.s4 1934713408
        %v5650 = vunpack.c.0.s8 %v5649
        %v5651 = vlaneseq
        %v5652 = vshrl.u32 %v5651, 7
        %v5653 = vsub.s32 %v5650, %v5652
        %v5654 = vrot.slane %v5640, %v5653
        %v5655 = vcombine.low %v5630, %v5638
        %v5656 = vcombine.high %v5630, %v5638
        %v5658 = vunpack.c.l.s4 1934713408
        %v5659 = vunpack.c.0.s8 %v5658
        %v5660 = vlaneseq
        %v5661 = vshrl.u32 %v5660, 7
        %v5662 = vsub.s32 %v5659, %v5661
        %v5663 = vrot.slane %v5655, %v5662
        %v5665 = vunpack.c.l.s4 1934713408
        %v5666 = vunpack.c.0.s8 %v5665
        %v5667 = vlaneseq
        %v5668 = vshrl.u32 %v5667, 7
        %v5669 = vsub.s32 %v5666, %v5668
        %v5670 = vrot.slane %v5656, %v5669
        %v5671 = vcombine.low %v5647, %v5663
        %v5672 = vcombine.high %v5647, %v5663
        %v5673 = vcombine.low %v5654, %v5670
        %v5674 = vcombine.high %v5654, %v5670
        %v5675 = vcombine.low %v5443, %v5450
        %v5677 = vunpack.c.l.s4 1983009808
        %v5678 = vunpack.c.0.s8 %v5677
        %v5679 = vlaneseq
        %v5680 = vshrl.u32 %v5679, 7
        %v5681 = vsub.s32 %v5678, %v5680
        %v5682 = vrot.slane %v5675, %v5681
        %v5683 = vcombine.low %v5467, %v5468
        %v5685 = vunpack.c.l.s4 1983009808
        %v5686 = vunpack.c.0.s8 %v5685
        %v5687 = vlaneseq
        %v5688 = vshrl.u32 %v5687, 7
        %v5689 = vsub.s32 %v5686, %v5688
        %v5690 = vrot.slane %v5683, %v5689
        %v5691 = vcombine.low %v5459, %v5466
        %v5693 = vunpack.c.l.s4 1983009808
        %v5694 = vunpack.c.0.s8 %v5693
        %v5695 = vlaneseq
        %v5696 = vshrl.u32 %v5695, 7
        %v5697 = vsub.s32 %v5694, %v5696
        %v5698 = vrot.slane %v5691, %v5697
        %v5699 = vcombine.low %v5469, %v5470
        %v5701 = vunpack.c.l.s4 1983009808
        %v5702 = vunpack.c.0.s8 %v5701
        %v5703 = vlaneseq
        %v5704 = vshrl.u32 %v5703, 7
        %v5705 = vsub.s32 %v5702, %v5704
        %v5706 = vrot.slane %v5699, %v5705
        %v5707 = vcombine.low %v5682, %v5690
        %v5708 = vcombine.high %v5682, %v5690
        %v5710 = vunpack.c.l.s4 1934713408
        %v5711 = vunpack.c.0.s8 %v5710
        %v5712 = vlaneseq
        %v5713 = vshrl.u32 %v5712, 7
        %v5714 = vsub.s32 %v5711, %v5713
        %v5715 = vrot.slane %v5707, %v5714
        %v5717 = vunpack.c.l.s4 1934713408
        %v5718 = vunpack.c.0.s8 %v5717
        %v5719 = vlaneseq
        %v5720 = vshrl.u32 %v5719, 7
        %v5721 = vsub.s32 %v5718, %v5720
        %v5722 = vrot.slane %v5708, %v5721
        %v5723 = vcombine.low %v5698, %v5706
        %v5724 = vcombine.high %v5698, %v5706
        %v5726 = vunpack.c.l.s4 1934713408
        %v5727 = vunpack.c.0.s8 %v5726
        %v5728 = vlaneseq
        %v5729 = vshrl.u32 %v5728, 7
        %v5730 = vsub.s32 %v5727, %v5729
        %v5731 = vrot.slane %v5723, %v5730
        %v5733 = vunpack.c.l.s4 1934713408
        %v5734 = vunpack.c.0.s8 %v5733
        %v5735 = vlaneseq
        %v5736 = vshrl.u32 %v5735, 7
        %v5737 = vsub.s32 %v5734, %v5736
        %v5738 = vrot.slane %v5724, %v5737
        %v5739 = vcombine.low %v5715, %v5731
        %v5740 = vcombine.high %v5715, %v5731
        %v5741 = vcombine.low %v5722, %v5738
        %v5742 = vcombine.high %v5722, %v5738
        %v5743 = vcombine.low %v5511, %v5518
        %v5745 = vunpack.c.l.s4 1983009808
        %v5746 = vunpack.c.0.s8 %v5745
        %v5747 = vlaneseq
        %v5748 = vshrl.u32 %v5747, 7
        %v5749 = vsub.s32 %v5746, %v5748
        %v5750 = vrot.slane %v5743, %v5749
        %v5751 = vcombine.low %v5535, %v5536
        %v5753 = vunpack.c.l.s4 1983009808
        %v5754 = vunpack.c.0.s8 %v5753
        %v5755 = vlaneseq
        %v5756 = vshrl.u32 %v5755, 7
        %v5757 = vsub.s32 %v5754, %v5756
        %v5758 = vrot.slane %v5751, %v5757
        %v5759 = vcombine.low %v5527, %v5534
        %v5761 = vunpack.c.l.s4 1983009808
        %v5762 = vunpack.c.0.s8 %v5761
        %v5763 = vlaneseq
        %v5764 = vshrl.u32 %v5763, 7
        %v5765 = vsub.s32 %v5762, %v5764
        %v5766 = vrot.slane %v5759, %v5765
        %v5767 = vcombine.low %v5537, %v5538
        %v5769 = vunpack.c.l.s4 1983009808
        %v5770 = vunpack.c.0.s8 %v5769
        %v5771 = vlaneseq
        %v5772 = vshrl.u32 %v5771, 7
        %v5773 = vsub.s32 %v5770, %v5772
        %v5774 = vrot.slane %v5767, %v5773
        %v5775 = vcombine.low %v5750, %v5758
        %v5776 = vcombine.high %v5750, %v5758
        %v5778 = vunpack.c.l.s4 1934713408
        %v5779 = vunpack.c.0.s8 %v5778
        %v5780 = vlaneseq
        %v5781 = vshrl.u32 %v5780, 7
        %v5782 = vsub.s32 %v5779, %v5781
        %v5783 = vrot.slane %v5775, %v5782
        %v5785 = vunpack.c.l.s4 1934713408
        %v5786 = vunpack.c.0.s8 %v5785
        %v5787 = vlaneseq
        %v5788 = vshrl.u32 %v5787, 7
        %v5789 = vsub.s32 %v5786, %v5788
        %v5790 = vrot.slane %v5776, %v5789
        %v5791 = vcombine.low %v5766, %v5774
        %v5792 = vcombine.high %v5766, %v5774
        %v5794 = vunpack.c.l.s4 1934713408
        %v5795 = vunpack.c.0.s8 %v5794
        %v5796 = vlaneseq
        %v5797 = vshrl.u32 %v5796, 7
        %v5798 = vsub.s32 %v5795, %v5797
        %v5799 = vrot.slane %v5791, %v5798
        %v5801 = vunpack.c.l.s4 1934713408
        %v5802 = vunpack.c.0.s8 %v5801
        %v5803 = vlaneseq
        %v5804 = vshrl.u32 %v5803, 7
        %v5805 = vsub.s32 %v5802, %v5804
        %v5806 = vrot.slane %v5792, %v5805
        %v5807 = vcombine.low %v5783, %v5799
        %v5808 = vcombine.high %v5783, %v5799
        %v5809 = vcombine.low %v5790, %v5806
        %v5810 = vcombine.high %v5790, %v5806
        %v5811 = vcombine.low %v5579, %v5586
        %v5813 = vunpack.c.l.s4 1983009808
        %v5814 = vunpack.c.0.s8 %v5813
        %v5815 = vlaneseq
        %v5816 = vshrl.u32 %v5815, 7
        %v5817 = vsub.s32 %v5814, %v5816
        %v5818 = vrot.slane %v5811, %v5817
        %v5819 = vcombine.low %v5603, %v5604
        %v5821 = vunpack.c.l.s4 1983009808
        %v5822 = vunpack.c.0.s8 %v5821
        %v5823 = vlaneseq
        %v5824 = vshrl.u32 %v5823, 7
        %v5825 = vsub.s32 %v5822, %v5824
        %v5826 = vrot.slane %v5819, %v5825
        %v5827 = vcombine.low %v5595, %v5602
        %v5829 = vunpack.c.l.s4 1983009808
        %v5830 = vunpack.c.0.s8 %v5829
        %v5831 = vlaneseq
        %v5832 = vshrl.u32 %v5831, 7
        %v5833 = vsub.s32 %v5830, %v5832
        %v5834 = vrot.slane %v5827, %v5833
        %v5835 = vcombine.low %v5605, %v5606
        %v5837 = vunpack.c.l.s4 1983009808
        %v5838 = vunpack.c.0.s8 %v5837
        %v5839 = vlaneseq
        %v5840 = vshrl.u32 %v5839, 7
        %v5841 = vsub.s32 %v5838, %v5840
        %v5842 = vrot.slane %v5835, %v5841
        %v5843 = vcombine.low %v5818, %v5826
        %v5844 = vcombine.high %v5818, %v5826
        %v5846 = vunpack.c.l.s4 1934713408
        %v5847 = vunpack.c.0.s8 %v5846
        %v5848 = vlaneseq
        %v5849 = vshrl.u32 %v5848, 7
        %v5850 = vsub.s32 %v5847, %v5849
        %v5851 = vrot.slane %v5843, %v5850
        %v5853 = vunpack.c.l.s4 1934713408
        %v5854 = vunpack.c.0.s8 %v5853
        %v5855 = vlaneseq
        %v5856 = vshrl.u32 %v5855, 7
        %v5857 = vsub.s32 %v5854, %v5856
        %v5858 = vrot.slane %v5844, %v5857
        %v5859 = vcombine.low %v5834, %v5842
        %v5860 = vcombine.high %v5834, %v5842
        %v5862 = vunpack.c.l.s4 1934713408
        %v5863 = vunpack.c.0.s8 %v5862
        %v5864 = vlaneseq
        %v5865 = vshrl.u32 %v5864, 7
        %v5866 = vsub.s32 %v5863, %v5865
        %v5867 = vrot.slane %v5859, %v5866
        %v5869 = vunpack.c.l.s4 1934713408
        %v5870 = vunpack.c.0.s8 %v5869
        %v5871 = vlaneseq
        %v5872 = vshrl.u32 %v5871, 7
        %v5873 = vsub.s32 %v5870, %v5872
        %v5874 = vrot.slane %v5860, %v5873
        %v5875 = vcombine.low %v5851, %v5867
        %v5876 = vcombine.high %v5851, %v5867
        %v5877 = vcombine.low %v5858, %v5874
        %v5878 = vcombine.high %v5858, %v5874
        %5883 = vrot.lane.b32.xlu0 %v5672, 32
        %v5884 = vpop.permute.xlu0 %5883
        %5885 = vrot.lane.b32.xlu0 %v5740, 32
        %v5886 = vpop.permute.xlu0 %5885
        %5887 = vrot.lane.b32.xlu0 %v5808, 32
        %v5888 = vpop.permute.xlu0 %5887
        %5889 = vrot.lane.b32.xlu0 %v5876, 32
        %v5890 = vpop.permute.xlu0 %5889
        %5899 = vrot.lane.b32.xlu0 %v5673, 64
        %v5900 = vpop.permute.xlu0 %5899
        %5901 = vrot.lane.b32.xlu0 %v5741, 64
        %v5902 = vpop.permute.xlu0 %5901
        %5903 = vrot.lane.b32.xlu0 %v5809, 64
        %v5904 = vpop.permute.xlu0 %5903
        %5905 = vrot.lane.b32.xlu0 %v5877, 64
        %v5906 = vpop.permute.xlu0 %5905
        %5915 = vrot.lane.b32.xlu0 %v5674, 96
        %v5916 = vpop.permute.xlu0 %5915
        %5917 = vrot.lane.b32.xlu0 %v5742, 96
        %v5918 = vpop.permute.xlu0 %5917
        %5919 = vrot.lane.b32.xlu0 %v5810, 96
        %v5920 = vpop.permute.xlu0 %5919
        %5921 = vrot.lane.b32.xlu0 %v5878, 96
        %v5922 = vpop.permute.xlu0 %5921
        %v5927 = vsel %vm4574, %v5671, %v5884
        %v5928 = vsel %vm4574, %v5739, %v5886
        %v5929 = vsel %vm4574, %v5807, %v5888
        %v5930 = vsel %vm4574, %v5875, %v5890
        %vm5931 = vcmask 523264
        %v5932 = vsel %vm5931, %v5927, %v5900
        %v5933 = vsel %vm5931, %v5928, %v5902
        %v5934 = vsel %vm5931, %v5929, %v5904
        %v5935 = vsel %vm5931, %v5930, %v5906
        %vm5936 = vcmask 785408
        %v5937 = vsel %vm5936, %v5932, %v5916
        %v5938 = vsel %vm5936, %v5933, %v5918
        %v5939 = vsel %vm5936, %v5934, %v5920
        %v5940 = vsel %vm5936, %v5935, %v5922
        %v5941 = vpack.c.bf16 %v5938, %v5937
        %v5942 = vpack.c.bf16 %v5940, %v5939
        %5943 = vst [vmem:[#allocation2] sm:$0xff] %v5941
        %5944 = vst [vmem:[#allocation2 + $0x8] sm:$0xff] %v5942
        %v5946 = vsel %vm4574, %v2188, 0
        %v5949 = vsel %vm4574, %v2189, 0
        %5951 = vmatprep.subr.bf16.mxu0 0
        %5952 = vmatpush1.bf16.xpose.msra.mxu0 %v4582
        %5953 = vmatprep.subr.bf16.mxu0 0
        %5954 = vmatpush1.bf16.xpose.msra.mxu0 %v4585
        %5955 = vmatprep.subr.bf16.mxu0 0
        %5956 = vmatpush1.bf16.xpose.msra.mxu0 0
        %5957 = vmatprep.subr.bf16.mxu0 0
        %5958 = vmatpush1.bf16.xpose.msra.mxu0 0
        %5959 = vmatprep.subr.bf16.mxu0 0
        %5960 = vmatpush1.bf16.xpose.msra.mxu0 0
        %5961 = vmatprep.subr.bf16.mxu0 0
        %5962 = vmatpush1.bf16.xpose.msra.mxu0 0
        %5963 = vmatprep.subr.bf16.mxu0 0
        %5964 = vmatpush1.bf16.xpose.msra.mxu0 0
        %5965 = vmatprep.subr.bf16.mxu0 0
        %5966 = vmatpush1.bf16.xpose.msra.mxu0 0
        %5967 = vmatprep.subr.bf16.mxu0 0
        %5968 = vmatpush1.bf16.xpose.msra.mxu0 0
        %5969 = vmatprep.subr.bf16.mxu0 0
        %5970 = vmatpush1.bf16.xpose.msra.mxu0 0
        %5971 = vmatprep.subr.bf16.mxu0 0
        %5972 = vmatpush1.bf16.xpose.msra.mxu0 0
        %5973 = vmatprep.subr.bf16.mxu0 0
        %5974 = vmatpush1.bf16.xpose.msra.mxu0 0
        %5975 = vmatprep.subr.bf16.mxu0 0
        %5976 = vmatpush1.bf16.xpose.msra.mxu0 0
        %5977 = vmatprep.subr.bf16.mxu0 0
        %5978 = vmatpush1.bf16.xpose.msra.mxu0 0
        %5979 = vmatprep.subr.bf16.mxu0 0
        %5980 = vmatpush1.bf16.xpose.msra.mxu0 0
        %5981 = vmatprep.subr.bf16.mxu0 0
        %5982 = vmatpush1.bf16.xpose.msra.mxu0 0
        %5983 = vmatprep.mubr.bf16.mxu0 0
        %5984 = vmatmul.mubr.bf16.gmra.mrb[0].mxu0 %v5946
        %v5985 = vpop.f32.mrb[0].mxu0
        %v5986 = vadd.f32 0.0, %v5985
        %v5987 = vpop.f32.mrb[0].mxu0
        %v5988 = vpop.f32.mrb[0].mxu0
        %v5989 = vadd.f32 0.0, %v5988
        %v5990 = vpop.f32.mrb[0].mxu0
        %5991 = vmatprep.mubr.bf16.mxu0 0
        %5992 = vmatmul.mubr.bf16.gmra.mrb[0].mxu0 %v5949
        %v5993 = vpop.f32.mrb[0].mxu0
        %v5994 = vadd.f32 0.0, %v5993
        %v5995 = vpop.f32.mrb[0].mxu0
        %v5996 = vpop.f32.mrb[0].mxu0
        %v5997 = vadd.f32 0.0, %v5996
        %v5998 = vpop.f32.mrb[0].mxu0
        %5999 = vdwg.mxu0
        %v6001 = vsel %vm4574, %v2192, 0
        %v6004 = vsel %vm4574, %v2193, 0
        %6006 = vmatprep.subr.bf16.mxu0 0
        %6007 = vmatpush1.bf16.xpose.msra.mxu0 %v4643
        %6008 = vmatprep.subr.bf16.mxu0 0
        %6009 = vmatpush1.bf16.xpose.msra.mxu0 %v4646
        %6010 = vmatprep.subr.bf16.mxu0 0
        %6011 = vmatpush1.bf16.xpose.msra.mxu0 0
        %6012 = vmatprep.subr.bf16.mxu0 0
        %6013 = vmatpush1.bf16.xpose.msra.mxu0 0
        %6014 = vmatprep.subr.bf16.mxu0 0
        %6015 = vmatpush1.bf16.xpose.msra.mxu0 0
        %6016 = vmatprep.subr.bf16.mxu0 0
        %6017 = vmatpush1.bf16.xpose.msra.mxu0 0
        %6018 = vmatprep.subr.bf16.mxu0 0
        %6019 = vmatpush1.bf16.xpose.msra.mxu0 0
        %6020 = vmatprep.subr.bf16.mxu0 0
        %6021 = vmatpush1.bf16.xpose.msra.mxu0 0
        %6022 = vmatprep.subr.bf16.mxu0 0
        %6023 = vmatpush1.bf16.xpose.msra.mxu0 0
        %6024 = vmatprep.subr.bf16.mxu0 0
        %6025 = vmatpush1.bf16.xpose.msra.mxu0 0
        %6026 = vmatprep.subr.bf16.mxu0 0
        %6027 = vmatpush1.bf16.xpose.msra.mxu0 0
        %6028 = vmatprep.subr.bf16.mxu0 0
        %6029 = vmatpush1.bf16.xpose.msra.mxu0 0
        %6030 = vmatprep.subr.bf16.mxu0 0
        %6031 = vmatpush1.bf16.xpose.msra.mxu0 0
        %6032 = vmatprep.subr.bf16.mxu0 0
        %6033 = vmatpush1.bf16.xpose.msra.mxu0 0
        %6034 = vmatprep.subr.bf16.mxu0 0
        %6035 = vmatpush1.bf16.xpose.msra.mxu0 0
        %6036 = vmatprep.subr.bf16.mxu0 0
        %6037 = vmatpush1.bf16.xpose.msra.mxu0 0
        %6038 = vmatprep.mubr.bf16.mxu0 0
        %6039 = vmatmul.mubr.bf16.gmra.mrb[0].mxu0 %v6001
        %v6040 = vpop.f32.mrb[0].mxu0
        %v6041 = vadd.f32 0.0, %v6040
        %v6042 = vpop.f32.mrb[0].mxu0
        %v6043 = vpop.f32.mrb[0].mxu0
        %v6044 = vadd.f32 0.0, %v6043
        %v6045 = vpop.f32.mrb[0].mxu0
        %6046 = vmatprep.mubr.bf16.mxu0 0
        %6047 = vmatmul.mubr.bf16.gmra.mrb[0].mxu0 %v6004
        %v6048 = vpop.f32.mrb[0].mxu0
        %v6049 = vadd.f32 0.0, %v6048
        %v6050 = vpop.f32.mrb[0].mxu0
        %v6051 = vpop.f32.mrb[0].mxu0
        %v6052 = vadd.f32 0.0, %v6051
        %v6053 = vpop.f32.mrb[0].mxu0
        %6054 = vdwg.mxu0
        %v6056 = vsel %vm4574, %v2196, 0
        %v6059 = vsel %vm4574, %v2197, 0
        %6061 = vmatprep.subr.bf16.mxu0 0
        %6062 = vmatpush1.bf16.xpose.msra.mxu0 %v4704
        %6063 = vmatprep.subr.bf16.mxu0 0
        %6064 = vmatpush1.bf16.xpose.msra.mxu0 %v4707
        %6065 = vmatprep.subr.bf16.mxu0 0
        %6066 = vmatpush1.bf16.xpose.msra.mxu0 0
        %6067 = vmatprep.subr.bf16.mxu0 0
        %6068 = vmatpush1.bf16.xpose.msra.mxu0 0
        %6069 = vmatprep.subr.bf16.mxu0 0
        %6070 = vmatpush1.bf16.xpose.msra.mxu0 0
        %6071 = vmatprep.subr.bf16.mxu0 0
        %6072 = vmatpush1.bf16.xpose.msra.mxu0 0
        %6073 = vmatprep.subr.bf16.mxu0 0
        %6074 = vmatpush1.bf16.xpose.msra.mxu0 0
        %6075 = vmatprep.subr.bf16.mxu0 0
        %6076 = vmatpush1.bf16.xpose.msra.mxu0 0
        %6077 = vmatprep.subr.bf16.mxu0 0
        %6078 = vmatpush1.bf16.xpose.msra.mxu0 0
        %6079 = vmatprep.subr.bf16.mxu0 0
        %6080 = vmatpush1.bf16.xpose.msra.mxu0 0
        %6081 = vmatprep.subr.bf16.mxu0 0
        %6082 = vmatpush1.bf16.xpose.msra.mxu0 0
        %6083 = vmatprep.subr.bf16.mxu0 0
        %6084 = vmatpush1.bf16.xpose.msra.mxu0 0
        %6085 = vmatprep.subr.bf16.mxu0 0
        %6086 = vmatpush1.bf16.xpose.msra.mxu0 0
        %6087 = vmatprep.subr.bf16.mxu0 0
        %6088 = vmatpush1.bf16.xpose.msra.mxu0 0
        %6089 = vmatprep.subr.bf16.mxu0 0
        %6090 = vmatpush1.bf16.xpose.msra.mxu0 0
        %6091 = vmatprep.subr.bf16.mxu0 0
        %6092 = vmatpush1.bf16.xpose.msra.mxu0 0
        %6093 = vmatprep.mubr.bf16.mxu0 0
        %6094 = vmatmul.mubr.bf16.gmra.mrb[0].mxu0 %v6056
        %v6095 = vpop.f32.mrb[0].mxu0
        %v6096 = vadd.f32 0.0, %v6095
        %v6097 = vpop.f32.mrb[0].mxu0
        %v6098 = vpop.f32.mrb[0].mxu0
        %v6099 = vadd.f32 0.0, %v6098
        %v6100 = vpop.f32.mrb[0].mxu0
        %6101 = vmatprep.mubr.bf16.mxu0 0
        %6102 = vmatmul.mubr.bf16.gmra.mrb[0].mxu0 %v6059
        %v6103 = vpop.f32.mrb[0].mxu0
        %v6104 = vadd.f32 0.0, %v6103
        %v6105 = vpop.f32.mrb[0].mxu0
        %v6106 = vpop.f32.mrb[0].mxu0
        %v6107 = vadd.f32 0.0, %v6106
        %v6108 = vpop.f32.mrb[0].mxu0
        %6109 = vdwg.mxu0
        %v6111 = vsel %vm4574, %v2200, 0
        %v6114 = vsel %vm4574, %v2201, 0
        %6116 = vmatprep.subr.bf16.mxu0 0
        %6117 = vmatpush1.bf16.xpose.msra.mxu0 %v4765
        %6118 = vmatprep.subr.bf16.mxu0 0
        %6119 = vmatpush1.bf16.xpose.msra.mxu0 %v4768
        %6120 = vmatprep.subr.bf16.mxu0 0
        %6121 = vmatpush1.bf16.xpose.msra.mxu0 0
        %6122 = vmatprep.subr.bf16.mxu0 0
        %6123 = vmatpush1.bf16.xpose.msra.mxu0 0
        %6124 = vmatprep.subr.bf16.mxu0 0
        %6125 = vmatpush1.bf16.xpose.msra.mxu0 0
        %6126 = vmatprep.subr.bf16.mxu0 0
        %6127 = vmatpush1.bf16.xpose.msra.mxu0 0
        %6128 = vmatprep.subr.bf16.mxu0 0
        %6129 = vmatpush1.bf16.xpose.msra.mxu0 0
        %6130 = vmatprep.subr.bf16.mxu0 0
        %6131 = vmatpush1.bf16.xpose.msra.mxu0 0
        %6132 = vmatprep.subr.bf16.mxu0 0
        %6133 = vmatpush1.bf16.xpose.msra.mxu0 0
        %6134 = vmatprep.subr.bf16.mxu0 0
        %6135 = vmatpush1.bf16.xpose.msra.mxu0 0
        %6136 = vmatprep.subr.bf16.mxu0 0
        %6137 = vmatpush1.bf16.xpose.msra.mxu0 0
        %6138 = vmatprep.subr.bf16.mxu0 0
        %6139 = vmatpush1.bf16.xpose.msra.mxu0 0
        %6140 = vmatprep.subr.bf16.mxu0 0
        %6141 = vmatpush1.bf16.xpose.msra.mxu0 0
        %6142 = vmatprep.subr.bf16.mxu0 0
        %6143 = vmatpush1.bf16.xpose.msra.mxu0 0
        %6144 = vmatprep.subr.bf16.mxu0 0
        %6145 = vmatpush1.bf16.xpose.msra.mxu0 0
        %6146 = vmatprep.subr.bf16.mxu0 0
        %6147 = vmatpush1.bf16.xpose.msra.mxu0 0
        %6148 = vmatprep.mubr.bf16.mxu0 0
        %6149 = vmatmul.mubr.bf16.gmra.mrb[0].mxu0 %v6111
        %v6150 = vpop.f32.mrb[0].mxu0
        %v6151 = vadd.f32 0.0, %v6150
        %v6152 = vpop.f32.mrb[0].mxu0
        %v6153 = vpop.f32.mrb[0].mxu0
        %v6154 = vadd.f32 0.0, %v6153
        %v6155 = vpop.f32.mrb[0].mxu0
        %6156 = vmatprep.mubr.bf16.mxu0 0
        %6157 = vmatmul.mubr.bf16.gmra.mrb[0].mxu0 %v6114
        %v6158 = vpop.f32.mrb[0].mxu0
        %v6159 = vadd.f32 0.0, %v6158
        %v6160 = vpop.f32.mrb[0].mxu0
        %v6161 = vpop.f32.mrb[0].mxu0
        %v6162 = vadd.f32 0.0, %v6161
        %v6163 = vpop.f32.mrb[0].mxu0
        %6164 = vdwg.mxu0
        %v6165 = vsel %vm4574, %v5986, -inf
        %6166 = vmax.xlane.f32.xlu0 %v6165
        %v6167 = vpop.xlane.xlu0 %6166
        %v6168 = vsel %vm4574, %v5989, -inf
        %6169 = vmax.xlane.f32.xlu0 %v6168
        %v6170 = vpop.xlane.xlu0 %6169
        %v6171 = vsel %vm4574, %v5994, -inf
        %6172 = vmax.xlane.f32.xlu0 %v6171
        %v6173 = vpop.xlane.xlu0 %6172
        %v6174 = vsel %vm4574, %v5997, -inf
        %6175 = vmax.xlane.f32.xlu0 %v6174
        %v6176 = vpop.xlane.xlu0 %6175
        %v6177 = vsel %vm4574, %v6041, -inf
        %6178 = vmax.xlane.f32.xlu0 %v6177
        %v6179 = vpop.xlane.xlu0 %6178
        %v6180 = vsel %vm4574, %v6044, -inf
        %6181 = vmax.xlane.f32.xlu0 %v6180
        %v6182 = vpop.xlane.xlu0 %6181
        %v6183 = vsel %vm4574, %v6049, -inf
        %6184 = vmax.xlane.f32.xlu0 %v6183
        %v6185 = vpop.xlane.xlu0 %6184
        %v6186 = vsel %vm4574, %v6052, -inf
        %6187 = vmax.xlane.f32.xlu0 %v6186
        %v6188 = vpop.xlane.xlu0 %6187
        %v6189 = vsel %vm4574, %v6096, -inf
        %6190 = vmax.xlane.f32.xlu0 %v6189
        %v6191 = vpop.xlane.xlu0 %6190
        %v6192 = vsel %vm4574, %v6099, -inf
        %6193 = vmax.xlane.f32.xlu0 %v6192
        %v6194 = vpop.xlane.xlu0 %6193
        %v6195 = vsel %vm4574, %v6104, -inf
        %6196 = vmax.xlane.f32.xlu0 %v6195
        %v6197 = vpop.xlane.xlu0 %6196
        %v6198 = vsel %vm4574, %v6107, -inf
        %6199 = vmax.xlane.f32.xlu0 %v6198
        %v6200 = vpop.xlane.xlu0 %6199
        %v6201 = vsel %vm4574, %v6151, -inf
        %6202 = vmax.xlane.f32.xlu0 %v6201
        %v6203 = vpop.xlane.xlu0 %6202
        %v6204 = vsel %vm4574, %v6154, -inf
        %6205 = vmax.xlane.f32.xlu0 %v6204
        %v6206 = vpop.xlane.xlu0 %6205
        %v6207 = vsel %vm4574, %v6159, -inf
        %6208 = vmax.xlane.f32.xlu0 %v6207
        %v6209 = vpop.xlane.xlu0 %6208
        %v6210 = vsel %vm4574, %v6162, -inf
        %6211 = vmax.xlane.f32.xlu0 %v6210
        %v6212 = vpop.xlane.xlu0 %6211
        %v6213 = vmax.f32 %v6167, -1e+30
        %v6214 = vmax.f32 %v6170, -1e+30
        %v6215 = vmax.f32 %v6173, -1e+30
        %v6216 = vmax.f32 %v6176, -1e+30
        %v6217 = vmax.f32 %v6179, -1e+30
        %v6218 = vmax.f32 %v6182, -1e+30
        %v6219 = vmax.f32 %v6185, -1e+30
        %v6220 = vmax.f32 %v6188, -1e+30
        %v6221 = vmax.f32 %v6191, -1e+30
        %v6222 = vmax.f32 %v6194, -1e+30
        %v6223 = vmax.f32 %v6197, -1e+30
        %v6224 = vmax.f32 %v6200, -1e+30
        %v6225 = vmax.f32 %v6203, -1e+30
        %v6226 = vmax.f32 %v6206, -1e+30
        %v6227 = vmax.f32 %v6209, -1e+30
        %v6228 = vmax.f32 %v6212, -1e+30
        %v6229 = vsub.f32 -1e+30, %v6213
        %v6230 = vsub.f32 -1e+30, %v6214
        %v6231 = vsub.f32 -1e+30, %v6215
        %v6232 = vsub.f32 -1e+30, %v6216
        %v6233 = vsub.f32 -1e+30, %v6217
        %v6234 = vsub.f32 -1e+30, %v6218
        %v6235 = vsub.f32 -1e+30, %v6219
        %v6236 = vsub.f32 -1e+30, %v6220
        %v6237 = vsub.f32 -1e+30, %v6221
        %v6238 = vsub.f32 -1e+30, %v6222
        %v6239 = vsub.f32 -1e+30, %v6223
        %v6240 = vsub.f32 -1e+30, %v6224
        %v6241 = vsub.f32 -1e+30, %v6225
        %v6242 = vsub.f32 -1e+30, %v6226
        %v6243 = vsub.f32 -1e+30, %v6227
        %v6244 = vsub.f32 -1e+30, %v6228
        %v6245 = vmul.f32 %v6229, 1.442695
        %v6246 = vpow.pop %v6245
        %v6247 = vmul.f32 %v6230, 1.442695
        %v6248 = vpow.pop %v6247
        %v6249 = vmul.f32 %v6231, 1.442695
        %v6250 = vpow.pop %v6249
        %v6251 = vmul.f32 %v6232, 1.442695
        %v6252 = vpow.pop %v6251
        %v6253 = vmul.f32 %v6233, 1.442695
        %v6254 = vpow.pop %v6253
        %v6255 = vmul.f32 %v6234, 1.442695
        %v6256 = vpow.pop %v6255
        %v6257 = vmul.f32 %v6235, 1.442695
        %v6258 = vpow.pop %v6257
        %v6259 = vmul.f32 %v6236, 1.442695
        %v6260 = vpow.pop %v6259
        %v6261 = vmul.f32 %v6237, 1.442695
        %v6262 = vpow.pop %v6261
        %v6263 = vmul.f32 %v6238, 1.442695
        %v6264 = vpow.pop %v6263
        %v6265 = vmul.f32 %v6239, 1.442695
        %v6266 = vpow.pop %v6265
        %v6267 = vmul.f32 %v6240, 1.442695
        %v6268 = vpow.pop %v6267
        %v6269 = vmul.f32 %v6241, 1.442695
        %v6270 = vpow.pop %v6269
        %v6271 = vmul.f32 %v6242, 1.442695
        %v6272 = vpow.pop %v6271
        %v6273 = vmul.f32 %v6243, 1.442695
        %v6274 = vpow.pop %v6273
        %v6275 = vmul.f32 %v6244, 1.442695
        %v6276 = vpow.pop %v6275
        %v6277 = vsub.f32 %v5986, %v6213
        %v6278 = vsub.f32 %v5989, %v6214
        %v6279 = vsub.f32 %v5994, %v6215
        %v6280 = vsub.f32 %v5997, %v6216
        %v6281 = vsub.f32 %v6041, %v6217
        %v6282 = vsub.f32 %v6044, %v6218
        %v6283 = vsub.f32 %v6049, %v6219
        %v6284 = vsub.f32 %v6052, %v6220
        %v6285 = vsub.f32 %v6096, %v6221
        %v6286 = vsub.f32 %v6099, %v6222
        %v6287 = vsub.f32 %v6104, %v6223
        %v6288 = vsub.f32 %v6107, %v6224
        %v6289 = vsub.f32 %v6151, %v6225
        %v6290 = vsub.f32 %v6154, %v6226
        %v6291 = vsub.f32 %v6159, %v6227
        %v6292 = vsub.f32 %v6162, %v6228
        %v6293 = vmul.f32 %v6277, 1.442695
        %v6294 = vpow.pop %v6293
        %v6295 = vmul.f32 %v6278, 1.442695
        %v6296 = vpow.pop %v6295
        %v6297 = vmul.f32 %v6279, 1.442695
        %v6298 = vpow.pop %v6297
        %v6299 = vmul.f32 %v6280, 1.442695
        %v6300 = vpow.pop %v6299
        %v6301 = vmul.f32 %v6281, 1.442695
        %v6302 = vpow.pop %v6301
        %v6303 = vmul.f32 %v6282, 1.442695
        %v6304 = vpow.pop %v6303
        %v6305 = vmul.f32 %v6283, 1.442695
        %v6306 = vpow.pop %v6305
        %v6307 = vmul.f32 %v6284, 1.442695
        %v6308 = vpow.pop %v6307
        %v6309 = vmul.f32 %v6285, 1.442695
        %v6310 = vpow.pop %v6309
        %v6311 = vmul.f32 %v6286, 1.442695
        %v6312 = vpow.pop %v6311
        %v6313 = vmul.f32 %v6287, 1.442695
        %v6314 = vpow.pop %v6313
        %v6315 = vmul.f32 %v6288, 1.442695
        %v6316 = vpow.pop %v6315
        %v6317 = vmul.f32 %v6289, 1.442695
        %v6318 = vpow.pop %v6317
        %v6319 = vmul.f32 %v6290, 1.442695
        %v6320 = vpow.pop %v6319
        %v6321 = vmul.f32 %v6291, 1.442695
        %v6322 = vpow.pop %v6321
        %v6323 = vmul.f32 %v6292, 1.442695
        %v6324 = vpow.pop %v6323
        %v6325 = vmul.f32 %v6246, 0.0
        %v6326 = vmul.f32 %v6248, 0.0
        %v6327 = vmul.f32 %v6250, 0.0
        %v6328 = vmul.f32 %v6252, 0.0
        %v6329 = vmul.f32 %v6254, 0.0
        %v6330 = vmul.f32 %v6256, 0.0
        %v6331 = vmul.f32 %v6258, 0.0
        %v6332 = vmul.f32 %v6260, 0.0
        %v6333 = vmul.f32 %v6262, 0.0
        %v6334 = vmul.f32 %v6264, 0.0
        %v6335 = vmul.f32 %v6266, 0.0
        %v6336 = vmul.f32 %v6268, 0.0
        %v6337 = vmul.f32 %v6270, 0.0
        %v6338 = vmul.f32 %v6272, 0.0
        %v6339 = vmul.f32 %v6274, 0.0
        %v6340 = vmul.f32 %v6276, 0.0
        %v6341 = vsel %vm4574, %v6294, 0.0
        %6342 = vadd.xlane.f32.xlu0 %v6341
        %v6343 = vpop.xlane.xlu0 %6342
        %v6344 = vsel %vm4574, %v6296, 0.0
        %6345 = vadd.xlane.f32.xlu0 %v6344
        %v6346 = vpop.xlane.xlu0 %6345
        %v6347 = vsel %vm4574, %v6298, 0.0
        %6348 = vadd.xlane.f32.xlu0 %v6347
        %v6349 = vpop.xlane.xlu0 %6348
        %v6350 = vsel %vm4574, %v6300, 0.0
        %6351 = vadd.xlane.f32.xlu0 %v6350
        %v6352 = vpop.xlane.xlu0 %6351
        %v6353 = vsel %vm4574, %v6302, 0.0
        %6354 = vadd.xlane.f32.xlu0 %v6353
        %v6355 = vpop.xlane.xlu0 %6354
        %v6356 = vsel %vm4574, %v6304, 0.0
        %6357 = vadd.xlane.f32.xlu0 %v6356
        %v6358 = vpop.xlane.xlu0 %6357
        %v6359 = vsel %vm4574, %v6306, 0.0
        %6360 = vadd.xlane.f32.xlu0 %v6359
        %v6361 = vpop.xlane.xlu0 %6360
        %v6362 = vsel %vm4574, %v6308, 0.0
        %6363 = vadd.xlane.f32.xlu0 %v6362
        %v6364 = vpop.xlane.xlu0 %6363
        %v6365 = vsel %vm4574, %v6310, 0.0
        %6366 = vadd.xlane.f32.xlu0 %v6365
        %v6367 = vpop.xlane.xlu0 %6366
        %v6368 = vsel %vm4574, %v6312, 0.0
        %6369 = vadd.xlane.f32.xlu0 %v6368
        %v6370 = vpop.xlane.xlu0 %6369
        %v6371 = vsel %vm4574, %v6314, 0.0
        %6372 = vadd.xlane.f32.xlu0 %v6371
        %v6373 = vpop.xlane.xlu0 %6372
        %v6374 = vsel %vm4574, %v6316, 0.0
        %6375 = vadd.xlane.f32.xlu0 %v6374
        %v6376 = vpop.xlane.xlu0 %6375
        %v6377 = vsel %vm4574, %v6318, 0.0
        %6378 = vadd.xlane.f32.xlu0 %v6377
        %v6379 = vpop.xlane.xlu0 %6378
        %v6380 = vsel %vm4574, %v6320, 0.0
        %6381 = vadd.xlane.f32.xlu0 %v6380
        %v6382 = vpop.xlane.xlu0 %6381
        %v6383 = vsel %vm4574, %v6322, 0.0
        %6384 = vadd.xlane.f32.xlu0 %v6383
        %v6385 = vpop.xlane.xlu0 %6384
        %v6386 = vsel %vm4574, %v6324, 0.0
        %6387 = vadd.xlane.f32.xlu0 %v6386
        %v6388 = vpop.xlane.xlu0 %6387
        %v6389 = vadd.f32 %v6325, %v6343
        %v6390 = vadd.f32 %v6326, %v6346
        %v6391 = vadd.f32 %v6327, %v6349
        %v6392 = vadd.f32 %v6328, %v6352
        %v6393 = vadd.f32 %v6329, %v6355
        %v6394 = vadd.f32 %v6330, %v6358
        %v6395 = vadd.f32 %v6331, %v6361
        %v6396 = vadd.f32 %v6332, %v6364
        %v6397 = vadd.f32 %v6333, %v6367
        %v6398 = vadd.f32 %v6334, %v6370
        %v6399 = vadd.f32 %v6335, %v6373
        %v6400 = vadd.f32 %v6336, %v6376
        %v6401 = vadd.f32 %v6337, %v6379
        %v6402 = vadd.f32 %v6338, %v6382
        %v6403 = vadd.f32 %v6339, %v6385
        %v6404 = vadd.f32 %v6340, %v6388
        %v6405 = vpack.c.bf16 %v6296, %v6294
        %v6406 = vpack.c.bf16 %v6300, %v6298
        %v6407 = vpack.c.bf16 %v6304, %v6302
        %v6408 = vpack.c.bf16 %v6308, %v6306
        %v6409 = vpack.c.bf16 %v6312, %v6310
        %v6410 = vpack.c.bf16 %v6316, %v6314
        %v6411 = vpack.c.bf16 %v6320, %v6318
        %v6412 = vpack.c.bf16 %v6324, %v6322
        %v6414 = vsel %vm4574, %v6405, 0
        %v6417 = vsel %vm4574, %v6406, 0
        %6419 = vmatprep.subr.bf16.mxu0 0
        %6420 = vmatpush1.bf16.msra.mxu0 %v4554
        %6421 = vmatprep.subr.bf16.mxu0 0
        %6422 = vmatpush1.bf16.msra.mxu0 %v4555
        %6423 = vmatprep.subr.bf16.mxu0 0
        %6424 = vmatpush1.bf16.msra.mxu0 0
        %6425 = vmatprep.subr.bf16.mxu0 0
        %6426 = vmatpush1.bf16.msra.mxu0 0
        %6427 = vmatprep.subr.bf16.mxu0 0
        %6428 = vmatpush1.bf16.msra.mxu0 0
        %6429 = vmatprep.subr.bf16.mxu0 0
        %6430 = vmatpush1.bf16.msra.mxu0 0
        %6431 = vmatprep.subr.bf16.mxu0 0
        %6432 = vmatpush1.bf16.msra.mxu0 0
        %6433 = vmatprep.subr.bf16.mxu0 0
        %6434 = vmatpush1.bf16.msra.mxu0 0
        %6435 = vmatprep.subr.bf16.mxu0 0
        %6436 = vmatpush1.bf16.msra.mxu0 0
        %6437 = vmatprep.subr.bf16.mxu0 0
        %6438 = vmatpush1.bf16.msra.mxu0 0
        %6439 = vmatprep.subr.bf16.mxu0 0
        %6440 = vmatpush1.bf16.msra.mxu0 0
        %6441 = vmatprep.subr.bf16.mxu0 0
        %6442 = vmatpush1.bf16.msra.mxu0 0
        %6443 = vmatprep.subr.bf16.mxu0 0
        %6444 = vmatpush1.bf16.msra.mxu0 0
        %6445 = vmatprep.subr.bf16.mxu0 0
        %6446 = vmatpush1.bf16.msra.mxu0 0
        %6447 = vmatprep.subr.bf16.mxu0 0
        %6448 = vmatpush1.bf16.msra.mxu0 0
        %6449 = vmatprep.subr.bf16.mxu0 0
        %6450 = vmatpush1.bf16.msra.mxu0 0
        %6451 = vmatprep.mubr.bf16.mxu0 0
        %6452 = vmatmul.mubr.bf16.gmra.mrb[0].mxu0 %v6414
        %v6453 = vpop.f32.mrb[0].mxu0
        %v6454 = vadd.f32 0.0, %v6453
        %v6455 = vpop.f32.mrb[0].mxu0
        %v6456 = vpop.f32.mrb[0].mxu0
        %v6457 = vadd.f32 0.0, %v6456
        %v6458 = vpop.f32.mrb[0].mxu0
        %6459 = vmatprep.mubr.bf16.mxu0 0
        %6460 = vmatmul.mubr.bf16.gmra.mrb[0].mxu0 %v6417
        %v6461 = vpop.f32.mrb[0].mxu0
        %v6462 = vadd.f32 0.0, %v6461
        %v6463 = vpop.f32.mrb[0].mxu0
        %v6464 = vpop.f32.mrb[0].mxu0
        %v6465 = vadd.f32 0.0, %v6464
        %v6466 = vpop.f32.mrb[0].mxu0
        %6467 = vdwg.mxu0
        %v6469 = vsel %vm4574, %v6407, 0
        %v6472 = vsel %vm4574, %v6408, 0
        %6474 = vmatprep.subr.bf16.mxu0 0
        %6475 = vmatpush1.bf16.msra.mxu0 %v4558
        %6476 = vmatprep.subr.bf16.mxu0 0
        %6477 = vmatpush1.bf16.msra.mxu0 %v4559
        %6478 = vmatprep.subr.bf16.mxu0 0
        %6479 = vmatpush1.bf16.msra.mxu0 0
        %6480 = vmatprep.subr.bf16.mxu0 0
        %6481 = vmatpush1.bf16.msra.mxu0 0
        %6482 = vmatprep.subr.bf16.mxu0 0
        %6483 = vmatpush1.bf16.msra.mxu0 0
        %6484 = vmatprep.subr.bf16.mxu0 0
        %6485 = vmatpush1.bf16.msra.mxu0 0
        %6486 = vmatprep.subr.bf16.mxu0 0
        %6487 = vmatpush1.bf16.msra.mxu0 0
        %6488 = vmatprep.subr.bf16.mxu0 0
        %6489 = vmatpush1.bf16.msra.mxu0 0
        %6490 = vmatprep.subr.bf16.mxu0 0
        %6491 = vmatpush1.bf16.msra.mxu0 0
        %6492 = vmatprep.subr.bf16.mxu0 0
        %6493 = vmatpush1.bf16.msra.mxu0 0
        %6494 = vmatprep.subr.bf16.mxu0 0
        %6495 = vmatpush1.bf16.msra.mxu0 0
        %6496 = vmatprep.subr.bf16.mxu0 0
        %6497 = vmatpush1.bf16.msra.mxu0 0
        %6498 = vmatprep.subr.bf16.mxu0 0
        %6499 = vmatpush1.bf16.msra.mxu0 0
        %6500 = vmatprep.subr.bf16.mxu0 0
        %6501 = vmatpush1.bf16.msra.mxu0 0
        %6502 = vmatprep.subr.bf16.mxu0 0
        %6503 = vmatpush1.bf16.msra.mxu0 0
        %6504 = vmatprep.subr.bf16.mxu0 0
        %6505 = vmatpush1.bf16.msra.mxu0 0
        %6506 = vmatprep.mubr.bf16.mxu0 0
        %6507 = vmatmul.mubr.bf16.gmra.mrb[0].mxu0 %v6469
        %v6508 = vpop.f32.mrb[0].mxu0
        %v6509 = vadd.f32 0.0, %v6508
        %v6510 = vpop.f32.mrb[0].mxu0
        %v6511 = vpop.f32.mrb[0].mxu0
        %v6512 = vadd.f32 0.0, %v6511
        %v6513 = vpop.f32.mrb[0].mxu0
        %6514 = vmatprep.mubr.bf16.mxu0 0
        %6515 = vmatmul.mubr.bf16.gmra.mrb[0].mxu0 %v6472
        %v6516 = vpop.f32.mrb[0].mxu0
        %v6517 = vadd.f32 0.0, %v6516
        %v6518 = vpop.f32.mrb[0].mxu0
        %v6519 = vpop.f32.mrb[0].mxu0
        %v6520 = vadd.f32 0.0, %v6519
        %v6521 = vpop.f32.mrb[0].mxu0
        %6522 = vdwg.mxu0
        %v6524 = vsel %vm4574, %v6409, 0
        %v6527 = vsel %vm4574, %v6410, 0
        %6529 = vmatprep.subr.bf16.mxu0 0
        %6530 = vmatpush1.bf16.msra.mxu0 %v4562
        %6531 = vmatprep.subr.bf16.mxu0 0
        %6532 = vmatpush1.bf16.msra.mxu0 %v4563
        %6533 = vmatprep.subr.bf16.mxu0 0
        %6534 = vmatpush1.bf16.msra.mxu0 0
        %6535 = vmatprep.subr.bf16.mxu0 0
        %6536 = vmatpush1.bf16.msra.mxu0 0
        %6537 = vmatprep.subr.bf16.mxu0 0
        %6538 = vmatpush1.bf16.msra.mxu0 0
        %6539 = vmatprep.subr.bf16.mxu0 0
        %6540 = vmatpush1.bf16.msra.mxu0 0
        %6541 = vmatprep.subr.bf16.mxu0 0
        %6542 = vmatpush1.bf16.msra.mxu0 0
        %6543 = vmatprep.subr.bf16.mxu0 0
        %6544 = vmatpush1.bf16.msra.mxu0 0
        %6545 = vmatprep.subr.bf16.mxu0 0
        %6546 = vmatpush1.bf16.msra.mxu0 0
        %6547 = vmatprep.subr.bf16.mxu0 0
        %6548 = vmatpush1.bf16.msra.mxu0 0
        %6549 = vmatprep.subr.bf16.mxu0 0
        %6550 = vmatpush1.bf16.msra.mxu0 0
        %6551 = vmatprep.subr.bf16.mxu0 0
        %6552 = vmatpush1.bf16.msra.mxu0 0
        %6553 = vmatprep.subr.bf16.mxu0 0
        %6554 = vmatpush1.bf16.msra.mxu0 0
        %6555 = vmatprep.subr.bf16.mxu0 0
        %6556 = vmatpush1.bf16.msra.mxu0 0
        %6557 = vmatprep.subr.bf16.mxu0 0
        %6558 = vmatpush1.bf16.msra.mxu0 0
        %6559 = vmatprep.subr.bf16.mxu0 0
        %6560 = vmatpush1.bf16.msra.mxu0 0
        %6561 = vmatprep.mubr.bf16.mxu0 0
        %6562 = vmatmul.mubr.bf16.gmra.mrb[0].mxu0 %v6524
        %v6563 = vpop.f32.mrb[0].mxu0
        %v6564 = vadd.f32 0.0, %v6563
        %v6565 = vpop.f32.mrb[0].mxu0
        %v6566 = vpop.f32.mrb[0].mxu0
        %v6567 = vadd.f32 0.0, %v6566
        %v6568 = vpop.f32.mrb[0].mxu0
        %6569 = vmatprep.mubr.bf16.mxu0 0
        %6570 = vmatmul.mubr.bf16.gmra.mrb[0].mxu0 %v6527
        %v6571 = vpop.f32.mrb[0].mxu0
        %v6572 = vadd.f32 0.0, %v6571
        %v6573 = vpop.f32.mrb[0].mxu0
        %v6574 = vpop.f32.mrb[0].mxu0
        %v6575 = vadd.f32 0.0, %v6574
        %v6576 = vpop.f32.mrb[0].mxu0
        %6577 = vdwg.mxu0
        %v6579 = vsel %vm4574, %v6411, 0
        %v6582 = vsel %vm4574, %v6412, 0
        %6584 = vmatprep.subr.bf16.mxu0 0
        %6585 = vmatpush1.bf16.msra.mxu0 %v4566
        %6586 = vmatprep.subr.bf16.mxu0 0
        %6587 = vmatpush1.bf16.msra.mxu0 %v4567
        %6588 = vmatprep.subr.bf16.mxu0 0
        %6589 = vmatpush1.bf16.msra.mxu0 0
        %6590 = vmatprep.subr.bf16.mxu0 0
        %6591 = vmatpush1.bf16.msra.mxu0 0
        %6592 = vmatprep.subr.bf16.mxu0 0
        %6593 = vmatpush1.bf16.msra.mxu0 0
        %6594 = vmatprep.subr.bf16.mxu0 0
        %6595 = vmatpush1.bf16.msra.mxu0 0
        %6596 = vmatprep.subr.bf16.mxu0 0
        %6597 = vmatpush1.bf16.msra.mxu0 0
        %6598 = vmatprep.subr.bf16.mxu0 0
        %6599 = vmatpush1.bf16.msra.mxu0 0
        %6600 = vmatprep.subr.bf16.mxu0 0
        %6601 = vmatpush1.bf16.msra.mxu0 0
        %6602 = vmatprep.subr.bf16.mxu0 0
        %6603 = vmatpush1.bf16.msra.mxu0 0
        %6604 = vmatprep.subr.bf16.mxu0 0
        %6605 = vmatpush1.bf16.msra.mxu0 0
        %6606 = vmatprep.subr.bf16.mxu0 0
        %6607 = vmatpush1.bf16.msra.mxu0 0
        %6608 = vmatprep.subr.bf16.mxu0 0
        %6609 = vmatpush1.bf16.msra.mxu0 0
        %6610 = vmatprep.subr.bf16.mxu0 0
        %6611 = vmatpush1.bf16.msra.mxu0 0
        %6612 = vmatprep.subr.bf16.mxu0 0
        %6613 = vmatpush1.bf16.msra.mxu0 0
        %6614 = vmatprep.subr.bf16.mxu0 0
        %6615 = vmatpush1.bf16.msra.mxu0 0
        %6616 = vmatprep.mubr.bf16.mxu0 0
        %6617 = vmatmul.mubr.bf16.gmra.mrb[0].mxu0 %v6579
        %v6618 = vpop.f32.mrb[0].mxu0
        %v6619 = vadd.f32 0.0, %v6618
        %v6620 = vpop.f32.mrb[0].mxu0
        %v6621 = vpop.f32.mrb[0].mxu0
        %v6622 = vadd.f32 0.0, %v6621
        %v6623 = vpop.f32.mrb[0].mxu0
        %6624 = vmatprep.mubr.bf16.mxu0 0
        %6625 = vmatmul.mubr.bf16.gmra.mrb[0].mxu0 %v6582
        %v6626 = vpop.f32.mrb[0].mxu0
        %v6627 = vadd.f32 0.0, %v6626
        %v6628 = vpop.f32.mrb[0].mxu0
        %v6629 = vpop.f32.mrb[0].mxu0
        %v6630 = vadd.f32 0.0, %v6629
        %v6631 = vpop.f32.mrb[0].mxu0
        %6632 = vdwg.mxu0
        %v6633 = vadd.f32 %v6325, %v6454
        %v6634 = vadd.f32 %v6326, %v6457
        %v6635 = vadd.f32 %v6327, %v6462
        %v6636 = vadd.f32 %v6328, %v6465
        %v6637 = vadd.f32 %v6329, %v6509
        %v6638 = vadd.f32 %v6330, %v6512
        %v6639 = vadd.f32 %v6331, %v6517
        %v6640 = vadd.f32 %v6332, %v6520
        %v6641 = vadd.f32 %v6333, %v6564
        %v6642 = vadd.f32 %v6334, %v6567
        %v6643 = vadd.f32 %v6335, %v6572
        %v6644 = vadd.f32 %v6336, %v6575
        %v6645 = vadd.f32 %v6337, %v6619
        %v6646 = vadd.f32 %v6338, %v6622
        %v6647 = vadd.f32 %v6339, %v6627
        %v6648 = vadd.f32 %v6340, %v6630
        %v6650 = vsel %vm4574, %v3372, 0
        %v6653 = vsel %vm4574, %v3373, 0
        %6655 = vmatprep.subr.bf16.mxu0 0
        %6656 = vmatpush1.bf16.xpose.msra.mxu0 %v6650
        %6657 = vmatprep.subr.bf16.mxu0 0
        %6658 = vmatpush1.bf16.xpose.msra.mxu0 %v6653
        %6659 = vmatprep.subr.bf16.mxu0 0
        %6660 = vmatpush1.bf16.xpose.msra.mxu0 0
        %6661 = vmatprep.subr.bf16.mxu0 0
        %6662 = vmatpush1.bf16.xpose.msra.mxu0 0
        %6663 = vmatprep.subr.bf16.mxu0 0
        %6664 = vmatpush1.bf16.xpose.msra.mxu0 0
        %6665 = vmatprep.subr.bf16.mxu0 0
        %6666 = vmatpush1.bf16.xpose.msra.mxu0 0
        %6667 = vmatprep.subr.bf16.mxu0 0
        %6668 = vmatpush1.bf16.xpose.msra.mxu0 0
        %6669 = vmatprep.subr.bf16.mxu0 0
        %6670 = vmatpush1.bf16.xpose.msra.mxu0 0
        %6671 = vmatprep.subr.bf16.mxu0 0
        %6672 = vmatpush1.bf16.xpose.msra.mxu0 0
        %6673 = vmatprep.subr.bf16.mxu0 0
        %6674 = vmatpush1.bf16.xpose.msra.mxu0 0
        %6675 = vmatprep.subr.bf16.mxu0 0
        %6676 = vmatpush1.bf16.xpose.msra.mxu0 0
        %6677 = vmatprep.subr.bf16.mxu0 0
        %6678 = vmatpush1.bf16.xpose.msra.mxu0 0
        %6679 = vmatprep.subr.bf16.mxu0 0
        %6680 = vmatpush1.bf16.xpose.msra.mxu0 0
        %6681 = vmatprep.subr.bf16.mxu0 0
        %6682 = vmatpush1.bf16.xpose.msra.mxu0 0
        %6683 = vmatprep.subr.bf16.mxu0 0
        %6684 = vmatpush1.bf16.xpose.msra.mxu0 0
        %6685 = vmatprep.subr.bf16.mxu0 0
        %6686 = vmatpush1.bf16.xpose.msra.mxu0 0
        %6687 = vmatprep.mubr.bf16.mxu0 0
        %6688 = vmatmul.mubr.bf16.gmra.mrb[0].mxu0 %v5946
        %v6689 = vpop.f32.mrb[0].mxu0
        %v6690 = vadd.f32 %v4570, %v6689
        %v6691 = vpop.f32.mrb[0].mxu0
        %v6692 = vpop.f32.mrb[0].mxu0
        %v6693 = vadd.f32 %v4571, %v6692
        %v6694 = vpop.f32.mrb[0].mxu0
        %6695 = vmatprep.mubr.bf16.mxu0 0
        %6696 = vmatmul.mubr.bf16.gmra.mrb[0].mxu0 %v5949
        %v6697 = vpop.f32.mrb[0].mxu0
        %v6698 = vadd.f32 %v4572, %v6697
        %v6699 = vpop.f32.mrb[0].mxu0
        %v6700 = vpop.f32.mrb[0].mxu0
        %v6701 = vadd.f32 %v4573, %v6700
        %v6702 = vpop.f32.mrb[0].mxu0
        %6703 = vdwg.mxu0
        %v6705 = vsel %vm4574, %v3376, 0
        %v6708 = vsel %vm4574, %v3377, 0
        %6710 = vmatprep.subr.bf16.mxu0 0
        %6711 = vmatpush1.bf16.xpose.msra.mxu0 %v6705
        %6712 = vmatprep.subr.bf16.mxu0 0
        %6713 = vmatpush1.bf16.xpose.msra.mxu0 %v6708
        %6714 = vmatprep.subr.bf16.mxu0 0
        %6715 = vmatpush1.bf16.xpose.msra.mxu0 0
        %6716 = vmatprep.subr.bf16.mxu0 0
        %6717 = vmatpush1.bf16.xpose.msra.mxu0 0
        %6718 = vmatprep.subr.bf16.mxu0 0
        %6719 = vmatpush1.bf16.xpose.msra.mxu0 0
        %6720 = vmatprep.subr.bf16.mxu0 0
        %6721 = vmatpush1.bf16.xpose.msra.mxu0 0
        %6722 = vmatprep.subr.bf16.mxu0 0
        %6723 = vmatpush1.bf16.xpose.msra.mxu0 0
        %6724 = vmatprep.subr.bf16.mxu0 0
        %6725 = vmatpush1.bf16.xpose.msra.mxu0 0
        %6726 = vmatprep.subr.bf16.mxu0 0
        %6727 = vmatpush1.bf16.xpose.msra.mxu0 0
        %6728 = vmatprep.subr.bf16.mxu0 0
        %6729 = vmatpush1.bf16.xpose.msra.mxu0 0
        %6730 = vmatprep.subr.bf16.mxu0 0
        %6731 = vmatpush1.bf16.xpose.msra.mxu0 0
        %6732 = vmatprep.subr.bf16.mxu0 0
        %6733 = vmatpush1.bf16.xpose.msra.mxu0 0
        %6734 = vmatprep.subr.bf16.mxu0 0
        %6735 = vmatpush1.bf16.xpose.msra.mxu0 0
        %6736 = vmatprep.subr.bf16.mxu0 0
        %6737 = vmatpush1.bf16.xpose.msra.mxu0 0
        %6738 = vmatprep.subr.bf16.mxu0 0
        %6739 = vmatpush1.bf16.xpose.msra.mxu0 0
        %6740 = vmatprep.subr.bf16.mxu0 0
        %6741 = vmatpush1.bf16.xpose.msra.mxu0 0
        %6742 = vmatprep.mubr.bf16.mxu0 0
        %6743 = vmatmul.mubr.bf16.gmra.mrb[0].mxu0 %v6001
        %v6744 = vpop.f32.mrb[0].mxu0
        %v6745 = vadd.f32 %v4570, %v6744
        %v6746 = vpop.f32.mrb[0].mxu0
        %v6747 = vpop.f32.mrb[0].mxu0
        %v6748 = vadd.f32 %v4571, %v6747
        %v6749 = vpop.f32.mrb[0].mxu0
        %6750 = vmatprep.mubr.bf16.mxu0 0
        %6751 = vmatmul.mubr.bf16.gmra.mrb[0].mxu0 %v6004
        %v6752 = vpop.f32.mrb[0].mxu0
        %v6753 = vadd.f32 %v4572, %v6752
        %v6754 = vpop.f32.mrb[0].mxu0
        %v6755 = vpop.f32.mrb[0].mxu0
        %v6756 = vadd.f32 %v4573, %v6755
        %v6757 = vpop.f32.mrb[0].mxu0
        %6758 = vdwg.mxu0
        %v6760 = vsel %vm4574, %v3380, 0
        %v6763 = vsel %vm4574, %v3381, 0
        %6765 = vmatprep.subr.bf16.mxu0 0
        %6766 = vmatpush1.bf16.xpose.msra.mxu0 %v6760
        %6767 = vmatprep.subr.bf16.mxu0 0
        %6768 = vmatpush1.bf16.xpose.msra.mxu0 %v6763
        %6769 = vmatprep.subr.bf16.mxu0 0
        %6770 = vmatpush1.bf16.xpose.msra.mxu0 0
        %6771 = vmatprep.subr.bf16.mxu0 0
        %6772 = vmatpush1.bf16.xpose.msra.mxu0 0
        %6773 = vmatprep.subr.bf16.mxu0 0
        %6774 = vmatpush1.bf16.xpose.msra.mxu0 0
        %6775 = vmatprep.subr.bf16.mxu0 0
        %6776 = vmatpush1.bf16.xpose.msra.mxu0 0
        %6777 = vmatprep.subr.bf16.mxu0 0
        %6778 = vmatpush1.bf16.xpose.msra.mxu0 0
        %6779 = vmatprep.subr.bf16.mxu0 0
        %6780 = vmatpush1.bf16.xpose.msra.mxu0 0
        %6781 = vmatprep.subr.bf16.mxu0 0
        %6782 = vmatpush1.bf16.xpose.msra.mxu0 0
        %6783 = vmatprep.subr.bf16.mxu0 0
        %6784 = vmatpush1.bf16.xpose.msra.mxu0 0
        %6785 = vmatprep.subr.bf16.mxu0 0
        %6786 = vmatpush1.bf16.xpose.msra.mxu0 0
        %6787 = vmatprep.subr.bf16.mxu0 0
        %6788 = vmatpush1.bf16.xpose.msra.mxu0 0
        %6789 = vmatprep.subr.bf16.mxu0 0
        %6790 = vmatpush1.bf16.xpose.msra.mxu0 0
        %6791 = vmatprep.subr.bf16.mxu0 0
        %6792 = vmatpush1.bf16.xpose.msra.mxu0 0
        %6793 = vmatprep.subr.bf16.mxu0 0
        %6794 = vmatpush1.bf16.xpose.msra.mxu0 0
        %6795 = vmatprep.subr.bf16.mxu0 0
        %6796 = vmatpush1.bf16.xpose.msra.mxu0 0
        %6797 = vmatprep.mubr.bf16.mxu0 0
        %6798 = vmatmul.mubr.bf16.gmra.mrb[0].mxu0 %v6056
        %v6799 = vpop.f32.mrb[0].mxu0
        %v6800 = vadd.f32 %v4570, %v6799
        %v6801 = vpop.f32.mrb[0].mxu0
        %v6802 = vpop.f32.mrb[0].mxu0
        %v6803 = vadd.f32 %v4571, %v6802
        %v6804 = vpop.f32.mrb[0].mxu0
        %6805 = vmatprep.mubr.bf16.mxu0 0
        %6806 = vmatmul.mubr.bf16.gmra.mrb[0].mxu0 %v6059
        %v6807 = vpop.f32.mrb[0].mxu0
        %v6808 = vadd.f32 %v4572, %v6807
        %v6809 = vpop.f32.mrb[0].mxu0
        %v6810 = vpop.f32.mrb[0].mxu0
        %v6811 = vadd.f32 %v4573, %v6810
        %v6812 = vpop.f32.mrb[0].mxu0
        %6813 = vdwg.mxu0
        %v6815 = vsel %vm4574, %v3384, 0
        %v6818 = vsel %vm4574, %v3385, 0
        %6820 = vmatprep.subr.bf16.mxu0 0
        %6821 = vmatpush1.bf16.xpose.msra.mxu0 %v6815
        %6822 = vmatprep.subr.bf16.mxu0 0
        %6823 = vmatpush1.bf16.xpose.msra.mxu0 %v6818
        %6824 = vmatprep.subr.bf16.mxu0 0
        %6825 = vmatpush1.bf16.xpose.msra.mxu0 0
        %6826 = vmatprep.subr.bf16.mxu0 0
        %6827 = vmatpush1.bf16.xpose.msra.mxu0 0
        %6828 = vmatprep.subr.bf16.mxu0 0
        %6829 = vmatpush1.bf16.xpose.msra.mxu0 0
        %6830 = vmatprep.subr.bf16.mxu0 0
        %6831 = vmatpush1.bf16.xpose.msra.mxu0 0
        %6832 = vmatprep.subr.bf16.mxu0 0
        %6833 = vmatpush1.bf16.xpose.msra.mxu0 0
        %6834 = vmatprep.subr.bf16.mxu0 0
        %6835 = vmatpush1.bf16.xpose.msra.mxu0 0
        %6836 = vmatprep.subr.bf16.mxu0 0
        %6837 = vmatpush1.bf16.xpose.msra.mxu0 0
        %6838 = vmatprep.subr.bf16.mxu0 0
        %6839 = vmatpush1.bf16.xpose.msra.mxu0 0
        %6840 = vmatprep.subr.bf16.mxu0 0
        %6841 = vmatpush1.bf16.xpose.msra.mxu0 0
        %6842 = vmatprep.subr.bf16.mxu0 0
        %6843 = vmatpush1.bf16.xpose.msra.mxu0 0
        %6844 = vmatprep.subr.bf16.mxu0 0
        %6845 = vmatpush1.bf16.xpose.msra.mxu0 0
        %6846 = vmatprep.subr.bf16.mxu0 0
        %6847 = vmatpush1.bf16.xpose.msra.mxu0 0
        %6848 = vmatprep.subr.bf16.mxu0 0
        %6849 = vmatpush1.bf16.xpose.msra.mxu0 0
        %6850 = vmatprep.subr.bf16.mxu0 0
        %6851 = vmatpush1.bf16.xpose.msra.mxu0 0
        %6852 = vmatprep.mubr.bf16.mxu0 0
        %6853 = vmatmul.mubr.bf16.gmra.mrb[0].mxu0 %v6111
        %v6854 = vpop.f32.mrb[0].mxu0
        %v6855 = vadd.f32 %v4570, %v6854
        %v6856 = vpop.f32.mrb[0].mxu0
        %v6857 = vpop.f32.mrb[0].mxu0
        %v6858 = vadd.f32 %v4571, %v6857
        %v6859 = vpop.f32.mrb[0].mxu0
        %6860 = vmatprep.mubr.bf16.mxu0 0
        %6861 = vmatmul.mubr.bf16.gmra.mrb[0].mxu0 %v6114
        %v6862 = vpop.f32.mrb[0].mxu0
        %v6863 = vadd.f32 %v4572, %v6862
        %v6864 = vpop.f32.mrb[0].mxu0
        %v6865 = vpop.f32.mrb[0].mxu0
        %v6866 = vadd.f32 %v4573, %v6865
        %v6867 = vpop.f32.mrb[0].mxu0
        %6868 = vdwg.mxu0
        %v6869 = vsel %vm4574, %v6690, -inf
        %6870 = vmax.xlane.f32.xlu0 %v6869
        %v6871 = vpop.xlane.xlu0 %6870
        %v6872 = vsel %vm4574, %v6693, -inf
        %6873 = vmax.xlane.f32.xlu0 %v6872
        %v6874 = vpop.xlane.xlu0 %6873
        %v6875 = vsel %vm4574, %v6698, -inf
        %6876 = vmax.xlane.f32.xlu0 %v6875
        %v6877 = vpop.xlane.xlu0 %6876
        %v6878 = vsel %vm4574, %v6701, -inf
        %6879 = vmax.xlane.f32.xlu0 %v6878
        %v6880 = vpop.xlane.xlu0 %6879
        %v6881 = vsel %vm4574, %v6745, -inf
        %6882 = vmax.xlane.f32.xlu0 %v6881
        %v6883 = vpop.xlane.xlu0 %6882
        %v6884 = vsel %vm4574, %v6748, -inf
        %6885 = vmax.xlane.f32.xlu0 %v6884
        %v6886 = vpop.xlane.xlu0 %6885
        %v6887 = vsel %vm4574, %v6753, -inf
        %6888 = vmax.xlane.f32.xlu0 %v6887
        %v6889 = vpop.xlane.xlu0 %6888
        %v6890 = vsel %vm4574, %v6756, -inf
        %6891 = vmax.xlane.f32.xlu0 %v6890
        %v6892 = vpop.xlane.xlu0 %6891
        %v6893 = vsel %vm4574, %v6800, -inf
        %6894 = vmax.xlane.f32.xlu0 %v6893
        %v6895 = vpop.xlane.xlu0 %6894
        %v6896 = vsel %vm4574, %v6803, -inf
        %6897 = vmax.xlane.f32.xlu0 %v6896
        %v6898 = vpop.xlane.xlu0 %6897
        %v6899 = vsel %vm4574, %v6808, -inf
        %6900 = vmax.xlane.f32.xlu0 %v6899
        %v6901 = vpop.xlane.xlu0 %6900
        %v6902 = vsel %vm4574, %v6811, -inf
        %6903 = vmax.xlane.f32.xlu0 %v6902
        %v6904 = vpop.xlane.xlu0 %6903
        %v6905 = vsel %vm4574, %v6855, -inf
        %6906 = vmax.xlane.f32.xlu0 %v6905
        %v6907 = vpop.xlane.xlu0 %6906
        %v6908 = vsel %vm4574, %v6858, -inf
        %6909 = vmax.xlane.f32.xlu0 %v6908
        %v6910 = vpop.xlane.xlu0 %6909
        %v6911 = vsel %vm4574, %v6863, -inf
        %6912 = vmax.xlane.f32.xlu0 %v6911
        %v6913 = vpop.xlane.xlu0 %6912
        %v6914 = vsel %vm4574, %v6866, -inf
        %6915 = vmax.xlane.f32.xlu0 %v6914
        %v6916 = vpop.xlane.xlu0 %6915
        %v6917 = vmax.f32 %v6213, %v6871
        %v6918 = vmax.f32 %v6214, %v6874
        %v6919 = vmax.f32 %v6215, %v6877
        %v6920 = vmax.f32 %v6216, %v6880
        %v6921 = vmax.f32 %v6217, %v6883
        %v6922 = vmax.f32 %v6218, %v6886
        %v6923 = vmax.f32 %v6219, %v6889
        %v6924 = vmax.f32 %v6220, %v6892
        %v6925 = vmax.f32 %v6221, %v6895
        %v6926 = vmax.f32 %v6222, %v6898
        %v6927 = vmax.f32 %v6223, %v6901
        %v6928 = vmax.f32 %v6224, %v6904
        %v6929 = vmax.f32 %v6225, %v6907
        %v6930 = vmax.f32 %v6226, %v6910
        %v6931 = vmax.f32 %v6227, %v6913
        %v6932 = vmax.f32 %v6228, %v6916
        %v6933 = vsub.f32 %v6213, %v6917
        %v6934 = vsub.f32 %v6214, %v6918
        %v6935 = vsub.f32 %v6215, %v6919
        %v6936 = vsub.f32 %v6216, %v6920
        %v6937 = vsub.f32 %v6217, %v6921
        %v6938 = vsub.f32 %v6218, %v6922
        %v6939 = vsub.f32 %v6219, %v6923
        %v6940 = vsub.f32 %v6220, %v6924
        %v6941 = vsub.f32 %v6221, %v6925
        %v6942 = vsub.f32 %v6222, %v6926
        %v6943 = vsub.f32 %v6223, %v6927
        %v6944 = vsub.f32 %v6224, %v6928
        %v6945 = vsub.f32 %v6225, %v6929
        %v6946 = vsub.f32 %v6226, %v6930
        %v6947 = vsub.f32 %v6227, %v6931
        %v6948 = vsub.f32 %v6228, %v6932
        %v6949 = vmul.f32 %v6933, 1.442695
        %v6950 = vpow.pop %v6949
        %v6951 = vmul.f32 %v6934, 1.442695
        %v6952 = vpow.pop %v6951
        %v6953 = vmul.f32 %v6935, 1.442695
        %v6954 = vpow.pop %v6953
        %v6955 = vmul.f32 %v6936, 1.442695
        %v6956 = vpow.pop %v6955
        %v6957 = vmul.f32 %v6937, 1.442695
        %v6958 = vpow.pop %v6957
        %v6959 = vmul.f32 %v6938, 1.442695
        %v6960 = vpow.pop %v6959
        %v6961 = vmul.f32 %v6939, 1.442695
        %v6962 = vpow.pop %v6961
        %v6963 = vmul.f32 %v6940, 1.442695
        %v6964 = vpow.pop %v6963
        %v6965 = vmul.f32 %v6941, 1.442695
        %v6966 = vpow.pop %v6965
        %v6967 = vmul.f32 %v6942, 1.442695
        %v6968 = vpow.pop %v6967
        %v6969 = vmul.f32 %v6943, 1.442695
        %v6970 = vpow.pop %v6969
        %v6971 = vmul.f32 %v6944, 1.442695
        %v6972 = vpow.pop %v6971
        %v6973 = vmul.f32 %v6945, 1.442695
        %v6974 = vpow.pop %v6973
        %v6975 = vmul.f32 %v6946, 1.442695
        %v6976 = vpow.pop %v6975
        %v6977 = vmul.f32 %v6947, 1.442695
        %v6978 = vpow.pop %v6977
        %v6979 = vmul.f32 %v6948, 1.442695
        %v6980 = vpow.pop %v6979
        %v6981 = vsub.f32 %v6690, %v6917
        %v6982 = vsub.f32 %v6693, %v6918
        %v6983 = vsub.f32 %v6698, %v6919
        %v6984 = vsub.f32 %v6701, %v6920
        %v6985 = vsub.f32 %v6745, %v6921
        %v6986 = vsub.f32 %v6748, %v6922
        %v6987 = vsub.f32 %v6753, %v6923
        %v6988 = vsub.f32 %v6756, %v6924
        %v6989 = vsub.f32 %v6800, %v6925
        %v6990 = vsub.f32 %v6803, %v6926
        %v6991 = vsub.f32 %v6808, %v6927
        %v6992 = vsub.f32 %v6811, %v6928
        %v6993 = vsub.f32 %v6855, %v6929
        %v6994 = vsub.f32 %v6858, %v6930
        %v6995 = vsub.f32 %v6863, %v6931
        %v6996 = vsub.f32 %v6866, %v6932
        %v6997 = vmul.f32 %v6981, 1.442695
        %v6998 = vpow.pop %v6997
        %v6999 = vmul.f32 %v6982, 1.442695
        %v7000 = vpow.pop %v6999
        %v7001 = vmul.f32 %v6983, 1.442695
        %v7002 = vpow.pop %v7001
        %v7003 = vmul.f32 %v6984, 1.442695
        %v7004 = vpow.pop %v7003
        %v7005 = vmul.f32 %v6985, 1.442695
        %v7006 = vpow.pop %v7005
        %v7007 = vmul.f32 %v6986, 1.442695
        %v7008 = vpow.pop %v7007
        %v7009 = vmul.f32 %v6987, 1.442695
        %v7010 = vpow.pop %v7009
        %v7011 = vmul.f32 %v6988, 1.442695
        %v7012 = vpow.pop %v7011
        %v7013 = vmul.f32 %v6989, 1.442695
        %v7014 = vpow.pop %v7013
        %v7015 = vmul.f32 %v6990, 1.442695
        %v7016 = vpow.pop %v7015
        %v7017 = vmul.f32 %v6991, 1.442695
        %v7018 = vpow.pop %v7017
        %v7019 = vmul.f32 %v6992, 1.442695
        %v7020 = vpow.pop %v7019
        %v7021 = vmul.f32 %v6993, 1.442695
        %v7022 = vpow.pop %v7021
        %v7023 = vmul.f32 %v6994, 1.442695
        %v7024 = vpow.pop %v7023
        %v7025 = vmul.f32 %v6995, 1.442695
        %v7026 = vpow.pop %v7025
        %v7027 = vmul.f32 %v6996, 1.442695
        %v7028 = vpow.pop %v7027
        %v7029 = vmul.f32 %v6950, %v6389
        %v7030 = vmul.f32 %v6952, %v6390
        %v7031 = vmul.f32 %v6954, %v6391
        %v7032 = vmul.f32 %v6956, %v6392
        %v7033 = vmul.f32 %v6958, %v6393
        %v7034 = vmul.f32 %v6960, %v6394
        %v7035 = vmul.f32 %v6962, %v6395
        %v7036 = vmul.f32 %v6964, %v6396
        %v7037 = vmul.f32 %v6966, %v6397
        %v7038 = vmul.f32 %v6968, %v6398
        %v7039 = vmul.f32 %v6970, %v6399
        %v7040 = vmul.f32 %v6972, %v6400
        %v7041 = vmul.f32 %v6974, %v6401
        %v7042 = vmul.f32 %v6976, %v6402
        %v7043 = vmul.f32 %v6978, %v6403
        %v7044 = vmul.f32 %v6980, %v6404
        %v7045 = vsel %vm4574, %v6998, 0.0
        %7046 = vadd.xlane.f32.xlu0 %v7045
        %v7047 = vpop.xlane.xlu0 %7046
        %v7048 = vsel %vm4574, %v7000, 0.0
        %7049 = vadd.xlane.f32.xlu0 %v7048
        %v7050 = vpop.xlane.xlu0 %7049
        %v7051 = vsel %vm4574, %v7002, 0.0
        %7052 = vadd.xlane.f32.xlu0 %v7051
        %v7053 = vpop.xlane.xlu0 %7052
        %v7054 = vsel %vm4574, %v7004, 0.0
        %7055 = vadd.xlane.f32.xlu0 %v7054
        %v7056 = vpop.xlane.xlu0 %7055
        %v7057 = vsel %vm4574, %v7006, 0.0
        %7058 = vadd.xlane.f32.xlu0 %v7057
        %v7059 = vpop.xlane.xlu0 %7058
        %v7060 = vsel %vm4574, %v7008, 0.0
        %7061 = vadd.xlane.f32.xlu0 %v7060
        %v7062 = vpop.xlane.xlu0 %7061
        %v7063 = vsel %vm4574, %v7010, 0.0
        %7064 = vadd.xlane.f32.xlu0 %v7063
        %v7065 = vpop.xlane.xlu0 %7064
        %v7066 = vsel %vm4574, %v7012, 0.0
        %7067 = vadd.xlane.f32.xlu0 %v7066
        %v7068 = vpop.xlane.xlu0 %7067
        %v7069 = vsel %vm4574, %v7014, 0.0
        %7070 = vadd.xlane.f32.xlu0 %v7069
        %v7071 = vpop.xlane.xlu0 %7070
        %v7072 = vsel %vm4574, %v7016, 0.0
        %7073 = vadd.xlane.f32.xlu0 %v7072
        %v7074 = vpop.xlane.xlu0 %7073
        %v7075 = vsel %vm4574, %v7018, 0.0
        %7076 = vadd.xlane.f32.xlu0 %v7075
        %v7077 = vpop.xlane.xlu0 %7076
        %v7078 = vsel %vm4574, %v7020, 0.0
        %7079 = vadd.xlane.f32.xlu0 %v7078
        %v7080 = vpop.xlane.xlu0 %7079
        %v7081 = vsel %vm4574, %v7022, 0.0
        %7082 = vadd.xlane.f32.xlu0 %v7081
        %v7083 = vpop.xlane.xlu0 %7082
        %v7084 = vsel %vm4574, %v7024, 0.0
        %7085 = vadd.xlane.f32.xlu0 %v7084
        %v7086 = vpop.xlane.xlu0 %7085
        %v7087 = vsel %vm4574, %v7026, 0.0
        %7088 = vadd.xlane.f32.xlu0 %v7087
        %v7089 = vpop.xlane.xlu0 %7088
        %v7090 = vsel %vm4574, %v7028, 0.0
        %7091 = vadd.xlane.f32.xlu0 %v7090
        %v7092 = vpop.xlane.xlu0 %7091
        %v7093 = vadd.f32 %v7029, %v7047
        %v7094 = vadd.f32 %v7030, %v7050
        %v7095 = vadd.f32 %v7031, %v7053
        %v7096 = vadd.f32 %v7032, %v7056
        %v7097 = vadd.f32 %v7033, %v7059
        %v7098 = vadd.f32 %v7034, %v7062
        %v7099 = vadd.f32 %v7035, %v7065
        %v7100 = vadd.f32 %v7036, %v7068
        %v7101 = vadd.f32 %v7037, %v7071
        %v7102 = vadd.f32 %v7038, %v7074
        %v7103 = vadd.f32 %v7039, %v7077
        %v7104 = vadd.f32 %v7040, %v7080
        %v7105 = vadd.f32 %v7041, %v7083
        %v7106 = vadd.f32 %v7042, %v7086
        %v7107 = vadd.f32 %v7043, %v7089
        %v7108 = vadd.f32 %v7044, %v7092
        %v7109 = vmul.f32 %v6950, %v6633
        %v7110 = vmul.f32 %v6952, %v6634
        %v7111 = vmul.f32 %v6954, %v6635
        %v7112 = vmul.f32 %v6956, %v6636
        %v7113 = vmul.f32 %v6958, %v6637
        %v7114 = vmul.f32 %v6960, %v6638
        %v7115 = vmul.f32 %v6962, %v6639
        %v7116 = vmul.f32 %v6964, %v6640
        %v7117 = vmul.f32 %v6966, %v6641
        %v7118 = vmul.f32 %v6968, %v6642
        %v7119 = vmul.f32 %v6970, %v6643
        %v7120 = vmul.f32 %v6972, %v6644
        %v7121 = vmul.f32 %v6974, %v6645
        %v7122 = vmul.f32 %v6976, %v6646
        %v7123 = vmul.f32 %v6978, %v6647
        %v7124 = vmul.f32 %v6980, %v6648
        %v7125 = vpack.c.bf16 %v7000, %v6998
        %v7126 = vpack.c.bf16 %v7004, %v7002
        %v7127 = vpack.c.bf16 %v7008, %v7006
        %v7128 = vpack.c.bf16 %v7012, %v7010
        %v7129 = vpack.c.bf16 %v7016, %v7014
        %v7130 = vpack.c.bf16 %v7020, %v7018
        %v7131 = vpack.c.bf16 %v7024, %v7022
        %v7132 = vpack.c.bf16 %v7028, %v7026
        %v7134 = vsel %vm4574, %v7125, 0
        %v7137 = vsel %vm4574, %v7126, 0
        %7139 = vmatprep.subr.bf16.mxu0 0
        %7140 = vmatpush1.bf16.msra.mxu0 %v4556
        %7141 = vmatprep.subr.bf16.mxu0 0
        %7142 = vmatpush1.bf16.msra.mxu0 %v4557
        %7143 = vmatprep.subr.bf16.mxu0 0
        %7144 = vmatpush1.bf16.msra.mxu0 0
        %7145 = vmatprep.subr.bf16.mxu0 0
        %7146 = vmatpush1.bf16.msra.mxu0 0
        %7147 = vmatprep.subr.bf16.mxu0 0
        %7148 = vmatpush1.bf16.msra.mxu0 0
        %7149 = vmatprep.subr.bf16.mxu0 0
        %7150 = vmatpush1.bf16.msra.mxu0 0
        %7151 = vmatprep.subr.bf16.mxu0 0
        %7152 = vmatpush1.bf16.msra.mxu0 0
        %7153 = vmatprep.subr.bf16.mxu0 0
        %7154 = vmatpush1.bf16.msra.mxu0 0
        %7155 = vmatprep.subr.bf16.mxu0 0
        %7156 = vmatpush1.bf16.msra.mxu0 0
        %7157 = vmatprep.subr.bf16.mxu0 0
        %7158 = vmatpush1.bf16.msra.mxu0 0
        %7159 = vmatprep.subr.bf16.mxu0 0
        %7160 = vmatpush1.bf16.msra.mxu0 0
        %7161 = vmatprep.subr.bf16.mxu0 0
        %7162 = vmatpush1.bf16.msra.mxu0 0
        %7163 = vmatprep.subr.bf16.mxu0 0
        %7164 = vmatpush1.bf16.msra.mxu0 0
        %7165 = vmatprep.subr.bf16.mxu0 0
        %7166 = vmatpush1.bf16.msra.mxu0 0
        %7167 = vmatprep.subr.bf16.mxu0 0
        %7168 = vmatpush1.bf16.msra.mxu0 0
        %7169 = vmatprep.subr.bf16.mxu0 0
        %7170 = vmatpush1.bf16.msra.mxu0 0
        %7171 = vmatprep.mubr.bf16.mxu0 0
        %7172 = vmatmul.mubr.bf16.gmra.mrb[0].mxu0 %v7134
        %v7173 = vpop.f32.mrb[0].mxu0
        %v7174 = vadd.f32 0.0, %v7173
        %v7175 = vpop.f32.mrb[0].mxu0
        %v7176 = vpop.f32.mrb[0].mxu0
        %v7177 = vadd.f32 0.0, %v7176
        %v7178 = vpop.f32.mrb[0].mxu0
        %7179 = vmatprep.mubr.bf16.mxu0 0
        %7180 = vmatmul.mubr.bf16.gmra.mrb[0].mxu0 %v7137
        %v7181 = vpop.f32.mrb[0].mxu0
        %v7182 = vadd.f32 0.0, %v7181
        %v7183 = vpop.f32.mrb[0].mxu0
        %v7184 = vpop.f32.mrb[0].mxu0
        %v7185 = vadd.f32 0.0, %v7184
        %v7186 = vpop.f32.mrb[0].mxu0
        %7187 = vdwg.mxu0
        %v7189 = vsel %vm4574, %v7127, 0
        %v7192 = vsel %vm4574, %v7128, 0
        %7194 = vmatprep.subr.bf16.mxu0 0
        %7195 = vmatpush1.bf16.msra.mxu0 %v4560
        %7196 = vmatprep.subr.bf16.mxu0 0
        %7197 = vmatpush1.bf16.msra.mxu0 %v4561
        %7198 = vmatprep.subr.bf16.mxu0 0
        %7199 = vmatpush1.bf16.msra.mxu0 0
        %7200 = vmatprep.subr.bf16.mxu0 0
        %7201 = vmatpush1.bf16.msra.mxu0 0
        %7202 = vmatprep.subr.bf16.mxu0 0
        %7203 = vmatpush1.bf16.msra.mxu0 0
        %7204 = vmatprep.subr.bf16.mxu0 0
        %7205 = vmatpush1.bf16.msra.mxu0 0
        %7206 = vmatprep.subr.bf16.mxu0 0
        %7207 = vmatpush1.bf16.msra.mxu0 0
        %7208 = vmatprep.subr.bf16.mxu0 0
        %7209 = vmatpush1.bf16.msra.mxu0 0
        %7210 = vmatprep.subr.bf16.mxu0 0
        %7211 = vmatpush1.bf16.msra.mxu0 0
        %7212 = vmatprep.subr.bf16.mxu0 0
        %7213 = vmatpush1.bf16.msra.mxu0 0
        %7214 = vmatprep.subr.bf16.mxu0 0
        %7215 = vmatpush1.bf16.msra.mxu0 0
        %7216 = vmatprep.subr.bf16.mxu0 0
        %7217 = vmatpush1.bf16.msra.mxu0 0
        %7218 = vmatprep.subr.bf16.mxu0 0
        %7219 = vmatpush1.bf16.msra.mxu0 0
        %7220 = vmatprep.subr.bf16.mxu0 0
        %7221 = vmatpush1.bf16.msra.mxu0 0
        %7222 = vmatprep.subr.bf16.mxu0 0
        %7223 = vmatpush1.bf16.msra.mxu0 0
        %7224 = vmatprep.subr.bf16.mxu0 0
        %7225 = vmatpush1.bf16.msra.mxu0 0
        %7226 = vmatprep.mubr.bf16.mxu0 0
        %7227 = vmatmul.mubr.bf16.gmra.mrb[0].mxu0 %v7189
        %v7228 = vpop.f32.mrb[0].mxu0
        %v7229 = vadd.f32 0.0, %v7228
        %v7230 = vpop.f32.mrb[0].mxu0
        %v7231 = vpop.f32.mrb[0].mxu0
        %v7232 = vadd.f32 0.0, %v7231
        %v7233 = vpop.f32.mrb[0].mxu0
        %7234 = vmatprep.mubr.bf16.mxu0 0
        %7235 = vmatmul.mubr.bf16.gmra.mrb[0].mxu0 %v7192
        %v7236 = vpop.f32.mrb[0].mxu0
        %v7237 = vadd.f32 0.0, %v7236
        %v7238 = vpop.f32.mrb[0].mxu0
        %v7239 = vpop.f32.mrb[0].mxu0
        %v7240 = vadd.f32 0.0, %v7239
        %v7241 = vpop.f32.mrb[0].mxu0
        %7242 = vdwg.mxu0
        %v7244 = vsel %vm4574, %v7129, 0
        %v7247 = vsel %vm4574, %v7130, 0
        %7249 = vmatprep.subr.bf16.mxu0 0
        %7250 = vmatpush1.bf16.msra.mxu0 %v4564
        %7251 = vmatprep.subr.bf16.mxu0 0
        %7252 = vmatpush1.bf16.msra.mxu0 %v4565
        %7253 = vmatprep.subr.bf16.mxu0 0
        %7254 = vmatpush1.bf16.msra.mxu0 0
        %7255 = vmatprep.subr.bf16.mxu0 0
        %7256 = vmatpush1.bf16.msra.mxu0 0
        %7257 = vmatprep.subr.bf16.mxu0 0
        %7258 = vmatpush1.bf16.msra.mxu0 0
        %7259 = vmatprep.subr.bf16.mxu0 0
        %7260 = vmatpush1.bf16.msra.mxu0 0
        %7261 = vmatprep.subr.bf16.mxu0 0
        %7262 = vmatpush1.bf16.msra.mxu0 0
        %7263 = vmatprep.subr.bf16.mxu0 0
        %7264 = vmatpush1.bf16.msra.mxu0 0
        %7265 = vmatprep.subr.bf16.mxu0 0
        %7266 = vmatpush1.bf16.msra.mxu0 0
        %7267 = vmatprep.subr.bf16.mxu0 0
        %7268 = vmatpush1.bf16.msra.mxu0 0
        %7269 = vmatprep.subr.bf16.mxu0 0
        %7270 = vmatpush1.bf16.msra.mxu0 0
        %7271 = vmatprep.subr.bf16.mxu0 0
        %7272 = vmatpush1.bf16.msra.mxu0 0
        %7273 = vmatprep.subr.bf16.mxu0 0
        %7274 = vmatpush1.bf16.msra.mxu0 0
        %7275 = vmatprep.subr.bf16.mxu0 0
        %7276 = vmatpush1.bf16.msra.mxu0 0
        %7277 = vmatprep.subr.bf16.mxu0 0
        %7278 = vmatpush1.bf16.msra.mxu0 0
        %7279 = vmatprep.subr.bf16.mxu0 0
        %7280 = vmatpush1.bf16.msra.mxu0 0
        %7281 = vmatprep.mubr.bf16.mxu0 0
        %7282 = vmatmul.mubr.bf16.gmra.mrb[0].mxu0 %v7244
        %v7283 = vpop.f32.mrb[0].mxu0
        %v7284 = vadd.f32 0.0, %v7283
        %v7285 = vpop.f32.mrb[0].mxu0
        %v7286 = vpop.f32.mrb[0].mxu0
        %v7287 = vadd.f32 0.0, %v7286
        %v7288 = vpop.f32.mrb[0].mxu0
        %7289 = vmatprep.mubr.bf16.mxu0 0
        %7290 = vmatmul.mubr.bf16.gmra.mrb[0].mxu0 %v7247
        %v7291 = vpop.f32.mrb[0].mxu0
        %v7292 = vadd.f32 0.0, %v7291
        %v7293 = vpop.f32.mrb[0].mxu0
        %v7294 = vpop.f32.mrb[0].mxu0
        %v7295 = vadd.f32 0.0, %v7294
        %v7296 = vpop.f32.mrb[0].mxu0
        %7297 = vdwg.mxu0
        %v7299 = vsel %vm4574, %v7131, 0
        %v7302 = vsel %vm4574, %v7132, 0
        %7304 = vmatprep.subr.bf16.mxu0 0
        %7305 = vmatpush1.bf16.msra.mxu0 %v4568
        %7306 = vmatprep.subr.bf16.mxu0 0
        %7307 = vmatpush1.bf16.msra.mxu0 %v4569
        %7308 = vmatprep.subr.bf16.mxu0 0
        %7309 = vmatpush1.bf16.msra.mxu0 0
        %7310 = vmatprep.subr.bf16.mxu0 0
        %7311 = vmatpush1.bf16.msra.mxu0 0
        %7312 = vmatprep.subr.bf16.mxu0 0
        %7313 = vmatpush1.bf16.msra.mxu0 0
        %7314 = vmatprep.subr.bf16.mxu0 0
        %7315 = vmatpush1.bf16.msra.mxu0 0
        %7316 = vmatprep.subr.bf16.mxu0 0
        %7317 = vmatpush1.bf16.msra.mxu0 0
        %7318 = vmatprep.subr.bf16.mxu0 0
        %7319 = vmatpush1.bf16.msra.mxu0 0
        %7320 = vmatprep.subr.bf16.mxu0 0
        %7321 = vmatpush1.bf16.msra.mxu0 0
        %7322 = vmatprep.subr.bf16.mxu0 0
        %7323 = vmatpush1.bf16.msra.mxu0 0
        %7324 = vmatprep.subr.bf16.mxu0 0
        %7325 = vmatpush1.bf16.msra.mxu0 0
        %7326 = vmatprep.subr.bf16.mxu0 0
        %7327 = vmatpush1.bf16.msra.mxu0 0
        %7328 = vmatprep.subr.bf16.mxu0 0
        %7329 = vmatpush1.bf16.msra.mxu0 0
        %7330 = vmatprep.subr.bf16.mxu0 0
        %7331 = vmatpush1.bf16.msra.mxu0 0
        %7332 = vmatprep.subr.bf16.mxu0 0
        %7333 = vmatpush1.bf16.msra.mxu0 0
        %7334 = vmatprep.subr.bf16.mxu0 0
        %7335 = vmatpush1.bf16.msra.mxu0 0
        %7336 = vmatprep.mubr.bf16.mxu0 0
        %7337 = vmatmul.mubr.bf16.gmra.mrb[0].mxu0 %v7299
        %v7338 = vpop.f32.mrb[0].mxu0
        %v7339 = vadd.f32 0.0, %v7338
        %v7340 = vpop.f32.mrb[0].mxu0
        %v7341 = vpop.f32.mrb[0].mxu0
        %v7342 = vadd.f32 0.0, %v7341
        %v7343 = vpop.f32.mrb[0].mxu0
        %7344 = vmatprep.mubr.bf16.mxu0 0
        %7345 = vmatmul.mubr.bf16.gmra.mrb[0].mxu0 %v7302
        %v7346 = vpop.f32.mrb[0].mxu0
        %v7347 = vadd.f32 0.0, %v7346
        %v7348 = vpop.f32.mrb[0].mxu0
        %v7349 = vpop.f32.mrb[0].mxu0
        %v7350 = vadd.f32 0.0, %v7349
        %v7351 = vpop.f32.mrb[0].mxu0
        %7352 = vdwg.mxu0
        %v7353 = vadd.f32 %v7109, %v7174
        %v7354 = vadd.f32 %v7110, %v7177
        %v7355 = vadd.f32 %v7111, %v7182
        %v7356 = vadd.f32 %v7112, %v7185
        %v7357 = vadd.f32 %v7113, %v7229
        %v7358 = vadd.f32 %v7114, %v7232
        %v7359 = vadd.f32 %v7115, %v7237
        %v7360 = vadd.f32 %v7116, %v7240
        %v7361 = vadd.f32 %v7117, %v7284
        %v7362 = vadd.f32 %v7118, %v7287
        %v7363 = vadd.f32 %v7119, %v7292
        %v7364 = vadd.f32 %v7120, %v7295
        %v7365 = vadd.f32 %v7121, %v7339
        %v7366 = vadd.f32 %v7122, %v7342
        %v7367 = vadd.f32 %v7123, %v7347
        %v7368 = vadd.f32 %v7124, %v7350
        %v7369 = vrcp.pop %v7093
        %v7370 = vrcp.pop %v7094
        %v7371 = vrcp.pop %v7095
        %v7372 = vrcp.pop %v7096
        %v7373 = vrcp.pop %v7097
        %v7374 = vrcp.pop %v7098
        %v7375 = vrcp.pop %v7099
        %v7376 = vrcp.pop %v7100
        %v7377 = vrcp.pop %v7101
        %v7378 = vrcp.pop %v7102
        %v7379 = vrcp.pop %v7103
        %v7380 = vrcp.pop %v7104
        %v7381 = vrcp.pop %v7105
        %v7382 = vrcp.pop %v7106
        %v7383 = vrcp.pop %v7107
        %v7384 = vrcp.pop %v7108
        %v7385 = vmul.f32 %v7353, %v7369
        %v7386 = vmul.f32 %v7354, %v7370
        %v7387 = vmul.f32 %v7355, %v7371
        %v7388 = vmul.f32 %v7356, %v7372
        %v7389 = vmul.f32 %v7357, %v7373
        %v7390 = vmul.f32 %v7358, %v7374
        %v7391 = vmul.f32 %v7359, %v7375
        %v7392 = vmul.f32 %v7360, %v7376
        %v7393 = vmul.f32 %v7361, %v7377
        %v7394 = vmul.f32 %v7362, %v7378
        %v7395 = vmul.f32 %v7363, %v7379
        %v7396 = vmul.f32 %v7364, %v7380
        %v7397 = vmul.f32 %v7365, %v7381
        %v7398 = vmul.f32 %v7366, %v7382
        %v7399 = vmul.f32 %v7367, %v7383
        %v7400 = vmul.f32 %v7368, %v7384
        %v7401 = vcombine.low %v7385, %v7393
        %v7402 = vcombine.high %v7385, %v7393
        %v7404 = vunpack.c.l.s4 1983009808
        %v7405 = vunpack.c.0.s8 %v7404
        %v7406 = vlaneseq
        %v7407 = vshrl.u32 %v7406, 7
        %v7408 = vsub.s32 %v7405, %v7407
        %v7409 = vrot.slane %v7401, %v7408
        %v7411 = vunpack.c.l.s4 1983009808
        %v7412 = vunpack.c.0.s8 %v7411
        %v7413 = vlaneseq
        %v7414 = vshrl.u32 %v7413, 7
        %v7415 = vsub.s32 %v7412, %v7414
        %v7416 = vrot.slane %v7402, %v7415
        %v7417 = vcombine.low %v7389, %v7397
        %v7418 = vcombine.high %v7389, %v7397
        %v7420 = vunpack.c.l.s4 1983009808
        %v7421 = vunpack.c.0.s8 %v7420
        %v7422 = vlaneseq
        %v7423 = vshrl.u32 %v7422, 7
        %v7424 = vsub.s32 %v7421, %v7423
        %v7425 = vrot.slane %v7417, %v7424
        %v7427 = vunpack.c.l.s4 1983009808
        %v7428 = vunpack.c.0.s8 %v7427
        %v7429 = vlaneseq
        %v7430 = vshrl.u32 %v7429, 7
        %v7431 = vsub.s32 %v7428, %v7430
        %v7432 = vrot.slane %v7418, %v7431
        %v7433 = vcombine.low %v7409, %v7425
        %v7434 = vcombine.high %v7409, %v7425
        %v7436 = vunpack.c.l.s4 1934713408
        %v7437 = vunpack.c.0.s8 %v7436
        %v7438 = vlaneseq
        %v7439 = vshrl.u32 %v7438, 7
        %v7440 = vsub.s32 %v7437, %v7439
        %v7441 = vrot.slane %v7433, %v7440
        %v7443 = vunpack.c.l.s4 1934713408
        %v7444 = vunpack.c.0.s8 %v7443
        %v7445 = vlaneseq
        %v7446 = vshrl.u32 %v7445, 7
        %v7447 = vsub.s32 %v7444, %v7446
        %v7448 = vrot.slane %v7434, %v7447
        %v7449 = vcombine.low %v7416, %v7432
        %v7450 = vcombine.high %v7416, %v7432
        %v7452 = vunpack.c.l.s4 1934713408
        %v7453 = vunpack.c.0.s8 %v7452
        %v7454 = vlaneseq
        %v7455 = vshrl.u32 %v7454, 7
        %v7456 = vsub.s32 %v7453, %v7455
        %v7457 = vrot.slane %v7449, %v7456
        %v7459 = vunpack.c.l.s4 1934713408
        %v7460 = vunpack.c.0.s8 %v7459
        %v7461 = vlaneseq
        %v7462 = vshrl.u32 %v7461, 7
        %v7463 = vsub.s32 %v7460, %v7462
        %v7464 = vrot.slane %v7450, %v7463
        %v7465 = vcombine.high %v7441, 0.0
        %v7466 = vcombine.high %v7448, 0.0
        %v7467 = vcombine.high %v7457, 0.0
        %v7468 = vcombine.high %v7464, 0.0
        %v7469 = vcombine.low %v7386, %v7394
        %v7470 = vcombine.high %v7386, %v7394
        %v7472 = vunpack.c.l.s4 1983009808
        %v7473 = vunpack.c.0.s8 %v7472
        %v7474 = vlaneseq
        %v7475 = vshrl.u32 %v7474, 7
        %v7476 = vsub.s32 %v7473, %v7475
        %v7477 = vrot.slane %v7469, %v7476
        %v7479 = vunpack.c.l.s4 1983009808
        %v7480 = vunpack.c.0.s8 %v7479
        %v7481 = vlaneseq
        %v7482 = vshrl.u32 %v7481, 7
        %v7483 = vsub.s32 %v7480, %v7482
        %v7484 = vrot.slane %v7470, %v7483
        %v7485 = vcombine.low %v7390, %v7398
        %v7486 = vcombine.high %v7390, %v7398
        %v7488 = vunpack.c.l.s4 1983009808
        %v7489 = vunpack.c.0.s8 %v7488
        %v7490 = vlaneseq
        %v7491 = vshrl.u32 %v7490, 7
        %v7492 = vsub.s32 %v7489, %v7491
        %v7493 = vrot.slane %v7485, %v7492
        %v7495 = vunpack.c.l.s4 1983009808
        %v7496 = vunpack.c.0.s8 %v7495
        %v7497 = vlaneseq
        %v7498 = vshrl.u32 %v7497, 7
        %v7499 = vsub.s32 %v7496, %v7498
        %v7500 = vrot.slane %v7486, %v7499
        %v7501 = vcombine.low %v7477, %v7493
        %v7502 = vcombine.high %v7477, %v7493
        %v7504 = vunpack.c.l.s4 1934713408
        %v7505 = vunpack.c.0.s8 %v7504
        %v7506 = vlaneseq
        %v7507 = vshrl.u32 %v7506, 7
        %v7508 = vsub.s32 %v7505, %v7507
        %v7509 = vrot.slane %v7501, %v7508
        %v7511 = vunpack.c.l.s4 1934713408
        %v7512 = vunpack.c.0.s8 %v7511
        %v7513 = vlaneseq
        %v7514 = vshrl.u32 %v7513, 7
        %v7515 = vsub.s32 %v7512, %v7514
        %v7516 = vrot.slane %v7502, %v7515
        %v7517 = vcombine.low %v7484, %v7500
        %v7518 = vcombine.high %v7484, %v7500
        %v7520 = vunpack.c.l.s4 1934713408
        %v7521 = vunpack.c.0.s8 %v7520
        %v7522 = vlaneseq
        %v7523 = vshrl.u32 %v7522, 7
        %v7524 = vsub.s32 %v7521, %v7523
        %v7525 = vrot.slane %v7517, %v7524
        %v7527 = vunpack.c.l.s4 1934713408
        %v7528 = vunpack.c.0.s8 %v7527
        %v7529 = vlaneseq
        %v7530 = vshrl.u32 %v7529, 7
        %v7531 = vsub.s32 %v7528, %v7530
        %v7532 = vrot.slane %v7518, %v7531
        %v7533 = vcombine.high %v7509, 0.0
        %v7534 = vcombine.high %v7516, 0.0
        %v7535 = vcombine.high %v7525, 0.0
        %v7536 = vcombine.high %v7532, 0.0
        %v7537 = vcombine.low %v7387, %v7395
        %v7538 = vcombine.high %v7387, %v7395
        %v7540 = vunpack.c.l.s4 1983009808
        %v7541 = vunpack.c.0.s8 %v7540
        %v7542 = vlaneseq
        %v7543 = vshrl.u32 %v7542, 7
        %v7544 = vsub.s32 %v7541, %v7543
        %v7545 = vrot.slane %v7537, %v7544
        %v7547 = vunpack.c.l.s4 1983009808
        %v7548 = vunpack.c.0.s8 %v7547
        %v7549 = vlaneseq
        %v7550 = vshrl.u32 %v7549, 7
        %v7551 = vsub.s32 %v7548, %v7550
        %v7552 = vrot.slane %v7538, %v7551
        %v7553 = vcombine.low %v7391, %v7399
        %v7554 = vcombine.high %v7391, %v7399
        %v7556 = vunpack.c.l.s4 1983009808
        %v7557 = vunpack.c.0.s8 %v7556
        %v7558 = vlaneseq
        %v7559 = vshrl.u32 %v7558, 7
        %v7560 = vsub.s32 %v7557, %v7559
        %v7561 = vrot.slane %v7553, %v7560
        %v7563 = vunpack.c.l.s4 1983009808
        %v7564 = vunpack.c.0.s8 %v7563
        %v7565 = vlaneseq
        %v7566 = vshrl.u32 %v7565, 7
        %v7567 = vsub.s32 %v7564, %v7566
        %v7568 = vrot.slane %v7554, %v7567
        %v7569 = vcombine.low %v7545, %v7561
        %v7570 = vcombine.high %v7545, %v7561
        %v7572 = vunpack.c.l.s4 1934713408
        %v7573 = vunpack.c.0.s8 %v7572
        %v7574 = vlaneseq
        %v7575 = vshrl.u32 %v7574, 7
        %v7576 = vsub.s32 %v7573, %v7575
        %v7577 = vrot.slane %v7569, %v7576
        %v7579 = vunpack.c.l.s4 1934713408
        %v7580 = vunpack.c.0.s8 %v7579
        %v7581 = vlaneseq
        %v7582 = vshrl.u32 %v7581, 7
        %v7583 = vsub.s32 %v7580, %v7582
        %v7584 = vrot.slane %v7570, %v7583
        %v7585 = vcombine.low %v7552, %v7568
        %v7586 = vcombine.high %v7552, %v7568
        %v7588 = vunpack.c.l.s4 1934713408
        %v7589 = vunpack.c.0.s8 %v7588
        %v7590 = vlaneseq
        %v7591 = vshrl.u32 %v7590, 7
        %v7592 = vsub.s32 %v7589, %v7591
        %v7593 = vrot.slane %v7585, %v7592
        %v7595 = vunpack.c.l.s4 1934713408
        %v7596 = vunpack.c.0.s8 %v7595
        %v7597 = vlaneseq
        %v7598 = vshrl.u32 %v7597, 7
        %v7599 = vsub.s32 %v7596, %v7598
        %v7600 = vrot.slane %v7586, %v7599
        %v7601 = vcombine.high %v7577, 0.0
        %v7602 = vcombine.high %v7584, 0.0
        %v7603 = vcombine.high %v7593, 0.0
        %v7604 = vcombine.high %v7600, 0.0
        %v7605 = vcombine.low %v7388, %v7396
        %v7606 = vcombine.high %v7388, %v7396
        %v7608 = vunpack.c.l.s4 1983009808
        %v7609 = vunpack.c.0.s8 %v7608
        %v7610 = vlaneseq
        %v7611 = vshrl.u32 %v7610, 7
        %v7612 = vsub.s32 %v7609, %v7611
        %v7613 = vrot.slane %v7605, %v7612
        %v7615 = vunpack.c.l.s4 1983009808
        %v7616 = vunpack.c.0.s8 %v7615
        %v7617 = vlaneseq
        %v7618 = vshrl.u32 %v7617, 7
        %v7619 = vsub.s32 %v7616, %v7618
        %v7620 = vrot.slane %v7606, %v7619
        %v7621 = vcombine.low %v7392, %v7400
        %v7622 = vcombine.high %v7392, %v7400
        %v7624 = vunpack.c.l.s4 1983009808
        %v7625 = vunpack.c.0.s8 %v7624
        %v7626 = vlaneseq
        %v7627 = vshrl.u32 %v7626, 7
        %v7628 = vsub.s32 %v7625, %v7627
        %v7629 = vrot.slane %v7621, %v7628
        %v7631 = vunpack.c.l.s4 1983009808
        %v7632 = vunpack.c.0.s8 %v7631
        %v7633 = vlaneseq
        %v7634 = vshrl.u32 %v7633, 7
        %v7635 = vsub.s32 %v7632, %v7634
        %v7636 = vrot.slane %v7622, %v7635
        %v7637 = vcombine.low %v7613, %v7629
        %v7638 = vcombine.high %v7613, %v7629
        %v7640 = vunpack.c.l.s4 1934713408
        %v7641 = vunpack.c.0.s8 %v7640
        %v7642 = vlaneseq
        %v7643 = vshrl.u32 %v7642, 7
        %v7644 = vsub.s32 %v7641, %v7643
        %v7645 = vrot.slane %v7637, %v7644
        %v7647 = vunpack.c.l.s4 1934713408
        %v7648 = vunpack.c.0.s8 %v7647
        %v7649 = vlaneseq
        %v7650 = vshrl.u32 %v7649, 7
        %v7651 = vsub.s32 %v7648, %v7650
        %v7652 = vrot.slane %v7638, %v7651
        %v7653 = vcombine.low %v7620, %v7636
        %v7654 = vcombine.high %v7620, %v7636
        %v7656 = vunpack.c.l.s4 1934713408
        %v7657 = vunpack.c.0.s8 %v7656
        %v7658 = vlaneseq
        %v7659 = vshrl.u32 %v7658, 7
        %v7660 = vsub.s32 %v7657, %v7659
        %v7661 = vrot.slane %v7653, %v7660
        %v7663 = vunpack.c.l.s4 1934713408
        %v7664 = vunpack.c.0.s8 %v7663
        %v7665 = vlaneseq
        %v7666 = vshrl.u32 %v7665, 7
        %v7667 = vsub.s32 %v7664, %v7666
        %v7668 = vrot.slane %v7654, %v7667
        %v7669 = vcombine.high %v7645, 0.0
        %v7670 = vcombine.high %v7652, 0.0
        %v7671 = vcombine.high %v7661, 0.0
        %v7672 = vcombine.high %v7668, 0.0
        %v7673 = vcombine.low %v7441, %v7448
        %v7675 = vunpack.c.l.s4 1983009808
        %v7676 = vunpack.c.0.s8 %v7675
        %v7677 = vlaneseq
        %v7678 = vshrl.u32 %v7677, 7
        %v7679 = vsub.s32 %v7676, %v7678
        %v7680 = vrot.slane %v7673, %v7679
        %v7681 = vcombine.low %v7465, %v7466
        %v7683 = vunpack.c.l.s4 1983009808
        %v7684 = vunpack.c.0.s8 %v7683
        %v7685 = vlaneseq
        %v7686 = vshrl.u32 %v7685, 7
        %v7687 = vsub.s32 %v7684, %v7686
        %v7688 = vrot.slane %v7681, %v7687
        %v7689 = vcombine.low %v7457, %v7464
        %v7691 = vunpack.c.l.s4 1983009808
        %v7692 = vunpack.c.0.s8 %v7691
        %v7693 = vlaneseq
        %v7694 = vshrl.u32 %v7693, 7
        %v7695 = vsub.s32 %v7692, %v7694
        %v7696 = vrot.slane %v7689, %v7695
        %v7697 = vcombine.low %v7467, %v7468
        %v7699 = vunpack.c.l.s4 1983009808
        %v7700 = vunpack.c.0.s8 %v7699
        %v7701 = vlaneseq
        %v7702 = vshrl.u32 %v7701, 7
        %v7703 = vsub.s32 %v7700, %v7702
        %v7704 = vrot.slane %v7697, %v7703
        %v7705 = vcombine.low %v7680, %v7688
        %v7706 = vcombine.high %v7680, %v7688
        %v7708 = vunpack.c.l.s4 1934713408
        %v7709 = vunpack.c.0.s8 %v7708
        %v7710 = vlaneseq
        %v7711 = vshrl.u32 %v7710, 7
        %v7712 = vsub.s32 %v7709, %v7711
        %v7713 = vrot.slane %v7705, %v7712
        %v7715 = vunpack.c.l.s4 1934713408
        %v7716 = vunpack.c.0.s8 %v7715
        %v7717 = vlaneseq
        %v7718 = vshrl.u32 %v7717, 7
        %v7719 = vsub.s32 %v7716, %v7718
        %v7720 = vrot.slane %v7706, %v7719
        %v7721 = vcombine.low %v7696, %v7704
        %v7722 = vcombine.high %v7696, %v7704
        %v7724 = vunpack.c.l.s4 1934713408
        %v7725 = vunpack.c.0.s8 %v7724
        %v7726 = vlaneseq
        %v7727 = vshrl.u32 %v7726, 7
        %v7728 = vsub.s32 %v7725, %v7727
        %v7729 = vrot.slane %v7721, %v7728
        %v7731 = vunpack.c.l.s4 1934713408
        %v7732 = vunpack.c.0.s8 %v7731
        %v7733 = vlaneseq
        %v7734 = vshrl.u32 %v7733, 7
        %v7735 = vsub.s32 %v7732, %v7734
        %v7736 = vrot.slane %v7722, %v7735
        %v7737 = vcombine.low %v7713, %v7729
        %v7738 = vcombine.high %v7713, %v7729
        %v7739 = vcombine.low %v7720, %v7736
        %v7740 = vcombine.high %v7720, %v7736
        %v7741 = vcombine.low %v7509, %v7516
        %v7743 = vunpack.c.l.s4 1983009808
        %v7744 = vunpack.c.0.s8 %v7743
        %v7745 = vlaneseq
        %v7746 = vshrl.u32 %v7745, 7
        %v7747 = vsub.s32 %v7744, %v7746
        %v7748 = vrot.slane %v7741, %v7747
        %v7749 = vcombine.low %v7533, %v7534
        %v7751 = vunpack.c.l.s4 1983009808
        %v7752 = vunpack.c.0.s8 %v7751
        %v7753 = vlaneseq
        %v7754 = vshrl.u32 %v7753, 7
        %v7755 = vsub.s32 %v7752, %v7754
        %v7756 = vrot.slane %v7749, %v7755
        %v7757 = vcombine.low %v7525, %v7532
        %v7759 = vunpack.c.l.s4 1983009808
        %v7760 = vunpack.c.0.s8 %v7759
        %v7761 = vlaneseq
        %v7762 = vshrl.u32 %v7761, 7
        %v7763 = vsub.s32 %v7760, %v7762
        %v7764 = vrot.slane %v7757, %v7763
        %v7765 = vcombine.low %v7535, %v7536
        %v7767 = vunpack.c.l.s4 1983009808
        %v7768 = vunpack.c.0.s8 %v7767
        %v7769 = vlaneseq
        %v7770 = vshrl.u32 %v7769, 7
        %v7771 = vsub.s32 %v7768, %v7770
        %v7772 = vrot.slane %v7765, %v7771
        %v7773 = vcombine.low %v7748, %v7756
        %v7774 = vcombine.high %v7748, %v7756
        %v7776 = vunpack.c.l.s4 1934713408
        %v7777 = vunpack.c.0.s8 %v7776
        %v7778 = vlaneseq
        %v7779 = vshrl.u32 %v7778, 7
        %v7780 = vsub.s32 %v7777, %v7779
        %v7781 = vrot.slane %v7773, %v7780
        %v7783 = vunpack.c.l.s4 1934713408
        %v7784 = vunpack.c.0.s8 %v7783
        %v7785 = vlaneseq
        %v7786 = vshrl.u32 %v7785, 7
        %v7787 = vsub.s32 %v7784, %v7786
        %v7788 = vrot.slane %v7774, %v7787
        %v7789 = vcombine.low %v7764, %v7772
        %v7790 = vcombine.high %v7764, %v7772
        %v7792 = vunpack.c.l.s4 1934713408
        %v7793 = vunpack.c.0.s8 %v7792
        %v7794 = vlaneseq
        %v7795 = vshrl.u32 %v7794, 7
        %v7796 = vsub.s32 %v7793, %v7795
        %v7797 = vrot.slane %v7789, %v7796
        %v7799 = vunpack.c.l.s4 1934713408
        %v7800 = vunpack.c.0.s8 %v7799
        %v7801 = vlaneseq
        %v7802 = vshrl.u32 %v7801, 7
        %v7803 = vsub.s32 %v7800, %v7802
        %v7804 = vrot.slane %v7790, %v7803
        %v7805 = vcombine.low %v7781, %v7797
        %v7806 = vcombine.high %v7781, %v7797
        %v7807 = vcombine.low %v7788, %v7804
        %v7808 = vcombine.high %v7788, %v7804
        %v7809 = vcombine.low %v7577, %v7584
        %v7811 = vunpack.c.l.s4 1983009808
        %v7812 = vunpack.c.0.s8 %v7811
        %v7813 = vlaneseq
        %v7814 = vshrl.u32 %v7813, 7
        %v7815 = vsub.s32 %v7812, %v7814
        %v7816 = vrot.slane %v7809, %v7815
        %v7817 = vcombine.low %v7601, %v7602
        %v7819 = vunpack.c.l.s4 1983009808
        %v7820 = vunpack.c.0.s8 %v7819
        %v7821 = vlaneseq
        %v7822 = vshrl.u32 %v7821, 7
        %v7823 = vsub.s32 %v7820, %v7822
        %v7824 = vrot.slane %v7817, %v7823
        %v7825 = vcombine.low %v7593, %v7600
        %v7827 = vunpack.c.l.s4 1983009808
        %v7828 = vunpack.c.0.s8 %v7827
        %v7829 = vlaneseq
        %v7830 = vshrl.u32 %v7829, 7
        %v7831 = vsub.s32 %v7828, %v7830
        %v7832 = vrot.slane %v7825, %v7831
        %v7833 = vcombine.low %v7603, %v7604
        %v7835 = vunpack.c.l.s4 1983009808
        %v7836 = vunpack.c.0.s8 %v7835
        %v7837 = vlaneseq
        %v7838 = vshrl.u32 %v7837, 7
        %v7839 = vsub.s32 %v7836, %v7838
        %v7840 = vrot.slane %v7833, %v7839
        %v7841 = vcombine.low %v7816, %v7824
        %v7842 = vcombine.high %v7816, %v7824
        %v7844 = vunpack.c.l.s4 1934713408
        %v7845 = vunpack.c.0.s8 %v7844
        %v7846 = vlaneseq
        %v7847 = vshrl.u32 %v7846, 7
        %v7848 = vsub.s32 %v7845, %v7847
        %v7849 = vrot.slane %v7841, %v7848
        %v7851 = vunpack.c.l.s4 1934713408
        %v7852 = vunpack.c.0.s8 %v7851
        %v7853 = vlaneseq
        %v7854 = vshrl.u32 %v7853, 7
        %v7855 = vsub.s32 %v7852, %v7854
        %v7856 = vrot.slane %v7842, %v7855
        %v7857 = vcombine.low %v7832, %v7840
        %v7858 = vcombine.high %v7832, %v7840
        %v7860 = vunpack.c.l.s4 1934713408
        %v7861 = vunpack.c.0.s8 %v7860
        %v7862 = vlaneseq
        %v7863 = vshrl.u32 %v7862, 7
        %v7864 = vsub.s32 %v7861, %v7863
        %v7865 = vrot.slane %v7857, %v7864
        %v7867 = vunpack.c.l.s4 1934713408
        %v7868 = vunpack.c.0.s8 %v7867
        %v7869 = vlaneseq
        %v7870 = vshrl.u32 %v7869, 7
        %v7871 = vsub.s32 %v7868, %v7870
        %v7872 = vrot.slane %v7858, %v7871
        %v7873 = vcombine.low %v7849, %v7865
        %v7874 = vcombine.high %v7849, %v7865
        %v7875 = vcombine.low %v7856, %v7872
        %v7876 = vcombine.high %v7856, %v7872
        %v7877 = vcombine.low %v7645, %v7652
        %v7879 = vunpack.c.l.s4 1983009808
        %v7880 = vunpack.c.0.s8 %v7879
        %v7881 = vlaneseq
        %v7882 = vshrl.u32 %v7881, 7
        %v7883 = vsub.s32 %v7880, %v7882
        %v7884 = vrot.slane %v7877, %v7883
        %v7885 = vcombine.low %v7669, %v7670
        %v7887 = vunpack.c.l.s4 1983009808
        %v7888 = vunpack.c.0.s8 %v7887
        %v7889 = vlaneseq
        %v7890 = vshrl.u32 %v7889, 7
        %v7891 = vsub.s32 %v7888, %v7890
        %v7892 = vrot.slane %v7885, %v7891
        %v7893 = vcombine.low %v7661, %v7668
        %v7895 = vunpack.c.l.s4 1983009808
        %v7896 = vunpack.c.0.s8 %v7895
        %v7897 = vlaneseq
        %v7898 = vshrl.u32 %v7897, 7
        %v7899 = vsub.s32 %v7896, %v7898
        %v7900 = vrot.slane %v7893, %v7899
        %v7901 = vcombine.low %v7671, %v7672
        %v7903 = vunpack.c.l.s4 1983009808
        %v7904 = vunpack.c.0.s8 %v7903
        %v7905 = vlaneseq
        %v7906 = vshrl.u32 %v7905, 7
        %v7907 = vsub.s32 %v7904, %v7906
        %v7908 = vrot.slane %v7901, %v7907
        %v7909 = vcombine.low %v7884, %v7892
        %v7910 = vcombine.high %v7884, %v7892
        %v7912 = vunpack.c.l.s4 1934713408
        %v7913 = vunpack.c.0.s8 %v7912
        %v7914 = vlaneseq
        %v7915 = vshrl.u32 %v7914, 7
        %v7916 = vsub.s32 %v7913, %v7915
        %v7917 = vrot.slane %v7909, %v7916
        %v7919 = vunpack.c.l.s4 1934713408
        %v7920 = vunpack.c.0.s8 %v7919
        %v7921 = vlaneseq
        %v7922 = vshrl.u32 %v7921, 7
        %v7923 = vsub.s32 %v7920, %v7922
        %v7924 = vrot.slane %v7910, %v7923
        %v7925 = vcombine.low %v7900, %v7908
        %v7926 = vcombine.high %v7900, %v7908
        %v7928 = vunpack.c.l.s4 1934713408
        %v7929 = vunpack.c.0.s8 %v7928
        %v7930 = vlaneseq
        %v7931 = vshrl.u32 %v7930, 7
        %v7932 = vsub.s32 %v7929, %v7931
        %v7933 = vrot.slane %v7925, %v7932
        %v7935 = vunpack.c.l.s4 1934713408
        %v7936 = vunpack.c.0.s8 %v7935
        %v7937 = vlaneseq
        %v7938 = vshrl.u32 %v7937, 7
        %v7939 = vsub.s32 %v7936, %v7938
        %v7940 = vrot.slane %v7926, %v7939
        %v7941 = vcombine.low %v7917, %v7933
        %v7942 = vcombine.high %v7917, %v7933
        %v7943 = vcombine.low %v7924, %v7940
        %v7944 = vcombine.high %v7924, %v7940
        %7949 = vrot.lane.b32.xlu0 %v7738, 32
        %v7950 = vpop.permute.xlu0 %7949
        %7951 = vrot.lane.b32.xlu0 %v7806, 32
        %v7952 = vpop.permute.xlu0 %7951
        %7953 = vrot.lane.b32.xlu0 %v7874, 32
        %v7954 = vpop.permute.xlu0 %7953
        %7955 = vrot.lane.b32.xlu0 %v7942, 32
        %v7956 = vpop.permute.xlu0 %7955
        %7965 = vrot.lane.b32.xlu0 %v7739, 64
        %v7966 = vpop.permute.xlu0 %7965
        %7967 = vrot.lane.b32.xlu0 %v7807, 64
        %v7968 = vpop.permute.xlu0 %7967
        %7969 = vrot.lane.b32.xlu0 %v7875, 64
        %v7970 = vpop.permute.xlu0 %7969
        %7971 = vrot.lane.b32.xlu0 %v7943, 64
        %v7972 = vpop.permute.xlu0 %7971
        %7981 = vrot.lane.b32.xlu0 %v7740, 96
        %v7982 = vpop.permute.xlu0 %7981
        %7983 = vrot.lane.b32.xlu0 %v7808, 96
        %v7984 = vpop.permute.xlu0 %7983
        %7985 = vrot.lane.b32.xlu0 %v7876, 96
        %v7986 = vpop.permute.xlu0 %7985
        %7987 = vrot.lane.b32.xlu0 %v7944, 96
        %v7988 = vpop.permute.xlu0 %7987
        %v7993 = vsel %vm4574, %v7737, %v7950
        %v7994 = vsel %vm4574, %v7805, %v7952
        %v7995 = vsel %vm4574, %v7873, %v7954
        %v7996 = vsel %vm4574, %v7941, %v7956
        %v7997 = vsel %vm5931, %v7993, %v7966
        %v7998 = vsel %vm5931, %v7994, %v7968
        %v7999 = vsel %vm5931, %v7995, %v7970
        %v8000 = vsel %vm5931, %v7996, %v7972
        %v8001 = vsel %vm5936, %v7997, %v7982
        %v8002 = vsel %vm5936, %v7998, %v7984
        %v8003 = vsel %vm5936, %v7999, %v7986
        %v8004 = vsel %vm5936, %v8000, %v7988
        %v8005 = vpack.c.bf16 %v8002, %v8001
        %v8006 = vpack.c.bf16 %v8004, %v8003
        %8007 = vst [vmem:[#allocation2 + $0x10] sm:$0xff] %v8005
        %8008 = vst [vmem:[#allocation2 + $0x18] sm:$0xff] %v8006
        %v8009 = vld [vmem:[#allocation2] sm:$0xff]
        %v8010 = vld [vmem:[#allocation2 + $0x8] sm:$0xff]
        %v8011 = vld [vmem:[#allocation2 + $0x10] sm:$0xff]
        %v8012 = vld [vmem:[#allocation2 + $0x18] sm:$0xff]
        %v8013 = vld [vmem:[#allocation11] sm:$0xf]
        %v8014 = vld [vmem:[#allocation11 + $0x4] sm:$0xf]
        %v8015 = vld [vmem:[#allocation11 + $0x8] sm:$0xf]
        %v8016 = vld [vmem:[#allocation11 + $0xc] sm:$0xf]
        %v8017 = vld [vmem:[#allocation11 + $0x10] sm:$0xf]
        %v8018 = vld [vmem:[#allocation11 + $0x14] sm:$0xf]
        %v8019 = vld [vmem:[#allocation11 + $0x18] sm:$0xf]
        %v8020 = vld [vmem:[#allocation11 + $0x1c] sm:$0xf]
        %v8021 = vld [vmem:[#allocation11 + $0x20] sm:$0xf]
        %v8022 = vld [vmem:[#allocation11 + $0x24] sm:$0xf]
        %v8023 = vld [vmem:[#allocation11 + $0x28] sm:$0xf]
        %v8024 = vld [vmem:[#allocation11 + $0x2c] sm:$0xf]
        %v8025 = vld [vmem:[#allocation11 + $0x30] sm:$0xf]
        %v8026 = vld [vmem:[#allocation11 + $0x34] sm:$0xf]
        %v8027 = vld [vmem:[#allocation11 + $0x38] sm:$0xf]
        %v8028 = vld [vmem:[#allocation11 + $0x3c] sm:$0xf]
        %v8029 = vld [vmem:[%s7] sm:$0x1]
        %v8031 = vlaneseq
        %v8032 = vshrl.u32 %v8031, 7
        %v8033 = vsub.s32 0, %v8032
        %v8034 = vrot.slane %v8029, %v8033
        %v8052 = vunpack.c.l.b16 %v8013
        %v8053 = vunpack.c.l.b16 %v8014
        %v8054 = vunpack.c.l.b16 %v8015
        %v8055 = vunpack.c.l.b16 %v8016
        %v8056 = vunpack.c.l.b16 %v8017
        %v8057 = vunpack.c.l.b16 %v8018
        %v8058 = vunpack.c.l.b16 %v8019
        %v8059 = vunpack.c.l.b16 %v8020
        %v8060 = vunpack.c.l.b16 %v8021
        %v8061 = vunpack.c.l.b16 %v8022
        %v8062 = vunpack.c.l.b16 %v8023
        %v8063 = vunpack.c.l.b16 %v8024
        %v8064 = vunpack.c.l.b16 %v8025
        %v8065 = vunpack.c.l.b16 %v8026
        %v8066 = vunpack.c.l.b16 %v8027
        %v8067 = vunpack.c.l.b16 %v8028
        %v8068 = vpack.c.b16 %v8053, %v8052
        %v8069 = vpack.c.b16 %v8055, %v8054
        %v8070 = vpack.c.b16 %v8057, %v8056
        %v8071 = vpack.c.b16 %v8059, %v8058
        %v8072 = vpack.c.b16 %v8061, %v8060
        %v8073 = vpack.c.b16 %v8063, %v8062
        %v8074 = vpack.c.b16 %v8065, %v8064
        %v8075 = vpack.c.b16 %v8067, %v8066
        %8084 = vmatprep.subr.bf16.mxu0 0
        %8085 = vmatpush1.bf16.msra.mxu0 %v8068
        %8086 = vmatprep.subr.bf16.mxu0 0
        %8087 = vmatpush1.bf16.msra.mxu0 %v8069
        %8088 = vmatprep.subr.bf16.mxu0 0
        %8089 = vmatpush1.bf16.msra.mxu0 %v8070
        %8090 = vmatprep.subr.bf16.mxu0 0
        %8091 = vmatpush1.bf16.msra.mxu0 %v8071
        %8092 = vmatprep.subr.bf16.mxu0 0
        %8093 = vmatpush1.bf16.msra.mxu0 %v8072
        %8094 = vmatprep.subr.bf16.mxu0 0
        %8095 = vmatpush1.bf16.msra.mxu0 %v8073
        %8096 = vmatprep.subr.bf16.mxu0 0
        %8097 = vmatpush1.bf16.msra.mxu0 %v8074
        %8098 = vmatprep.subr.bf16.mxu0 0
        %8099 = vmatpush1.bf16.msra.mxu0 %v8075
        %8100 = vmatprep.subr.bf16.mxu0 0
        %8101 = vmatpush1.bf16.msra.mxu0 0
        %8102 = vmatprep.subr.bf16.mxu0 0
        %8103 = vmatpush1.bf16.msra.mxu0 0
        %8104 = vmatprep.subr.bf16.mxu0 0
        %8105 = vmatpush1.bf16.msra.mxu0 0
        %8106 = vmatprep.subr.bf16.mxu0 0
        %8107 = vmatpush1.bf16.msra.mxu0 0
        %8108 = vmatprep.subr.bf16.mxu0 0
        %8109 = vmatpush1.bf16.msra.mxu0 0
        %8110 = vmatprep.subr.bf16.mxu0 0
        %8111 = vmatpush1.bf16.msra.mxu0 0
        %8112 = vmatprep.subr.bf16.mxu0 0
        %8113 = vmatpush1.bf16.msra.mxu0 0
        %8114 = vmatprep.subr.bf16.mxu0 0
        %8115 = vmatpush1.bf16.msra.mxu0 0
        %8116 = vmatprep.mubr.bf16.mxu0 0
        %8117 = vmatmul.mubr.bf16.gmra.mrb[0].mxu0 %v8009
        %v8118 = vpop.f32.mrb[0].mxu0
        %v8119 = vadd.f32 %v8034, %v8118
        %v8120 = vpop.f32.mrb[0].mxu0
        %v8121 = vpop.f32.mrb[0].mxu0
        %v8122 = vadd.f32 %v8034, %v8121
        %v8123 = vpop.f32.mrb[0].mxu0
        %8124 = vmatprep.mubr.bf16.mxu0 0
        %8125 = vmatmul.mubr.bf16.gmra.mrb[0].mxu0 %v8010
        %v8126 = vpop.f32.mrb[0].mxu0
        %v8127 = vadd.f32 %v8034, %v8126
        %v8128 = vpop.f32.mrb[0].mxu0
        %v8129 = vpop.f32.mrb[0].mxu0
        %v8130 = vadd.f32 %v8034, %v8129
        %v8131 = vpop.f32.mrb[0].mxu0
        %8132 = vmatprep.mubr.bf16.mxu0 0
        %8133 = vmatmul.mubr.bf16.gmra.mrb[0].mxu0 %v8011
        %v8134 = vpop.f32.mrb[0].mxu0
        %v8135 = vadd.f32 %v8034, %v8134
        %v8136 = vpop.f32.mrb[0].mxu0
        %v8137 = vpop.f32.mrb[0].mxu0
        %v8138 = vadd.f32 %v8034, %v8137
        %v8139 = vpop.f32.mrb[0].mxu0
        %8140 = vmatprep.mubr.bf16.mxu0 0
        %8141 = vmatmul.mubr.bf16.gmra.mrb[0].mxu0 %v8012
        %v8142 = vpop.f32.mrb[0].mxu0
        %v8143 = vadd.f32 %v8034, %v8142
        %v8144 = vpop.f32.mrb[0].mxu0
        %v8145 = vpop.f32.mrb[0].mxu0
        %v8146 = vadd.f32 %v8034, %v8145
        %v8147 = vpop.f32.mrb[0].mxu0
        %8148 = vdwg.mxu0
        %v8149 = vadd.f32 %v572, %v8119
        %v8150 = vadd.f32 %v573, %v8122
        %v8151 = vadd.f32 %v574, %v8127
        %v8152 = vadd.f32 %v575, %v8130
        %v8153 = vadd.f32 %v576, %v8135
        %v8154 = vadd.f32 %v577, %v8138
        %v8155 = vadd.f32 %v578, %v8143
        %v8156 = vadd.f32 %v579, %v8146
        %v8157 = vld [vmem:[%s8] sm:$0x1]
        %v8158 = vld [vmem:[%s9] sm:$0x1]
        %8159 = vadd.xlane.f32.xlu0 %v8149
        %v8160 = vpop.xlane.xlu0 %8159
        %8161 = vadd.xlane.f32.xlu0 %v8150
        %v8162 = vpop.xlane.xlu0 %8161
        %8163 = vadd.xlane.f32.xlu0 %v8151
        %v8164 = vpop.xlane.xlu0 %8163
        %8165 = vadd.xlane.f32.xlu0 %v8152
        %v8166 = vpop.xlane.xlu0 %8165
        %8167 = vadd.xlane.f32.xlu0 %v8153
        %v8168 = vpop.xlane.xlu0 %8167
        %8169 = vadd.xlane.f32.xlu0 %v8154
        %v8170 = vpop.xlane.xlu0 %8169
        %8171 = vadd.xlane.f32.xlu0 %v8155
        %v8172 = vpop.xlane.xlu0 %8171
        %8173 = vadd.xlane.f32.xlu0 %v8156
        %v8174 = vpop.xlane.xlu0 %8173
        %v8175 = vmul.f32 %v8160, %v598
        %v8176 = vmul.f32 %v8162, %v598
        %v8177 = vmul.f32 %v8164, %v598
        %v8178 = vmul.f32 %v8166, %v598
        %v8179 = vmul.f32 %v8168, %v598
        %v8180 = vmul.f32 %v8170, %v598
        %v8181 = vmul.f32 %v8172, %v598
        %v8182 = vmul.f32 %v8174, %v598
        %v8183 = vsub.f32 %v8149, %v8175
        %v8184 = vsub.f32 %v8150, %v8176
        %v8185 = vsub.f32 %v8151, %v8177
        %v8186 = vsub.f32 %v8152, %v8178
        %v8187 = vsub.f32 %v8153, %v8179
        %v8188 = vsub.f32 %v8154, %v8180
        %v8189 = vsub.f32 %v8155, %v8181
        %v8190 = vsub.f32 %v8156, %v8182
        %v8191 = vmul.f32 %v8183, %v8183
        %v8192 = vmul.f32 %v8184, %v8184
        %v8193 = vmul.f32 %v8185, %v8185
        %v8194 = vmul.f32 %v8186, %v8186
        %v8195 = vmul.f32 %v8187, %v8187
        %v8196 = vmul.f32 %v8188, %v8188
        %v8197 = vmul.f32 %v8189, %v8189
        %v8198 = vmul.f32 %v8190, %v8190
        %8199 = vadd.xlane.f32.xlu0 %v8191
        %v8200 = vpop.xlane.xlu0 %8199
        %8201 = vadd.xlane.f32.xlu0 %v8192
        %v8202 = vpop.xlane.xlu0 %8201
        %8203 = vadd.xlane.f32.xlu0 %v8193
        %v8204 = vpop.xlane.xlu0 %8203
        %8205 = vadd.xlane.f32.xlu0 %v8194
        %v8206 = vpop.xlane.xlu0 %8205
        %8207 = vadd.xlane.f32.xlu0 %v8195
        %v8208 = vpop.xlane.xlu0 %8207
        %8209 = vadd.xlane.f32.xlu0 %v8196
        %v8210 = vpop.xlane.xlu0 %8209
        %8211 = vadd.xlane.f32.xlu0 %v8197
        %v8212 = vpop.xlane.xlu0 %8211
        %8213 = vadd.xlane.f32.xlu0 %v8198
        %v8214 = vpop.xlane.xlu0 %8213
        %v8215 = vmul.f32 %v8200, %v598
        %v8216 = vmul.f32 %v8202, %v598
        %v8217 = vmul.f32 %v8204, %v598
        %v8218 = vmul.f32 %v8206, %v598
        %v8219 = vmul.f32 %v8208, %v598
        %v8220 = vmul.f32 %v8210, %v598
        %v8221 = vmul.f32 %v8212, %v598
        %v8222 = vmul.f32 %v8214, %v598
        %v8223 = vadd.f32 %v8215, 1e-05
        %v8224 = vadd.f32 %v8216, 1e-05
        %v8225 = vadd.f32 %v8217, 1e-05
        %v8226 = vadd.f32 %v8218, 1e-05
        %v8227 = vadd.f32 %v8219, 1e-05
        %v8228 = vadd.f32 %v8220, 1e-05
        %v8229 = vadd.f32 %v8221, 1e-05
        %v8230 = vadd.f32 %v8222, 1e-05
        %v8231 = vrsqrt.pop %v8223
        %v8232 = vrsqrt.pop %v8224
        %v8233 = vrsqrt.pop %v8225
        %v8234 = vrsqrt.pop %v8226
        %v8235 = vrsqrt.pop %v8227
        %v8236 = vrsqrt.pop %v8228
        %v8237 = vrsqrt.pop %v8229
        %v8238 = vrsqrt.pop %v8230
        %v8239 = vmul.f32 %v8183, %v8231
        %v8240 = vmul.f32 %v8184, %v8232
        %v8241 = vmul.f32 %v8185, %v8233
        %v8242 = vmul.f32 %v8186, %v8234
        %v8243 = vmul.f32 %v8187, %v8235
        %v8244 = vmul.f32 %v8188, %v8236
        %v8245 = vmul.f32 %v8189, %v8237
        %v8246 = vmul.f32 %v8190, %v8238
        %v8248 = vlaneseq
        %v8249 = vshrl.u32 %v8248, 7
        %v8250 = vsub.s32 0, %v8249
        %v8251 = vrot.slane %v8157, %v8250
        %v8253 = vmul.f32 %v8239, %v8251
        %v8254 = vmul.f32 %v8240, %v8251
        %v8255 = vmul.f32 %v8241, %v8251
        %v8256 = vmul.f32 %v8242, %v8251
        %v8257 = vmul.f32 %v8243, %v8251
        %v8258 = vmul.f32 %v8244, %v8251
        %v8259 = vmul.f32 %v8245, %v8251
        %v8260 = vmul.f32 %v8246, %v8251
        %v8262 = vlaneseq
        %v8263 = vshrl.u32 %v8262, 7
        %v8264 = vsub.s32 0, %v8263
        %v8265 = vrot.slane %v8158, %v8264
        %v8267 = vadd.f32 %v8253, %v8265
        %v8268 = vadd.f32 %v8254, %v8265
        %v8269 = vadd.f32 %v8255, %v8265
        %v8270 = vadd.f32 %v8256, %v8265
        %v8271 = vadd.f32 %v8257, %v8265
        %v8272 = vadd.f32 %v8258, %v8265
        %v8273 = vadd.f32 %v8259, %v8265
        %v8274 = vadd.f32 %v8260, %v8265
        %v8275 = vpack.c.bf16 %v8268, %v8267
        %v8276 = vpack.c.bf16 %v8270, %v8269
        %v8277 = vpack.c.bf16 %v8272, %v8271
        %v8278 = vpack.c.bf16 %v8274, %v8273
        %v8279 = vld [vmem:[#allocation12] sm:$0xff]
        %v8280 = vld [vmem:[#allocation12 + $0x8] sm:$0xff]
        %v8281 = vld [vmem:[#allocation12 + $0x10] sm:$0xff]
        %v8282 = vld [vmem:[#allocation12 + $0x18] sm:$0xff]
        %v8283 = vld [vmem:[#allocation12 + $0x20] sm:$0xff]
        %v8284 = vld [vmem:[#allocation12 + $0x28] sm:$0xff]
        %v8285 = vld [vmem:[#allocation12 + $0x30] sm:$0xff]
        %v8286 = vld [vmem:[#allocation12 + $0x38] sm:$0xff]
        %v8287 = vld [vmem:[#allocation12 + $0x40] sm:$0xff]
        %v8288 = vld [vmem:[#allocation12 + $0x48] sm:$0xff]
        %v8289 = vld [vmem:[#allocation12 + $0x50] sm:$0xff]
        %v8290 = vld [vmem:[#allocation12 + $0x58] sm:$0xff]
        %v8291 = vld [vmem:[#allocation12 + $0x60] sm:$0xff]
        %v8292 = vld [vmem:[#allocation12 + $0x68] sm:$0xff]
        %v8293 = vld [vmem:[#allocation12 + $0x70] sm:$0xff]
        %v8294 = vld [vmem:[#allocation12 + $0x78] sm:$0xff]
        %v8295 = vld [vmem:[#allocation12 + $0x80] sm:$0xff]
        %v8296 = vld [vmem:[#allocation12 + $0x88] sm:$0xff]
        %v8297 = vld [vmem:[#allocation12 + $0x90] sm:$0xff]
        %v8298 = vld [vmem:[#allocation12 + $0x98] sm:$0xff]
        %v8299 = vld [vmem:[#allocation12 + $0xa0] sm:$0xff]
        %v8300 = vld [vmem:[#allocation12 + $0xa8] sm:$0xff]
        %v8301 = vld [vmem:[#allocation12 + $0xb0] sm:$0xff]
        %v8302 = vld [vmem:[#allocation12 + $0xb8] sm:$0xff]
        %v8303 = vld [vmem:[#allocation12 + $0xc0] sm:$0xff]
        %v8304 = vld [vmem:[#allocation12 + $0xc8] sm:$0xff]
        %v8305 = vld [vmem:[#allocation12 + $0xd0] sm:$0xff]
        %v8306 = vld [vmem:[#allocation12 + $0xd8] sm:$0xff]
        %v8307 = vld [vmem:[#allocation12 + $0xe0] sm:$0xff]
        %v8308 = vld [vmem:[#allocation12 + $0xe8] sm:$0xff]
        %v8309 = vld [vmem:[#allocation12 + $0xf0] sm:$0xff]
        %v8310 = vld [vmem:[#allocation12 + $0xf8] sm:$0xff]
        %v8311 = vld [vmem:[%s11] sm:$0xf]
        %v8313 = vlaneseq
        %v8314 = vshrl.u32 %v8313, 7
        %v8315 = vsub.s32 0, %v8314
        %v8316 = vrot.slane %v8311, %v8315
        %v8317 = vlaneseq
        %v8318 = vshrl.u32 %v8317, 7
        %v8319 = vsub.s32 1, %v8318
        %v8320 = vrot.slane %v8311, %v8319
        %v8321 = vlaneseq
        %v8322 = vshrl.u32 %v8321, 7
        %v8323 = vsub.s32 2, %v8322
        %v8324 = vrot.slane %v8311, %v8323
        %v8325 = vlaneseq
        %v8326 = vshrl.u32 %v8325, 7
        %v8327 = vsub.s32 3, %v8326
        %v8328 = vrot.slane %v8311, %v8327
        %v8365 = vunpack.c.l.b16 %v8279
        %v8366 = vunpack.c.h.b16 %v8279
        %v8367 = vunpack.c.l.b16 %v8280
        %v8368 = vunpack.c.h.b16 %v8280
        %v8369 = vunpack.c.l.b16 %v8281
        %v8370 = vunpack.c.h.b16 %v8281
        %v8371 = vunpack.c.l.b16 %v8282
        %v8372 = vunpack.c.h.b16 %v8282
        %v8373 = vunpack.c.l.b16 %v8283
        %v8374 = vunpack.c.h.b16 %v8283
        %v8375 = vunpack.c.l.b16 %v8284
        %v8376 = vunpack.c.h.b16 %v8284
        %v8377 = vunpack.c.l.b16 %v8285
        %v8378 = vunpack.c.h.b16 %v8285
        %v8379 = vunpack.c.l.b16 %v8286
        %v8380 = vunpack.c.h.b16 %v8286
        %v8381 = vunpack.c.l.b16 %v8287
        %v8382 = vunpack.c.h.b16 %v8287
        %v8383 = vunpack.c.l.b16 %v8288
        %v8384 = vunpack.c.h.b16 %v8288
        %v8385 = vunpack.c.l.b16 %v8289
        %v8386 = vunpack.c.h.b16 %v8289
        %v8387 = vunpack.c.l.b16 %v8290
        %v8388 = vunpack.c.h.b16 %v8290
        %v8389 = vunpack.c.l.b16 %v8291
        %v8390 = vunpack.c.h.b16 %v8291
        %v8391 = vunpack.c.l.b16 %v8292
        %v8392 = vunpack.c.h.b16 %v8292
        %v8393 = vunpack.c.l.b16 %v8293
        %v8394 = vunpack.c.h.b16 %v8293
        %v8395 = vunpack.c.l.b16 %v8294
        %v8396 = vunpack.c.h.b16 %v8294
        %v8397 = vunpack.c.l.b16 %v8295
        %v8398 = vunpack.c.h.b16 %v8295
        %v8399 = vunpack.c.l.b16 %v8296
        %v8400 = vunpack.c.h.b16 %v8296
        %v8401 = vunpack.c.l.b16 %v8297
        %v8402 = vunpack.c.h.b16 %v8297
        %v8403 = vunpack.c.l.b16 %v8298
        %v8404 = vunpack.c.h.b16 %v8298
        %v8405 = vunpack.c.l.b16 %v8299
        %v8406 = vunpack.c.h.b16 %v8299
        %v8407 = vunpack.c.l.b16 %v8300
        %v8408 = vunpack.c.h.b16 %v8300
        %v8409 = vunpack.c.l.b16 %v8301
        %v8410 = vunpack.c.h.b16 %v8301
        %v8411 = vunpack.c.l.b16 %v8302
        %v8412 = vunpack.c.h.b16 %v8302
        %v8413 = vunpack.c.l.b16 %v8303
        %v8414 = vunpack.c.h.b16 %v8303
        %v8415 = vunpack.c.l.b16 %v8304
        %v8416 = vunpack.c.h.b16 %v8304
        %v8417 = vunpack.c.l.b16 %v8305
        %v8418 = vunpack.c.h.b16 %v8305
        %v8419 = vunpack.c.l.b16 %v8306
        %v8420 = vunpack.c.h.b16 %v8306
        %v8421 = vunpack.c.l.b16 %v8307
        %v8422 = vunpack.c.h.b16 %v8307
        %v8423 = vunpack.c.l.b16 %v8308
        %v8424 = vunpack.c.h.b16 %v8308
        %v8425 = vunpack.c.l.b16 %v8309
        %v8426 = vunpack.c.h.b16 %v8309
        %v8427 = vunpack.c.l.b16 %v8310
        %v8428 = vunpack.c.h.b16 %v8310
        %v8429 = vpack.c.b16 %v8369, %v8365
        %v8430 = vpack.c.b16 %v8370, %v8366
        %v8431 = vpack.c.b16 %v8371, %v8367
        %v8432 = vpack.c.b16 %v8372, %v8368
        %v8433 = vpack.c.b16 %v8377, %v8373
        %v8434 = vpack.c.b16 %v8378, %v8374
        %v8435 = vpack.c.b16 %v8379, %v8375
        %v8436 = vpack.c.b16 %v8380, %v8376
        %v8437 = vpack.c.b16 %v8385, %v8381
        %v8438 = vpack.c.b16 %v8386, %v8382
        %v8439 = vpack.c.b16 %v8387, %v8383
        %v8440 = vpack.c.b16 %v8388, %v8384
        %v8441 = vpack.c.b16 %v8393, %v8389
        %v8442 = vpack.c.b16 %v8394, %v8390
        %v8443 = vpack.c.b16 %v8395, %v8391
        %v8444 = vpack.c.b16 %v8396, %v8392
        %v8445 = vpack.c.b16 %v8401, %v8397
        %v8446 = vpack.c.b16 %v8402, %v8398
        %v8447 = vpack.c.b16 %v8403, %v8399
        %v8448 = vpack.c.b16 %v8404, %v8400
        %v8449 = vpack.c.b16 %v8409, %v8405
        %v8450 = vpack.c.b16 %v8410, %v8406
        %v8451 = vpack.c.b16 %v8411, %v8407
        %v8452 = vpack.c.b16 %v8412, %v8408
        %v8453 = vpack.c.b16 %v8417, %v8413
        %v8454 = vpack.c.b16 %v8418, %v8414
        %v8455 = vpack.c.b16 %v8419, %v8415
        %v8456 = vpack.c.b16 %v8420, %v8416
        %v8457 = vpack.c.b16 %v8425, %v8421
        %v8458 = vpack.c.b16 %v8426, %v8422
        %v8459 = vpack.c.b16 %v8427, %v8423
        %v8460 = vpack.c.b16 %v8428, %v8424
        %8493 = vmatprep.subr.bf16.mxu0 %v8430
        %8494 = vmatpush1.bf16.msra.mxu0 %v8429
        %8495 = vmatprep.subr.bf16.mxu0 %v8434
        %8496 = vmatpush1.bf16.msra.mxu0 %v8433
        %8497 = vmatprep.subr.bf16.mxu0 %v8438
        %8498 = vmatpush1.bf16.msra.mxu0 %v8437
        %8499 = vmatprep.subr.bf16.mxu0 %v8442
        %8500 = vmatpush1.bf16.msra.mxu0 %v8441
        %8501 = vmatprep.subr.bf16.mxu0 %v8446
        %8502 = vmatpush1.bf16.msra.mxu0 %v8445
        %8503 = vmatprep.subr.bf16.mxu0 %v8450
        %8504 = vmatpush1.bf16.msra.mxu0 %v8449
        %8505 = vmatprep.subr.bf16.mxu0 %v8454
        %8506 = vmatpush1.bf16.msra.mxu0 %v8453
        %8507 = vmatprep.subr.bf16.mxu0 %v8458
        %8508 = vmatpush1.bf16.msra.mxu0 %v8457
        %8509 = vmatprep.subr.bf16.mxu0 0
        %8510 = vmatpush1.bf16.msra.mxu0 0
        %8511 = vmatprep.subr.bf16.mxu0 0
        %8512 = vmatpush1.bf16.msra.mxu0 0
        %8513 = vmatprep.subr.bf16.mxu0 0
        %8514 = vmatpush1.bf16.msra.mxu0 0
        %8515 = vmatprep.subr.bf16.mxu0 0
        %8516 = vmatpush1.bf16.msra.mxu0 0
        %8517 = vmatprep.subr.bf16.mxu0 0
        %8518 = vmatpush1.bf16.msra.mxu0 0
        %8519 = vmatprep.subr.bf16.mxu0 0
        %8520 = vmatpush1.bf16.msra.mxu0 0
        %8521 = vmatprep.subr.bf16.mxu0 0
        %8522 = vmatpush1.bf16.msra.mxu0 0
        %8523 = vmatprep.subr.bf16.mxu0 0
        %8524 = vmatpush1.bf16.msra.mxu0 0
        %8525 = vmatprep.mubr.bf16.mxu0 0
        %8526 = vmatmul.mubr.bf16.gmra.mrb[0].mxu0 %v8275
        %v8527 = vpop.f32.mrb[0].mxu0
        %v8528 = vadd.f32 %v8316, %v8527
        %v8529 = vpop.f32.mrb[0].mxu0
        %v8530 = vadd.f32 %v8320, %v8529
        %v8531 = vpop.f32.mrb[0].mxu0
        %v8532 = vadd.f32 %v8316, %v8531
        %v8533 = vpop.f32.mrb[0].mxu0
        %v8534 = vadd.f32 %v8320, %v8533
        %8535 = vmatprep.mubr.bf16.mxu0 0
        %8536 = vmatmul.mubr.bf16.gmra.mrb[0].mxu0 %v8276
        %v8537 = vpop.f32.mrb[0].mxu0
        %v8538 = vadd.f32 %v8316, %v8537
        %v8539 = vpop.f32.mrb[0].mxu0
        %v8540 = vadd.f32 %v8320, %v8539
        %v8541 = vpop.f32.mrb[0].mxu0
        %v8542 = vadd.f32 %v8316, %v8541
        %v8543 = vpop.f32.mrb[0].mxu0
        %v8544 = vadd.f32 %v8320, %v8543
        %8545 = vmatprep.mubr.bf16.mxu0 0
        %8546 = vmatmul.mubr.bf16.gmra.mrb[0].mxu0 %v8277
        %v8547 = vpop.f32.mrb[0].mxu0
        %v8548 = vadd.f32 %v8316, %v8547
        %v8549 = vpop.f32.mrb[0].mxu0
        %v8550 = vadd.f32 %v8320, %v8549
        %v8551 = vpop.f32.mrb[0].mxu0
        %v8552 = vadd.f32 %v8316, %v8551
        %v8553 = vpop.f32.mrb[0].mxu0
        %v8554 = vadd.f32 %v8320, %v8553
        %8555 = vmatprep.mubr.bf16.mxu0 0
        %8556 = vmatmul.mubr.bf16.gmra.mrb[0].mxu0 %v8278
        %v8557 = vpop.f32.mrb[0].mxu0
        %v8558 = vadd.f32 %v8316, %v8557
        %v8559 = vpop.f32.mrb[0].mxu0
        %v8560 = vadd.f32 %v8320, %v8559
        %v8561 = vpop.f32.mrb[0].mxu0
        %v8562 = vadd.f32 %v8316, %v8561
        %v8563 = vpop.f32.mrb[0].mxu0
        %v8564 = vadd.f32 %v8320, %v8563
        %8565 = vdwg.mxu0
        %8566 = vmatprep.subr.bf16.mxu0 %v8432
        %8567 = vmatpush1.bf16.msra.mxu0 %v8431
        %8568 = vmatprep.subr.bf16.mxu0 %v8436
        %8569 = vmatpush1.bf16.msra.mxu0 %v8435
        %8570 = vmatprep.subr.bf16.mxu0 %v8440
        %8571 = vmatpush1.bf16.msra.mxu0 %v8439
        %8572 = vmatprep.subr.bf16.mxu0 %v8444
        %8573 = vmatpush1.bf16.msra.mxu0 %v8443
        %8574 = vmatprep.subr.bf16.mxu0 %v8448
        %8575 = vmatpush1.bf16.msra.mxu0 %v8447
        %8576 = vmatprep.subr.bf16.mxu0 %v8452
        %8577 = vmatpush1.bf16.msra.mxu0 %v8451
        %8578 = vmatprep.subr.bf16.mxu0 %v8456
        %8579 = vmatpush1.bf16.msra.mxu0 %v8455
        %8580 = vmatprep.subr.bf16.mxu0 %v8460
        %8581 = vmatpush1.bf16.msra.mxu0 %v8459
        %8582 = vmatprep.subr.bf16.mxu0 0
        %8583 = vmatpush1.bf16.msra.mxu0 0
        %8584 = vmatprep.subr.bf16.mxu0 0
        %8585 = vmatpush1.bf16.msra.mxu0 0
        %8586 = vmatprep.subr.bf16.mxu0 0
        %8587 = vmatpush1.bf16.msra.mxu0 0
        %8588 = vmatprep.subr.bf16.mxu0 0
        %8589 = vmatpush1.bf16.msra.mxu0 0
        %8590 = vmatprep.subr.bf16.mxu0 0
        %8591 = vmatpush1.bf16.msra.mxu0 0
        %8592 = vmatprep.subr.bf16.mxu0 0
        %8593 = vmatpush1.bf16.msra.mxu0 0
        %8594 = vmatprep.subr.bf16.mxu0 0
        %8595 = vmatpush1.bf16.msra.mxu0 0
        %8596 = vmatprep.subr.bf16.mxu0 0
        %8597 = vmatpush1.bf16.msra.mxu0 0
        %8598 = vmatprep.mubr.bf16.mxu0 0
        %8599 = vmatmul.mubr.bf16.gmra.mrb[0].mxu0 %v8275
        %v8600 = vpop.f32.mrb[0].mxu0
        %v8601 = vadd.f32 %v8324, %v8600
        %v8602 = vpop.f32.mrb[0].mxu0
        %v8603 = vadd.f32 %v8328, %v8602
        %v8604 = vpop.f32.mrb[0].mxu0
        %v8605 = vadd.f32 %v8324, %v8604
        %v8606 = vpop.f32.mrb[0].mxu0
        %v8607 = vadd.f32 %v8328, %v8606
        %8608 = vmatprep.mubr.bf16.mxu0 0
        %8609 = vmatmul.mubr.bf16.gmra.mrb[0].mxu0 %v8276
        %v8610 = vpop.f32.mrb[0].mxu0
        %v8611 = vadd.f32 %v8324, %v8610
        %v8612 = vpop.f32.mrb[0].mxu0
        %v8613 = vadd.f32 %v8328, %v8612
        %v8614 = vpop.f32.mrb[0].mxu0
        %v8615 = vadd.f32 %v8324, %v8614
        %v8616 = vpop.f32.mrb[0].mxu0
        %v8617 = vadd.f32 %v8328, %v8616
        %8618 = vmatprep.mubr.bf16.mxu0 0
        %8619 = vmatmul.mubr.bf16.gmra.mrb[0].mxu0 %v8277
        %v8620 = vpop.f32.mrb[0].mxu0
        %v8621 = vadd.f32 %v8324, %v8620
        %v8622 = vpop.f32.mrb[0].mxu0
        %v8623 = vadd.f32 %v8328, %v8622
        %v8624 = vpop.f32.mrb[0].mxu0
        %v8625 = vadd.f32 %v8324, %v8624
        %v8626 = vpop.f32.mrb[0].mxu0
        %v8627 = vadd.f32 %v8328, %v8626
        %8628 = vmatprep.mubr.bf16.mxu0 0
        %8629 = vmatmul.mubr.bf16.gmra.mrb[0].mxu0 %v8278
        %v8630 = vpop.f32.mrb[0].mxu0
        %v8631 = vadd.f32 %v8324, %v8630
        %v8632 = vpop.f32.mrb[0].mxu0
        %v8633 = vadd.f32 %v8328, %v8632
        %v8634 = vpop.f32.mrb[0].mxu0
        %v8635 = vadd.f32 %v8324, %v8634
        %v8636 = vpop.f32.mrb[0].mxu0
        %v8637 = vadd.f32 %v8328, %v8636
        %8638 = vdwg.mxu0
        %v8639 = vmul.f32 %v8528, 0.5
        %v8640 = vmul.f32 %v8530, 0.5
        %v8641 = vmul.f32 %v8601, 0.5
        %v8642 = vmul.f32 %v8603, 0.5
        %v8643 = vmul.f32 %v8532, 0.5
        %v8644 = vmul.f32 %v8534, 0.5
        %v8645 = vmul.f32 %v8605, 0.5
        %v8646 = vmul.f32 %v8607, 0.5
        %v8647 = vmul.f32 %v8538, 0.5
        %v8648 = vmul.f32 %v8540, 0.5
        %v8649 = vmul.f32 %v8611, 0.5
        %v8650 = vmul.f32 %v8613, 0.5
        %v8651 = vmul.f32 %v8542, 0.5
        %v8652 = vmul.f32 %v8544, 0.5
        %v8653 = vmul.f32 %v8615, 0.5
        %v8654 = vmul.f32 %v8617, 0.5
        %v8655 = vmul.f32 %v8548, 0.5
        %v8656 = vmul.f32 %v8550, 0.5
        %v8657 = vmul.f32 %v8621, 0.5
        %v8658 = vmul.f32 %v8623, 0.5
        %v8659 = vmul.f32 %v8552, 0.5
        %v8660 = vmul.f32 %v8554, 0.5
        %v8661 = vmul.f32 %v8625, 0.5
        %v8662 = vmul.f32 %v8627, 0.5
        %v8663 = vmul.f32 %v8558, 0.5
        %v8664 = vmul.f32 %v8560, 0.5
        %v8665 = vmul.f32 %v8631, 0.5
        %v8666 = vmul.f32 %v8633, 0.5
        %v8667 = vmul.f32 %v8562, 0.5
        %v8668 = vmul.f32 %v8564, 0.5
        %v8669 = vmul.f32 %v8635, 0.5
        %v8670 = vmul.f32 %v8637, 0.5
        %v8671 = vmul.f32 %v8528, 0.044715
        %v8672 = vmul.f32 %v8530, 0.044715
        %v8673 = vmul.f32 %v8601, 0.044715
        %v8674 = vmul.f32 %v8603, 0.044715
        %v8675 = vmul.f32 %v8532, 0.044715
        %v8676 = vmul.f32 %v8534, 0.044715
        %v8677 = vmul.f32 %v8605, 0.044715
        %v8678 = vmul.f32 %v8607, 0.044715
        %v8679 = vmul.f32 %v8538, 0.044715
        %v8680 = vmul.f32 %v8540, 0.044715
        %v8681 = vmul.f32 %v8611, 0.044715
        %v8682 = vmul.f32 %v8613, 0.044715
        %v8683 = vmul.f32 %v8542, 0.044715
        %v8684 = vmul.f32 %v8544, 0.044715
        %v8685 = vmul.f32 %v8615, 0.044715
        %v8686 = vmul.f32 %v8617, 0.044715
        %v8687 = vmul.f32 %v8548, 0.044715
        %v8688 = vmul.f32 %v8550, 0.044715
        %v8689 = vmul.f32 %v8621, 0.044715
        %v8690 = vmul.f32 %v8623, 0.044715
        %v8691 = vmul.f32 %v8552, 0.044715
        %v8692 = vmul.f32 %v8554, 0.044715
        %v8693 = vmul.f32 %v8625, 0.044715
        %v8694 = vmul.f32 %v8627, 0.044715
        %v8695 = vmul.f32 %v8558, 0.044715
        %v8696 = vmul.f32 %v8560, 0.044715
        %v8697 = vmul.f32 %v8631, 0.044715
        %v8698 = vmul.f32 %v8633, 0.044715
        %v8699 = vmul.f32 %v8562, 0.044715
        %v8700 = vmul.f32 %v8564, 0.044715
        %v8701 = vmul.f32 %v8635, 0.044715
        %v8702 = vmul.f32 %v8637, 0.044715
        %v8703 = vmul.f32 %v8671, %v8528
        %v8704 = vmul.f32 %v8672, %v8530
        %v8705 = vmul.f32 %v8673, %v8601
        %v8706 = vmul.f32 %v8674, %v8603
        %v8707 = vmul.f32 %v8675, %v8532
        %v8708 = vmul.f32 %v8676, %v8534
        %v8709 = vmul.f32 %v8677, %v8605
        %v8710 = vmul.f32 %v8678, %v8607
        %v8711 = vmul.f32 %v8679, %v8538
        %v8712 = vmul.f32 %v8680, %v8540
        %v8713 = vmul.f32 %v8681, %v8611
        %v8714 = vmul.f32 %v8682, %v8613
        %v8715 = vmul.f32 %v8683, %v8542
        %v8716 = vmul.f32 %v8684, %v8544
        %v8717 = vmul.f32 %v8685, %v8615
        %v8718 = vmul.f32 %v8686, %v8617
        %v8719 = vmul.f32 %v8687, %v8548
        %v8720 = vmul.f32 %v8688, %v8550
        %v8721 = vmul.f32 %v8689, %v8621
        %v8722 = vmul.f32 %v8690, %v8623
        %v8723 = vmul.f32 %v8691, %v8552
        %v8724 = vmul.f32 %v8692, %v8554
        %v8725 = vmul.f32 %v8693, %v8625
        %v8726 = vmul.f32 %v8694, %v8627
        %v8727 = vmul.f32 %v8695, %v8558
        %v8728 = vmul.f32 %v8696, %v8560
        %v8729 = vmul.f32 %v8697, %v8631
        %v8730 = vmul.f32 %v8698, %v8633
        %v8731 = vmul.f32 %v8699, %v8562
        %v8732 = vmul.f32 %v8700, %v8564
        %v8733 = vmul.f32 %v8701, %v8635
        %v8734 = vmul.f32 %v8702, %v8637
        %v8735 = vmul.f32 %v8703, %v8528
        %v8736 = vmul.f32 %v8704, %v8530
        %v8737 = vmul.f32 %v8705, %v8601
        %v8738 = vmul.f32 %v8706, %v8603
        %v8739 = vmul.f32 %v8707, %v8532
        %v8740 = vmul.f32 %v8708, %v8534
        %v8741 = vmul.f32 %v8709, %v8605
        %v8742 = vmul.f32 %v8710, %v8607
        %v8743 = vmul.f32 %v8711, %v8538
        %v8744 = vmul.f32 %v8712, %v8540
        %v8745 = vmul.f32 %v8713, %v8611
        %v8746 = vmul.f32 %v8714, %v8613
        %v8747 = vmul.f32 %v8715, %v8542
        %v8748 = vmul.f32 %v8716, %v8544
        %v8749 = vmul.f32 %v8717, %v8615
        %v8750 = vmul.f32 %v8718, %v8617
        %v8751 = vmul.f32 %v8719, %v8548
        %v8752 = vmul.f32 %v8720, %v8550
        %v8753 = vmul.f32 %v8721, %v8621
        %v8754 = vmul.f32 %v8722, %v8623
        %v8755 = vmul.f32 %v8723, %v8552
        %v8756 = vmul.f32 %v8724, %v8554
        %v8757 = vmul.f32 %v8725, %v8625
        %v8758 = vmul.f32 %v8726, %v8627
        %v8759 = vmul.f32 %v8727, %v8558
        %v8760 = vmul.f32 %v8728, %v8560
        %v8761 = vmul.f32 %v8729, %v8631
        %v8762 = vmul.f32 %v8730, %v8633
        %v8763 = vmul.f32 %v8731, %v8562
        %v8764 = vmul.f32 %v8732, %v8564
        %v8765 = vmul.f32 %v8733, %v8635
        %v8766 = vmul.f32 %v8734, %v8637
        %v8767 = vadd.f32 %v8528, %v8735
        %v8768 = vadd.f32 %v8530, %v8736
        %v8769 = vadd.f32 %v8601, %v8737
        %v8770 = vadd.f32 %v8603, %v8738
        %v8771 = vadd.f32 %v8532, %v8739
        %v8772 = vadd.f32 %v8534, %v8740
        %v8773 = vadd.f32 %v8605, %v8741
        %v8774 = vadd.f32 %v8607, %v8742
        %v8775 = vadd.f32 %v8538, %v8743
        %v8776 = vadd.f32 %v8540, %v8744
        %v8777 = vadd.f32 %v8611, %v8745
        %v8778 = vadd.f32 %v8613, %v8746
        %v8779 = vadd.f32 %v8542, %v8747
        %v8780 = vadd.f32 %v8544, %v8748
        %v8781 = vadd.f32 %v8615, %v8749
        %v8782 = vadd.f32 %v8617, %v8750
        %v8783 = vadd.f32 %v8548, %v8751
        %v8784 = vadd.f32 %v8550, %v8752
        %v8785 = vadd.f32 %v8621, %v8753
        %v8786 = vadd.f32 %v8623, %v8754
        %v8787 = vadd.f32 %v8552, %v8755
        %v8788 = vadd.f32 %v8554, %v8756
        %v8789 = vadd.f32 %v8625, %v8757
        %v8790 = vadd.f32 %v8627, %v8758
        %v8791 = vadd.f32 %v8558, %v8759
        %v8792 = vadd.f32 %v8560, %v8760
        %v8793 = vadd.f32 %v8631, %v8761
        %v8794 = vadd.f32 %v8633, %v8762
        %v8795 = vadd.f32 %v8562, %v8763
        %v8796 = vadd.f32 %v8564, %v8764
        %v8797 = vadd.f32 %v8635, %v8765
        %v8798 = vadd.f32 %v8637, %v8766
        %v8799 = vmul.f32 %v8767, 0.7978846
        %v8800 = vmul.f32 %v8768, 0.7978846
        %v8801 = vmul.f32 %v8769, 0.7978846
        %v8802 = vmul.f32 %v8770, 0.7978846
        %v8803 = vmul.f32 %v8771, 0.7978846
        %v8804 = vmul.f32 %v8772, 0.7978846
        %v8805 = vmul.f32 %v8773, 0.7978846
        %v8806 = vmul.f32 %v8774, 0.7978846
        %v8807 = vmul.f32 %v8775, 0.7978846
        %v8808 = vmul.f32 %v8776, 0.7978846
        %v8809 = vmul.f32 %v8777, 0.7978846
        %v8810 = vmul.f32 %v8778, 0.7978846
        %v8811 = vmul.f32 %v8779, 0.7978846
        %v8812 = vmul.f32 %v8780, 0.7978846
        %v8813 = vmul.f32 %v8781, 0.7978846
        %v8814 = vmul.f32 %v8782, 0.7978846
        %v8815 = vmul.f32 %v8783, 0.7978846
        %v8816 = vmul.f32 %v8784, 0.7978846
        %v8817 = vmul.f32 %v8785, 0.7978846
        %v8818 = vmul.f32 %v8786, 0.7978846
        %v8819 = vmul.f32 %v8787, 0.7978846
        %v8820 = vmul.f32 %v8788, 0.7978846
        %v8821 = vmul.f32 %v8789, 0.7978846
        %v8822 = vmul.f32 %v8790, 0.7978846
        %v8823 = vmul.f32 %v8791, 0.7978846
        %v8824 = vmul.f32 %v8792, 0.7978846
        %v8825 = vmul.f32 %v8793, 0.7978846
        %v8826 = vmul.f32 %v8794, 0.7978846
        %v8827 = vmul.f32 %v8795, 0.7978846
        %v8828 = vmul.f32 %v8796, 0.7978846
        %v8829 = vmul.f32 %v8797, 0.7978846
        %v8830 = vmul.f32 %v8798, 0.7978846
        %v8831 = vtanh.pop %v8799
        %v8832 = vtanh.pop %v8800
        %v8833 = vtanh.pop %v8801
        %v8834 = vtanh.pop %v8802
        %v8835 = vtanh.pop %v8803
        %v8836 = vtanh.pop %v8804
        %v8837 = vtanh.pop %v8805
        %v8838 = vtanh.pop %v8806
        %v8839 = vtanh.pop %v8807
        %v8840 = vtanh.pop %v8808
        %v8841 = vtanh.pop %v8809
        %v8842 = vtanh.pop %v8810
        %v8843 = vtanh.pop %v8811
        %v8844 = vtanh.pop %v8812
        %v8845 = vtanh.pop %v8813
        %v8846 = vtanh.pop %v8814
        %v8847 = vtanh.pop %v8815
        %v8848 = vtanh.pop %v8816
        %v8849 = vtanh.pop %v8817
        %v8850 = vtanh.pop %v8818
        %v8851 = vtanh.pop %v8819
        %v8852 = vtanh.pop %v8820
        %v8853 = vtanh.pop %v8821
        %v8854 = vtanh.pop %v8822
        %v8855 = vtanh.pop %v8823
        %v8856 = vtanh.pop %v8824
        %v8857 = vtanh.pop %v8825
        %v8858 = vtanh.pop %v8826
        %v8859 = vtanh.pop %v8827
        %v8860 = vtanh.pop %v8828
        %v8861 = vtanh.pop %v8829
        %v8862 = vtanh.pop %v8830
        %v8863 = vadd.f32 %v8831, 1.0
        %v8864 = vadd.f32 %v8832, 1.0
        %v8865 = vadd.f32 %v8833, 1.0
        %v8866 = vadd.f32 %v8834, 1.0
        %v8867 = vadd.f32 %v8835, 1.0
        %v8868 = vadd.f32 %v8836, 1.0
        %v8869 = vadd.f32 %v8837, 1.0
        %v8870 = vadd.f32 %v8838, 1.0
        %v8871 = vadd.f32 %v8839, 1.0
        %v8872 = vadd.f32 %v8840, 1.0
        %v8873 = vadd.f32 %v8841, 1.0
        %v8874 = vadd.f32 %v8842, 1.0
        %v8875 = vadd.f32 %v8843, 1.0
        %v8876 = vadd.f32 %v8844, 1.0
        %v8877 = vadd.f32 %v8845, 1.0
        %v8878 = vadd.f32 %v8846, 1.0
        %v8879 = vadd.f32 %v8847, 1.0
        %v8880 = vadd.f32 %v8848, 1.0
        %v8881 = vadd.f32 %v8849, 1.0
        %v8882 = vadd.f32 %v8850, 1.0
        %v8883 = vadd.f32 %v8851, 1.0
        %v8884 = vadd.f32 %v8852, 1.0
        %v8885 = vadd.f32 %v8853, 1.0
        %v8886 = vadd.f32 %v8854, 1.0
        %v8887 = vadd.f32 %v8855, 1.0
        %v8888 = vadd.f32 %v8856, 1.0
        %v8889 = vadd.f32 %v8857, 1.0
        %v8890 = vadd.f32 %v8858, 1.0
        %v8891 = vadd.f32 %v8859, 1.0
        %v8892 = vadd.f32 %v8860, 1.0
        %v8893 = vadd.f32 %v8861, 1.0
        %v8894 = vadd.f32 %v8862, 1.0
        %v8895 = vmul.f32 %v8639, %v8863
        %v8896 = vmul.f32 %v8640, %v8864
        %v8897 = vmul.f32 %v8641, %v8865
        %v8898 = vmul.f32 %v8642, %v8866
        %v8899 = vmul.f32 %v8643, %v8867
        %v8900 = vmul.f32 %v8644, %v8868
        %v8901 = vmul.f32 %v8645, %v8869
        %v8902 = vmul.f32 %v8646, %v8870
        %v8903 = vmul.f32 %v8647, %v8871
        %v8904 = vmul.f32 %v8648, %v8872
        %v8905 = vmul.f32 %v8649, %v8873
        %v8906 = vmul.f32 %v8650, %v8874
        %v8907 = vmul.f32 %v8651, %v8875
        %v8908 = vmul.f32 %v8652, %v8876
        %v8909 = vmul.f32 %v8653, %v8877
        %v8910 = vmul.f32 %v8654, %v8878
        %v8911 = vmul.f32 %v8655, %v8879
        %v8912 = vmul.f32 %v8656, %v8880
        %v8913 = vmul.f32 %v8657, %v8881
        %v8914 = vmul.f32 %v8658, %v8882
        %v8915 = vmul.f32 %v8659, %v8883
        %v8916 = vmul.f32 %v8660, %v8884
        %v8917 = vmul.f32 %v8661, %v8885
        %v8918 = vmul.f32 %v8662, %v8886
        %v8919 = vmul.f32 %v8663, %v8887
        %v8920 = vmul.f32 %v8664, %v8888
        %v8921 = vmul.f32 %v8665, %v8889
        %v8922 = vmul.f32 %v8666, %v8890
        %v8923 = vmul.f32 %v8667, %v8891
        %v8924 = vmul.f32 %v8668, %v8892
        %v8925 = vmul.f32 %v8669, %v8893
        %v8926 = vmul.f32 %v8670, %v8894
        %v8927 = vpack.c.bf16 %v8899, %v8895
        %v8928 = vpack.c.bf16 %v8900, %v8896
        %v8929 = vpack.c.bf16 %v8901, %v8897
        %v8930 = vpack.c.bf16 %v8902, %v8898
        %v8931 = vpack.c.bf16 %v8907, %v8903
        %v8932 = vpack.c.bf16 %v8908, %v8904
        %v8933 = vpack.c.bf16 %v8909, %v8905
        %v8934 = vpack.c.bf16 %v8910, %v8906
        %v8935 = vpack.c.bf16 %v8915, %v8911
        %v8936 = vpack.c.bf16 %v8916, %v8912
        %v8937 = vpack.c.bf16 %v8917, %v8913
        %v8938 = vpack.c.bf16 %v8918, %v8914
        %v8939 = vpack.c.bf16 %v8923, %v8919
        %v8940 = vpack.c.bf16 %v8924, %v8920
        %v8941 = vpack.c.bf16 %v8925, %v8921
        %v8942 = vpack.c.bf16 %v8926, %v8922
        %v8943 = vld [vmem:[#allocation14] sm:$0xf]
        %v8944 = vld [vmem:[#allocation14 + $0x4] sm:$0xf]
        %v8945 = vld [vmem:[#allocation14 + $0x8] sm:$0xf]
        %v8946 = vld [vmem:[#allocation14 + $0xc] sm:$0xf]
        %v8947 = vld [vmem:[#allocation14 + $0x10] sm:$0xf]
        %v8948 = vld [vmem:[#allocation14 + $0x14] sm:$0xf]
        %v8949 = vld [vmem:[#allocation14 + $0x18] sm:$0xf]
        %v8950 = vld [vmem:[#allocation14 + $0x1c] sm:$0xf]
        %v8951 = vld [vmem:[#allocation14 + $0x20] sm:$0xf]
        %v8952 = vld [vmem:[#allocation14 + $0x24] sm:$0xf]
        %v8953 = vld [vmem:[#allocation14 + $0x28] sm:$0xf]
        %v8954 = vld [vmem:[#allocation14 + $0x2c] sm:$0xf]
        %v8955 = vld [vmem:[#allocation14 + $0x30] sm:$0xf]
        %v8956 = vld [vmem:[#allocation14 + $0x34] sm:$0xf]
        %v8957 = vld [vmem:[#allocation14 + $0x38] sm:$0xf]
        %v8958 = vld [vmem:[#allocation14 + $0x3c] sm:$0xf]
        %v8959 = vld [vmem:[#allocation14 + $0x40] sm:$0xf]
        %v8960 = vld [vmem:[#allocation14 + $0x44] sm:$0xf]
        %v8961 = vld [vmem:[#allocation14 + $0x48] sm:$0xf]
        %v8962 = vld [vmem:[#allocation14 + $0x4c] sm:$0xf]
        %v8963 = vld [vmem:[#allocation14 + $0x50] sm:$0xf]
        %v8964 = vld [vmem:[#allocation14 + $0x54] sm:$0xf]
        %v8965 = vld [vmem:[#allocation14 + $0x58] sm:$0xf]
        %v8966 = vld [vmem:[#allocation14 + $0x5c] sm:$0xf]
        %v8967 = vld [vmem:[#allocation14 + $0x60] sm:$0xf]
        %v8968 = vld [vmem:[#allocation14 + $0x64] sm:$0xf]
        %v8969 = vld [vmem:[#allocation14 + $0x68] sm:$0xf]
        %v8970 = vld [vmem:[#allocation14 + $0x6c] sm:$0xf]
        %v8971 = vld [vmem:[#allocation14 + $0x70] sm:$0xf]
        %v8972 = vld [vmem:[#allocation14 + $0x74] sm:$0xf]
        %v8973 = vld [vmem:[#allocation14 + $0x78] sm:$0xf]
        %v8974 = vld [vmem:[#allocation14 + $0x7c] sm:$0xf]
        %v8975 = vld [vmem:[#allocation14 + $0x80] sm:$0xf]
        %v8976 = vld [vmem:[#allocation14 + $0x84] sm:$0xf]
        %v8977 = vld [vmem:[#allocation14 + $0x88] sm:$0xf]
        %v8978 = vld [vmem:[#allocation14 + $0x8c] sm:$0xf]
        %v8979 = vld [vmem:[#allocation14 + $0x90] sm:$0xf]
        %v8980 = vld [vmem:[#allocation14 + $0x94] sm:$0xf]
        %v8981 = vld [vmem:[#allocation14 + $0x98] sm:$0xf]
        %v8982 = vld [vmem:[#allocation14 + $0x9c] sm:$0xf]
        %v8983 = vld [vmem:[#allocation14 + $0xa0] sm:$0xf]
        %v8984 = vld [vmem:[#allocation14 + $0xa4] sm:$0xf]
        %v8985 = vld [vmem:[#allocation14 + $0xa8] sm:$0xf]
        %v8986 = vld [vmem:[#allocation14 + $0xac] sm:$0xf]
        %v8987 = vld [vmem:[#allocation14 + $0xb0] sm:$0xf]
        %v8988 = vld [vmem:[#allocation14 + $0xb4] sm:$0xf]
        %v8989 = vld [vmem:[#allocation14 + $0xb8] sm:$0xf]
        %v8990 = vld [vmem:[#allocation14 + $0xbc] sm:$0xf]
        %v8991 = vld [vmem:[#allocation14 + $0xc0] sm:$0xf]
        %v8992 = vld [vmem:[#allocation14 + $0xc4] sm:$0xf]
        %v8993 = vld [vmem:[#allocation14 + $0xc8] sm:$0xf]
        %v8994 = vld [vmem:[#allocation14 + $0xcc] sm:$0xf]
        %v8995 = vld [vmem:[#allocation14 + $0xd0] sm:$0xf]
        %v8996 = vld [vmem:[#allocation14 + $0xd4] sm:$0xf]
        %v8997 = vld [vmem:[#allocation14 + $0xd8] sm:$0xf]
        %v8998 = vld [vmem:[#allocation14 + $0xdc] sm:$0xf]
        %v8999 = vld [vmem:[#allocation14 + $0xe0] sm:$0xf]
        %v9000 = vld [vmem:[#allocation14 + $0xe4] sm:$0xf]
        %v9001 = vld [vmem:[#allocation14 + $0xe8] sm:$0xf]
        %v9002 = vld [vmem:[#allocation14 + $0xec] sm:$0xf]
        %v9003 = vld [vmem:[#allocation14 + $0xf0] sm:$0xf]
        %v9004 = vld [vmem:[#allocation14 + $0xf4] sm:$0xf]
        %v9005 = vld [vmem:[#allocation14 + $0xf8] sm:$0xf]
        %v9006 = vld [vmem:[#allocation14 + $0xfc] sm:$0xf]
        %v9007 = vld [vmem:[%s13] sm:$0x1]
        %v9009 = vlaneseq
        %v9010 = vshrl.u32 %v9009, 7
        %v9011 = vsub.s32 0, %v9010
        %v9012 = vrot.slane %v9007, %v9011
        %v9078 = vunpack.c.l.b16 %v8943
        %v9079 = vunpack.c.l.b16 %v8944
        %v9080 = vunpack.c.l.b16 %v8945
        %v9081 = vunpack.c.l.b16 %v8946
        %v9082 = vunpack.c.l.b16 %v8947
        %v9083 = vunpack.c.l.b16 %v8948
        %v9084 = vunpack.c.l.b16 %v8949
        %v9085 = vunpack.c.l.b16 %v8950
        %v9086 = vunpack.c.l.b16 %v8951
        %v9087 = vunpack.c.l.b16 %v8952
        %v9088 = vunpack.c.l.b16 %v8953
        %v9089 = vunpack.c.l.b16 %v8954
        %v9090 = vunpack.c.l.b16 %v8955
        %v9091 = vunpack.c.l.b16 %v8956
        %v9092 = vunpack.c.l.b16 %v8957
        %v9093 = vunpack.c.l.b16 %v8958
        %v9094 = vunpack.c.l.b16 %v8959
        %v9095 = vunpack.c.l.b16 %v8960
        %v9096 = vunpack.c.l.b16 %v8961
        %v9097 = vunpack.c.l.b16 %v8962
        %v9098 = vunpack.c.l.b16 %v8963
        %v9099 = vunpack.c.l.b16 %v8964
        %v9100 = vunpack.c.l.b16 %v8965
        %v9101 = vunpack.c.l.b16 %v8966
        %v9102 = vunpack.c.l.b16 %v8967
        %v9103 = vunpack.c.l.b16 %v8968
        %v9104 = vunpack.c.l.b16 %v8969
        %v9105 = vunpack.c.l.b16 %v8970
        %v9106 = vunpack.c.l.b16 %v8971
        %v9107 = vunpack.c.l.b16 %v8972
        %v9108 = vunpack.c.l.b16 %v8973
        %v9109 = vunpack.c.l.b16 %v8974
        %v9110 = vunpack.c.l.b16 %v8975
        %v9111 = vunpack.c.l.b16 %v8976
        %v9112 = vunpack.c.l.b16 %v8977
        %v9113 = vunpack.c.l.b16 %v8978
        %v9114 = vunpack.c.l.b16 %v8979
        %v9115 = vunpack.c.l.b16 %v8980
        %v9116 = vunpack.c.l.b16 %v8981
        %v9117 = vunpack.c.l.b16 %v8982
        %v9118 = vunpack.c.l.b16 %v8983
        %v9119 = vunpack.c.l.b16 %v8984
        %v9120 = vunpack.c.l.b16 %v8985
        %v9121 = vunpack.c.l.b16 %v8986
        %v9122 = vunpack.c.l.b16 %v8987
        %v9123 = vunpack.c.l.b16 %v8988
        %v9124 = vunpack.c.l.b16 %v8989
        %v9125 = vunpack.c.l.b16 %v8990
        %v9126 = vunpack.c.l.b16 %v8991
        %v9127 = vunpack.c.l.b16 %v8992
        %v9128 = vunpack.c.l.b16 %v8993
        %v9129 = vunpack.c.l.b16 %v8994
        %v9130 = vunpack.c.l.b16 %v8995
        %v9131 = vunpack.c.l.b16 %v8996
        %v9132 = vunpack.c.l.b16 %v8997
        %v9133 = vunpack.c.l.b16 %v8998
        %v9134 = vunpack.c.l.b16 %v8999
        %v9135 = vunpack.c.l.b16 %v9000
        %v9136 = vunpack.c.l.b16 %v9001
        %v9137 = vunpack.c.l.b16 %v9002
        %v9138 = vunpack.c.l.b16 %v9003
        %v9139 = vunpack.c.l.b16 %v9004
        %v9140 = vunpack.c.l.b16 %v9005
        %v9141 = vunpack.c.l.b16 %v9006
        %v9142 = vpack.c.b16 %v9079, %v9078
        %v9143 = vpack.c.b16 %v9081, %v9080
        %v9144 = vpack.c.b16 %v9083, %v9082
        %v9145 = vpack.c.b16 %v9085, %v9084
        %v9146 = vpack.c.b16 %v9087, %v9086
        %v9147 = vpack.c.b16 %v9089, %v9088
        %v9148 = vpack.c.b16 %v9091, %v9090
        %v9149 = vpack.c.b16 %v9093, %v9092
        %v9150 = vpack.c.b16 %v9095, %v9094
        %v9151 = vpack.c.b16 %v9097, %v9096
        %v9152 = vpack.c.b16 %v9099, %v9098
        %v9153 = vpack.c.b16 %v9101, %v9100
        %v9154 = vpack.c.b16 %v9103, %v9102
        %v9155 = vpack.c.b16 %v9105, %v9104
        %v9156 = vpack.c.b16 %v9107, %v9106
        %v9157 = vpack.c.b16 %v9109, %v9108
        %v9158 = vpack.c.b16 %v9111, %v9110
        %v9159 = vpack.c.b16 %v9113, %v9112
        %v9160 = vpack.c.b16 %v9115, %v9114
        %v9161 = vpack.c.b16 %v9117, %v9116
        %v9162 = vpack.c.b16 %v9119, %v9118
        %v9163 = vpack.c.b16 %v9121, %v9120
        %v9164 = vpack.c.b16 %v9123, %v9122
        %v9165 = vpack.c.b16 %v9125, %v9124
        %v9166 = vpack.c.b16 %v9127, %v9126
        %v9167 = vpack.c.b16 %v9129, %v9128
        %v9168 = vpack.c.b16 %v9131, %v9130
        %v9169 = vpack.c.b16 %v9133, %v9132
        %v9170 = vpack.c.b16 %v9135, %v9134
        %v9171 = vpack.c.b16 %v9137, %v9136
        %v9172 = vpack.c.b16 %v9139, %v9138
        %v9173 = vpack.c.b16 %v9141, %v9140
        %9206 = vmatprep.subr.bf16.mxu0 0
        %9207 = vmatpush1.bf16.msra.mxu0 %v9142
        %9208 = vmatprep.subr.bf16.mxu0 0
        %9209 = vmatpush1.bf16.msra.mxu0 %v9143
        %9210 = vmatprep.subr.bf16.mxu0 0
        %9211 = vmatpush1.bf16.msra.mxu0 %v9144
        %9212 = vmatprep.subr.bf16.mxu0 0
        %9213 = vmatpush1.bf16.msra.mxu0 %v9145
        %9214 = vmatprep.subr.bf16.mxu0 0
        %9215 = vmatpush1.bf16.msra.mxu0 %v9146
        %9216 = vmatprep.subr.bf16.mxu0 0
        %9217 = vmatpush1.bf16.msra.mxu0 %v9147
        %9218 = vmatprep.subr.bf16.mxu0 0
        %9219 = vmatpush1.bf16.msra.mxu0 %v9148
        %9220 = vmatprep.subr.bf16.mxu0 0
        %9221 = vmatpush1.bf16.msra.mxu0 %v9149
        %9222 = vmatprep.subr.bf16.mxu0 0
        %9223 = vmatpush1.bf16.msra.mxu0 %v9150
        %9224 = vmatprep.subr.bf16.mxu0 0
        %9225 = vmatpush1.bf16.msra.mxu0 %v9151
        %9226 = vmatprep.subr.bf16.mxu0 0
        %9227 = vmatpush1.bf16.msra.mxu0 %v9152
        %9228 = vmatprep.subr.bf16.mxu0 0
        %9229 = vmatpush1.bf16.msra.mxu0 %v9153
        %9230 = vmatprep.subr.bf16.mxu0 0
        %9231 = vmatpush1.bf16.msra.mxu0 %v9154
        %9232 = vmatprep.subr.bf16.mxu0 0
        %9233 = vmatpush1.bf16.msra.mxu0 %v9155
        %9234 = vmatprep.subr.bf16.mxu0 0
        %9235 = vmatpush1.bf16.msra.mxu0 %v9156
        %9236 = vmatprep.subr.bf16.mxu0 0
        %9237 = vmatpush1.bf16.msra.mxu0 %v9157
        %9238 = vmatprep.mubr.bf16.mxu0 %v8928
        %9239 = vmatmul.mubr.bf16.gmra.mrb[0].mxu0 %v8927
        %v9240 = vpop.f32.mrb[0].mxu0
        %v9241 = vadd.f32 %v9012, %v9240
        %v9242 = vpop.f32.mrb[0].mxu0
        %v9243 = vpop.f32.mrb[0].mxu0
        %v9244 = vadd.f32 %v9012, %v9243
        %v9245 = vpop.f32.mrb[0].mxu0
        %9246 = vmatprep.mubr.bf16.mxu0 %v8932
        %9247 = vmatmul.mubr.bf16.gmra.mrb[0].mxu0 %v8931
        %v9248 = vpop.f32.mrb[0].mxu0
        %v9249 = vadd.f32 %v9012, %v9248
        %v9250 = vpop.f32.mrb[0].mxu0
        %v9251 = vpop.f32.mrb[0].mxu0
        %v9252 = vadd.f32 %v9012, %v9251
        %v9253 = vpop.f32.mrb[0].mxu0
        %9254 = vmatprep.mubr.bf16.mxu0 %v8936
        %9255 = vmatmul.mubr.bf16.gmra.mrb[0].mxu0 %v8935
        %v9256 = vpop.f32.mrb[0].mxu0
        %v9257 = vadd.f32 %v9012, %v9256
        %v9258 = vpop.f32.mrb[0].mxu0
        %v9259 = vpop.f32.mrb[0].mxu0
        %v9260 = vadd.f32 %v9012, %v9259
        %v9261 = vpop.f32.mrb[0].mxu0
        %9262 = vmatprep.mubr.bf16.mxu0 %v8940
        %9263 = vmatmul.mubr.bf16.gmra.mrb[0].mxu0 %v8939
        %v9264 = vpop.f32.mrb[0].mxu0
        %v9265 = vadd.f32 %v9012, %v9264
        %v9266 = vpop.f32.mrb[0].mxu0
        %v9267 = vpop.f32.mrb[0].mxu0
        %v9268 = vadd.f32 %v9012, %v9267
        %v9269 = vpop.f32.mrb[0].mxu0
        %9270 = vdwg.mxu0
        %9271 = vmatprep.subr.bf16.mxu0 0
        %9272 = vmatpush1.bf16.msra.mxu0 %v9158
        %9273 = vmatprep.subr.bf16.mxu0 0
        %9274 = vmatpush1.bf16.msra.mxu0 %v9159
        %9275 = vmatprep.subr.bf16.mxu0 0
        %9276 = vmatpush1.bf16.msra.mxu0 %v9160
        %9277 = vmatprep.subr.bf16.mxu0 0
        %9278 = vmatpush1.bf16.msra.mxu0 %v9161
        %9279 = vmatprep.subr.bf16.mxu0 0
        %9280 = vmatpush1.bf16.msra.mxu0 %v9162
        %9281 = vmatprep.subr.bf16.mxu0 0
        %9282 = vmatpush1.bf16.msra.mxu0 %v9163
        %9283 = vmatprep.subr.bf16.mxu0 0
        %9284 = vmatpush1.bf16.msra.mxu0 %v9164
        %9285 = vmatprep.subr.bf16.mxu0 0
        %9286 = vmatpush1.bf16.msra.mxu0 %v9165
        %9287 = vmatprep.subr.bf16.mxu0 0
        %9288 = vmatpush1.bf16.msra.mxu0 %v9166
        %9289 = vmatprep.subr.bf16.mxu0 0
        %9290 = vmatpush1.bf16.msra.mxu0 %v9167
        %9291 = vmatprep.subr.bf16.mxu0 0
        %9292 = vmatpush1.bf16.msra.mxu0 %v9168
        %9293 = vmatprep.subr.bf16.mxu0 0
        %9294 = vmatpush1.bf16.msra.mxu0 %v9169
        %9295 = vmatprep.subr.bf16.mxu0 0
        %9296 = vmatpush1.bf16.msra.mxu0 %v9170
        %9297 = vmatprep.subr.bf16.mxu0 0
        %9298 = vmatpush1.bf16.msra.mxu0 %v9171
        %9299 = vmatprep.subr.bf16.mxu0 0
        %9300 = vmatpush1.bf16.msra.mxu0 %v9172
        %9301 = vmatprep.subr.bf16.mxu0 0
        %9302 = vmatpush1.bf16.msra.mxu0 %v9173
        %9303 = vmatprep.mubr.bf16.mxu0 %v8930
        %9304 = vmatmul.mubr.bf16.gmra.mrb[0].mxu0 %v8929
        %v9305 = vpop.f32.mrb[0].mxu0
        %v9306 = vadd.f32 %v9241, %v9305
        %v9307 = vpop.f32.mrb[0].mxu0
        %v9308 = vpop.f32.mrb[0].mxu0
        %v9309 = vadd.f32 %v9244, %v9308
        %v9310 = vpop.f32.mrb[0].mxu0
        %9311 = vmatprep.mubr.bf16.mxu0 %v8934
        %9312 = vmatmul.mubr.bf16.gmra.mrb[0].mxu0 %v8933
        %v9313 = vpop.f32.mrb[0].mxu0
        %v9314 = vadd.f32 %v9249, %v9313
        %v9315 = vpop.f32.mrb[0].mxu0
        %v9316 = vpop.f32.mrb[0].mxu0
        %v9317 = vadd.f32 %v9252, %v9316
        %v9318 = vpop.f32.mrb[0].mxu0
        %9319 = vmatprep.mubr.bf16.mxu0 %v8938
        %9320 = vmatmul.mubr.bf16.gmra.mrb[0].mxu0 %v8937
        %v9321 = vpop.f32.mrb[0].mxu0
        %v9322 = vadd.f32 %v9257, %v9321
        %v9323 = vpop.f32.mrb[0].mxu0
        %v9324 = vpop.f32.mrb[0].mxu0
        %v9325 = vadd.f32 %v9260, %v9324
        %v9326 = vpop.f32.mrb[0].mxu0
        %9327 = vmatprep.mubr.bf16.mxu0 %v8942
        %9328 = vmatmul.mubr.bf16.gmra.mrb[0].mxu0 %v8941
        %v9329 = vpop.f32.mrb[0].mxu0
        %v9330 = vadd.f32 %v9265, %v9329
        %v9331 = vpop.f32.mrb[0].mxu0
        %v9332 = vpop.f32.mrb[0].mxu0
        %v9333 = vadd.f32 %v9268, %v9332
        %v9334 = vpop.f32.mrb[0].mxu0
        %9335 = vdwg.mxu0
        %v9336 = vadd.f32 %v8149, %v9306
        %v9337 = vadd.f32 %v8150, %v9309
        %v9338 = vadd.f32 %v8151, %v9314
        %v9339 = vadd.f32 %v8152, %v9317
        %v9340 = vadd.f32 %v8153, %v9322
        %v9341 = vadd.f32 %v8154, %v9325
        %v9342 = vadd.f32 %v8155, %v9330
        %v9343 = vadd.f32 %v8156, %v9333
        %9344 = vst [vmem:[%s570] sm:$0xff] %v9336
        %9345 = vst [vmem:[%s570 + $0x8] sm:$0xff] %v9337
        %9346 = vst [vmem:[%s570 + $0x10] sm:$0xff] %v9338
        %9347 = vst [vmem:[%s570 + $0x18] sm:$0xff] %v9339
        %9348 = vst [vmem:[%s570 + $0x20] sm:$0xff] %v9340
        %9349 = vst [vmem:[%s570 + $0x28] sm:$0xff] %v9341
        %9350 = vst [vmem:[%s570 + $0x30] sm:$0xff] %v9342
        %9351 = vst [vmem:[%s570 + $0x38] sm:$0xff] %v9343
        %s9352 = sand.u32 %s341, 1
        %s9353 = scalar_lea.sflag [#allocation5], %s9352
        %s9354 = sand.u32 %s341, 1
        %s9355 = smul.addr %s9354, 64
        %s9356 = scalar_lea.vmem [#allocation15], %s9355
        // Predicated region
        $region105: #{tpu_custom_call.1} parent=75 // pred_check
          %p9357 = pneg %p351
        $region106: #{tpu_custom_call.1} parent=75 // pred_check_branch
          %9359 = sbr.rel (%p9357) target = $region108
        $region107: #{tpu_custom_call.1} parent=75 // pred_region
          %s9361 = ssub.s32 1024, 1024
          %9362 = vsyncadd %s9353, %s9361
          %s9363 = smul.addr %s34, 8
          %s9364 = smul.addr %s9363, 128
          %s9365 = scalar_lea.hbm %s14, %s9364
          %s9366 = sshll.u32 %s9356, 4
          %s9367 = int_to_ptr.vmem [resolvable:$true] %s9366
          %9372 = dma.vmem_to_hbm [thread:$0]  %s9367, 1024, %s9365, %s9353, 128, 128, 8
        $region108: #{tpu_custom_call.1} parent=75 // pred_fallthru
          _
      $region76: #{tpu_custom_call.1} parent=5 // pred_fallthru
        _
      %p9373 = scmp.le.s32.totalorder 2, %s29
      // Predicated region
      $region109: #{tpu_custom_call.1} parent=5 // pred_check
        %p9374 = pneg %p9373
      $region110: #{tpu_custom_call.1} parent=5 // pred_check_branch
        %9376 = sbr.rel (%p9374) target = $region112
      $region111: #{tpu_custom_call.1} parent=5 // pred_region
        %s9377 = ssub.s32 %s29, 2
        // Predicated region
        $region113: #{tpu_custom_call.1} parent=111 // pred_check
          %p9378 = pneg %p357
        $region114: #{tpu_custom_call.1} parent=111 // pred_check_branch
          %9380 = sbr.rel (%p9378) target = $region116
        $region115: #{tpu_custom_call.1} parent=111 // pred_region
          %s9381 = sand.u32 %s342, 1
          %s9382 = scalar_lea.sflag [#allocation5], %s9381
          %s9383 = sand.u32 %s342, 1
          %s9384 = smul.addr %s9383, 64
          %s9385 = scalar_lea.vmem [#allocation15], %s9384
          %9386 = dma.done %s9382, 1024
        $region116: #{tpu_custom_call.1} parent=111 // pred_fallthru
          _
      $region112: #{tpu_custom_call.1} parent=5 // pred_fallthru
        _
    $region6: #{tpu_custom_call.1} parent=1 // loop_footer
      %s33 = sadd.s32 1, %s29
    $region7: #{tpu_custom_call.1} parent=1 // loop_footer_branch
      %28 = sbr.rel target = $region3
    $region8: #{tpu_custom_call.1} parent=1 // loop_exit
      _
    %9387 = vsyncpa [#allocation4], 1
    %s9388 = scalar_lea.sflag [#allocation4], 1
    %9389 = vsyncpa %s9388, 1
    %9390 = vsyncpa [#allocation7], 1
    %9391 = vsyncpa [#allocation10], 1
    %9392 = vsyncpa [#allocation13], 1
    %9393 = vsyncpa [#allocation5], 1
    %s9394 = scalar_lea.sflag [#allocation5], 1
    %9395 = vsyncpa %s9394, 1

</llo_original>
